<compile_context>
chip_gen: v6e
topology: v6e:2x2x1
jax: 0.10.0
libtpu: 0.0.40
codegen_flags: <defaults>
</compile_context>

<pallas_src>
import math
from functools import partial

import jax
import jax.numpy as jnp
from jax.experimental import pallas as pl

# ----- hyperparameters consistent with Encoder.__init__ (small test sizes) -----
VOCAB_SIZE = 50
D_MODEL = 32
N_LAYERS = 2
HEADS = 4
D_FF = 2048          # FeedForward default hidden size in the reference code
FF_CHUNK = 512       # D_FF chunk size (review: keep live hidden in vregs)
MAX_SEQ_LEN = 200
EPS = 1e-6


# --------------------------------------------------------------------------
# In-kernel helpers
# --------------------------------------------------------------------------
def _layer_norm(x, alpha, bias):
    # PyTorch Norm: alpha * (x - mean) / (x.std(-1, unbiased=True) + eps) + bias
    mean = jnp.mean(x, axis=-1, keepdims=True)
    centered = x - mean
    var = jnp.sum(centered * centered, axis=-1, keepdims=True) / (x.shape[-1] - 1)
    std = jnp.sqrt(var)
    inv = pl.reciprocal(std + EPS, approx=True)      # EUP, off the VALU path
    return alpha * centered * inv + bias


def _softmax_last(x):
    m = jnp.max(x, axis=-1, keepdims=True)
    e = jnp.exp(x - m)
    s = jnp.sum(e, axis=-1, keepdims=True)
    return e * pl.reciprocal(s, approx=True)


# --------------------------------------------------------------------------
# Single fused kernel: PE add + N encoder layers + final Norm
# --------------------------------------------------------------------------
def _encoder_kernel(x_ref, pe_ref, maskb_ref,
                    a1_ref, b1_ref,
                    wqkv_ref, bqkv_ref, wo_ref, bo_ref,
                    a2_ref, b2_ref,
                    w1_ref, fb1_ref, w2_ref, fb2_ref,
                    af_ref, bf_ref,
                    o_ref, *, heads, n_layers, ff_chunk):
    B, S, D = x_ref.shape
    N = B * S
    dk = D // heads
    inv_sqrt_dk = 1.0 / math.sqrt(dk)
    d_ff = w1_ref.shape[2]
    n_chunks = d_ff // ff_chunk

    # Hoisted once: additive attention-mask bias (0 keep / -1e9 masked), [B,1,S].
    mask_bias = maskb_ref[...]

    # Hoisted once: per-head lane masks [1, D] for concat-free head merging.
    lane = jax.lax.broadcasted_iota(jnp.int32, (1, D), 1)
    head_lane_masks = [
        ((lane >= h * dk) & (lane < (h + 1) * dk)).astype(jnp.float32)
        for h in range(heads)
    ]

    # PositionalEncoder (eval): x * sqrt(d_model) + pe   (dropout = identity)
    x = x_ref[...] * math.sqrt(D) + pe_ref[...]          # [B, S, D]
    x = x.reshape(N, D)                                  # flatten batch for matmuls

    for li in range(n_layers):                           # static unroll over layers
        # ---------- self-attention sublayer: x = x + attn(norm_1(x)) ----------
        x2 = _layer_norm(x, a1_ref[li], b1_ref[li]).astype(jnp.bfloat16)
        # Fused QKV projection: one bf16 [D,3D] matmul, lane-dense [N,3D] result.
        qkv = jnp.dot(x2, wqkv_ref[li],
                      preferred_element_type=jnp.float32) + bqkv_ref[li]
        q3 = qkv[:, 0:D].reshape(B, S, D)
        k3 = qkv[:, D:2 * D].reshape(B, S, D)
        v3 = qkv[:, 2 * D:3 * D].reshape(B, S, D)

        # Per-head scores/context (single-batch-dim einsums only); heads are
        # merged via lane masks so the output projection is ONE full Wo matmul.
        ctx = jnp.zeros((B, S, D), jnp.float32)
        for h in range(heads):
            sl = slice(h * dk, (h + 1) * dk)
            scores = jnp.einsum('bqd,bkd->bqk', q3[:, :, sl], k3[:, :, sl],
                                preferred_element_type=jnp.float32) * inv_sqrt_dk
            probs = _softmax_last(scores + mask_bias)     # attn dropout = identity
            ctx = ctx + jnp.einsum('bqk,bkd->bqd', probs, v3,
                                   preferred_element_type=jnp.float32) * head_lane_masks[h]
        attn = jnp.dot(ctx.reshape(N, D).astype(jnp.bfloat16), wo_ref[li],
                       preferred_element_type=jnp.float32) + bo_ref[li]
        x = x + attn                                      # dropout_1 = identity (eval)

        # ---------- feed-forward sublayer: x = x + ff(norm_2(x)) ----------
        # Chunked over D_FF so the live hidden is [N, ff_chunk] instead of
        # [N, D_FF] f32 (+ bf16 copy), avoiding vreg spills.
        x2 = _layer_norm(x, a2_ref[li], b2_ref[li]).astype(jnp.bfloat16)
        ff = jnp.zeros((N, D), jnp.float32)
        for c in range(n_chunks):                         # static unroll, static ref slices
            cs = c * ff_chunk
            h1 = jnp.dot(x2, w1_ref[li, :, cs:cs + ff_chunk],
                         preferred_element_type=jnp.float32)
            h1 = h1 + fb1_ref[li, :, cs:cs + ff_chunk]
            h1 = jnp.maximum(h1, 0.0).astype(jnp.bfloat16)    # relu; ff dropout = identity
            ff = ff + jnp.dot(h1, w2_ref[li, cs:cs + ff_chunk, :],
                              preferred_element_type=jnp.float32)
        x = x + ff + fb2_ref[li]                          # dropout_2 = identity (eval)

    # final Norm + single store of the whole [N, D] slab
    out = _layer_norm(x, af_ref[...], bf_ref[...])
    o_ref[...] = out


# --------------------------------------------------------------------------
# Parameter setup (deterministic, synthetic) and glue
# --------------------------------------------------------------------------
def build_pe_table(max_len, d_model):
    # Reproduces the reference loop:
    #   pe[pos, i]   = sin(pos / 10000**((2*i)/d_model))        (i even)
    #   pe[pos, i+1] = cos(pos / 10000**((2*(i+1))/d_model))
    pos = jnp.arange(max_len, dtype=jnp.float32)[:, None]
    i = jnp.arange(0, d_model, 2, dtype=jnp.float32)[None, :]
    sin_part = jnp.sin(pos / jnp.power(10000.0, (2.0 * i) / d_model))
    cos_part = jnp.cos(pos / jnp.power(10000.0, (2.0 * (i + 1.0)) / d_model))
    pe = jnp.zeros((max_len, d_model), jnp.float32)
    pe = pe.at[:, 0::2].set(sin_part)
    pe = pe.at[:, 1::2].set(cos_part)
    return pe


def init_params(key, vocab, d_model, n_layers, d_ff):
    keys = jax.random.split(key, 1 + n_layers)
    embed = 0.02 * jax.random.normal(keys[0], (vocab, d_model), jnp.float32)

    def w(k, shape, scale=0.05):
        return scale * jax.random.normal(k, shape, jnp.float32)

    layers = []
    for li in range(n_layers):
        lk = jax.random.split(keys[1 + li], 6)
        p = dict(
            alpha1=jnp.ones((1, d_model), jnp.float32),
            bias1=jnp.zeros((1, d_model), jnp.float32),
            wq=w(lk[0], (d_model, d_model)), bq=jnp.zeros((1, d_model), jnp.float32),
            wk=w(lk[1], (d_model, d_model)), bk=jnp.zeros((1, d_model), jnp.float32),
            wv=w(lk[2], (d_model, d_model)), bv=jnp.zeros((1, d_model), jnp.float32),
            wo=w(lk[3], (d_model, d_model)), bo=jnp.zeros((1, d_model), jnp.float32),
            alpha2=jnp.ones((1, d_model), jnp.float32),
            bias2=jnp.zeros((1, d_model), jnp.float32),
            w1=w(lk[4], (d_model, d_ff)), fb1=jnp.zeros((1, d_ff), jnp.float32),
            w2=w(lk[5], (d_ff, d_model)), fb2=jnp.zeros((1, d_model), jnp.float32),
        )
        layers.append(p)
    norm = dict(alpha=jnp.ones((1, d_model), jnp.float32),
                bias=jnp.zeros((1, d_model), jnp.float32))
    return embed, layers, norm


def prepare_encoder(embed, layer_params, norm_params, seq_len):
    """One-time prep OUTSIDE the per-call path: stack per-layer params on a
    leading layer axis, fuse Wq/Wk/Wv into a single [L, D, 3D] bf16 weight,
    bf16-cast all matmul weights, and pre-build the PE slice."""
    d_model = embed.shape[1]
    stack = lambda name: jnp.stack([p[name] for p in layer_params])
    wqkv = jnp.concatenate([stack("wq"), stack("wk"), stack("wv")],
                           axis=-1).astype(jnp.bfloat16)          # [L, D, 3D]
    bqkv = jnp.concatenate([stack("bq"), stack("bk"), stack("bv")],
                           axis=-1)                                # [L, 1, 3D]
    return dict(
        embed=embed,
        pe=build_pe_table(MAX_SEQ_LEN, d_model)[:seq_len],         # [S, D]
        a1=stack("alpha1"), b1=stack("bias1"),
        wqkv=wqkv, bqkv=bqkv,
        wo=stack("wo").astype(jnp.bfloat16), bo=stack("bo"),       # full [L, D, D]
        a2=stack("alpha2"), b2=stack("bias2"),
        w1=stack("w1").astype(jnp.bfloat16), fb1=stack("fb1"),
        w2=stack("w2").astype(jnp.bfloat16), fb2=stack("fb2"),
        af=norm_params["alpha"], bf=norm_params["bias"],
    )


@partial(jax.jit, static_argnames=("heads", "n_layers"))
def encoder_forward(src, mask_b1s, prepared, *, heads, n_layers):
    B, S = src.shape
    D = prepared["embed"].shape[1]
    # Embedder: data-dependent gather stays in plain JAX (glue).
    x = jnp.take(prepared["embed"], src, axis=0).astype(jnp.float32)   # [B, S, D]
    # Additive attention-mask bias built once in the wrapper (hoisted out of the kernel).
    mask_bias = jnp.where(mask_b1s == 0, -1e9, 0.0).astype(jnp.float32)  # [B, 1, S]

    # Single fused invocation, no grid: every operand is a whole-array VMEM
    # block (total ~1 MiB), so there is one launch and one HBM round-trip for x.
    out = pl.pallas_call(
        partial(_encoder_kernel, heads=heads, n_layers=n_layers, ff_chunk=FF_CHUNK),
        out_shape=jax.ShapeDtypeStruct((B * S, D), jnp.float32),
    )(x, prepared["pe"], mask_bias,
      prepared["a1"], prepared["b1"],
      prepared["wqkv"], prepared["bqkv"], prepared["wo"], prepared["bo"],
      prepared["a2"], prepared["b2"],
      prepared["w1"], prepared["fb1"], prepared["w2"], prepared["fb2"],
      prepared["af"], prepared["bf"])
    return out.reshape(B, S, D)                     # pure-metadata reshape in the wrapper


if __name__ == "__main__":
    key = jax.random.PRNGKey(0)
    k_src, k_param = jax.random.split(key)

    B, S = 2, 8
    src = jax.random.randint(k_src, (B, S), 0, VOCAB_SIZE, dtype=jnp.int32)
    mask = jnp.ones((B, 1, S), jnp.float32)          # src padding mask
    mask = mask.at[1, 0, S - 1].set(0.0)             # pad out one key position

    embed_table, layer_params, norm_params = init_params(
        k_param, VOCAB_SIZE, D_MODEL, N_LAYERS, D_FF)
    prepared = prepare_encoder(embed_table, layer_params, norm_params, S)

    out = encoder_forward(src, mask, prepared, heads=HEADS, n_layers=N_LAYERS)
    out = jax.block_until_ready(out)

    assert out.shape == (B, S, D_MODEL)
    assert bool(jnp.all(jnp.isfinite(out)))
    print("KERNEL_OK")
</pallas_src>

<mosaic_0001>
module attributes {stable_mosaic.version = 11 : i64} {
  func.func @_encoder_kernel(%arg0: memref<2x8x32xf32, #tpu.memory_space<vmem>>, %arg1: memref<8x32xf32, #tpu.memory_space<vmem>>, %arg2: memref<2x1x8xf32, #tpu.memory_space<vmem>>, %arg3: memref<2x1x32xf32, #tpu.memory_space<vmem>>, %arg4: memref<2x1x32xf32, #tpu.memory_space<vmem>>, %arg5: memref<2x32x96xbf16, #tpu.memory_space<vmem>>, %arg6: memref<2x1x96xf32, #tpu.memory_space<vmem>>, %arg7: memref<2x32x32xbf16, #tpu.memory_space<vmem>>, %arg8: memref<2x1x32xf32, #tpu.memory_space<vmem>>, %arg9: memref<2x1x32xf32, #tpu.memory_space<vmem>>, %arg10: memref<2x1x32xf32, #tpu.memory_space<vmem>>, %arg11: memref<2x32x2048xbf16, #tpu.memory_space<vmem>>, %arg12: memref<2x1x2048xf32, #tpu.memory_space<vmem>>, %arg13: memref<2x2048x32xbf16, #tpu.memory_space<vmem>>, %arg14: memref<2x1x32xf32, #tpu.memory_space<vmem>>, %arg15: memref<1x32xf32, #tpu.memory_space<vmem>>, %arg16: memref<1x32xf32, #tpu.memory_space<vmem>>, %arg17: memref<16x32xf32, #tpu.memory_space<vmem>>) attributes {dimension_semantics = [], scalar_prefetch = 0 : i64, scratch_operands = 0 : i64, tpu.core_type = #tpu.core_type<tc>} {
    %c0 = arith.constant 0 : index
    %c0_0 = arith.constant 0 : index
    %c0_1 = arith.constant 0 : index
    %0 = vector.load %arg2[%c0, %c0_0, %c0_1] : memref<2x1x8xf32, #tpu.memory_space<vmem>>, vector<2x1x8xf32>
    %1 = tpu.iota {dimensions = array<i32: 1>} : vector<1x32xi32>
    %c0_i32 = arith.constant 0 : i32
    %2 = vector.broadcast %c0_i32 : i32 to vector<1x32xi32>
    %3 = arith.cmpi sge, %1, %2 : vector<1x32xi32>
    %c8_i32 = arith.constant 8 : i32
    %4 = vector.broadcast %c8_i32 : i32 to vector<1x32xi32>
    %5 = arith.cmpi slt, %1, %4 : vector<1x32xi32>
    %6 = arith.andi %3, %5 : vector<1x32xi1>
    %7 = arith.extui %6 : vector<1x32xi1> to vector<1x32xi32>
    %8 = arith.sitofp %7 : vector<1x32xi32> to vector<1x32xf32>
    %c8_i32_2 = arith.constant 8 : i32
    %9 = vector.broadcast %c8_i32_2 : i32 to vector<1x32xi32>
    %10 = arith.cmpi sge, %1, %9 : vector<1x32xi32>
    %c16_i32 = arith.constant 16 : i32
    %11 = vector.broadcast %c16_i32 : i32 to vector<1x32xi32>
    %12 = arith.cmpi slt, %1, %11 : vector<1x32xi32>
    %13 = arith.andi %10, %12 : vector<1x32xi1>
    %14 = arith.extui %13 : vector<1x32xi1> to vector<1x32xi32>
    %15 = arith.sitofp %14 : vector<1x32xi32> to vector<1x32xf32>
    %c16_i32_3 = arith.constant 16 : i32
    %16 = vector.broadcast %c16_i32_3 : i32 to vector<1x32xi32>
    %17 = arith.cmpi sge, %1, %16 : vector<1x32xi32>
    %c24_i32 = arith.constant 24 : i32
    %18 = vector.broadcast %c24_i32 : i32 to vector<1x32xi32>
    %19 = arith.cmpi slt, %1, %18 : vector<1x32xi32>
    %20 = arith.andi %17, %19 : vector<1x32xi1>
    %21 = arith.extui %20 : vector<1x32xi1> to vector<1x32xi32>
    %22 = arith.sitofp %21 : vector<1x32xi32> to vector<1x32xf32>
    %c24_i32_4 = arith.constant 24 : i32
    %23 = vector.broadcast %c24_i32_4 : i32 to vector<1x32xi32>
    %24 = arith.cmpi sge, %1, %23 : vector<1x32xi32>
    %c32_i32 = arith.constant 32 : i32
    %25 = vector.broadcast %c32_i32 : i32 to vector<1x32xi32>
    %26 = arith.cmpi slt, %1, %25 : vector<1x32xi32>
    %27 = arith.andi %24, %26 : vector<1x32xi1>
    %28 = arith.extui %27 : vector<1x32xi1> to vector<1x32xi32>
    %29 = arith.sitofp %28 : vector<1x32xi32> to vector<1x32xf32>
    %c0_5 = arith.constant 0 : index
    %c0_6 = arith.constant 0 : index
    %c0_7 = arith.constant 0 : index
    %30 = vector.load %arg0[%c0_5, %c0_6, %c0_7] : memref<2x8x32xf32, #tpu.memory_space<vmem>>, vector<2x8x32xf32>
    %cst = arith.constant 5.65685415 : f32
    %31 = vector.broadcast %cst : f32 to vector<2x8x32xf32>
    %32 = arith.mulf %30, %31 : vector<2x8x32xf32>
    %c0_8 = arith.constant 0 : index
    %c0_9 = arith.constant 0 : index
    %33 = vector.load %arg1[%c0_8, %c0_9] : memref<8x32xf32, #tpu.memory_space<vmem>>, vector<8x32xf32>
    %34 = vector.shape_cast %33 : vector<8x32xf32> to vector<1x8x32xf32>
    %35 = vector.broadcast %34 : vector<1x8x32xf32> to vector<2x8x32xf32>
    %36 = arith.addf %32, %35 : vector<2x8x32xf32>
    %37 = vector.shape_cast %36 : vector<2x8x32xf32> to vector<16x32xf32>
    %c0_10 = arith.constant 0 : index
    %c0_11 = arith.constant 0 : index
    %c0_12 = arith.constant 0 : index
    %38 = vector.load %arg3[%c0_10, %c0_11, %c0_12] : memref<2x1x32xf32, #tpu.memory_space<vmem>>, vector<1x1x32xf32>
    %39 = vector.shape_cast %38 : vector<1x1x32xf32> to vector<1x32xf32>
    %c0_13 = arith.constant 0 : index
    %c0_14 = arith.constant 0 : index
    %c0_15 = arith.constant 0 : index
    %40 = vector.load %arg4[%c0_13, %c0_14, %c0_15] : memref<2x1x32xf32, #tpu.memory_space<vmem>>, vector<1x1x32xf32>
    %41 = vector.shape_cast %40 : vector<1x1x32xf32> to vector<1x32xf32>
    %cst_16 = arith.constant dense<0.000000e+00> : vector<16xf32>
    %42 = vector.multi_reduction <add>, %37, %cst_16 [1] : vector<16x32xf32> to vector<16xf32>
    %43 = vector.shape_cast %42 : vector<16xf32> to vector<16x1xf32>
    %cst_17 = arith.constant 3.200000e+01 : f32
    %44 = vector.broadcast %cst_17 : f32 to vector<16x1xf32>
    %45 = arith.divf %43, %44 : vector<16x1xf32>
    %46 = vector.broadcast %45 : vector<16x1xf32> to vector<16x32xf32>
    %47 = arith.subf %37, %46 : vector<16x32xf32>
    %48 = arith.mulf %47, %47 : vector<16x32xf32>
    %cst_18 = arith.constant dense<0.000000e+00> : vector<16xf32>
    %49 = vector.multi_reduction <add>, %48, %cst_18 [1] : vector<16x32xf32> to vector<16xf32>
    %50 = vector.shape_cast %49 : vector<16xf32> to vector<16x1xf32>
    %cst_19 = arith.constant 3.100000e+01 : f32
    %51 = vector.broadcast %cst_19 : f32 to vector<16x1xf32>
    %52 = arith.divf %50, %51 : vector<16x1xf32>
    %53 = math.sqrt %52 : vector<16x1xf32>
    %cst_20 = arith.constant 9.99999997E-7 : f32
    %54 = vector.broadcast %cst_20 : f32 to vector<16x1xf32>
    %55 = arith.addf %53, %54 : vector<16x1xf32>
    %56 = tpu.reciprocal %55 {approx = true} : vector<16x1xf32> -> vector<16x1xf32>
    %57 = vector.broadcast %39 : vector<1x32xf32> to vector<16x32xf32>
    %58 = arith.mulf %57, %47 : vector<16x32xf32>
    %59 = vector.broadcast %56 : vector<16x1xf32> to vector<16x32xf32>
    %60 = arith.mulf %58, %59 : vector<16x32xf32>
    %61 = vector.broadcast %41 : vector<1x32xf32> to vector<16x32xf32>
    %62 = arith.addf %60, %61 : vector<16x32xf32>
    %63 = arith.truncf %62 : vector<16x32xf32> to vector<16x32xbf16>
    %c0_21 = arith.constant 0 : index
    %c0_22 = arith.constant 0 : index
    %c0_23 = arith.constant 0 : index
    %64 = vector.load %arg5[%c0_21, %c0_22, %c0_23] : memref<2x32x96xbf16, #tpu.memory_space<vmem>>, vector<1x32x96xbf16>
    %65 = vector.shape_cast %64 : vector<1x32x96xbf16> to vector<32x96xbf16>
    %cst_24 = arith.constant dense<0.000000e+00> : vector<16x96xf32>
    %66 = tpu.matmul %63, %65, %cst_24 {dimension_numbers = #tpu.dot_dimension_numbers<[1], [0], [0], [1], [0, 0, 1, 1], [], []>} : vector<16x32xbf16>, vector<32x96xbf16>, vector<16x96xf32> -> vector<16x96xf32>
    %c0_25 = arith.constant 0 : index
    %c0_26 = arith.constant 0 : index
    %c0_27 = arith.constant 0 : index
    %67 = vector.load %arg6[%c0_25, %c0_26, %c0_27] : memref<2x1x96xf32, #tpu.memory_space<vmem>>, vector<1x1x96xf32>
    %68 = vector.shape_cast %67 : vector<1x1x96xf32> to vector<1x96xf32>
    %69 = vector.broadcast %68 : vector<1x96xf32> to vector<16x96xf32>
    %70 = arith.addf %66, %69 : vector<16x96xf32>
    %71 = vector.extract_strided_slice %70 {offsets = [0, 0], sizes = [16, 32], strides = [1, 1]} : vector<16x96xf32> to vector<16x32xf32>
    %72 = vector.shape_cast %71 : vector<16x32xf32> to vector<2x8x32xf32>
    %73 = vector.extract_strided_slice %70 {offsets = [0, 32], sizes = [16, 32], strides = [1, 1]} : vector<16x96xf32> to vector<16x32xf32>
    %74 = vector.shape_cast %73 : vector<16x32xf32> to vector<2x8x32xf32>
    %75 = vector.extract_strided_slice %70 {offsets = [0, 64], sizes = [16, 32], strides = [1, 1]} : vector<16x96xf32> to vector<16x32xf32>
    %76 = vector.shape_cast %75 : vector<16x32xf32> to vector<2x8x32xf32>
    %cst_28 = arith.constant 0.000000e+00 : f32
    %77 = vector.broadcast %cst_28 : f32 to vector<2x8x32xf32>
    %78 = vector.extract_strided_slice %72 {offsets = [0, 0, 0], sizes = [2, 8, 8], strides = [1, 1, 1]} : vector<2x8x32xf32> to vector<2x8x8xf32>
    %79 = vector.extract_strided_slice %74 {offsets = [0, 0, 0], sizes = [2, 8, 8], strides = [1, 1, 1]} : vector<2x8x32xf32> to vector<2x8x8xf32>
    "tpu.trace_start"() <{level = 10 : i32, message = "bqd,bkd->bqk"}> : () -> ()
    %cst_29 = arith.constant dense<0.000000e+00> : vector<2x8x8xf32>
    %80 = tpu.matmul %78, %79, %cst_29 {dimension_numbers = #tpu.dot_dimension_numbers<[2], [2], [1], [1], [0, 0, 0, 1, 1, 1], [0], [0]>} : vector<2x8x8xf32>, vector<2x8x8xf32>, vector<2x8x8xf32> -> vector<2x8x8xf32>
    "tpu.trace_stop"() : () -> ()
    %cst_30 = arith.constant 0.353553385 : f32
    %81 = vector.broadcast %cst_30 : f32 to vector<2x8x8xf32>
    %82 = arith.mulf %80, %81 : vector<2x8x8xf32>
    %83 = vector.broadcast %0 : vector<2x1x8xf32> to vector<2x8x8xf32>
    %84 = arith.addf %82, %83 : vector<2x8x8xf32>
    %cst_31 = arith.constant dense<0xFF800000> : vector<2x8xf32>
    %85 = vector.multi_reduction <maximumf>, %84, %cst_31 [2] : vector<2x8x8xf32> to vector<2x8xf32>
    %86 = vector.shape_cast %85 : vector<2x8xf32> to vector<2x8x1xf32>
    %87 = vector.broadcast %86 : vector<2x8x1xf32> to vector<2x8x8xf32>
    %88 = arith.subf %84, %87 : vector<2x8x8xf32>
    %89 = math.exp %88 : vector<2x8x8xf32>
    %cst_32 = arith.constant dense<0.000000e+00> : vector<2x8xf32>
    %90 = vector.multi_reduction <add>, %89, %cst_32 [2] : vector<2x8x8xf32> to vector<2x8xf32>
    %91 = vector.shape_cast %90 : vector<2x8xf32> to vector<2x8x1xf32>
    %92 = tpu.reciprocal %91 {approx = true} : vector<2x8x1xf32> -> vector<2x8x1xf32>
    %93 = vector.broadcast %92 : vector<2x8x1xf32> to vector<2x8x8xf32>
    %94 = arith.mulf %89, %93 : vector<2x8x8xf32>
    "tpu.trace_start"() <{level = 10 : i32, message = "bqk,bkd->bqd"}> : () -> ()
    %cst_33 = arith.constant dense<0.000000e+00> : vector<2x8x32xf32>
    %95 = tpu.matmul %94, %76, %cst_33 {dimension_numbers = #tpu.dot_dimension_numbers<[2], [1], [1], [2], [0, 0, 0, 1, 1, 2], [0], [0]>} : vector<2x8x8xf32>, vector<2x8x32xf32>, vector<2x8x32xf32> -> vector<2x8x32xf32>
    "tpu.trace_stop"() : () -> ()
    %96 = vector.shape_cast %8 : vector<1x32xf32> to vector<1x1x32xf32>
    %97 = vector.broadcast %96 : vector<1x1x32xf32> to vector<2x8x32xf32>
    %98 = arith.mulf %95, %97 : vector<2x8x32xf32>
    %99 = arith.addf %77, %98 : vector<2x8x32xf32>
    %100 = vector.extract_strided_slice %72 {offsets = [0, 0, 8], sizes = [2, 8, 8], strides = [1, 1, 1]} : vector<2x8x32xf32> to vector<2x8x8xf32>
    %101 = vector.extract_strided_slice %74 {offsets = [0, 0, 8], sizes = [2, 8, 8], strides = [1, 1, 1]} : vector<2x8x32xf32> to vector<2x8x8xf32>
    "tpu.trace_start"() <{level = 10 : i32, message = "bqd,bkd->bqk"}> : () -> ()
    %cst_34 = arith.constant dense<0.000000e+00> : vector<2x8x8xf32>
    %102 = tpu.matmul %100, %101, %cst_34 {dimension_numbers = #tpu.dot_dimension_numbers<[2], [2], [1], [1], [0, 0, 0, 1, 1, 1], [0], [0]>} : vector<2x8x8xf32>, vector<2x8x8xf32>, vector<2x8x8xf32> -> vector<2x8x8xf32>
    "tpu.trace_stop"() : () -> ()
    %cst_35 = arith.constant 0.353553385 : f32
    %103 = vector.broadcast %cst_35 : f32 to vector<2x8x8xf32>
    %104 = arith.mulf %102, %103 : vector<2x8x8xf32>
    %105 = vector.broadcast %0 : vector<2x1x8xf32> to vector<2x8x8xf32>
    %106 = arith.addf %104, %105 : vector<2x8x8xf32>
    %cst_36 = arith.constant dense<0xFF800000> : vector<2x8xf32>
    %107 = vector.multi_reduction <maximumf>, %106, %cst_36 [2] : vector<2x8x8xf32> to vector<2x8xf32>
    %108 = vector.shape_cast %107 : vector<2x8xf32> to vector<2x8x1xf32>
    %109 = vector.broadcast %108 : vector<2x8x1xf32> to vector<2x8x8xf32>
    %110 = arith.subf %106, %109 : vector<2x8x8xf32>
    %111 = math.exp %110 : vector<2x8x8xf32>
    %cst_37 = arith.constant dense<0.000000e+00> : vector<2x8xf32>
    %112 = vector.multi_reduction <add>, %111, %cst_37 [2] : vector<2x8x8xf32> to vector<2x8xf32>
    %113 = vector.shape_cast %112 : vector<2x8xf32> to vector<2x8x1xf32>
    %114 = tpu.reciprocal %113 {approx = true} : vector<2x8x1xf32> -> vector<2x8x1xf32>
    %115 = vector.broadcast %114 : vector<2x8x1xf32> to vector<2x8x8xf32>
    %116 = arith.mulf %111, %115 : vector<2x8x8xf32>
    "tpu.trace_start"() <{level = 10 : i32, message = "bqk,bkd->bqd"}> : () -> ()
    %cst_38 = arith.constant dense<0.000000e+00> : vector<2x8x32xf32>
    %117 = tpu.matmul %116, %76, %cst_38 {dimension_numbers = #tpu.dot_dimension_numbers<[2], [1], [1], [2], [0, 0, 0, 1, 1, 2], [0], [0]>} : vector<2x8x8xf32>, vector<2x8x32xf32>, vector<2x8x32xf32> -> vector<2x8x32xf32>
    "tpu.trace_stop"() : () -> ()
    %118 = vector.shape_cast %15 : vector<1x32xf32> to vector<1x1x32xf32>
    %119 = vector.broadcast %118 : vector<1x1x32xf32> to vector<2x8x32xf32>
    %120 = arith.mulf %117, %119 : vector<2x8x32xf32>
    %121 = arith.addf %99, %120 : vector<2x8x32xf32>
    %122 = vector.extract_strided_slice %72 {offsets = [0, 0, 16], sizes = [2, 8, 8], strides = [1, 1, 1]} : vector<2x8x32xf32> to vector<2x8x8xf32>
    %123 = vector.extract_strided_slice %74 {offsets = [0, 0, 16], sizes = [2, 8, 8], strides = [1, 1, 1]} : vector<2x8x32xf32> to vector<2x8x8xf32>
    "tpu.trace_start"() <{level = 10 : i32, message = "bqd,bkd->bqk"}> : () -> ()
    %cst_39 = arith.constant dense<0.000000e+00> : vector<2x8x8xf32>
    %124 = tpu.matmul %122, %123, %cst_39 {dimension_numbers = #tpu.dot_dimension_numbers<[2], [2], [1], [1], [0, 0, 0, 1, 1, 1], [0], [0]>} : vector<2x8x8xf32>, vector<2x8x8xf32>, vector<2x8x8xf32> -> vector<2x8x8xf32>
    "tpu.trace_stop"() : () -> ()
    %cst_40 = arith.constant 0.353553385 : f32
    %125 = vector.broadcast %cst_40 : f32 to vector<2x8x8xf32>
    %126 = arith.mulf %124, %125 : vector<2x8x8xf32>
    %127 = vector.broadcast %0 : vector<2x1x8xf32> to vector<2x8x8xf32>
    %128 = arith.addf %126, %127 : vector<2x8x8xf32>
    %cst_41 = arith.constant dense<0xFF800000> : vector<2x8xf32>
    %129 = vector.multi_reduction <maximumf>, %128, %cst_41 [2] : vector<2x8x8xf32> to vector<2x8xf32>
    %130 = vector.shape_cast %129 : vector<2x8xf32> to vector<2x8x1xf32>
    %131 = vector.broadcast %130 : vector<2x8x1xf32> to vector<2x8x8xf32>
    %132 = arith.subf %128, %131 : vector<2x8x8xf32>
    %133 = math.exp %132 : vector<2x8x8xf32>
    %cst_42 = arith.constant dense<0.000000e+00> : vector<2x8xf32>
    %134 = vector.multi_reduction <add>, %133, %cst_42 [2] : vector<2x8x8xf32> to vector<2x8xf32>
    %135 = vector.shape_cast %134 : vector<2x8xf32> to vector<2x8x1xf32>
    %136 = tpu.reciprocal %135 {approx = true} : vector<2x8x1xf32> -> vector<2x8x1xf32>
    %137 = vector.broadcast %136 : vector<2x8x1xf32> to vector<2x8x8xf32>
    %138 = arith.mulf %133, %137 : vector<2x8x8xf32>
    "tpu.trace_start"() <{level = 10 : i32, message = "bqk,bkd->bqd"}> : () -> ()
    %cst_43 = arith.constant dense<0.000000e+00> : vector<2x8x32xf32>
    %139 = tpu.matmul %138, %76, %cst_43 {dimension_numbers = #tpu.dot_dimension_numbers<[2], [1], [1], [2], [0, 0, 0, 1, 1, 2], [0], [0]>} : vector<2x8x8xf32>, vector<2x8x32xf32>, vector<2x8x32xf32> -> vector<2x8x32xf32>
    "tpu.trace_stop"() : () -> ()
    %140 = vector.shape_cast %22 : vector<1x32xf32> to vector<1x1x32xf32>
    %141 = vector.broadcast %140 : vector<1x1x32xf32> to vector<2x8x32xf32>
    %142 = arith.mulf %139, %141 : vector<2x8x32xf32>
    %143 = arith.addf %121, %142 : vector<2x8x32xf32>
    %144 = vector.extract_strided_slice %72 {offsets = [0, 0, 24], sizes = [2, 8, 8], strides = [1, 1, 1]} : vector<2x8x32xf32> to vector<2x8x8xf32>
    %145 = vector.extract_strided_slice %74 {offsets = [0, 0, 24], sizes = [2, 8, 8], strides = [1, 1, 1]} : vector<2x8x32xf32> to vector<2x8x8xf32>
    "tpu.trace_start"() <{level = 10 : i32, message = "bqd,bkd->bqk"}> : () -> ()
    %cst_44 = arith.constant dense<0.000000e+00> : vector<2x8x8xf32>
    %146 = tpu.matmul %144, %145, %cst_44 {dimension_numbers = #tpu.dot_dimension_numbers<[2], [2], [1], [1], [0, 0, 0, 1, 1, 1], [0], [0]>} : vector<2x8x8xf32>, vector<2x8x8xf32>, vector<2x8x8xf32> -> vector<2x8x8xf32>
    "tpu.trace_stop"() : () -> ()
    %cst_45 = arith.constant 0.353553385 : f32
    %147 = vector.broadcast %cst_45 : f32 to vector<2x8x8xf32>
    %148 = arith.mulf %146, %147 : vector<2x8x8xf32>
    %149 = vector.broadcast %0 : vector<2x1x8xf32> to vector<2x8x8xf32>
    %150 = arith.addf %148, %149 : vector<2x8x8xf32>
    %cst_46 = arith.constant dense<0xFF800000> : vector<2x8xf32>
    %151 = vector.multi_reduction <maximumf>, %150, %cst_46 [2] : vector<2x8x8xf32> to vector<2x8xf32>
    %152 = vector.shape_cast %151 : vector<2x8xf32> to vector<2x8x1xf32>
    %153 = vector.broadcast %152 : vector<2x8x1xf32> to vector<2x8x8xf32>
    %154 = arith.subf %150, %153 : vector<2x8x8xf32>
    %155 = math.exp %154 : vector<2x8x8xf32>
    %cst_47 = arith.constant dense<0.000000e+00> : vector<2x8xf32>
    %156 = vector.multi_reduction <add>, %155, %cst_47 [2] : vector<2x8x8xf32> to vector<2x8xf32>
    %157 = vector.shape_cast %156 : vector<2x8xf32> to vector<2x8x1xf32>
    %158 = tpu.reciprocal %157 {approx = true} : vector<2x8x1xf32> -> vector<2x8x1xf32>
    %159 = vector.broadcast %158 : vector<2x8x1xf32> to vector<2x8x8xf32>
    %160 = arith.mulf %155, %159 : vector<2x8x8xf32>
    "tpu.trace_start"() <{level = 10 : i32, message = "bqk,bkd->bqd"}> : () -> ()
    %cst_48 = arith.constant dense<0.000000e+00> : vector<2x8x32xf32>
    %161 = tpu.matmul %160, %76, %cst_48 {dimension_numbers = #tpu.dot_dimension_numbers<[2], [1], [1], [2], [0, 0, 0, 1, 1, 2], [0], [0]>} : vector<2x8x8xf32>, vector<2x8x32xf32>, vector<2x8x32xf32> -> vector<2x8x32xf32>
    "tpu.trace_stop"() : () -> ()
    %162 = vector.shape_cast %29 : vector<1x32xf32> to vector<1x1x32xf32>
    %163 = vector.broadcast %162 : vector<1x1x32xf32> to vector<2x8x32xf32>
    %164 = arith.mulf %161, %163 : vector<2x8x32xf32>
    %165 = arith.addf %143, %164 : vector<2x8x32xf32>
    %166 = vector.shape_cast %165 : vector<2x8x32xf32> to vector<16x32xf32>
    %167 = arith.truncf %166 : vector<16x32xf32> to vector<16x32xbf16>
    %c0_49 = arith.constant 0 : index
    %c0_50 = arith.constant 0 : index
    %c0_51 = arith.constant 0 : index
    %168 = vector.load %arg7[%c0_49, %c0_50, %c0_51] : memref<2x32x32xbf16, #tpu.memory_space<vmem>>, vector<1x32x32xbf16>
    %169 = vector.shape_cast %168 : vector<1x32x32xbf16> to vector<32x32xbf16>
    %cst_52 = arith.constant dense<0.000000e+00> : vector<16x32xf32>
    %170 = tpu.matmul %167, %169, %cst_52 {dimension_numbers = #tpu.dot_dimension_numbers<[1], [0], [0], [1], [0, 0, 1, 1], [], []>} : vector<16x32xbf16>, vector<32x32xbf16>, vector<16x32xf32> -> vector<16x32xf32>
    %c0_53 = arith.constant 0 : index
    %c0_54 = arith.constant 0 : index
    %c0_55 = arith.constant 0 : index
    %171 = vector.load %arg8[%c0_53, %c0_54, %c0_55] : memref<2x1x32xf32, #tpu.memory_space<vmem>>, vector<1x1x32xf32>
    %172 = vector.shape_cast %171 : vector<1x1x32xf32> to vector<1x32xf32>
    %173 = vector.broadcast %172 : vector<1x32xf32> to vector<16x32xf32>
    %174 = arith.addf %170, %173 : vector<16x32xf32>
    %175 = arith.addf %37, %174 : vector<16x32xf32>
    %c0_56 = arith.constant 0 : index
    %c0_57 = arith.constant 0 : index
    %c0_58 = arith.constant 0 : index
    %176 = vector.load %arg9[%c0_56, %c0_57, %c0_58] : memref<2x1x32xf32, #tpu.memory_space<vmem>>, vector<1x1x32xf32>
    %177 = vector.shape_cast %176 : vector<1x1x32xf32> to vector<1x32xf32>
    %c0_59 = arith.constant 0 : index
    %c0_60 = arith.constant 0 : index
    %c0_61 = arith.constant 0 : index
    %178 = vector.load %arg10[%c0_59, %c0_60, %c0_61] : memref<2x1x32xf32, #tpu.memory_space<vmem>>, vector<1x1x32xf32>
    %179 = vector.shape_cast %178 : vector<1x1x32xf32> to vector<1x32xf32>
    %cst_62 = arith.constant dense<0.000000e+00> : vector<16xf32>
    %180 = vector.multi_reduction <add>, %175, %cst_62 [1] : vector<16x32xf32> to vector<16xf32>
    %181 = vector.shape_cast %180 : vector<16xf32> to vector<16x1xf32>
    %cst_63 = arith.constant 3.200000e+01 : f32
    %182 = vector.broadcast %cst_63 : f32 to vector<16x1xf32>
    %183 = arith.divf %181, %182 : vector<16x1xf32>
    %184 = vector.broadcast %183 : vector<16x1xf32> to vector<16x32xf32>
    %185 = arith.subf %175, %184 : vector<16x32xf32>
    %186 = arith.mulf %185, %185 : vector<16x32xf32>
    %cst_64 = arith.constant dense<0.000000e+00> : vector<16xf32>
    %187 = vector.multi_reduction <add>, %186, %cst_64 [1] : vector<16x32xf32> to vector<16xf32>
    %188 = vector.shape_cast %187 : vector<16xf32> to vector<16x1xf32>
    %cst_65 = arith.constant 3.100000e+01 : f32
    %189 = vector.broadcast %cst_65 : f32 to vector<16x1xf32>
    %190 = arith.divf %188, %189 : vector<16x1xf32>
    %191 = math.sqrt %190 : vector<16x1xf32>
    %cst_66 = arith.constant 9.99999997E-7 : f32
    %192 = vector.broadcast %cst_66 : f32 to vector<16x1xf32>
    %193 = arith.addf %191, %192 : vector<16x1xf32>
    %194 = tpu.reciprocal %193 {approx = true} : vector<16x1xf32> -> vector<16x1xf32>
    %195 = vector.broadcast %177 : vector<1x32xf32> to vector<16x32xf32>
    %196 = arith.mulf %195, %185 : vector<16x32xf32>
    %197 = vector.broadcast %194 : vector<16x1xf32> to vector<16x32xf32>
    %198 = arith.mulf %196, %197 : vector<16x32xf32>
    %199 = vector.broadcast %179 : vector<1x32xf32> to vector<16x32xf32>
    %200 = arith.addf %198, %199 : vector<16x32xf32>
    %201 = arith.truncf %200 : vector<16x32xf32> to vector<16x32xbf16>
    %cst_67 = arith.constant 0.000000e+00 : f32
    %202 = vector.broadcast %cst_67 : f32 to vector<16x32xf32>
    %c0_68 = arith.constant 0 : index
    %c0_69 = arith.constant 0 : index
    %c0_70 = arith.constant 0 : index
    %203 = vector.load %arg11[%c0_68, %c0_69, %c0_70] : memref<2x32x2048xbf16, #tpu.memory_space<vmem>>, vector<1x32x512xbf16>
    %204 = vector.shape_cast %203 : vector<1x32x512xbf16> to vector<32x512xbf16>
    %cst_71 = arith.constant dense<0.000000e+00> : vector<16x512xf32>
    %205 = tpu.matmul %201, %204, %cst_71 {dimension_numbers = #tpu.dot_dimension_numbers<[1], [0], [0], [1], [0, 0, 1, 1], [], []>} : vector<16x32xbf16>, vector<32x512xbf16>, vector<16x512xf32> -> vector<16x512xf32>
    %c0_72 = arith.constant 0 : index
    %c0_73 = arith.constant 0 : index
    %c0_74 = arith.constant 0 : index
    %206 = vector.load %arg12[%c0_72, %c0_73, %c0_74] : memref<2x1x2048xf32, #tpu.memory_space<vmem>>, vector<1x1x512xf32>
    %207 = vector.shape_cast %206 : vector<1x1x512xf32> to vector<1x512xf32>
    %208 = vector.broadcast %207 : vector<1x512xf32> to vector<16x512xf32>
    %209 = arith.addf %205, %208 : vector<16x512xf32>
    %cst_75 = arith.constant 0.000000e+00 : f32
    %210 = vector.broadcast %cst_75 : f32 to vector<16x512xf32>
    %211 = arith.maximumf %209, %210 : vector<16x512xf32>
    %212 = arith.truncf %211 : vector<16x512xf32> to vector<16x512xbf16>
    %c0_76 = arith.constant 0 : index
    %c0_77 = arith.constant 0 : index
    %c0_78 = arith.constant 0 : index
    %213 = vector.load %arg13[%c0_76, %c0_77, %c0_78] : memref<2x2048x32xbf16, #tpu.memory_space<vmem>>, vector<1x512x32xbf16>
    %214 = vector.shape_cast %213 : vector<1x512x32xbf16> to vector<512x32xbf16>
    %cst_79 = arith.constant dense<0.000000e+00> : vector<16x32xf32>
    %215 = tpu.matmul %212, %214, %cst_79 {dimension_numbers = #tpu.dot_dimension_numbers<[1], [0], [0], [1], [0, 0, 1, 1], [], []>} : vector<16x512xbf16>, vector<512x32xbf16>, vector<16x32xf32> -> vector<16x32xf32>
    %216 = arith.addf %202, %215 : vector<16x32xf32>
    %c0_80 = arith.constant 0 : index
    %c0_81 = arith.constant 0 : index
    %c512 = arith.constant 512 : index
    %217 = vector.load %arg11[%c0_80, %c0_81, %c512] : memref<2x32x2048xbf16, #tpu.memory_space<vmem>>, vector<1x32x512xbf16>
    %218 = vector.shape_cast %217 : vector<1x32x512xbf16> to vector<32x512xbf16>
    %cst_82 = arith.constant dense<0.000000e+00> : vector<16x512xf32>
    %219 = tpu.matmul %201, %218, %cst_82 {dimension_numbers = #tpu.dot_dimension_numbers<[1], [0], [0], [1], [0, 0, 1, 1], [], []>} : vector<16x32xbf16>, vector<32x512xbf16>, vector<16x512xf32> -> vector<16x512xf32>
    %c0_83 = arith.constant 0 : index
    %c0_84 = arith.constant 0 : index
    %c512_85 = arith.constant 512 : index
    %220 = vector.load %arg12[%c0_83, %c0_84, %c512_85] : memref<2x1x2048xf32, #tpu.memory_space<vmem>>, vector<1x1x512xf32>
    %221 = vector.shape_cast %220 : vector<1x1x512xf32> to vector<1x512xf32>
    %222 = vector.broadcast %221 : vector<1x512xf32> to vector<16x512xf32>
    %223 = arith.addf %219, %222 : vector<16x512xf32>
    %cst_86 = arith.constant 0.000000e+00 : f32
    %224 = vector.broadcast %cst_86 : f32 to vector<16x512xf32>
    %225 = arith.maximumf %223, %224 : vector<16x512xf32>
    %226 = arith.truncf %225 : vector<16x512xf32> to vector<16x512xbf16>
    %c0_87 = arith.constant 0 : index
    %c512_88 = arith.constant 512 : index
    %c0_89 = arith.constant 0 : index
    %227 = vector.load %arg13[%c0_87, %c512_88, %c0_89] : memref<2x2048x32xbf16, #tpu.memory_space<vmem>>, vector<1x512x32xbf16>
    %228 = vector.shape_cast %227 : vector<1x512x32xbf16> to vector<512x32xbf16>
    %cst_90 = arith.constant dense<0.000000e+00> : vector<16x32xf32>
    %229 = tpu.matmul %226, %228, %cst_90 {dimension_numbers = #tpu.dot_dimension_numbers<[1], [0], [0], [1], [0, 0, 1, 1], [], []>} : vector<16x512xbf16>, vector<512x32xbf16>, vector<16x32xf32> -> vector<16x32xf32>
    %230 = arith.addf %216, %229 : vector<16x32xf32>
    %c0_91 = arith.constant 0 : index
    %c0_92 = arith.constant 0 : index
    %c1024 = arith.constant 1024 : index
    %231 = vector.load %arg11[%c0_91, %c0_92, %c1024] : memref<2x32x2048xbf16, #tpu.memory_space<vmem>>, vector<1x32x512xbf16>
    %232 = vector.shape_cast %231 : vector<1x32x512xbf16> to vector<32x512xbf16>
    %cst_93 = arith.constant dense<0.000000e+00> : vector<16x512xf32>
    %233 = tpu.matmul %201, %232, %cst_93 {dimension_numbers = #tpu.dot_dimension_numbers<[1], [0], [0], [1], [0, 0, 1, 1], [], []>} : vector<16x32xbf16>, vector<32x512xbf16>, vector<16x512xf32> -> vector<16x512xf32>
    %c0_94 = arith.constant 0 : index
    %c0_95 = arith.constant 0 : index
    %c1024_96 = arith.constant 1024 : index
    %234 = vector.load %arg12[%c0_94, %c0_95, %c1024_96] : memref<2x1x2048xf32, #tpu.memory_space<vmem>>, vector<1x1x512xf32>
    %235 = vector.shape_cast %234 : vector<1x1x512xf32> to vector<1x512xf32>
    %236 = vector.broadcast %235 : vector<1x512xf32> to vector<16x512xf32>
    %237 = arith.addf %233, %236 : vector<16x512xf32>
    %cst_97 = arith.constant 0.000000e+00 : f32
    %238 = vector.broadcast %cst_97 : f32 to vector<16x512xf32>
    %239 = arith.maximumf %237, %238 : vector<16x512xf32>
    %240 = arith.truncf %239 : vector<16x512xf32> to vector<16x512xbf16>
    %c0_98 = arith.constant 0 : index
    %c1024_99 = arith.constant 1024 : index
    %c0_100 = arith.constant 0 : index
    %241 = vector.load %arg13[%c0_98, %c1024_99, %c0_100] : memref<2x2048x32xbf16, #tpu.memory_space<vmem>>, vector<1x512x32xbf16>
    %242 = vector.shape_cast %241 : vector<1x512x32xbf16> to vector<512x32xbf16>
    %cst_101 = arith.constant dense<0.000000e+00> : vector<16x32xf32>
    %243 = tpu.matmul %240, %242, %cst_101 {dimension_numbers = #tpu.dot_dimension_numbers<[1], [0], [0], [1], [0, 0, 1, 1], [], []>} : vector<16x512xbf16>, vector<512x32xbf16>, vector<16x32xf32> -> vector<16x32xf32>
    %244 = arith.addf %230, %243 : vector<16x32xf32>
    %c0_102 = arith.constant 0 : index
    %c0_103 = arith.constant 0 : index
    %c1536 = arith.constant 1536 : index
    %245 = vector.load %arg11[%c0_102, %c0_103, %c1536] : memref<2x32x2048xbf16, #tpu.memory_space<vmem>>, vector<1x32x512xbf16>
    %246 = vector.shape_cast %245 : vector<1x32x512xbf16> to vector<32x512xbf16>
    %cst_104 = arith.constant dense<0.000000e+00> : vector<16x512xf32>
    %247 = tpu.matmul %201, %246, %cst_104 {dimension_numbers = #tpu.dot_dimension_numbers<[1], [0], [0], [1], [0, 0, 1, 1], [], []>} : vector<16x32xbf16>, vector<32x512xbf16>, vector<16x512xf32> -> vector<16x512xf32>
    %c0_105 = arith.constant 0 : index
    %c0_106 = arith.constant 0 : index
    %c1536_107 = arith.constant 1536 : index
    %248 = vector.load %arg12[%c0_105, %c0_106, %c1536_107] : memref<2x1x2048xf32, #tpu.memory_space<vmem>>, vector<1x1x512xf32>
    %249 = vector.shape_cast %248 : vector<1x1x512xf32> to vector<1x512xf32>
    %250 = vector.broadcast %249 : vector<1x512xf32> to vector<16x512xf32>
    %251 = arith.addf %247, %250 : vector<16x512xf32>
    %cst_108 = arith.constant 0.000000e+00 : f32
    %252 = vector.broadcast %cst_108 : f32 to vector<16x512xf32>
    %253 = arith.maximumf %251, %252 : vector<16x512xf32>
    %254 = arith.truncf %253 : vector<16x512xf32> to vector<16x512xbf16>
    %c0_109 = arith.constant 0 : index
    %c1536_110 = arith.constant 1536 : index
    %c0_111 = arith.constant 0 : index
    %255 = vector.load %arg13[%c0_109, %c1536_110, %c0_111] : memref<2x2048x32xbf16, #tpu.memory_space<vmem>>, vector<1x512x32xbf16>
    %256 = vector.shape_cast %255 : vector<1x512x32xbf16> to vector<512x32xbf16>
    %cst_112 = arith.constant dense<0.000000e+00> : vector<16x32xf32>
    %257 = tpu.matmul %254, %256, %cst_112 {dimension_numbers = #tpu.dot_dimension_numbers<[1], [0], [0], [1], [0, 0, 1, 1], [], []>} : vector<16x512xbf16>, vector<512x32xbf16>, vector<16x32xf32> -> vector<16x32xf32>
    %258 = arith.addf %244, %257 : vector<16x32xf32>
    %259 = arith.addf %175, %258 : vector<16x32xf32>
    %c0_113 = arith.constant 0 : index
    %c0_114 = arith.constant 0 : index
    %c0_115 = arith.constant 0 : index
    %260 = vector.load %arg14[%c0_113, %c0_114, %c0_115] : memref<2x1x32xf32, #tpu.memory_space<vmem>>, vector<1x1x32xf32>
    %261 = vector.shape_cast %260 : vector<1x1x32xf32> to vector<1x32xf32>
    %262 = vector.broadcast %261 : vector<1x32xf32> to vector<16x32xf32>
    %263 = arith.addf %259, %262 : vector<16x32xf32>
    %c1 = arith.constant 1 : index
    %c0_116 = arith.constant 0 : index
    %c0_117 = arith.constant 0 : index
    %264 = vector.load %arg3[%c1, %c0_116, %c0_117] : memref<2x1x32xf32, #tpu.memory_space<vmem>>, vector<1x1x32xf32>
    %265 = vector.shape_cast %264 : vector<1x1x32xf32> to vector<1x32xf32>
    %c1_118 = arith.constant 1 : index
    %c0_119 = arith.constant 0 : index
    %c0_120 = arith.constant 0 : index
    %266 = vector.load %arg4[%c1_118, %c0_119, %c0_120] : memref<2x1x32xf32, #tpu.memory_space<vmem>>, vector<1x1x32xf32>
    %267 = vector.shape_cast %266 : vector<1x1x32xf32> to vector<1x32xf32>
    %cst_121 = arith.constant dense<0.000000e+00> : vector<16xf32>
    %268 = vector.multi_reduction <add>, %263, %cst_121 [1] : vector<16x32xf32> to vector<16xf32>
    %269 = vector.shape_cast %268 : vector<16xf32> to vector<16x1xf32>
    %cst_122 = arith.constant 3.200000e+01 : f32
    %270 = vector.broadcast %cst_122 : f32 to vector<16x1xf32>
    %271 = arith.divf %269, %270 : vector<16x1xf32>
    %272 = vector.broadcast %271 : vector<16x1xf32> to vector<16x32xf32>
    %273 = arith.subf %263, %272 : vector<16x32xf32>
    %274 = arith.mulf %273, %273 : vector<16x32xf32>
    %cst_123 = arith.constant dense<0.000000e+00> : vector<16xf32>
    %275 = vector.multi_reduction <add>, %274, %cst_123 [1] : vector<16x32xf32> to vector<16xf32>
    %276 = vector.shape_cast %275 : vector<16xf32> to vector<16x1xf32>
    %cst_124 = arith.constant 3.100000e+01 : f32
    %277 = vector.broadcast %cst_124 : f32 to vector<16x1xf32>
    %278 = arith.divf %276, %277 : vector<16x1xf32>
    %279 = math.sqrt %278 : vector<16x1xf32>
    %cst_125 = arith.constant 9.99999997E-7 : f32
    %280 = vector.broadcast %cst_125 : f32 to vector<16x1xf32>
    %281 = arith.addf %279, %280 : vector<16x1xf32>
    %282 = tpu.reciprocal %281 {approx = true} : vector<16x1xf32> -> vector<16x1xf32>
    %283 = vector.broadcast %265 : vector<1x32xf32> to vector<16x32xf32>
    %284 = arith.mulf %283, %273 : vector<16x32xf32>
    %285 = vector.broadcast %282 : vector<16x1xf32> to vector<16x32xf32>
    %286 = arith.mulf %284, %285 : vector<16x32xf32>
    %287 = vector.broadcast %267 : vector<1x32xf32> to vector<16x32xf32>
    %288 = arith.addf %286, %287 : vector<16x32xf32>
    %289 = arith.truncf %288 : vector<16x32xf32> to vector<16x32xbf16>
    %c1_126 = arith.constant 1 : index
    %c0_127 = arith.constant 0 : index
    %c0_128 = arith.constant 0 : index
    %290 = vector.load %arg5[%c1_126, %c0_127, %c0_128] : memref<2x32x96xbf16, #tpu.memory_space<vmem>>, vector<1x32x96xbf16>
    %291 = vector.shape_cast %290 : vector<1x32x96xbf16> to vector<32x96xbf16>
    %cst_129 = arith.constant dense<0.000000e+00> : vector<16x96xf32>
    %292 = tpu.matmul %289, %291, %cst_129 {dimension_numbers = #tpu.dot_dimension_numbers<[1], [0], [0], [1], [0, 0, 1, 1], [], []>} : vector<16x32xbf16>, vector<32x96xbf16>, vector<16x96xf32> -> vector<16x96xf32>
    %c1_130 = arith.constant 1 : index
    %c0_131 = arith.constant 0 : index
    %c0_132 = arith.constant 0 : index
    %293 = vector.load %arg6[%c1_130, %c0_131, %c0_132] : memref<2x1x96xf32, #tpu.memory_space<vmem>>, vector<1x1x96xf32>
    %294 = vector.shape_cast %293 : vector<1x1x96xf32> to vector<1x96xf32>
    %295 = vector.broadcast %294 : vector<1x96xf32> to vector<16x96xf32>
    %296 = arith.addf %292, %295 : vector<16x96xf32>
    %297 = vector.extract_strided_slice %296 {offsets = [0, 0], sizes = [16, 32], strides = [1, 1]} : vector<16x96xf32> to vector<16x32xf32>
    %298 = vector.shape_cast %297 : vector<16x32xf32> to vector<2x8x32xf32>
    %299 = vector.extract_strided_slice %296 {offsets = [0, 32], sizes = [16, 32], strides = [1, 1]} : vector<16x96xf32> to vector<16x32xf32>
    %300 = vector.shape_cast %299 : vector<16x32xf32> to vector<2x8x32xf32>
    %301 = vector.extract_strided_slice %296 {offsets = [0, 64], sizes = [16, 32], strides = [1, 1]} : vector<16x96xf32> to vector<16x32xf32>
    %302 = vector.shape_cast %301 : vector<16x32xf32> to vector<2x8x32xf32>
    %cst_133 = arith.constant 0.000000e+00 : f32
    %303 = vector.broadcast %cst_133 : f32 to vector<2x8x32xf32>
    %304 = vector.extract_strided_slice %298 {offsets = [0, 0, 0], sizes = [2, 8, 8], strides = [1, 1, 1]} : vector<2x8x32xf32> to vector<2x8x8xf32>
    %305 = vector.extract_strided_slice %300 {offsets = [0, 0, 0], sizes = [2, 8, 8], strides = [1, 1, 1]} : vector<2x8x32xf32> to vector<2x8x8xf32>
    "tpu.trace_start"() <{level = 10 : i32, message = "bqd,bkd->bqk"}> : () -> ()
    %cst_134 = arith.constant dense<0.000000e+00> : vector<2x8x8xf32>
    %306 = tpu.matmul %304, %305, %cst_134 {dimension_numbers = #tpu.dot_dimension_numbers<[2], [2], [1], [1], [0, 0, 0, 1, 1, 1], [0], [0]>} : vector<2x8x8xf32>, vector<2x8x8xf32>, vector<2x8x8xf32> -> vector<2x8x8xf32>
    "tpu.trace_stop"() : () -> ()
    %cst_135 = arith.constant 0.353553385 : f32
    %307 = vector.broadcast %cst_135 : f32 to vector<2x8x8xf32>
    %308 = arith.mulf %306, %307 : vector<2x8x8xf32>
    %309 = vector.broadcast %0 : vector<2x1x8xf32> to vector<2x8x8xf32>
    %310 = arith.addf %308, %309 : vector<2x8x8xf32>
    %cst_136 = arith.constant dense<0xFF800000> : vector<2x8xf32>
    %311 = vector.multi_reduction <maximumf>, %310, %cst_136 [2] : vector<2x8x8xf32> to vector<2x8xf32>
    %312 = vector.shape_cast %311 : vector<2x8xf32> to vector<2x8x1xf32>
    %313 = vector.broadcast %312 : vector<2x8x1xf32> to vector<2x8x8xf32>
    %314 = arith.subf %310, %313 : vector<2x8x8xf32>
    %315 = math.exp %314 : vector<2x8x8xf32>
    %cst_137 = arith.constant dense<0.000000e+00> : vector<2x8xf32>
    %316 = vector.multi_reduction <add>, %315, %cst_137 [2] : vector<2x8x8xf32> to vector<2x8xf32>
    %317 = vector.shape_cast %316 : vector<2x8xf32> to vector<2x8x1xf32>
    %318 = tpu.reciprocal %317 {approx = true} : vector<2x8x1xf32> -> vector<2x8x1xf32>
    %319 = vector.broadcast %318 : vector<2x8x1xf32> to vector<2x8x8xf32>
    %320 = arith.mulf %315, %319 : vector<2x8x8xf32>
    "tpu.trace_start"() <{level = 10 : i32, message = "bqk,bkd->bqd"}> : () -> ()
    %cst_138 = arith.constant dense<0.000000e+00> : vector<2x8x32xf32>
    %321 = tpu.matmul %320, %302, %cst_138 {dimension_numbers = #tpu.dot_dimension_numbers<[2], [1], [1], [2], [0, 0, 0, 1, 1, 2], [0], [0]>} : vector<2x8x8xf32>, vector<2x8x32xf32>, vector<2x8x32xf32> -> vector<2x8x32xf32>
    "tpu.trace_stop"() : () -> ()
    %322 = vector.shape_cast %8 : vector<1x32xf32> to vector<1x1x32xf32>
    %323 = vector.broadcast %322 : vector<1x1x32xf32> to vector<2x8x32xf32>
    %324 = arith.mulf %321, %323 : vector<2x8x32xf32>
    %325 = arith.addf %303, %324 : vector<2x8x32xf32>
    %326 = vector.extract_strided_slice %298 {offsets = [0, 0, 8], sizes = [2, 8, 8], strides = [1, 1, 1]} : vector<2x8x32xf32> to vector<2x8x8xf32>
    %327 = vector.extract_strided_slice %300 {offsets = [0, 0, 8], sizes = [2, 8, 8], strides = [1, 1, 1]} : vector<2x8x32xf32> to vector<2x8x8xf32>
    "tpu.trace_start"() <{level = 10 : i32, message = "bqd,bkd->bqk"}> : () -> ()
    %cst_139 = arith.constant dense<0.000000e+00> : vector<2x8x8xf32>
    %328 = tpu.matmul %326, %327, %cst_139 {dimension_numbers = #tpu.dot_dimension_numbers<[2], [2], [1], [1], [0, 0, 0, 1, 1, 1], [0], [0]>} : vector<2x8x8xf32>, vector<2x8x8xf32>, vector<2x8x8xf32> -> vector<2x8x8xf32>
    "tpu.trace_stop"() : () -> ()
    %cst_140 = arith.constant 0.353553385 : f32
    %329 = vector.broadcast %cst_140 : f32 to vector<2x8x8xf32>
    %330 = arith.mulf %328, %329 : vector<2x8x8xf32>
    %331 = vector.broadcast %0 : vector<2x1x8xf32> to vector<2x8x8xf32>
    %332 = arith.addf %330, %331 : vector<2x8x8xf32>
    %cst_141 = arith.constant dense<0xFF800000> : vector<2x8xf32>
    %333 = vector.multi_reduction <maximumf>, %332, %cst_141 [2] : vector<2x8x8xf32> to vector<2x8xf32>
    %334 = vector.shape_cast %333 : vector<2x8xf32> to vector<2x8x1xf32>
    %335 = vector.broadcast %334 : vector<2x8x1xf32> to vector<2x8x8xf32>
    %336 = arith.subf %332, %335 : vector<2x8x8xf32>
    %337 = math.exp %336 : vector<2x8x8xf32>
    %cst_142 = arith.constant dense<0.000000e+00> : vector<2x8xf32>
    %338 = vector.multi_reduction <add>, %337, %cst_142 [2] : vector<2x8x8xf32> to vector<2x8xf32>
    %339 = vector.shape_cast %338 : vector<2x8xf32> to vector<2x8x1xf32>
    %340 = tpu.reciprocal %339 {approx = true} : vector<2x8x1xf32> -> vector<2x8x1xf32>
    %341 = vector.broadcast %340 : vector<2x8x1xf32> to vector<2x8x8xf32>
    %342 = arith.mulf %337, %341 : vector<2x8x8xf32>
    "tpu.trace_start"() <{level = 10 : i32, message = "bqk,bkd->bqd"}> : () -> ()
    %cst_143 = arith.constant dense<0.000000e+00> : vector<2x8x32xf32>
    %343 = tpu.matmul %342, %302, %cst_143 {dimension_numbers = #tpu.dot_dimension_numbers<[2], [1], [1], [2], [0, 0, 0, 1, 1, 2], [0], [0]>} : vector<2x8x8xf32>, vector<2x8x32xf32>, vector<2x8x32xf32> -> vector<2x8x32xf32>
    "tpu.trace_stop"() : () -> ()
    %344 = vector.shape_cast %15 : vector<1x32xf32> to vector<1x1x32xf32>
    %345 = vector.broadcast %344 : vector<1x1x32xf32> to vector<2x8x32xf32>
    %346 = arith.mulf %343, %345 : vector<2x8x32xf32>
    %347 = arith.addf %325, %346 : vector<2x8x32xf32>
    %348 = vector.extract_strided_slice %298 {offsets = [0, 0, 16], sizes = [2, 8, 8], strides = [1, 1, 1]} : vector<2x8x32xf32> to vector<2x8x8xf32>
    %349 = vector.extract_strided_slice %300 {offsets = [0, 0, 16], sizes = [2, 8, 8], strides = [1, 1, 1]} : vector<2x8x32xf32> to vector<2x8x8xf32>
    "tpu.trace_start"() <{level = 10 : i32, message = "bqd,bkd->bqk"}> : () -> ()
    %cst_144 = arith.constant dense<0.000000e+00> : vector<2x8x8xf32>
    %350 = tpu.matmul %348, %349, %cst_144 {dimension_numbers = #tpu.dot_dimension_numbers<[2], [2], [1], [1], [0, 0, 0, 1, 1, 1], [0], [0]>} : vector<2x8x8xf32>, vector<2x8x8xf32>, vector<2x8x8xf32> -> vector<2x8x8xf32>
    "tpu.trace_stop"() : () -> ()
    %cst_145 = arith.constant 0.353553385 : f32
    %351 = vector.broadcast %cst_145 : f32 to vector<2x8x8xf32>
    %352 = arith.mulf %350, %351 : vector<2x8x8xf32>
    %353 = vector.broadcast %0 : vector<2x1x8xf32> to vector<2x8x8xf32>
    %354 = arith.addf %352, %353 : vector<2x8x8xf32>
    %cst_146 = arith.constant dense<0xFF800000> : vector<2x8xf32>
    %355 = vector.multi_reduction <maximumf>, %354, %cst_146 [2] : vector<2x8x8xf32> to vector<2x8xf32>
    %356 = vector.shape_cast %355 : vector<2x8xf32> to vector<2x8x1xf32>
    %357 = vector.broadcast %356 : vector<2x8x1xf32> to vector<2x8x8xf32>
    %358 = arith.subf %354, %357 : vector<2x8x8xf32>
    %359 = math.exp %358 : vector<2x8x8xf32>
    %cst_147 = arith.constant dense<0.000000e+00> : vector<2x8xf32>
    %360 = vector.multi_reduction <add>, %359, %cst_147 [2] : vector<2x8x8xf32> to vector<2x8xf32>
    %361 = vector.shape_cast %360 : vector<2x8xf32> to vector<2x8x1xf32>
    %362 = tpu.reciprocal %361 {approx = true} : vector<2x8x1xf32> -> vector<2x8x1xf32>
    %363 = vector.broadcast %362 : vector<2x8x1xf32> to vector<2x8x8xf32>
    %364 = arith.mulf %359, %363 : vector<2x8x8xf32>
    "tpu.trace_start"() <{level = 10 : i32, message = "bqk,bkd->bqd"}> : () -> ()
    %cst_148 = arith.constant dense<0.000000e+00> : vector<2x8x32xf32>
    %365 = tpu.matmul %364, %302, %cst_148 {dimension_numbers = #tpu.dot_dimension_numbers<[2], [1], [1], [2], [0, 0, 0, 1, 1, 2], [0], [0]>} : vector<2x8x8xf32>, vector<2x8x32xf32>, vector<2x8x32xf32> -> vector<2x8x32xf32>
    "tpu.trace_stop"() : () -> ()
    %366 = vector.shape_cast %22 : vector<1x32xf32> to vector<1x1x32xf32>
    %367 = vector.broadcast %366 : vector<1x1x32xf32> to vector<2x8x32xf32>
    %368 = arith.mulf %365, %367 : vector<2x8x32xf32>
    %369 = arith.addf %347, %368 : vector<2x8x32xf32>
    %370 = vector.extract_strided_slice %298 {offsets = [0, 0, 24], sizes = [2, 8, 8], strides = [1, 1, 1]} : vector<2x8x32xf32> to vector<2x8x8xf32>
    %371 = vector.extract_strided_slice %300 {offsets = [0, 0, 24], sizes = [2, 8, 8], strides = [1, 1, 1]} : vector<2x8x32xf32> to vector<2x8x8xf32>
    "tpu.trace_start"() <{level = 10 : i32, message = "bqd,bkd->bqk"}> : () -> ()
    %cst_149 = arith.constant dense<0.000000e+00> : vector<2x8x8xf32>
    %372 = tpu.matmul %370, %371, %cst_149 {dimension_numbers = #tpu.dot_dimension_numbers<[2], [2], [1], [1], [0, 0, 0, 1, 1, 1], [0], [0]>} : vector<2x8x8xf32>, vector<2x8x8xf32>, vector<2x8x8xf32> -> vector<2x8x8xf32>
    "tpu.trace_stop"() : () -> ()
    %cst_150 = arith.constant 0.353553385 : f32
    %373 = vector.broadcast %cst_150 : f32 to vector<2x8x8xf32>
    %374 = arith.mulf %372, %373 : vector<2x8x8xf32>
    %375 = vector.broadcast %0 : vector<2x1x8xf32> to vector<2x8x8xf32>
    %376 = arith.addf %374, %375 : vector<2x8x8xf32>
    %cst_151 = arith.constant dense<0xFF800000> : vector<2x8xf32>
    %377 = vector.multi_reduction <maximumf>, %376, %cst_151 [2] : vector<2x8x8xf32> to vector<2x8xf32>
    %378 = vector.shape_cast %377 : vector<2x8xf32> to vector<2x8x1xf32>
    %379 = vector.broadcast %378 : vector<2x8x1xf32> to vector<2x8x8xf32>
    %380 = arith.subf %376, %379 : vector<2x8x8xf32>
    %381 = math.exp %380 : vector<2x8x8xf32>
    %cst_152 = arith.constant dense<0.000000e+00> : vector<2x8xf32>
    %382 = vector.multi_reduction <add>, %381, %cst_152 [2] : vector<2x8x8xf32> to vector<2x8xf32>
    %383 = vector.shape_cast %382 : vector<2x8xf32> to vector<2x8x1xf32>
    %384 = tpu.reciprocal %383 {approx = true} : vector<2x8x1xf32> -> vector<2x8x1xf32>
    %385 = vector.broadcast %384 : vector<2x8x1xf32> to vector<2x8x8xf32>
    %386 = arith.mulf %381, %385 : vector<2x8x8xf32>
    "tpu.trace_start"() <{level = 10 : i32, message = "bqk,bkd->bqd"}> : () -> ()
    %cst_153 = arith.constant dense<0.000000e+00> : vector<2x8x32xf32>
    %387 = tpu.matmul %386, %302, %cst_153 {dimension_numbers = #tpu.dot_dimension_numbers<[2], [1], [1], [2], [0, 0, 0, 1, 1, 2], [0], [0]>} : vector<2x8x8xf32>, vector<2x8x32xf32>, vector<2x8x32xf32> -> vector<2x8x32xf32>
    "tpu.trace_stop"() : () -> ()
    %388 = vector.shape_cast %29 : vector<1x32xf32> to vector<1x1x32xf32>
    %389 = vector.broadcast %388 : vector<1x1x32xf32> to vector<2x8x32xf32>
    %390 = arith.mulf %387, %389 : vector<2x8x32xf32>
    %391 = arith.addf %369, %390 : vector<2x8x32xf32>
    %392 = vector.shape_cast %391 : vector<2x8x32xf32> to vector<16x32xf32>
    %393 = arith.truncf %392 : vector<16x32xf32> to vector<16x32xbf16>
    %c1_154 = arith.constant 1 : index
    %c0_155 = arith.constant 0 : index
    %c0_156 = arith.constant 0 : index
    %394 = vector.load %arg7[%c1_154, %c0_155, %c0_156] : memref<2x32x32xbf16, #tpu.memory_space<vmem>>, vector<1x32x32xbf16>
    %395 = vector.shape_cast %394 : vector<1x32x32xbf16> to vector<32x32xbf16>
    %cst_157 = arith.constant dense<0.000000e+00> : vector<16x32xf32>
    %396 = tpu.matmul %393, %395, %cst_157 {dimension_numbers = #tpu.dot_dimension_numbers<[1], [0], [0], [1], [0, 0, 1, 1], [], []>} : vector<16x32xbf16>, vector<32x32xbf16>, vector<16x32xf32> -> vector<16x32xf32>
    %c1_158 = arith.constant 1 : index
    %c0_159 = arith.constant 0 : index
    %c0_160 = arith.constant 0 : index
    %397 = vector.load %arg8[%c1_158, %c0_159, %c0_160] : memref<2x1x32xf32, #tpu.memory_space<vmem>>, vector<1x1x32xf32>
    %398 = vector.shape_cast %397 : vector<1x1x32xf32> to vector<1x32xf32>
    %399 = vector.broadcast %398 : vector<1x32xf32> to vector<16x32xf32>
    %400 = arith.addf %396, %399 : vector<16x32xf32>
    %401 = arith.addf %263, %400 : vector<16x32xf32>
    %c1_161 = arith.constant 1 : index
    %c0_162 = arith.constant 0 : index
    %c0_163 = arith.constant 0 : index
    %402 = vector.load %arg9[%c1_161, %c0_162, %c0_163] : memref<2x1x32xf32, #tpu.memory_space<vmem>>, vector<1x1x32xf32>
    %403 = vector.shape_cast %402 : vector<1x1x32xf32> to vector<1x32xf32>
    %c1_164 = arith.constant 1 : index
    %c0_165 = arith.constant 0 : index
    %c0_166 = arith.constant 0 : index
    %404 = vector.load %arg10[%c1_164, %c0_165, %c0_166] : memref<2x1x32xf32, #tpu.memory_space<vmem>>, vector<1x1x32xf32>
    %405 = vector.shape_cast %404 : vector<1x1x32xf32> to vector<1x32xf32>
    %cst_167 = arith.constant dense<0.000000e+00> : vector<16xf32>
    %406 = vector.multi_reduction <add>, %401, %cst_167 [1] : vector<16x32xf32> to vector<16xf32>
    %407 = vector.shape_cast %406 : vector<16xf32> to vector<16x1xf32>
    %cst_168 = arith.constant 3.200000e+01 : f32
    %408 = vector.broadcast %cst_168 : f32 to vector<16x1xf32>
    %409 = arith.divf %407, %408 : vector<16x1xf32>
    %410 = vector.broadcast %409 : vector<16x1xf32> to vector<16x32xf32>
    %411 = arith.subf %401, %410 : vector<16x32xf32>
    %412 = arith.mulf %411, %411 : vector<16x32xf32>
    %cst_169 = arith.constant dense<0.000000e+00> : vector<16xf32>
    %413 = vector.multi_reduction <add>, %412, %cst_169 [1] : vector<16x32xf32> to vector<16xf32>
    %414 = vector.shape_cast %413 : vector<16xf32> to vector<16x1xf32>
    %cst_170 = arith.constant 3.100000e+01 : f32
    %415 = vector.broadcast %cst_170 : f32 to vector<16x1xf32>
    %416 = arith.divf %414, %415 : vector<16x1xf32>
    %417 = math.sqrt %416 : vector<16x1xf32>
    %cst_171 = arith.constant 9.99999997E-7 : f32
    %418 = vector.broadcast %cst_171 : f32 to vector<16x1xf32>
    %419 = arith.addf %417, %418 : vector<16x1xf32>
    %420 = tpu.reciprocal %419 {approx = true} : vector<16x1xf32> -> vector<16x1xf32>
    %421 = vector.broadcast %403 : vector<1x32xf32> to vector<16x32xf32>
    %422 = arith.mulf %421, %411 : vector<16x32xf32>
    %423 = vector.broadcast %420 : vector<16x1xf32> to vector<16x32xf32>
    %424 = arith.mulf %422, %423 : vector<16x32xf32>
    %425 = vector.broadcast %405 : vector<1x32xf32> to vector<16x32xf32>
    %426 = arith.addf %424, %425 : vector<16x32xf32>
    %427 = arith.truncf %426 : vector<16x32xf32> to vector<16x32xbf16>
    %cst_172 = arith.constant 0.000000e+00 : f32
    %428 = vector.broadcast %cst_172 : f32 to vector<16x32xf32>
    %c1_173 = arith.constant 1 : index
    %c0_174 = arith.constant 0 : index
    %c0_175 = arith.constant 0 : index
    %429 = vector.load %arg11[%c1_173, %c0_174, %c0_175] : memref<2x32x2048xbf16, #tpu.memory_space<vmem>>, vector<1x32x512xbf16>
    %430 = vector.shape_cast %429 : vector<1x32x512xbf16> to vector<32x512xbf16>
    %cst_176 = arith.constant dense<0.000000e+00> : vector<16x512xf32>
    %431 = tpu.matmul %427, %430, %cst_176 {dimension_numbers = #tpu.dot_dimension_numbers<[1], [0], [0], [1], [0, 0, 1, 1], [], []>} : vector<16x32xbf16>, vector<32x512xbf16>, vector<16x512xf32> -> vector<16x512xf32>
    %c1_177 = arith.constant 1 : index
    %c0_178 = arith.constant 0 : index
    %c0_179 = arith.constant 0 : index
    %432 = vector.load %arg12[%c1_177, %c0_178, %c0_179] : memref<2x1x2048xf32, #tpu.memory_space<vmem>>, vector<1x1x512xf32>
    %433 = vector.shape_cast %432 : vector<1x1x512xf32> to vector<1x512xf32>
    %434 = vector.broadcast %433 : vector<1x512xf32> to vector<16x512xf32>
    %435 = arith.addf %431, %434 : vector<16x512xf32>
    %cst_180 = arith.constant 0.000000e+00 : f32
    %436 = vector.broadcast %cst_180 : f32 to vector<16x512xf32>
    %437 = arith.maximumf %435, %436 : vector<16x512xf32>
    %438 = arith.truncf %437 : vector<16x512xf32> to vector<16x512xbf16>
    %c1_181 = arith.constant 1 : index
    %c0_182 = arith.constant 0 : index
    %c0_183 = arith.constant 0 : index
    %439 = vector.load %arg13[%c1_181, %c0_182, %c0_183] : memref<2x2048x32xbf16, #tpu.memory_space<vmem>>, vector<1x512x32xbf16>
    %440 = vector.shape_cast %439 : vector<1x512x32xbf16> to vector<512x32xbf16>
    %cst_184 = arith.constant dense<0.000000e+00> : vector<16x32xf32>
    %441 = tpu.matmul %438, %440, %cst_184 {dimension_numbers = #tpu.dot_dimension_numbers<[1], [0], [0], [1], [0, 0, 1, 1], [], []>} : vector<16x512xbf16>, vector<512x32xbf16>, vector<16x32xf32> -> vector<16x32xf32>
    %442 = arith.addf %428, %441 : vector<16x32xf32>
    %c1_185 = arith.constant 1 : index
    %c0_186 = arith.constant 0 : index
    %c512_187 = arith.constant 512 : index
    %443 = vector.load %arg11[%c1_185, %c0_186, %c512_187] : memref<2x32x2048xbf16, #tpu.memory_space<vmem>>, vector<1x32x512xbf16>
    %444 = vector.shape_cast %443 : vector<1x32x512xbf16> to vector<32x512xbf16>
    %cst_188 = arith.constant dense<0.000000e+00> : vector<16x512xf32>
    %445 = tpu.matmul %427, %444, %cst_188 {dimension_numbers = #tpu.dot_dimension_numbers<[1], [0], [0], [1], [0, 0, 1, 1], [], []>} : vector<16x32xbf16>, vector<32x512xbf16>, vector<16x512xf32> -> vector<16x512xf32>
    %c1_189 = arith.constant 1 : index
    %c0_190 = arith.constant 0 : index
    %c512_191 = arith.constant 512 : index
    %446 = vector.load %arg12[%c1_189, %c0_190, %c512_191] : memref<2x1x2048xf32, #tpu.memory_space<vmem>>, vector<1x1x512xf32>
    %447 = vector.shape_cast %446 : vector<1x1x512xf32> to vector<1x512xf32>
    %448 = vector.broadcast %447 : vector<1x512xf32> to vector<16x512xf32>
    %449 = arith.addf %445, %448 : vector<16x512xf32>
    %cst_192 = arith.constant 0.000000e+00 : f32
    %450 = vector.broadcast %cst_192 : f32 to vector<16x512xf32>
    %451 = arith.maximumf %449, %450 : vector<16x512xf32>
    %452 = arith.truncf %451 : vector<16x512xf32> to vector<16x512xbf16>
    %c1_193 = arith.constant 1 : index
    %c512_194 = arith.constant 512 : index
    %c0_195 = arith.constant 0 : index
    %453 = vector.load %arg13[%c1_193, %c512_194, %c0_195] : memref<2x2048x32xbf16, #tpu.memory_space<vmem>>, vector<1x512x32xbf16>
    %454 = vector.shape_cast %453 : vector<1x512x32xbf16> to vector<512x32xbf16>
    %cst_196 = arith.constant dense<0.000000e+00> : vector<16x32xf32>
    %455 = tpu.matmul %452, %454, %cst_196 {dimension_numbers = #tpu.dot_dimension_numbers<[1], [0], [0], [1], [0, 0, 1, 1], [], []>} : vector<16x512xbf16>, vector<512x32xbf16>, vector<16x32xf32> -> vector<16x32xf32>
    %456 = arith.addf %442, %455 : vector<16x32xf32>
    %c1_197 = arith.constant 1 : index
    %c0_198 = arith.constant 0 : index
    %c1024_199 = arith.constant 1024 : index
    %457 = vector.load %arg11[%c1_197, %c0_198, %c1024_199] : memref<2x32x2048xbf16, #tpu.memory_space<vmem>>, vector<1x32x512xbf16>
    %458 = vector.shape_cast %457 : vector<1x32x512xbf16> to vector<32x512xbf16>
    %cst_200 = arith.constant dense<0.000000e+00> : vector<16x512xf32>
    %459 = tpu.matmul %427, %458, %cst_200 {dimension_numbers = #tpu.dot_dimension_numbers<[1], [0], [0], [1], [0, 0, 1, 1], [], []>} : vector<16x32xbf16>, vector<32x512xbf16>, vector<16x512xf32> -> vector<16x512xf32>
    %c1_201 = arith.constant 1 : index
    %c0_202 = arith.constant 0 : index
    %c1024_203 = arith.constant 1024 : index
    %460 = vector.load %arg12[%c1_201, %c0_202, %c1024_203] : memref<2x1x2048xf32, #tpu.memory_space<vmem>>, vector<1x1x512xf32>
    %461 = vector.shape_cast %460 : vector<1x1x512xf32> to vector<1x512xf32>
    %462 = vector.broadcast %461 : vector<1x512xf32> to vector<16x512xf32>
    %463 = arith.addf %459, %462 : vector<16x512xf32>
    %cst_204 = arith.constant 0.000000e+00 : f32
    %464 = vector.broadcast %cst_204 : f32 to vector<16x512xf32>
    %465 = arith.maximumf %463, %464 : vector<16x512xf32>
    %466 = arith.truncf %465 : vector<16x512xf32> to vector<16x512xbf16>
    %c1_205 = arith.constant 1 : index
    %c1024_206 = arith.constant 1024 : index
    %c0_207 = arith.constant 0 : index
    %467 = vector.load %arg13[%c1_205, %c1024_206, %c0_207] : memref<2x2048x32xbf16, #tpu.memory_space<vmem>>, vector<1x512x32xbf16>
    %468 = vector.shape_cast %467 : vector<1x512x32xbf16> to vector<512x32xbf16>
    %cst_208 = arith.constant dense<0.000000e+00> : vector<16x32xf32>
    %469 = tpu.matmul %466, %468, %cst_208 {dimension_numbers = #tpu.dot_dimension_numbers<[1], [0], [0], [1], [0, 0, 1, 1], [], []>} : vector<16x512xbf16>, vector<512x32xbf16>, vector<16x32xf32> -> vector<16x32xf32>
    %470 = arith.addf %456, %469 : vector<16x32xf32>
    %c1_209 = arith.constant 1 : index
    %c0_210 = arith.constant 0 : index
    %c1536_211 = arith.constant 1536 : index
    %471 = vector.load %arg11[%c1_209, %c0_210, %c1536_211] : memref<2x32x2048xbf16, #tpu.memory_space<vmem>>, vector<1x32x512xbf16>
    %472 = vector.shape_cast %471 : vector<1x32x512xbf16> to vector<32x512xbf16>
    %cst_212 = arith.constant dense<0.000000e+00> : vector<16x512xf32>
    %473 = tpu.matmul %427, %472, %cst_212 {dimension_numbers = #tpu.dot_dimension_numbers<[1], [0], [0], [1], [0, 0, 1, 1], [], []>} : vector<16x32xbf16>, vector<32x512xbf16>, vector<16x512xf32> -> vector<16x512xf32>
    %c1_213 = arith.constant 1 : index
    %c0_214 = arith.constant 0 : index
    %c1536_215 = arith.constant 1536 : index
    %474 = vector.load %arg12[%c1_213, %c0_214, %c1536_215] : memref<2x1x2048xf32, #tpu.memory_space<vmem>>, vector<1x1x512xf32>
    %475 = vector.shape_cast %474 : vector<1x1x512xf32> to vector<1x512xf32>
    %476 = vector.broadcast %475 : vector<1x512xf32> to vector<16x512xf32>
    %477 = arith.addf %473, %476 : vector<16x512xf32>
    %cst_216 = arith.constant 0.000000e+00 : f32
    %478 = vector.broadcast %cst_216 : f32 to vector<16x512xf32>
    %479 = arith.maximumf %477, %478 : vector<16x512xf32>
    %480 = arith.truncf %479 : vector<16x512xf32> to vector<16x512xbf16>
    %c1_217 = arith.constant 1 : index
    %c1536_218 = arith.constant 1536 : index
    %c0_219 = arith.constant 0 : index
    %481 = vector.load %arg13[%c1_217, %c1536_218, %c0_219] : memref<2x2048x32xbf16, #tpu.memory_space<vmem>>, vector<1x512x32xbf16>
    %482 = vector.shape_cast %481 : vector<1x512x32xbf16> to vector<512x32xbf16>
    %cst_220 = arith.constant dense<0.000000e+00> : vector<16x32xf32>
    %483 = tpu.matmul %480, %482, %cst_220 {dimension_numbers = #tpu.dot_dimension_numbers<[1], [0], [0], [1], [0, 0, 1, 1], [], []>} : vector<16x512xbf16>, vector<512x32xbf16>, vector<16x32xf32> -> vector<16x32xf32>
    %484 = arith.addf %470, %483 : vector<16x32xf32>
    %485 = arith.addf %401, %484 : vector<16x32xf32>
    %c1_221 = arith.constant 1 : index
    %c0_222 = arith.constant 0 : index
    %c0_223 = arith.constant 0 : index
    %486 = vector.load %arg14[%c1_221, %c0_222, %c0_223] : memref<2x1x32xf32, #tpu.memory_space<vmem>>, vector<1x1x32xf32>
    %487 = vector.shape_cast %486 : vector<1x1x32xf32> to vector<1x32xf32>
    %488 = vector.broadcast %487 : vector<1x32xf32> to vector<16x32xf32>
    %489 = arith.addf %485, %488 : vector<16x32xf32>
    %c0_224 = arith.constant 0 : index
    %c0_225 = arith.constant 0 : index
    %490 = vector.load %arg15[%c0_224, %c0_225] : memref<1x32xf32, #tpu.memory_space<vmem>>, vector<1x32xf32>
    %c0_226 = arith.constant 0 : index
    %c0_227 = arith.constant 0 : index
    %491 = vector.load %arg16[%c0_226, %c0_227] : memref<1x32xf32, #tpu.memory_space<vmem>>, vector<1x32xf32>
    %cst_228 = arith.constant dense<0.000000e+00> : vector<16xf32>
    %492 = vector.multi_reduction <add>, %489, %cst_228 [1] : vector<16x32xf32> to vector<16xf32>
    %493 = vector.shape_cast %492 : vector<16xf32> to vector<16x1xf32>
    %cst_229 = arith.constant 3.200000e+01 : f32
    %494 = vector.broadcast %cst_229 : f32 to vector<16x1xf32>
    %495 = arith.divf %493, %494 : vector<16x1xf32>
    %496 = vector.broadcast %495 : vector<16x1xf32> to vector<16x32xf32>
    %497 = arith.subf %489, %496 : vector<16x32xf32>
    %498 = arith.mulf %497, %497 : vector<16x32xf32>
    %cst_230 = arith.constant dense<0.000000e+00> : vector<16xf32>
    %499 = vector.multi_reduction <add>, %498, %cst_230 [1] : vector<16x32xf32> to vector<16xf32>
    %500 = vector.shape_cast %499 : vector<16xf32> to vector<16x1xf32>
    %cst_231 = arith.constant 3.100000e+01 : f32
    %501 = vector.broadcast %cst_231 : f32 to vector<16x1xf32>
    %502 = arith.divf %500, %501 : vector<16x1xf32>
    %503 = math.sqrt %502 : vector<16x1xf32>
    %cst_232 = arith.constant 9.99999997E-7 : f32
    %504 = vector.broadcast %cst_232 : f32 to vector<16x1xf32>
    %505 = arith.addf %503, %504 : vector<16x1xf32>
    %506 = tpu.reciprocal %505 {approx = true} : vector<16x1xf32> -> vector<16x1xf32>
    %507 = vector.broadcast %490 : vector<1x32xf32> to vector<16x32xf32>
    %508 = arith.mulf %507, %497 : vector<16x32xf32>
    %509 = vector.broadcast %506 : vector<16x1xf32> to vector<16x32xf32>
    %510 = arith.mulf %508, %509 : vector<16x32xf32>
    %511 = vector.broadcast %491 : vector<1x32xf32> to vector<16x32xf32>
    %512 = arith.addf %510, %511 : vector<16x32xf32>
    %c0_233 = arith.constant 0 : index
    %c0_234 = arith.constant 0 : index
    %513 = vector.load %arg17[%c0_233, %c0_234] : memref<16x32xf32, #tpu.memory_space<vmem>>, vector<16x32xf32>
    tpu.vector_store %arg17[%c0_233, %c0_234], %512 {strides = array<i32>} : memref<16x32xf32, #tpu.memory_space<vmem>>, vector<16x32xf32>,
    return
  }
}

</mosaic_0001>

<llo_original>
// kernel: encoder_forward.1
$region0: #{encoder_forward.1}
  #allocation0 [shape = 'u32[]', space=smem, size = 0x4, offset = 0x4, fixed_abs, tag = 'smem constant byte address 0x4 - core index']
  #allocation1 [shape = 'u32[144,128]{1,0:T(1,128)}', space=vmem, size = 0x12000, scoped, tag = 'internal scratch']
  %s0 = inlined_call_operand.vmem [shape: f32[2,8,32], index: 0, kind: input, shape index: {}]
  %s1 = inlined_call_operand.vmem [shape: f32[8,32], index: 1, kind: input, shape index: {}]
  %s2 = inlined_call_operand.vmem [shape: f32[2,1,8], index: 2, kind: input, shape index: {}]
  %s3 = inlined_call_operand.vmem [shape: f32[2,1,32], index: 3, kind: input, shape index: {}]
  %s4 = inlined_call_operand.vmem [shape: f32[2,1,32], index: 4, kind: input, shape index: {}]
  %s5 = inlined_call_operand.vmem [shape: bf16[2,32,96], index: 5, kind: input, shape index: {}]
  %s6 = inlined_call_operand.vmem [shape: f32[2,1,96], index: 6, kind: input, shape index: {}]
  %s7 = inlined_call_operand.vmem [shape: bf16[2,32,32], index: 7, kind: input, shape index: {}]
  %s8 = inlined_call_operand.vmem [shape: f32[2,1,32], index: 8, kind: input, shape index: {}]
  %s9 = inlined_call_operand.vmem [shape: f32[2,1,32], index: 9, kind: input, shape index: {}]
  %s10 = inlined_call_operand.vmem [shape: f32[2,1,32], index: 10, kind: input, shape index: {}]
  %s11 = inlined_call_operand.vmem [shape: bf16[2,32,2048], index: 11, kind: input, shape index: {}]
  %s12 = inlined_call_operand.vmem [shape: f32[2,1,2048], index: 12, kind: input, shape index: {}]
  %s13 = inlined_call_operand.vmem [shape: bf16[2,2048,32], index: 13, kind: input, shape index: {}]
  %s14 = inlined_call_operand.vmem [shape: f32[2,1,32], index: 14, kind: input, shape index: {}]
  %s15 = inlined_call_operand.vmem [shape: f32[1,32], index: 15, kind: input, shape index: {}]
  %s16 = inlined_call_operand.vmem [shape: f32[1,32], index: 16, kind: input, shape index: {}]
  %s17 = inlined_call_operand.hbm [shape: f32[16,32], index: 17, kind: output, shape index: {}]
  %s18 = sld [smem:[#allocation0]]
  $region78: #{encoder_forward.1} parent=0
    _
  %s20 = ssub.s32 1, %s18
  %s21 = scalar_select 0, %s20, %s18
  $region1: #{encoder_forward.1} parent=0
    #allocation2 [shape = 'u8[8192]{0}', space=vmem, size = 0x2000, scoped, tag = 'output window, operand 0, single buffered']
    #allocation3 [shape = 's32[1]{0}', space=sflag, size = 0x4, scoped, tag = 'scoped memory for encoder_forward.1']
    %22 = vsyncpa [#allocation3], 0
    // Predicated region
    $region2: #{encoder_forward.1} parent=1 // pred_check
      _
    $region3: #{encoder_forward.1} parent=1 // pred_check_branch
      %24 = sbr.rel (0) target = $region5
    $region4: #{encoder_forward.1} parent=1 // pred_region
      _
    $region5: #{encoder_forward.1} parent=1 // pred_fallthru
      _
    // Predicated region
    $region6: #{encoder_forward.1} parent=1 // pred_check
      _
    $region7: #{encoder_forward.1} parent=1 // pred_check_branch
      %26 = sbr.rel (0) target = $region9
    $region8: #{encoder_forward.1} parent=1 // pred_region
      _
    $region9: #{encoder_forward.1} parent=1 // pred_fallthru
      _
    // Predicated region
    $region10: #{encoder_forward.1} parent=1 // pred_check
      _
    $region11: #{encoder_forward.1} parent=1 // pred_check_branch
      %28 = sbr.rel (0) target = $region13
    $region12: #{encoder_forward.1} parent=1 // pred_region
      _
    $region13: #{encoder_forward.1} parent=1 // pred_fallthru
      _
    // Predicated region
    $region14: #{encoder_forward.1} parent=1 // pred_check
      _
    $region15: #{encoder_forward.1} parent=1 // pred_check_branch
      %30 = sbr.rel (0) target = $region17
    $region16: #{encoder_forward.1} parent=1 // pred_region
      _
    $region17: #{encoder_forward.1} parent=1 // pred_fallthru
      _
    // Predicated region
    $region18: #{encoder_forward.1} parent=1 // pred_check
      _
    $region19: #{encoder_forward.1} parent=1 // pred_check_branch
      %32 = sbr.rel (0) target = $region21
    $region20: #{encoder_forward.1} parent=1 // pred_region
      _
    $region21: #{encoder_forward.1} parent=1 // pred_fallthru
      _
    // Predicated region
    $region22: #{encoder_forward.1} parent=1 // pred_check
      _
    $region23: #{encoder_forward.1} parent=1 // pred_check_branch
      %34 = sbr.rel (0) target = $region25
    $region24: #{encoder_forward.1} parent=1 // pred_region
      _
    $region25: #{encoder_forward.1} parent=1 // pred_fallthru
      _
    // Predicated region
    $region26: #{encoder_forward.1} parent=1 // pred_check
      _
    $region27: #{encoder_forward.1} parent=1 // pred_check_branch
      %36 = sbr.rel (0) target = $region29
    $region28: #{encoder_forward.1} parent=1 // pred_region
      _
    $region29: #{encoder_forward.1} parent=1 // pred_fallthru
      _
    // Predicated region
    $region30: #{encoder_forward.1} parent=1 // pred_check
      _
    $region31: #{encoder_forward.1} parent=1 // pred_check_branch
      %38 = sbr.rel (0) target = $region33
    $region32: #{encoder_forward.1} parent=1 // pred_region
      _
    $region33: #{encoder_forward.1} parent=1 // pred_fallthru
      _
    // Predicated region
    $region34: #{encoder_forward.1} parent=1 // pred_check
      _
    $region35: #{encoder_forward.1} parent=1 // pred_check_branch
      %40 = sbr.rel (0) target = $region37
    $region36: #{encoder_forward.1} parent=1 // pred_region
      _
    $region37: #{encoder_forward.1} parent=1 // pred_fallthru
      _
    // Predicated region
    $region38: #{encoder_forward.1} parent=1 // pred_check
      _
    $region39: #{encoder_forward.1} parent=1 // pred_check_branch
      %42 = sbr.rel (0) target = $region41
    $region40: #{encoder_forward.1} parent=1 // pred_region
      _
    $region41: #{encoder_forward.1} parent=1 // pred_fallthru
      _
    // Predicated region
    $region42: #{encoder_forward.1} parent=1 // pred_check
      _
    $region43: #{encoder_forward.1} parent=1 // pred_check_branch
      %44 = sbr.rel (0) target = $region45
    $region44: #{encoder_forward.1} parent=1 // pred_region
      _
    $region45: #{encoder_forward.1} parent=1 // pred_fallthru
      _
    // Predicated region
    $region46: #{encoder_forward.1} parent=1 // pred_check
      _
    $region47: #{encoder_forward.1} parent=1 // pred_check_branch
      %46 = sbr.rel (0) target = $region49
    $region48: #{encoder_forward.1} parent=1 // pred_region
      _
    $region49: #{encoder_forward.1} parent=1 // pred_fallthru
      _
    // Predicated region
    $region50: #{encoder_forward.1} parent=1 // pred_check
      _
    $region51: #{encoder_forward.1} parent=1 // pred_check_branch
      %48 = sbr.rel (0) target = $region53
    $region52: #{encoder_forward.1} parent=1 // pred_region
      _
    $region53: #{encoder_forward.1} parent=1 // pred_fallthru
      _
    // Predicated region
    $region54: #{encoder_forward.1} parent=1 // pred_check
      _
    $region55: #{encoder_forward.1} parent=1 // pred_check_branch
      %50 = sbr.rel (0) target = $region57
    $region56: #{encoder_forward.1} parent=1 // pred_region
      _
    $region57: #{encoder_forward.1} parent=1 // pred_fallthru
      _
    // Predicated region
    $region58: #{encoder_forward.1} parent=1 // pred_check
      _
    $region59: #{encoder_forward.1} parent=1 // pred_check_branch
      %52 = sbr.rel (0) target = $region61
    $region60: #{encoder_forward.1} parent=1 // pred_region
      _
    $region61: #{encoder_forward.1} parent=1 // pred_fallthru
      _
    // Predicated region
    $region62: #{encoder_forward.1} parent=1 // pred_check
      _
    $region63: #{encoder_forward.1} parent=1 // pred_check_branch
      %54 = sbr.rel (0) target = $region65
    $region64: #{encoder_forward.1} parent=1 // pred_region
      _
    $region65: #{encoder_forward.1} parent=1 // pred_fallthru
      _
    // Predicated region
    $region66: #{encoder_forward.1} parent=1 // pred_check
      _
    $region67: #{encoder_forward.1} parent=1 // pred_check_branch
      %56 = sbr.rel (0) target = $region69
    $region68: #{encoder_forward.1} parent=1 // pred_region
      _
    $region69: #{encoder_forward.1} parent=1 // pred_fallthru
      _
    %v58 = vld [vmem:[%s2] sm:$0x1]
    %v59 = vld [vmem:[%s2 + $0x1] sm:$0x1]
    %v60 = vlaneseq
    %v61 = vand.u32 %v60, 127
    %vm62 = vcmp.ge.s32.totalorder %v61, 0
    %vm63 = vcmp.lt.s32.totalorder %v61, 8
    %vm64 = vmand %vm62, %vm63
    %v65 = vsel %vm64, 1, 0
    %v66 = vcvt.s32.f32 %v65
    %vm67 = vcmp.ge.s32.totalorder %v61, 8
    %vm68 = vcmp.lt.s32.totalorder %v61, 16
    %vm69 = vmand %vm67, %vm68
    %v70 = vsel %vm69, 1, 0
    %v71 = vcvt.s32.f32 %v70
    %vm72 = vcmp.ge.s32.totalorder %v61, 16
    %vm73 = vcmp.lt.s32.totalorder %v61, 24
    %vm74 = vmand %vm72, %vm73
    %v75 = vsel %vm74, 1, 0
    %v76 = vcvt.s32.f32 %v75
    %vm77 = vcmp.ge.s32.totalorder %v61, 24
    %vm78 = vcmp.lt.s32.totalorder %v61, 32
    %vm79 = vmand %vm77, %vm78
    %v80 = vsel %vm79, 1, 0
    %v81 = vcvt.s32.f32 %v80
    %v82 = vld [vmem:[%s0] sm:$0xff]
    %v83 = vld [vmem:[%s0 + $0x8] sm:$0xff]
    %v84 = vmul.f32 %v82, 5.656854
    %v85 = vmul.f32 %v83, 5.656854
    %v86 = vld [vmem:[%s1] sm:$0xff]
    %v87 = vadd.f32 %v84, %v86
    %v88 = vadd.f32 %v85, %v86
    %v89 = vld [vmem:[%s3] sm:$0x1]
    %v90 = vld [vmem:[%s4] sm:$0x1]
    %vm91 = vcmask 261120
    %v92 = vsel %vm91, %v87, 0.0
    %93 = vadd.xlane.f32.xlu0 %v92
    %v94 = vpop.xlane.xlu0 %93
    %v95 = vsel %vm91, %v88, 0.0
    %96 = vadd.xlane.f32.xlu0 %v95
    %v97 = vpop.xlane.xlu0 %96
    %v98 = vrcp.pop 32.0
    %v99 = vmul.f32 %v94, %v98
    %v100 = vmul.f32 %v97, %v98
    %v101 = vsub.f32 %v87, %v99
    %v102 = vsub.f32 %v88, %v100
    %v103 = vmul.f32 %v101, %v101
    %v104 = vmul.f32 %v102, %v102
    %v105 = vsel %vm91, %v103, 0.0
    %106 = vadd.xlane.f32.xlu0 %v105
    %v107 = vpop.xlane.xlu0 %106
    %v108 = vsel %vm91, %v104, 0.0
    %109 = vadd.xlane.f32.xlu0 %v108
    %v110 = vpop.xlane.xlu0 %109
    %v111 = vrcp.pop 31.0
    %v112 = vmul.f32 %v107, %v111
    %v113 = vmul.f32 %v110, %v111
    %v114 = vrsqrt.pop %v112
    %v115 = vmul.f32 %v112, %v114
    %vm116 = vcmp.eq.f32.partialorder %v112, inf
    %v117 = vsel %vm116, %v112, %v115
    %vm118 = vcmp.eq.f32.partialorder %v112, 0.0
    %v119 = vand.u32 %v112, 2147483648
    %v120 = vsel %vm118, %v119, %v117
    %v121 = vrsqrt.pop %v113
    %v122 = vmul.f32 %v113, %v121
    %vm123 = vcmp.eq.f32.partialorder %v113, inf
    %v124 = vsel %vm123, %v113, %v122
    %vm125 = vcmp.eq.f32.partialorder %v113, 0.0
    %v126 = vand.u32 %v113, 2147483648
    %v127 = vsel %vm125, %v126, %v124
    %v128 = vadd.f32 %v120, 1e-06
    %v129 = vadd.f32 %v127, 1e-06
    %v130 = vrcp.pop %v128
    %v131 = vrcp.pop %v129
    %v133 = vlaneseq
    %v134 = vshrl.u32 %v133, 7
    %v135 = vsub.s32 0, %v134
    %v136 = vrot.slane %v89, %v135
    %v138 = vmul.f32 %v136, %v101
    %v139 = vmul.f32 %v136, %v102
    %v140 = vmul.f32 %v138, %v130
    %v141 = vmul.f32 %v139, %v131
    %v143 = vlaneseq
    %v144 = vshrl.u32 %v143, 7
    %v145 = vsub.s32 0, %v144
    %v146 = vrot.slane %v90, %v145
    %v148 = vadd.f32 %v140, %v146
    %v149 = vadd.f32 %v141, %v146
    %v150 = vpack.c.bf16 %v149, %v148
    %v151 = vld [vmem:[%s5] sm:$0xf]
    %v152 = vld [vmem:[%s5 + $0x4] sm:$0xf]
    %v153 = vld [vmem:[%s5 + $0x8] sm:$0xf]
    %v154 = vld [vmem:[%s5 + $0xc] sm:$0xf]
    %v155 = vld [vmem:[%s6] sm:$0x1]
    %v157 = vlaneseq
    %v158 = vshrl.u32 %v157, 7
    %v159 = vsub.s32 0, %v158
    %v160 = vrot.slane %v155, %v159
    %v166 = vunpack.c.l.b16 %v151
    %v167 = vunpack.c.l.b16 %v152
    %v168 = vunpack.c.l.b16 %v153
    %v169 = vunpack.c.l.b16 %v154
    %v170 = vpack.c.b16 %v167, %v166
    %v171 = vpack.c.b16 %v169, %v168
    %v175 = vsel %vm91, %v150, 0
    %177 = vmatprep.subr.bf16.mxu0 0
    %178 = vmatpush1.bf16.msra.mxu0 0
    %179 = vmatprep.subr.bf16.mxu0 0
    %180 = vmatpush1.bf16.msra.mxu0 0
    %181 = vmatprep.subr.bf16.mxu0 0
    %182 = vmatpush1.bf16.msra.mxu0 0
    %183 = vmatprep.subr.bf16.mxu0 0
    %184 = vmatpush1.bf16.msra.mxu0 0
    %185 = vmatprep.subr.bf16.mxu0 0
    %186 = vmatpush1.bf16.msra.mxu0 0
    %187 = vmatprep.subr.bf16.mxu0 0
    %188 = vmatpush1.bf16.msra.mxu0 0
    %189 = vmatprep.subr.bf16.mxu0 0
    %190 = vmatpush1.bf16.msra.mxu0 %v171
    %191 = vmatprep.subr.bf16.mxu0 0
    %192 = vmatpush1.bf16.msra.mxu0 %v170
    %193 = vmatprep.subr.bf16.mxu0 0
    %194 = vmatpush2.bf16.msra.mxu0 0
    %195 = vmatprep.subr.bf16.mxu0 0
    %196 = vmatpush2.bf16.msra.mxu0 0
    %197 = vmatprep.subr.bf16.mxu0 0
    %198 = vmatpush2.bf16.msra.mxu0 0
    %199 = vmatprep.subr.bf16.mxu0 0
    %200 = vmatpush2.bf16.msra.mxu0 0
    %201 = vmatprep.subr.bf16.mxu0 0
    %202 = vmatpush2.bf16.msra.mxu0 0
    %203 = vmatprep.subr.bf16.mxu0 0
    %204 = vmatpush2.bf16.msra.mxu0 0
    %205 = vmatprep.subr.bf16.mxu0 0
    %206 = vmatpush2.bf16.msra.mxu0 0
    %207 = vmatprep.subr.bf16.mxu0 0
    %208 = vmatpush2.bf16.msra.mxu0 0
    %209 = vmatprep.mubr.bf16.mxu0 0
    %210 = vmatmul.mubr.bf16.gmra.mxu0 %v175
    %v211 = vpop.f32.mrf.mxu0
    %v212 = vadd.f32 %v160, %v211
    %v213 = vpop.f32.mrf.mxu0
    %v214 = vpop.f32.mrf.mxu0
    %v215 = vadd.f32 %v160, %v214
    %v216 = vpop.f32.mrf.mxu0
    %217 = vdwg.mxu0
    %219 = vrot.lane.b32.xlu0 %v212, 96
    %v220 = vpop.permute.xlu0 %219
    %vm221 = vcmask 64512
    %v222 = vsel %vm221, %v212, 0
    %v224 = vsel %vm221, %v220, 0
    %226 = vmatprep.subr.mxu0 0.0
    %227 = vmatpush1.xpose.msra.mxu0 0.0
    %228 = vmatprep.subr.mxu0 0.0
    %229 = vmatpush1.xpose.msra.mxu0 0.0
    %230 = vmatprep.subr.mxu0 0.0
    %231 = vmatpush1.xpose.msra.mxu0 0.0
    %232 = vmatprep.subr.mxu0 0.0
    %233 = vmatpush1.xpose.msra.mxu0 0.0
    %234 = vmatprep.subr.mxu0 0.0
    %235 = vmatpush1.xpose.msra.mxu0 0.0
    %236 = vmatprep.subr.mxu0 0.0
    %237 = vmatpush1.xpose.msra.mxu0 0.0
    %238 = vmatprep.subr.mxu0 0.0
    %239 = vmatpush1.xpose.msra.mxu0 0.0
    %240 = vmatprep.subr.mxu0 0.0
    %241 = vmatpush1.xpose.msra.mxu0 0.0
    %242 = vmatprep.subr.mxu0 0.0
    %243 = vmatpush1.xpose.msra.mxu0 0.0
    %244 = vmatprep.subr.mxu0 0.0
    %245 = vmatpush1.xpose.msra.mxu0 0.0
    %246 = vmatprep.subr.mxu0 0.0
    %247 = vmatpush1.xpose.msra.mxu0 0.0
    %248 = vmatprep.subr.mxu0 0.0
    %249 = vmatpush1.xpose.msra.mxu0 0.0
    %250 = vmatprep.subr.mxu0 0.0
    %251 = vmatpush1.xpose.msra.mxu0 0.0
    %252 = vmatprep.subr.mxu0 0.0
    %253 = vmatpush1.xpose.msra.mxu0 0.0
    %254 = vmatprep.subr.mxu0 0.0
    %255 = vmatpush1.xpose.msra.mxu0 0.0
    %256 = vmatprep.subr.mxu0 0.0
    %257 = vmatpush1.xpose.msra.mxu0 %v224
    %258 = vmatprep.subr.mxu0 0.0
    %259 = vmatpush2.xpose.msra.mxu0 0.0
    %260 = vmatprep.subr.mxu0 0.0
    %261 = vmatpush2.xpose.msra.mxu0 0.0
    %262 = vmatprep.subr.mxu0 0.0
    %263 = vmatpush2.xpose.msra.mxu0 0.0
    %264 = vmatprep.subr.mxu0 0.0
    %265 = vmatpush2.xpose.msra.mxu0 0.0
    %266 = vmatprep.subr.mxu0 0.0
    %267 = vmatpush2.xpose.msra.mxu0 0.0
    %268 = vmatprep.subr.mxu0 0.0
    %269 = vmatpush2.xpose.msra.mxu0 0.0
    %270 = vmatprep.subr.mxu0 0.0
    %271 = vmatpush2.xpose.msra.mxu0 0.0
    %272 = vmatprep.subr.mxu0 0.0
    %273 = vmatpush2.xpose.msra.mxu0 0.0
    %274 = vmatprep.subr.mxu0 0.0
    %275 = vmatpush2.xpose.msra.mxu0 0.0
    %276 = vmatprep.subr.mxu0 0.0
    %277 = vmatpush2.xpose.msra.mxu0 0.0
    %278 = vmatprep.subr.mxu0 0.0
    %279 = vmatpush2.xpose.msra.mxu0 0.0
    %280 = vmatprep.subr.mxu0 0.0
    %281 = vmatpush2.xpose.msra.mxu0 0.0
    %282 = vmatprep.subr.mxu0 0.0
    %283 = vmatpush2.xpose.msra.mxu0 0.0
    %284 = vmatprep.subr.mxu0 0.0
    %285 = vmatpush2.xpose.msra.mxu0 0.0
    %286 = vmatprep.subr.mxu0 0.0
    %287 = vmatpush2.xpose.msra.mxu0 0.0
    %288 = vmatprep.subr.mxu0 0.0
    %289 = vmatpush2.xpose.msra.mxu0 0.0
    %290 = vmatprep.mubr.f32.mxu0 0.0
    %291 = vmatmul.mubr.f32.gmra.mxu0 %v222
    %v292 = vpop.f32.mrf.mxu0
    %v293 = vadd.f32 0.0, %v292
    %v294 = vpop.f32.mrf.mxu0
    %295 = vdwg.mxu0
    %297 = vrot.lane.b32.xlu0 %v215, 96
    %v298 = vpop.permute.xlu0 %297
    %v299 = vsel %vm221, %v215, 0
    %v301 = vsel %vm221, %v298, 0
    %303 = vmatprep.subr.mxu0 0.0
    %304 = vmatpush1.xpose.msra.mxu0 0.0
    %305 = vmatprep.subr.mxu0 0.0
    %306 = vmatpush1.xpose.msra.mxu0 0.0
    %307 = vmatprep.subr.mxu0 0.0
    %308 = vmatpush1.xpose.msra.mxu0 0.0
    %309 = vmatprep.subr.mxu0 0.0
    %310 = vmatpush1.xpose.msra.mxu0 0.0
    %311 = vmatprep.subr.mxu0 0.0
    %312 = vmatpush1.xpose.msra.mxu0 0.0
    %313 = vmatprep.subr.mxu0 0.0
    %314 = vmatpush1.xpose.msra.mxu0 0.0
    %315 = vmatprep.subr.mxu0 0.0
    %316 = vmatpush1.xpose.msra.mxu0 0.0
    %317 = vmatprep.subr.mxu0 0.0
    %318 = vmatpush1.xpose.msra.mxu0 0.0
    %319 = vmatprep.subr.mxu0 0.0
    %320 = vmatpush1.xpose.msra.mxu0 0.0
    %321 = vmatprep.subr.mxu0 0.0
    %322 = vmatpush1.xpose.msra.mxu0 0.0
    %323 = vmatprep.subr.mxu0 0.0
    %324 = vmatpush1.xpose.msra.mxu0 0.0
    %325 = vmatprep.subr.mxu0 0.0
    %326 = vmatpush1.xpose.msra.mxu0 0.0
    %327 = vmatprep.subr.mxu0 0.0
    %328 = vmatpush1.xpose.msra.mxu0 0.0
    %329 = vmatprep.subr.mxu0 0.0
    %330 = vmatpush1.xpose.msra.mxu0 0.0
    %331 = vmatprep.subr.mxu0 0.0
    %332 = vmatpush1.xpose.msra.mxu0 0.0
    %333 = vmatprep.subr.mxu0 0.0
    %334 = vmatpush1.xpose.msra.mxu0 %v301
    %335 = vmatprep.subr.mxu0 0.0
    %336 = vmatpush2.xpose.msra.mxu0 0.0
    %337 = vmatprep.subr.mxu0 0.0
    %338 = vmatpush2.xpose.msra.mxu0 0.0
    %339 = vmatprep.subr.mxu0 0.0
    %340 = vmatpush2.xpose.msra.mxu0 0.0
    %341 = vmatprep.subr.mxu0 0.0
    %342 = vmatpush2.xpose.msra.mxu0 0.0
    %343 = vmatprep.subr.mxu0 0.0
    %344 = vmatpush2.xpose.msra.mxu0 0.0
    %345 = vmatprep.subr.mxu0 0.0
    %346 = vmatpush2.xpose.msra.mxu0 0.0
    %347 = vmatprep.subr.mxu0 0.0
    %348 = vmatpush2.xpose.msra.mxu0 0.0
    %349 = vmatprep.subr.mxu0 0.0
    %350 = vmatpush2.xpose.msra.mxu0 0.0
    %351 = vmatprep.subr.mxu0 0.0
    %352 = vmatpush2.xpose.msra.mxu0 0.0
    %353 = vmatprep.subr.mxu0 0.0
    %354 = vmatpush2.xpose.msra.mxu0 0.0
    %355 = vmatprep.subr.mxu0 0.0
    %356 = vmatpush2.xpose.msra.mxu0 0.0
    %357 = vmatprep.subr.mxu0 0.0
    %358 = vmatpush2.xpose.msra.mxu0 0.0
    %359 = vmatprep.subr.mxu0 0.0
    %360 = vmatpush2.xpose.msra.mxu0 0.0
    %361 = vmatprep.subr.mxu0 0.0
    %362 = vmatpush2.xpose.msra.mxu0 0.0
    %363 = vmatprep.subr.mxu0 0.0
    %364 = vmatpush2.xpose.msra.mxu0 0.0
    %365 = vmatprep.subr.mxu0 0.0
    %366 = vmatpush2.xpose.msra.mxu0 0.0
    %367 = vmatprep.mubr.f32.mxu0 0.0
    %368 = vmatmul.mubr.f32.gmra.mxu0 %v299
    %v369 = vpop.f32.mrf.mxu0
    %v370 = vadd.f32 0.0, %v369
    %v371 = vpop.f32.mrf.mxu0
    %372 = vdwg.mxu0
    %v373 = vmul.f32 %v293, 0.35355338
    %v374 = vmul.f32 %v370, 0.35355338
    %v377 = vlaneseq
    %v378 = vshrl.u32 %v377, 7
    %v379 = vsub.s32 0, %v378
    %v380 = vrot.slane %v58, %v379
    %v381 = vlaneseq
    %v382 = vshrl.u32 %v381, 7
    %v383 = vsub.s32 0, %v382
    %v384 = vrot.slane %v59, %v383
    %v387 = vadd.f32 %v373, %v380
    %v388 = vadd.f32 %v374, %v384
    %v389 = vsel %vm221, %v387, -inf
    %390 = vmax.xlane.f32.xlu0 %v389
    %v391 = vpop.xlane.xlu0 %390
    %v392 = vsel %vm221, %v388, -inf
    %393 = vmax.xlane.f32.xlu0 %v392
    %v394 = vpop.xlane.xlu0 %393
    %v395 = vsub.f32 %v387, %v391
    %v396 = vsub.f32 %v388, %v394
    %v397 = vmul.f32 %v395, 1.442695
    %v398 = vpow.pop %v397
    %v399 = vmul.f32 %v396, 1.442695
    %v400 = vpow.pop %v399
    %v401 = vsel %vm221, %v398, 0.0
    %402 = vadd.xlane.f32.xlu0 %v401
    %v403 = vpop.xlane.xlu0 %402
    %v404 = vsel %vm221, %v400, 0.0
    %405 = vadd.xlane.f32.xlu0 %v404
    %v406 = vpop.xlane.xlu0 %405
    %v407 = vrcp.pop %v403
    %v408 = vrcp.pop %v406
    %v409 = vmul.f32 %v398, %v407
    %v410 = vmul.f32 %v400, %v408
    %411 = vrot.lane.b32.xlu0 %v212, 64
    %v412 = vpop.permute.xlu0 %411
    %v415 = vsel %vm221, %v409, 0
    %417 = vmatprep.subr.mxu0 0.0
    %418 = vmatpush1.msra.mxu0 0.0
    %419 = vmatprep.subr.mxu0 0.0
    %420 = vmatpush1.msra.mxu0 0.0
    %421 = vmatprep.subr.mxu0 0.0
    %422 = vmatpush1.msra.mxu0 0.0
    %423 = vmatprep.subr.mxu0 0.0
    %424 = vmatpush1.msra.mxu0 0.0
    %425 = vmatprep.subr.mxu0 0.0
    %426 = vmatpush1.msra.mxu0 0.0
    %427 = vmatprep.subr.mxu0 0.0
    %428 = vmatpush1.msra.mxu0 0.0
    %429 = vmatprep.subr.mxu0 0.0
    %430 = vmatpush1.msra.mxu0 0.0
    %431 = vmatprep.subr.mxu0 0.0
    %432 = vmatpush1.msra.mxu0 0.0
    %433 = vmatprep.subr.mxu0 0.0
    %434 = vmatpush1.msra.mxu0 0.0
    %435 = vmatprep.subr.mxu0 0.0
    %436 = vmatpush1.msra.mxu0 0.0
    %437 = vmatprep.subr.mxu0 0.0
    %438 = vmatpush1.msra.mxu0 0.0
    %439 = vmatprep.subr.mxu0 0.0
    %440 = vmatpush1.msra.mxu0 0.0
    %441 = vmatprep.subr.mxu0 0.0
    %442 = vmatpush1.msra.mxu0 0.0
    %443 = vmatprep.subr.mxu0 0.0
    %444 = vmatpush1.msra.mxu0 0.0
    %445 = vmatprep.subr.mxu0 0.0
    %446 = vmatpush1.msra.mxu0 0.0
    %447 = vmatprep.subr.mxu0 0.0
    %448 = vmatpush1.msra.mxu0 %v412
    %449 = vmatprep.subr.mxu0 0.0
    %450 = vmatpush2.msra.mxu0 0.0
    %451 = vmatprep.subr.mxu0 0.0
    %452 = vmatpush2.msra.mxu0 0.0
    %453 = vmatprep.subr.mxu0 0.0
    %454 = vmatpush2.msra.mxu0 0.0
    %455 = vmatprep.subr.mxu0 0.0
    %456 = vmatpush2.msra.mxu0 0.0
    %457 = vmatprep.subr.mxu0 0.0
    %458 = vmatpush2.msra.mxu0 0.0
    %459 = vmatprep.subr.mxu0 0.0
    %460 = vmatpush2.msra.mxu0 0.0
    %461 = vmatprep.subr.mxu0 0.0
    %462 = vmatpush2.msra.mxu0 0.0
    %463 = vmatprep.subr.mxu0 0.0
    %464 = vmatpush2.msra.mxu0 0.0
    %465 = vmatprep.subr.mxu0 0.0
    %466 = vmatpush2.msra.mxu0 0.0
    %467 = vmatprep.subr.mxu0 0.0
    %468 = vmatpush2.msra.mxu0 0.0
    %469 = vmatprep.subr.mxu0 0.0
    %470 = vmatpush2.msra.mxu0 0.0
    %471 = vmatprep.subr.mxu0 0.0
    %472 = vmatpush2.msra.mxu0 0.0
    %473 = vmatprep.subr.mxu0 0.0
    %474 = vmatpush2.msra.mxu0 0.0
    %475 = vmatprep.subr.mxu0 0.0
    %476 = vmatpush2.msra.mxu0 0.0
    %477 = vmatprep.subr.mxu0 0.0
    %478 = vmatpush2.msra.mxu0 0.0
    %479 = vmatprep.subr.mxu0 0.0
    %480 = vmatpush2.msra.mxu0 0.0
    %481 = vmatprep.mubr.f32.mxu0 0.0
    %482 = vmatmul.mubr.f32.gmra.mxu0 %v415
    %v483 = vpop.f32.mrf.mxu0
    %v484 = vadd.f32 0.0, %v483
    %v485 = vpop.f32.mrf.mxu0
    %486 = vdwg.mxu0
    %487 = vrot.lane.b32.xlu0 %v215, 64
    %v488 = vpop.permute.xlu0 %487
    %v491 = vsel %vm221, %v410, 0
    %493 = vmatprep.subr.mxu0 0.0
    %494 = vmatpush1.msra.mxu0 0.0
    %495 = vmatprep.subr.mxu0 0.0
    %496 = vmatpush1.msra.mxu0 0.0
    %497 = vmatprep.subr.mxu0 0.0
    %498 = vmatpush1.msra.mxu0 0.0
    %499 = vmatprep.subr.mxu0 0.0
    %500 = vmatpush1.msra.mxu0 0.0
    %501 = vmatprep.subr.mxu0 0.0
    %502 = vmatpush1.msra.mxu0 0.0
    %503 = vmatprep.subr.mxu0 0.0
    %504 = vmatpush1.msra.mxu0 0.0
    %505 = vmatprep.subr.mxu0 0.0
    %506 = vmatpush1.msra.mxu0 0.0
    %507 = vmatprep.subr.mxu0 0.0
    %508 = vmatpush1.msra.mxu0 0.0
    %509 = vmatprep.subr.mxu0 0.0
    %510 = vmatpush1.msra.mxu0 0.0
    %511 = vmatprep.subr.mxu0 0.0
    %512 = vmatpush1.msra.mxu0 0.0
    %513 = vmatprep.subr.mxu0 0.0
    %514 = vmatpush1.msra.mxu0 0.0
    %515 = vmatprep.subr.mxu0 0.0
    %516 = vmatpush1.msra.mxu0 0.0
    %517 = vmatprep.subr.mxu0 0.0
    %518 = vmatpush1.msra.mxu0 0.0
    %519 = vmatprep.subr.mxu0 0.0
    %520 = vmatpush1.msra.mxu0 0.0
    %521 = vmatprep.subr.mxu0 0.0
    %522 = vmatpush1.msra.mxu0 0.0
    %523 = vmatprep.subr.mxu0 0.0
    %524 = vmatpush1.msra.mxu0 %v488
    %525 = vmatprep.subr.mxu0 0.0
    %526 = vmatpush2.msra.mxu0 0.0
    %527 = vmatprep.subr.mxu0 0.0
    %528 = vmatpush2.msra.mxu0 0.0
    %529 = vmatprep.subr.mxu0 0.0
    %530 = vmatpush2.msra.mxu0 0.0
    %531 = vmatprep.subr.mxu0 0.0
    %532 = vmatpush2.msra.mxu0 0.0
    %533 = vmatprep.subr.mxu0 0.0
    %534 = vmatpush2.msra.mxu0 0.0
    %535 = vmatprep.subr.mxu0 0.0
    %536 = vmatpush2.msra.mxu0 0.0
    %537 = vmatprep.subr.mxu0 0.0
    %538 = vmatpush2.msra.mxu0 0.0
    %539 = vmatprep.subr.mxu0 0.0
    %540 = vmatpush2.msra.mxu0 0.0
    %541 = vmatprep.subr.mxu0 0.0
    %542 = vmatpush2.msra.mxu0 0.0
    %543 = vmatprep.subr.mxu0 0.0
    %544 = vmatpush2.msra.mxu0 0.0
    %545 = vmatprep.subr.mxu0 0.0
    %546 = vmatpush2.msra.mxu0 0.0
    %547 = vmatprep.subr.mxu0 0.0
    %548 = vmatpush2.msra.mxu0 0.0
    %549 = vmatprep.subr.mxu0 0.0
    %550 = vmatpush2.msra.mxu0 0.0
    %551 = vmatprep.subr.mxu0 0.0
    %552 = vmatpush2.msra.mxu0 0.0
    %553 = vmatprep.subr.mxu0 0.0
    %554 = vmatpush2.msra.mxu0 0.0
    %555 = vmatprep.subr.mxu0 0.0
    %556 = vmatpush2.msra.mxu0 0.0
    %557 = vmatprep.mubr.f32.mxu0 0.0
    %558 = vmatmul.mubr.f32.gmra.mxu0 %v491
    %v559 = vpop.f32.mrf.mxu0
    %v560 = vadd.f32 0.0, %v559
    %v561 = vpop.f32.mrf.mxu0
    %562 = vdwg.mxu0
    %v563 = vmul.f32 %v484, %v66
    %v564 = vmul.f32 %v560, %v66
    %v565 = vadd.f32 %v563, 0.0
    %v566 = vadd.f32 %v564, 0.0
    %567 = vrot.lane.b32.xlu0 %v212, 120
    %v568 = vpop.permute.xlu0 %567
    %569 = vrot.lane.b32.xlu0 %v212, 88
    %v570 = vpop.permute.xlu0 %569
    %v571 = vsel %vm221, %v568, 0
    %v573 = vsel %vm221, %v570, 0
    %575 = vmatprep.subr.mxu0 0.0
    %576 = vmatpush1.xpose.msra.mxu0 0.0
    %577 = vmatprep.subr.mxu0 0.0
    %578 = vmatpush1.xpose.msra.mxu0 0.0
    %579 = vmatprep.subr.mxu0 0.0
    %580 = vmatpush1.xpose.msra.mxu0 0.0
    %581 = vmatprep.subr.mxu0 0.0
    %582 = vmatpush1.xpose.msra.mxu0 0.0
    %583 = vmatprep.subr.mxu0 0.0
    %584 = vmatpush1.xpose.msra.mxu0 0.0
    %585 = vmatprep.subr.mxu0 0.0
    %586 = vmatpush1.xpose.msra.mxu0 0.0
    %587 = vmatprep.subr.mxu0 0.0
    %588 = vmatpush1.xpose.msra.mxu0 0.0
    %589 = vmatprep.subr.mxu0 0.0
    %590 = vmatpush1.xpose.msra.mxu0 0.0
    %591 = vmatprep.subr.mxu0 0.0
    %592 = vmatpush1.xpose.msra.mxu0 0.0
    %593 = vmatprep.subr.mxu0 0.0
    %594 = vmatpush1.xpose.msra.mxu0 0.0
    %595 = vmatprep.subr.mxu0 0.0
    %596 = vmatpush1.xpose.msra.mxu0 0.0
    %597 = vmatprep.subr.mxu0 0.0
    %598 = vmatpush1.xpose.msra.mxu0 0.0
    %599 = vmatprep.subr.mxu0 0.0
    %600 = vmatpush1.xpose.msra.mxu0 0.0
    %601 = vmatprep.subr.mxu0 0.0
    %602 = vmatpush1.xpose.msra.mxu0 0.0
    %603 = vmatprep.subr.mxu0 0.0
    %604 = vmatpush1.xpose.msra.mxu0 0.0
    %605 = vmatprep.subr.mxu0 0.0
    %606 = vmatpush1.xpose.msra.mxu0 %v573
    %607 = vmatprep.subr.mxu0 0.0
    %608 = vmatpush2.xpose.msra.mxu0 0.0
    %609 = vmatprep.subr.mxu0 0.0
    %610 = vmatpush2.xpose.msra.mxu0 0.0
    %611 = vmatprep.subr.mxu0 0.0
    %612 = vmatpush2.xpose.msra.mxu0 0.0
    %613 = vmatprep.subr.mxu0 0.0
    %614 = vmatpush2.xpose.msra.mxu0 0.0
    %615 = vmatprep.subr.mxu0 0.0
    %616 = vmatpush2.xpose.msra.mxu0 0.0
    %617 = vmatprep.subr.mxu0 0.0
    %618 = vmatpush2.xpose.msra.mxu0 0.0
    %619 = vmatprep.subr.mxu0 0.0
    %620 = vmatpush2.xpose.msra.mxu0 0.0
    %621 = vmatprep.subr.mxu0 0.0
    %622 = vmatpush2.xpose.msra.mxu0 0.0
    %623 = vmatprep.subr.mxu0 0.0
    %624 = vmatpush2.xpose.msra.mxu0 0.0
    %625 = vmatprep.subr.mxu0 0.0
    %626 = vmatpush2.xpose.msra.mxu0 0.0
    %627 = vmatprep.subr.mxu0 0.0
    %628 = vmatpush2.xpose.msra.mxu0 0.0
    %629 = vmatprep.subr.mxu0 0.0
    %630 = vmatpush2.xpose.msra.mxu0 0.0
    %631 = vmatprep.subr.mxu0 0.0
    %632 = vmatpush2.xpose.msra.mxu0 0.0
    %633 = vmatprep.subr.mxu0 0.0
    %634 = vmatpush2.xpose.msra.mxu0 0.0
    %635 = vmatprep.subr.mxu0 0.0
    %636 = vmatpush2.xpose.msra.mxu0 0.0
    %637 = vmatprep.subr.mxu0 0.0
    %638 = vmatpush2.xpose.msra.mxu0 0.0
    %639 = vmatprep.mubr.f32.mxu0 0.0
    %640 = vmatmul.mubr.f32.gmra.mxu0 %v571
    %v641 = vpop.f32.mrf.mxu0
    %v642 = vadd.f32 0.0, %v641
    %v643 = vpop.f32.mrf.mxu0
    %644 = vdwg.mxu0
    %645 = vrot.lane.b32.xlu0 %v215, 120
    %v646 = vpop.permute.xlu0 %645
    %647 = vrot.lane.b32.xlu0 %v215, 88
    %v648 = vpop.permute.xlu0 %647
    %v649 = vsel %vm221, %v646, 0
    %v651 = vsel %vm221, %v648, 0
    %653 = vmatprep.subr.mxu0 0.0
    %654 = vmatpush1.xpose.msra.mxu0 0.0
    %655 = vmatprep.subr.mxu0 0.0
    %656 = vmatpush1.xpose.msra.mxu0 0.0
    %657 = vmatprep.subr.mxu0 0.0
    %658 = vmatpush1.xpose.msra.mxu0 0.0
    %659 = vmatprep.subr.mxu0 0.0
    %660 = vmatpush1.xpose.msra.mxu0 0.0
    %661 = vmatprep.subr.mxu0 0.0
    %662 = vmatpush1.xpose.msra.mxu0 0.0
    %663 = vmatprep.subr.mxu0 0.0
    %664 = vmatpush1.xpose.msra.mxu0 0.0
    %665 = vmatprep.subr.mxu0 0.0
    %666 = vmatpush1.xpose.msra.mxu0 0.0
    %667 = vmatprep.subr.mxu0 0.0
    %668 = vmatpush1.xpose.msra.mxu0 0.0
    %669 = vmatprep.subr.mxu0 0.0
    %670 = vmatpush1.xpose.msra.mxu0 0.0
    %671 = vmatprep.subr.mxu0 0.0
    %672 = vmatpush1.xpose.msra.mxu0 0.0
    %673 = vmatprep.subr.mxu0 0.0
    %674 = vmatpush1.xpose.msra.mxu0 0.0
    %675 = vmatprep.subr.mxu0 0.0
    %676 = vmatpush1.xpose.msra.mxu0 0.0
    %677 = vmatprep.subr.mxu0 0.0
    %678 = vmatpush1.xpose.msra.mxu0 0.0
    %679 = vmatprep.subr.mxu0 0.0
    %680 = vmatpush1.xpose.msra.mxu0 0.0
    %681 = vmatprep.subr.mxu0 0.0
    %682 = vmatpush1.xpose.msra.mxu0 0.0
    %683 = vmatprep.subr.mxu0 0.0
    %684 = vmatpush1.xpose.msra.mxu0 %v651
    %685 = vmatprep.subr.mxu0 0.0
    %686 = vmatpush2.xpose.msra.mxu0 0.0
    %687 = vmatprep.subr.mxu0 0.0
    %688 = vmatpush2.xpose.msra.mxu0 0.0
    %689 = vmatprep.subr.mxu0 0.0
    %690 = vmatpush2.xpose.msra.mxu0 0.0
    %691 = vmatprep.subr.mxu0 0.0
    %692 = vmatpush2.xpose.msra.mxu0 0.0
    %693 = vmatprep.subr.mxu0 0.0
    %694 = vmatpush2.xpose.msra.mxu0 0.0
    %695 = vmatprep.subr.mxu0 0.0
    %696 = vmatpush2.xpose.msra.mxu0 0.0
    %697 = vmatprep.subr.mxu0 0.0
    %698 = vmatpush2.xpose.msra.mxu0 0.0
    %699 = vmatprep.subr.mxu0 0.0
    %700 = vmatpush2.xpose.msra.mxu0 0.0
    %701 = vmatprep.subr.mxu0 0.0
    %702 = vmatpush2.xpose.msra.mxu0 0.0
    %703 = vmatprep.subr.mxu0 0.0
    %704 = vmatpush2.xpose.msra.mxu0 0.0
    %705 = vmatprep.subr.mxu0 0.0
    %706 = vmatpush2.xpose.msra.mxu0 0.0
    %707 = vmatprep.subr.mxu0 0.0
    %708 = vmatpush2.xpose.msra.mxu0 0.0
    %709 = vmatprep.subr.mxu0 0.0
    %710 = vmatpush2.xpose.msra.mxu0 0.0
    %711 = vmatprep.subr.mxu0 0.0
    %712 = vmatpush2.xpose.msra.mxu0 0.0
    %713 = vmatprep.subr.mxu0 0.0
    %714 = vmatpush2.xpose.msra.mxu0 0.0
    %715 = vmatprep.subr.mxu0 0.0
    %716 = vmatpush2.xpose.msra.mxu0 0.0
    %717 = vmatprep.mubr.f32.mxu0 0.0
    %718 = vmatmul.mubr.f32.gmra.mxu0 %v649
    %v719 = vpop.f32.mrf.mxu0
    %v720 = vadd.f32 0.0, %v719
    %v721 = vpop.f32.mrf.mxu0
    %722 = vdwg.mxu0
    %v723 = vmul.f32 %v642, 0.35355338
    %v724 = vmul.f32 %v720, 0.35355338
    %v725 = vadd.f32 %v723, %v380
    %v726 = vadd.f32 %v724, %v384
    %v727 = vsel %vm221, %v725, -inf
    %728 = vmax.xlane.f32.xlu0 %v727
    %v729 = vpop.xlane.xlu0 %728
    %v730 = vsel %vm221, %v726, -inf
    %731 = vmax.xlane.f32.xlu0 %v730
    %v732 = vpop.xlane.xlu0 %731
    %v733 = vsub.f32 %v725, %v729
    %v734 = vsub.f32 %v726, %v732
    %v735 = vmul.f32 %v733, 1.442695
    %v736 = vpow.pop %v735
    %v737 = vmul.f32 %v734, 1.442695
    %v738 = vpow.pop %v737
    %v739 = vsel %vm221, %v736, 0.0
    %740 = vadd.xlane.f32.xlu0 %v739
    %v741 = vpop.xlane.xlu0 %740
    %v742 = vsel %vm221, %v738, 0.0
    %743 = vadd.xlane.f32.xlu0 %v742
    %v744 = vpop.xlane.xlu0 %743
    %v745 = vrcp.pop %v741
    %v746 = vrcp.pop %v744
    %v747 = vmul.f32 %v736, %v745
    %v748 = vmul.f32 %v738, %v746
    %v750 = vsel %vm221, %v747, 0
    %752 = vmatprep.subr.mxu0 0.0
    %753 = vmatpush1.msra.mxu0 0.0
    %754 = vmatprep.subr.mxu0 0.0
    %755 = vmatpush1.msra.mxu0 0.0
    %756 = vmatprep.subr.mxu0 0.0
    %757 = vmatpush1.msra.mxu0 0.0
    %758 = vmatprep.subr.mxu0 0.0
    %759 = vmatpush1.msra.mxu0 0.0
    %760 = vmatprep.subr.mxu0 0.0
    %761 = vmatpush1.msra.mxu0 0.0
    %762 = vmatprep.subr.mxu0 0.0
    %763 = vmatpush1.msra.mxu0 0.0
    %764 = vmatprep.subr.mxu0 0.0
    %765 = vmatpush1.msra.mxu0 0.0
    %766 = vmatprep.subr.mxu0 0.0
    %767 = vmatpush1.msra.mxu0 0.0
    %768 = vmatprep.subr.mxu0 0.0
    %769 = vmatpush1.msra.mxu0 0.0
    %770 = vmatprep.subr.mxu0 0.0
    %771 = vmatpush1.msra.mxu0 0.0
    %772 = vmatprep.subr.mxu0 0.0
    %773 = vmatpush1.msra.mxu0 0.0
    %774 = vmatprep.subr.mxu0 0.0
    %775 = vmatpush1.msra.mxu0 0.0
    %776 = vmatprep.subr.mxu0 0.0
    %777 = vmatpush1.msra.mxu0 0.0
    %778 = vmatprep.subr.mxu0 0.0
    %779 = vmatpush1.msra.mxu0 0.0
    %780 = vmatprep.subr.mxu0 0.0
    %781 = vmatpush1.msra.mxu0 0.0
    %782 = vmatprep.subr.mxu0 0.0
    %783 = vmatpush1.msra.mxu0 %v412
    %784 = vmatprep.subr.mxu0 0.0
    %785 = vmatpush2.msra.mxu0 0.0
    %786 = vmatprep.subr.mxu0 0.0
    %787 = vmatpush2.msra.mxu0 0.0
    %788 = vmatprep.subr.mxu0 0.0
    %789 = vmatpush2.msra.mxu0 0.0
    %790 = vmatprep.subr.mxu0 0.0
    %791 = vmatpush2.msra.mxu0 0.0
    %792 = vmatprep.subr.mxu0 0.0
    %793 = vmatpush2.msra.mxu0 0.0
    %794 = vmatprep.subr.mxu0 0.0
    %795 = vmatpush2.msra.mxu0 0.0
    %796 = vmatprep.subr.mxu0 0.0
    %797 = vmatpush2.msra.mxu0 0.0
    %798 = vmatprep.subr.mxu0 0.0
    %799 = vmatpush2.msra.mxu0 0.0
    %800 = vmatprep.subr.mxu0 0.0
    %801 = vmatpush2.msra.mxu0 0.0
    %802 = vmatprep.subr.mxu0 0.0
    %803 = vmatpush2.msra.mxu0 0.0
    %804 = vmatprep.subr.mxu0 0.0
    %805 = vmatpush2.msra.mxu0 0.0
    %806 = vmatprep.subr.mxu0 0.0
    %807 = vmatpush2.msra.mxu0 0.0
    %808 = vmatprep.subr.mxu0 0.0
    %809 = vmatpush2.msra.mxu0 0.0
    %810 = vmatprep.subr.mxu0 0.0
    %811 = vmatpush2.msra.mxu0 0.0
    %812 = vmatprep.subr.mxu0 0.0
    %813 = vmatpush2.msra.mxu0 0.0
    %814 = vmatprep.subr.mxu0 0.0
    %815 = vmatpush2.msra.mxu0 0.0
    %816 = vmatprep.mubr.f32.mxu0 0.0
    %817 = vmatmul.mubr.f32.gmra.mxu0 %v750
    %v818 = vpop.f32.mrf.mxu0
    %v819 = vadd.f32 0.0, %v818
    %v820 = vpop.f32.mrf.mxu0
    %821 = vdwg.mxu0
    %v823 = vsel %vm221, %v748, 0
    %825 = vmatprep.subr.mxu0 0.0
    %826 = vmatpush1.msra.mxu0 0.0
    %827 = vmatprep.subr.mxu0 0.0
    %828 = vmatpush1.msra.mxu0 0.0
    %829 = vmatprep.subr.mxu0 0.0
    %830 = vmatpush1.msra.mxu0 0.0
    %831 = vmatprep.subr.mxu0 0.0
    %832 = vmatpush1.msra.mxu0 0.0
    %833 = vmatprep.subr.mxu0 0.0
    %834 = vmatpush1.msra.mxu0 0.0
    %835 = vmatprep.subr.mxu0 0.0
    %836 = vmatpush1.msra.mxu0 0.0
    %837 = vmatprep.subr.mxu0 0.0
    %838 = vmatpush1.msra.mxu0 0.0
    %839 = vmatprep.subr.mxu0 0.0
    %840 = vmatpush1.msra.mxu0 0.0
    %841 = vmatprep.subr.mxu0 0.0
    %842 = vmatpush1.msra.mxu0 0.0
    %843 = vmatprep.subr.mxu0 0.0
    %844 = vmatpush1.msra.mxu0 0.0
    %845 = vmatprep.subr.mxu0 0.0
    %846 = vmatpush1.msra.mxu0 0.0
    %847 = vmatprep.subr.mxu0 0.0
    %848 = vmatpush1.msra.mxu0 0.0
    %849 = vmatprep.subr.mxu0 0.0
    %850 = vmatpush1.msra.mxu0 0.0
    %851 = vmatprep.subr.mxu0 0.0
    %852 = vmatpush1.msra.mxu0 0.0
    %853 = vmatprep.subr.mxu0 0.0
    %854 = vmatpush1.msra.mxu0 0.0
    %855 = vmatprep.subr.mxu0 0.0
    %856 = vmatpush1.msra.mxu0 %v488
    %857 = vmatprep.subr.mxu0 0.0
    %858 = vmatpush2.msra.mxu0 0.0
    %859 = vmatprep.subr.mxu0 0.0
    %860 = vmatpush2.msra.mxu0 0.0
    %861 = vmatprep.subr.mxu0 0.0
    %862 = vmatpush2.msra.mxu0 0.0
    %863 = vmatprep.subr.mxu0 0.0
    %864 = vmatpush2.msra.mxu0 0.0
    %865 = vmatprep.subr.mxu0 0.0
    %866 = vmatpush2.msra.mxu0 0.0
    %867 = vmatprep.subr.mxu0 0.0
    %868 = vmatpush2.msra.mxu0 0.0
    %869 = vmatprep.subr.mxu0 0.0
    %870 = vmatpush2.msra.mxu0 0.0
    %871 = vmatprep.subr.mxu0 0.0
    %872 = vmatpush2.msra.mxu0 0.0
    %873 = vmatprep.subr.mxu0 0.0
    %874 = vmatpush2.msra.mxu0 0.0
    %875 = vmatprep.subr.mxu0 0.0
    %876 = vmatpush2.msra.mxu0 0.0
    %877 = vmatprep.subr.mxu0 0.0
    %878 = vmatpush2.msra.mxu0 0.0
    %879 = vmatprep.subr.mxu0 0.0
    %880 = vmatpush2.msra.mxu0 0.0
    %881 = vmatprep.subr.mxu0 0.0
    %882 = vmatpush2.msra.mxu0 0.0
    %883 = vmatprep.subr.mxu0 0.0
    %884 = vmatpush2.msra.mxu0 0.0
    %885 = vmatprep.subr.mxu0 0.0
    %886 = vmatpush2.msra.mxu0 0.0
    %887 = vmatprep.subr.mxu0 0.0
    %888 = vmatpush2.msra.mxu0 0.0
    %889 = vmatprep.mubr.f32.mxu0 0.0
    %890 = vmatmul.mubr.f32.gmra.mxu0 %v823
    %v891 = vpop.f32.mrf.mxu0
    %v892 = vadd.f32 0.0, %v891
    %v893 = vpop.f32.mrf.mxu0
    %894 = vdwg.mxu0
    %v895 = vmul.f32 %v819, %v71
    %v896 = vmul.f32 %v892, %v71
    %v897 = vadd.f32 %v565, %v895
    %v898 = vadd.f32 %v566, %v896
    %899 = vrot.lane.b32.xlu0 %v212, 112
    %v900 = vpop.permute.xlu0 %899
    %901 = vrot.lane.b32.xlu0 %v212, 80
    %v902 = vpop.permute.xlu0 %901
    %v903 = vsel %vm221, %v900, 0
    %v905 = vsel %vm221, %v902, 0
    %907 = vmatprep.subr.mxu0 0.0
    %908 = vmatpush1.xpose.msra.mxu0 0.0
    %909 = vmatprep.subr.mxu0 0.0
    %910 = vmatpush1.xpose.msra.mxu0 0.0
    %911 = vmatprep.subr.mxu0 0.0
    %912 = vmatpush1.xpose.msra.mxu0 0.0
    %913 = vmatprep.subr.mxu0 0.0
    %914 = vmatpush1.xpose.msra.mxu0 0.0
    %915 = vmatprep.subr.mxu0 0.0
    %916 = vmatpush1.xpose.msra.mxu0 0.0
    %917 = vmatprep.subr.mxu0 0.0
    %918 = vmatpush1.xpose.msra.mxu0 0.0
    %919 = vmatprep.subr.mxu0 0.0
    %920 = vmatpush1.xpose.msra.mxu0 0.0
    %921 = vmatprep.subr.mxu0 0.0
    %922 = vmatpush1.xpose.msra.mxu0 0.0
    %923 = vmatprep.subr.mxu0 0.0
    %924 = vmatpush1.xpose.msra.mxu0 0.0
    %925 = vmatprep.subr.mxu0 0.0
    %926 = vmatpush1.xpose.msra.mxu0 0.0
    %927 = vmatprep.subr.mxu0 0.0
    %928 = vmatpush1.xpose.msra.mxu0 0.0
    %929 = vmatprep.subr.mxu0 0.0
    %930 = vmatpush1.xpose.msra.mxu0 0.0
    %931 = vmatprep.subr.mxu0 0.0
    %932 = vmatpush1.xpose.msra.mxu0 0.0
    %933 = vmatprep.subr.mxu0 0.0
    %934 = vmatpush1.xpose.msra.mxu0 0.0
    %935 = vmatprep.subr.mxu0 0.0
    %936 = vmatpush1.xpose.msra.mxu0 0.0
    %937 = vmatprep.subr.mxu0 0.0
    %938 = vmatpush1.xpose.msra.mxu0 %v905
    %939 = vmatprep.subr.mxu0 0.0
    %940 = vmatpush2.xpose.msra.mxu0 0.0
    %941 = vmatprep.subr.mxu0 0.0
    %942 = vmatpush2.xpose.msra.mxu0 0.0
    %943 = vmatprep.subr.mxu0 0.0
    %944 = vmatpush2.xpose.msra.mxu0 0.0
    %945 = vmatprep.subr.mxu0 0.0
    %946 = vmatpush2.xpose.msra.mxu0 0.0
    %947 = vmatprep.subr.mxu0 0.0
    %948 = vmatpush2.xpose.msra.mxu0 0.0
    %949 = vmatprep.subr.mxu0 0.0
    %950 = vmatpush2.xpose.msra.mxu0 0.0
    %951 = vmatprep.subr.mxu0 0.0
    %952 = vmatpush2.xpose.msra.mxu0 0.0
    %953 = vmatprep.subr.mxu0 0.0
    %954 = vmatpush2.xpose.msra.mxu0 0.0
    %955 = vmatprep.subr.mxu0 0.0
    %956 = vmatpush2.xpose.msra.mxu0 0.0
    %957 = vmatprep.subr.mxu0 0.0
    %958 = vmatpush2.xpose.msra.mxu0 0.0
    %959 = vmatprep.subr.mxu0 0.0
    %960 = vmatpush2.xpose.msra.mxu0 0.0
    %961 = vmatprep.subr.mxu0 0.0
    %962 = vmatpush2.xpose.msra.mxu0 0.0
    %963 = vmatprep.subr.mxu0 0.0
    %964 = vmatpush2.xpose.msra.mxu0 0.0
    %965 = vmatprep.subr.mxu0 0.0
    %966 = vmatpush2.xpose.msra.mxu0 0.0
    %967 = vmatprep.subr.mxu0 0.0
    %968 = vmatpush2.xpose.msra.mxu0 0.0
    %969 = vmatprep.subr.mxu0 0.0
    %970 = vmatpush2.xpose.msra.mxu0 0.0
    %971 = vmatprep.mubr.f32.mxu0 0.0
    %972 = vmatmul.mubr.f32.gmra.mxu0 %v903
    %v973 = vpop.f32.mrf.mxu0
    %v974 = vadd.f32 0.0, %v973
    %v975 = vpop.f32.mrf.mxu0
    %976 = vdwg.mxu0
    %977 = vrot.lane.b32.xlu0 %v215, 112
    %v978 = vpop.permute.xlu0 %977
    %979 = vrot.lane.b32.xlu0 %v215, 80
    %v980 = vpop.permute.xlu0 %979
    %v981 = vsel %vm221, %v978, 0
    %v983 = vsel %vm221, %v980, 0
    %985 = vmatprep.subr.mxu0 0.0
    %986 = vmatpush1.xpose.msra.mxu0 0.0
    %987 = vmatprep.subr.mxu0 0.0
    %988 = vmatpush1.xpose.msra.mxu0 0.0
    %989 = vmatprep.subr.mxu0 0.0
    %990 = vmatpush1.xpose.msra.mxu0 0.0
    %991 = vmatprep.subr.mxu0 0.0
    %992 = vmatpush1.xpose.msra.mxu0 0.0
    %993 = vmatprep.subr.mxu0 0.0
    %994 = vmatpush1.xpose.msra.mxu0 0.0
    %995 = vmatprep.subr.mxu0 0.0
    %996 = vmatpush1.xpose.msra.mxu0 0.0
    %997 = vmatprep.subr.mxu0 0.0
    %998 = vmatpush1.xpose.msra.mxu0 0.0
    %999 = vmatprep.subr.mxu0 0.0
    %1000 = vmatpush1.xpose.msra.mxu0 0.0
    %1001 = vmatprep.subr.mxu0 0.0
    %1002 = vmatpush1.xpose.msra.mxu0 0.0
    %1003 = vmatprep.subr.mxu0 0.0
    %1004 = vmatpush1.xpose.msra.mxu0 0.0
    %1005 = vmatprep.subr.mxu0 0.0
    %1006 = vmatpush1.xpose.msra.mxu0 0.0
    %1007 = vmatprep.subr.mxu0 0.0
    %1008 = vmatpush1.xpose.msra.mxu0 0.0
    %1009 = vmatprep.subr.mxu0 0.0
    %1010 = vmatpush1.xpose.msra.mxu0 0.0
    %1011 = vmatprep.subr.mxu0 0.0
    %1012 = vmatpush1.xpose.msra.mxu0 0.0
    %1013 = vmatprep.subr.mxu0 0.0
    %1014 = vmatpush1.xpose.msra.mxu0 0.0
    %1015 = vmatprep.subr.mxu0 0.0
    %1016 = vmatpush1.xpose.msra.mxu0 %v983
    %1017 = vmatprep.subr.mxu0 0.0
    %1018 = vmatpush2.xpose.msra.mxu0 0.0
    %1019 = vmatprep.subr.mxu0 0.0
    %1020 = vmatpush2.xpose.msra.mxu0 0.0
    %1021 = vmatprep.subr.mxu0 0.0
    %1022 = vmatpush2.xpose.msra.mxu0 0.0
    %1023 = vmatprep.subr.mxu0 0.0
    %1024 = vmatpush2.xpose.msra.mxu0 0.0
    %1025 = vmatprep.subr.mxu0 0.0
    %1026 = vmatpush2.xpose.msra.mxu0 0.0
    %1027 = vmatprep.subr.mxu0 0.0
    %1028 = vmatpush2.xpose.msra.mxu0 0.0
    %1029 = vmatprep.subr.mxu0 0.0
    %1030 = vmatpush2.xpose.msra.mxu0 0.0
    %1031 = vmatprep.subr.mxu0 0.0
    %1032 = vmatpush2.xpose.msra.mxu0 0.0
    %1033 = vmatprep.subr.mxu0 0.0
    %1034 = vmatpush2.xpose.msra.mxu0 0.0
    %1035 = vmatprep.subr.mxu0 0.0
    %1036 = vmatpush2.xpose.msra.mxu0 0.0
    %1037 = vmatprep.subr.mxu0 0.0
    %1038 = vmatpush2.xpose.msra.mxu0 0.0
    %1039 = vmatprep.subr.mxu0 0.0
    %1040 = vmatpush2.xpose.msra.mxu0 0.0
    %1041 = vmatprep.subr.mxu0 0.0
    %1042 = vmatpush2.xpose.msra.mxu0 0.0
    %1043 = vmatprep.subr.mxu0 0.0
    %1044 = vmatpush2.xpose.msra.mxu0 0.0
    %1045 = vmatprep.subr.mxu0 0.0
    %1046 = vmatpush2.xpose.msra.mxu0 0.0
    %1047 = vmatprep.subr.mxu0 0.0
    %1048 = vmatpush2.xpose.msra.mxu0 0.0
    %1049 = vmatprep.mubr.f32.mxu0 0.0
    %1050 = vmatmul.mubr.f32.gmra.mxu0 %v981
    %v1051 = vpop.f32.mrf.mxu0
    %v1052 = vadd.f32 0.0, %v1051
    %v1053 = vpop.f32.mrf.mxu0
    %1054 = vdwg.mxu0
    %v1055 = vmul.f32 %v974, 0.35355338
    %v1056 = vmul.f32 %v1052, 0.35355338
    %v1057 = vadd.f32 %v1055, %v380
    %v1058 = vadd.f32 %v1056, %v384
    %v1059 = vsel %vm221, %v1057, -inf
    %1060 = vmax.xlane.f32.xlu0 %v1059
    %v1061 = vpop.xlane.xlu0 %1060
    %v1062 = vsel %vm221, %v1058, -inf
    %1063 = vmax.xlane.f32.xlu0 %v1062
    %v1064 = vpop.xlane.xlu0 %1063
    %v1065 = vsub.f32 %v1057, %v1061
    %v1066 = vsub.f32 %v1058, %v1064
    %v1067 = vmul.f32 %v1065, 1.442695
    %v1068 = vpow.pop %v1067
    %v1069 = vmul.f32 %v1066, 1.442695
    %v1070 = vpow.pop %v1069
    %v1071 = vsel %vm221, %v1068, 0.0
    %1072 = vadd.xlane.f32.xlu0 %v1071
    %v1073 = vpop.xlane.xlu0 %1072
    %v1074 = vsel %vm221, %v1070, 0.0
    %1075 = vadd.xlane.f32.xlu0 %v1074
    %v1076 = vpop.xlane.xlu0 %1075
    %v1077 = vrcp.pop %v1073
    %v1078 = vrcp.pop %v1076
    %v1079 = vmul.f32 %v1068, %v1077
    %v1080 = vmul.f32 %v1070, %v1078
    %v1082 = vsel %vm221, %v1079, 0
    %1084 = vmatprep.subr.mxu0 0.0
    %1085 = vmatpush1.msra.mxu0 0.0
    %1086 = vmatprep.subr.mxu0 0.0
    %1087 = vmatpush1.msra.mxu0 0.0
    %1088 = vmatprep.subr.mxu0 0.0
    %1089 = vmatpush1.msra.mxu0 0.0
    %1090 = vmatprep.subr.mxu0 0.0
    %1091 = vmatpush1.msra.mxu0 0.0
    %1092 = vmatprep.subr.mxu0 0.0
    %1093 = vmatpush1.msra.mxu0 0.0
    %1094 = vmatprep.subr.mxu0 0.0
    %1095 = vmatpush1.msra.mxu0 0.0
    %1096 = vmatprep.subr.mxu0 0.0
    %1097 = vmatpush1.msra.mxu0 0.0
    %1098 = vmatprep.subr.mxu0 0.0
    %1099 = vmatpush1.msra.mxu0 0.0
    %1100 = vmatprep.subr.mxu0 0.0
    %1101 = vmatpush1.msra.mxu0 0.0
    %1102 = vmatprep.subr.mxu0 0.0
    %1103 = vmatpush1.msra.mxu0 0.0
    %1104 = vmatprep.subr.mxu0 0.0
    %1105 = vmatpush1.msra.mxu0 0.0
    %1106 = vmatprep.subr.mxu0 0.0
    %1107 = vmatpush1.msra.mxu0 0.0
    %1108 = vmatprep.subr.mxu0 0.0
    %1109 = vmatpush1.msra.mxu0 0.0
    %1110 = vmatprep.subr.mxu0 0.0
    %1111 = vmatpush1.msra.mxu0 0.0
    %1112 = vmatprep.subr.mxu0 0.0
    %1113 = vmatpush1.msra.mxu0 0.0
    %1114 = vmatprep.subr.mxu0 0.0
    %1115 = vmatpush1.msra.mxu0 %v412
    %1116 = vmatprep.subr.mxu0 0.0
    %1117 = vmatpush2.msra.mxu0 0.0
    %1118 = vmatprep.subr.mxu0 0.0
    %1119 = vmatpush2.msra.mxu0 0.0
    %1120 = vmatprep.subr.mxu0 0.0
    %1121 = vmatpush2.msra.mxu0 0.0
    %1122 = vmatprep.subr.mxu0 0.0
    %1123 = vmatpush2.msra.mxu0 0.0
    %1124 = vmatprep.subr.mxu0 0.0
    %1125 = vmatpush2.msra.mxu0 0.0
    %1126 = vmatprep.subr.mxu0 0.0
    %1127 = vmatpush2.msra.mxu0 0.0
    %1128 = vmatprep.subr.mxu0 0.0
    %1129 = vmatpush2.msra.mxu0 0.0
    %1130 = vmatprep.subr.mxu0 0.0
    %1131 = vmatpush2.msra.mxu0 0.0
    %1132 = vmatprep.subr.mxu0 0.0
    %1133 = vmatpush2.msra.mxu0 0.0
    %1134 = vmatprep.subr.mxu0 0.0
    %1135 = vmatpush2.msra.mxu0 0.0
    %1136 = vmatprep.subr.mxu0 0.0
    %1137 = vmatpush2.msra.mxu0 0.0
    %1138 = vmatprep.subr.mxu0 0.0
    %1139 = vmatpush2.msra.mxu0 0.0
    %1140 = vmatprep.subr.mxu0 0.0
    %1141 = vmatpush2.msra.mxu0 0.0
    %1142 = vmatprep.subr.mxu0 0.0
    %1143 = vmatpush2.msra.mxu0 0.0
    %1144 = vmatprep.subr.mxu0 0.0
    %1145 = vmatpush2.msra.mxu0 0.0
    %1146 = vmatprep.subr.mxu0 0.0
    %1147 = vmatpush2.msra.mxu0 0.0
    %1148 = vmatprep.mubr.f32.mxu0 0.0
    %1149 = vmatmul.mubr.f32.gmra.mxu0 %v1082
    %v1150 = vpop.f32.mrf.mxu0
    %v1151 = vadd.f32 0.0, %v1150
    %v1152 = vpop.f32.mrf.mxu0
    %1153 = vdwg.mxu0
    %v1155 = vsel %vm221, %v1080, 0
    %1157 = vmatprep.subr.mxu0 0.0
    %1158 = vmatpush1.msra.mxu0 0.0
    %1159 = vmatprep.subr.mxu0 0.0
    %1160 = vmatpush1.msra.mxu0 0.0
    %1161 = vmatprep.subr.mxu0 0.0
    %1162 = vmatpush1.msra.mxu0 0.0
    %1163 = vmatprep.subr.mxu0 0.0
    %1164 = vmatpush1.msra.mxu0 0.0
    %1165 = vmatprep.subr.mxu0 0.0
    %1166 = vmatpush1.msra.mxu0 0.0
    %1167 = vmatprep.subr.mxu0 0.0
    %1168 = vmatpush1.msra.mxu0 0.0
    %1169 = vmatprep.subr.mxu0 0.0
    %1170 = vmatpush1.msra.mxu0 0.0
    %1171 = vmatprep.subr.mxu0 0.0
    %1172 = vmatpush1.msra.mxu0 0.0
    %1173 = vmatprep.subr.mxu0 0.0
    %1174 = vmatpush1.msra.mxu0 0.0
    %1175 = vmatprep.subr.mxu0 0.0
    %1176 = vmatpush1.msra.mxu0 0.0
    %1177 = vmatprep.subr.mxu0 0.0
    %1178 = vmatpush1.msra.mxu0 0.0
    %1179 = vmatprep.subr.mxu0 0.0
    %1180 = vmatpush1.msra.mxu0 0.0
    %1181 = vmatprep.subr.mxu0 0.0
    %1182 = vmatpush1.msra.mxu0 0.0
    %1183 = vmatprep.subr.mxu0 0.0
    %1184 = vmatpush1.msra.mxu0 0.0
    %1185 = vmatprep.subr.mxu0 0.0
    %1186 = vmatpush1.msra.mxu0 0.0
    %1187 = vmatprep.subr.mxu0 0.0
    %1188 = vmatpush1.msra.mxu0 %v488
    %1189 = vmatprep.subr.mxu0 0.0
    %1190 = vmatpush2.msra.mxu0 0.0
    %1191 = vmatprep.subr.mxu0 0.0
    %1192 = vmatpush2.msra.mxu0 0.0
    %1193 = vmatprep.subr.mxu0 0.0
    %1194 = vmatpush2.msra.mxu0 0.0
    %1195 = vmatprep.subr.mxu0 0.0
    %1196 = vmatpush2.msra.mxu0 0.0
    %1197 = vmatprep.subr.mxu0 0.0
    %1198 = vmatpush2.msra.mxu0 0.0
    %1199 = vmatprep.subr.mxu0 0.0
    %1200 = vmatpush2.msra.mxu0 0.0
    %1201 = vmatprep.subr.mxu0 0.0
    %1202 = vmatpush2.msra.mxu0 0.0
    %1203 = vmatprep.subr.mxu0 0.0
    %1204 = vmatpush2.msra.mxu0 0.0
    %1205 = vmatprep.subr.mxu0 0.0
    %1206 = vmatpush2.msra.mxu0 0.0
    %1207 = vmatprep.subr.mxu0 0.0
    %1208 = vmatpush2.msra.mxu0 0.0
    %1209 = vmatprep.subr.mxu0 0.0
    %1210 = vmatpush2.msra.mxu0 0.0
    %1211 = vmatprep.subr.mxu0 0.0
    %1212 = vmatpush2.msra.mxu0 0.0
    %1213 = vmatprep.subr.mxu0 0.0
    %1214 = vmatpush2.msra.mxu0 0.0
    %1215 = vmatprep.subr.mxu0 0.0
    %1216 = vmatpush2.msra.mxu0 0.0
    %1217 = vmatprep.subr.mxu0 0.0
    %1218 = vmatpush2.msra.mxu0 0.0
    %1219 = vmatprep.subr.mxu0 0.0
    %1220 = vmatpush2.msra.mxu0 0.0
    %1221 = vmatprep.mubr.f32.mxu0 0.0
    %1222 = vmatmul.mubr.f32.gmra.mxu0 %v1155
    %v1223 = vpop.f32.mrf.mxu0
    %v1224 = vadd.f32 0.0, %v1223
    %v1225 = vpop.f32.mrf.mxu0
    %1226 = vdwg.mxu0
    %v1227 = vmul.f32 %v1151, %v76
    %v1228 = vmul.f32 %v1224, %v76
    %v1229 = vadd.f32 %v897, %v1227
    %v1230 = vadd.f32 %v898, %v1228
    %1231 = vrot.lane.b32.xlu0 %v212, 104
    %v1232 = vpop.permute.xlu0 %1231
    %1233 = vrot.lane.b32.xlu0 %v212, 72
    %v1234 = vpop.permute.xlu0 %1233
    %v1235 = vsel %vm221, %v1232, 0
    %v1237 = vsel %vm221, %v1234, 0
    %1239 = vmatprep.subr.mxu0 0.0
    %1240 = vmatpush1.xpose.msra.mxu0 0.0
    %1241 = vmatprep.subr.mxu0 0.0
    %1242 = vmatpush1.xpose.msra.mxu0 0.0
    %1243 = vmatprep.subr.mxu0 0.0
    %1244 = vmatpush1.xpose.msra.mxu0 0.0
    %1245 = vmatprep.subr.mxu0 0.0
    %1246 = vmatpush1.xpose.msra.mxu0 0.0
    %1247 = vmatprep.subr.mxu0 0.0
    %1248 = vmatpush1.xpose.msra.mxu0 0.0
    %1249 = vmatprep.subr.mxu0 0.0
    %1250 = vmatpush1.xpose.msra.mxu0 0.0
    %1251 = vmatprep.subr.mxu0 0.0
    %1252 = vmatpush1.xpose.msra.mxu0 0.0
    %1253 = vmatprep.subr.mxu0 0.0
    %1254 = vmatpush1.xpose.msra.mxu0 0.0
    %1255 = vmatprep.subr.mxu0 0.0
    %1256 = vmatpush1.xpose.msra.mxu0 0.0
    %1257 = vmatprep.subr.mxu0 0.0
    %1258 = vmatpush1.xpose.msra.mxu0 0.0
    %1259 = vmatprep.subr.mxu0 0.0
    %1260 = vmatpush1.xpose.msra.mxu0 0.0
    %1261 = vmatprep.subr.mxu0 0.0
    %1262 = vmatpush1.xpose.msra.mxu0 0.0
    %1263 = vmatprep.subr.mxu0 0.0
    %1264 = vmatpush1.xpose.msra.mxu0 0.0
    %1265 = vmatprep.subr.mxu0 0.0
    %1266 = vmatpush1.xpose.msra.mxu0 0.0
    %1267 = vmatprep.subr.mxu0 0.0
    %1268 = vmatpush1.xpose.msra.mxu0 0.0
    %1269 = vmatprep.subr.mxu0 0.0
    %1270 = vmatpush1.xpose.msra.mxu0 %v1237
    %1271 = vmatprep.subr.mxu0 0.0
    %1272 = vmatpush2.xpose.msra.mxu0 0.0
    %1273 = vmatprep.subr.mxu0 0.0
    %1274 = vmatpush2.xpose.msra.mxu0 0.0
    %1275 = vmatprep.subr.mxu0 0.0
    %1276 = vmatpush2.xpose.msra.mxu0 0.0
    %1277 = vmatprep.subr.mxu0 0.0
    %1278 = vmatpush2.xpose.msra.mxu0 0.0
    %1279 = vmatprep.subr.mxu0 0.0
    %1280 = vmatpush2.xpose.msra.mxu0 0.0
    %1281 = vmatprep.subr.mxu0 0.0
    %1282 = vmatpush2.xpose.msra.mxu0 0.0
    %1283 = vmatprep.subr.mxu0 0.0
    %1284 = vmatpush2.xpose.msra.mxu0 0.0
    %1285 = vmatprep.subr.mxu0 0.0
    %1286 = vmatpush2.xpose.msra.mxu0 0.0
    %1287 = vmatprep.subr.mxu0 0.0
    %1288 = vmatpush2.xpose.msra.mxu0 0.0
    %1289 = vmatprep.subr.mxu0 0.0
    %1290 = vmatpush2.xpose.msra.mxu0 0.0
    %1291 = vmatprep.subr.mxu0 0.0
    %1292 = vmatpush2.xpose.msra.mxu0 0.0
    %1293 = vmatprep.subr.mxu0 0.0
    %1294 = vmatpush2.xpose.msra.mxu0 0.0
    %1295 = vmatprep.subr.mxu0 0.0
    %1296 = vmatpush2.xpose.msra.mxu0 0.0
    %1297 = vmatprep.subr.mxu0 0.0
    %1298 = vmatpush2.xpose.msra.mxu0 0.0
    %1299 = vmatprep.subr.mxu0 0.0
    %1300 = vmatpush2.xpose.msra.mxu0 0.0
    %1301 = vmatprep.subr.mxu0 0.0
    %1302 = vmatpush2.xpose.msra.mxu0 0.0
    %1303 = vmatprep.mubr.f32.mxu0 0.0
    %1304 = vmatmul.mubr.f32.gmra.mxu0 %v1235
    %v1305 = vpop.f32.mrf.mxu0
    %v1306 = vadd.f32 0.0, %v1305
    %v1307 = vpop.f32.mrf.mxu0
    %1308 = vdwg.mxu0
    %1309 = vrot.lane.b32.xlu0 %v215, 104
    %v1310 = vpop.permute.xlu0 %1309
    %1311 = vrot.lane.b32.xlu0 %v215, 72
    %v1312 = vpop.permute.xlu0 %1311
    %v1313 = vsel %vm221, %v1310, 0
    %v1315 = vsel %vm221, %v1312, 0
    %1317 = vmatprep.subr.mxu0 0.0
    %1318 = vmatpush1.xpose.msra.mxu0 0.0
    %1319 = vmatprep.subr.mxu0 0.0
    %1320 = vmatpush1.xpose.msra.mxu0 0.0
    %1321 = vmatprep.subr.mxu0 0.0
    %1322 = vmatpush1.xpose.msra.mxu0 0.0
    %1323 = vmatprep.subr.mxu0 0.0
    %1324 = vmatpush1.xpose.msra.mxu0 0.0
    %1325 = vmatprep.subr.mxu0 0.0
    %1326 = vmatpush1.xpose.msra.mxu0 0.0
    %1327 = vmatprep.subr.mxu0 0.0
    %1328 = vmatpush1.xpose.msra.mxu0 0.0
    %1329 = vmatprep.subr.mxu0 0.0
    %1330 = vmatpush1.xpose.msra.mxu0 0.0
    %1331 = vmatprep.subr.mxu0 0.0
    %1332 = vmatpush1.xpose.msra.mxu0 0.0
    %1333 = vmatprep.subr.mxu0 0.0
    %1334 = vmatpush1.xpose.msra.mxu0 0.0
    %1335 = vmatprep.subr.mxu0 0.0
    %1336 = vmatpush1.xpose.msra.mxu0 0.0
    %1337 = vmatprep.subr.mxu0 0.0
    %1338 = vmatpush1.xpose.msra.mxu0 0.0
    %1339 = vmatprep.subr.mxu0 0.0
    %1340 = vmatpush1.xpose.msra.mxu0 0.0
    %1341 = vmatprep.subr.mxu0 0.0
    %1342 = vmatpush1.xpose.msra.mxu0 0.0
    %1343 = vmatprep.subr.mxu0 0.0
    %1344 = vmatpush1.xpose.msra.mxu0 0.0
    %1345 = vmatprep.subr.mxu0 0.0
    %1346 = vmatpush1.xpose.msra.mxu0 0.0
    %1347 = vmatprep.subr.mxu0 0.0
    %1348 = vmatpush1.xpose.msra.mxu0 %v1315
    %1349 = vmatprep.subr.mxu0 0.0
    %1350 = vmatpush2.xpose.msra.mxu0 0.0
    %1351 = vmatprep.subr.mxu0 0.0
    %1352 = vmatpush2.xpose.msra.mxu0 0.0
    %1353 = vmatprep.subr.mxu0 0.0
    %1354 = vmatpush2.xpose.msra.mxu0 0.0
    %1355 = vmatprep.subr.mxu0 0.0
    %1356 = vmatpush2.xpose.msra.mxu0 0.0
    %1357 = vmatprep.subr.mxu0 0.0
    %1358 = vmatpush2.xpose.msra.mxu0 0.0
    %1359 = vmatprep.subr.mxu0 0.0
    %1360 = vmatpush2.xpose.msra.mxu0 0.0
    %1361 = vmatprep.subr.mxu0 0.0
    %1362 = vmatpush2.xpose.msra.mxu0 0.0
    %1363 = vmatprep.subr.mxu0 0.0
    %1364 = vmatpush2.xpose.msra.mxu0 0.0
    %1365 = vmatprep.subr.mxu0 0.0
    %1366 = vmatpush2.xpose.msra.mxu0 0.0
    %1367 = vmatprep.subr.mxu0 0.0
    %1368 = vmatpush2.xpose.msra.mxu0 0.0
    %1369 = vmatprep.subr.mxu0 0.0
    %1370 = vmatpush2.xpose.msra.mxu0 0.0
    %1371 = vmatprep.subr.mxu0 0.0
    %1372 = vmatpush2.xpose.msra.mxu0 0.0
    %1373 = vmatprep.subr.mxu0 0.0
    %1374 = vmatpush2.xpose.msra.mxu0 0.0
    %1375 = vmatprep.subr.mxu0 0.0
    %1376 = vmatpush2.xpose.msra.mxu0 0.0
    %1377 = vmatprep.subr.mxu0 0.0
    %1378 = vmatpush2.xpose.msra.mxu0 0.0
    %1379 = vmatprep.subr.mxu0 0.0
    %1380 = vmatpush2.xpose.msra.mxu0 0.0
    %1381 = vmatprep.mubr.f32.mxu0 0.0
    %1382 = vmatmul.mubr.f32.gmra.mxu0 %v1313
    %v1383 = vpop.f32.mrf.mxu0
    %v1384 = vadd.f32 0.0, %v1383
    %v1385 = vpop.f32.mrf.mxu0
    %1386 = vdwg.mxu0
    %v1387 = vmul.f32 %v1306, 0.35355338
    %v1388 = vmul.f32 %v1384, 0.35355338
    %v1389 = vadd.f32 %v1387, %v380
    %v1390 = vadd.f32 %v1388, %v384
    %v1391 = vsel %vm221, %v1389, -inf
    %1392 = vmax.xlane.f32.xlu0 %v1391
    %v1393 = vpop.xlane.xlu0 %1392
    %v1394 = vsel %vm221, %v1390, -inf
    %1395 = vmax.xlane.f32.xlu0 %v1394
    %v1396 = vpop.xlane.xlu0 %1395
    %v1397 = vsub.f32 %v1389, %v1393
    %v1398 = vsub.f32 %v1390, %v1396
    %v1399 = vmul.f32 %v1397, 1.442695
    %v1400 = vpow.pop %v1399
    %v1401 = vmul.f32 %v1398, 1.442695
    %v1402 = vpow.pop %v1401
    %v1403 = vsel %vm221, %v1400, 0.0
    %1404 = vadd.xlane.f32.xlu0 %v1403
    %v1405 = vpop.xlane.xlu0 %1404
    %v1406 = vsel %vm221, %v1402, 0.0
    %1407 = vadd.xlane.f32.xlu0 %v1406
    %v1408 = vpop.xlane.xlu0 %1407
    %v1409 = vrcp.pop %v1405
    %v1410 = vrcp.pop %v1408
    %v1411 = vmul.f32 %v1400, %v1409
    %v1412 = vmul.f32 %v1402, %v1410
    %v1414 = vsel %vm221, %v1411, 0
    %1416 = vmatprep.subr.mxu0 0.0
    %1417 = vmatpush1.msra.mxu0 0.0
    %1418 = vmatprep.subr.mxu0 0.0
    %1419 = vmatpush1.msra.mxu0 0.0
    %1420 = vmatprep.subr.mxu0 0.0
    %1421 = vmatpush1.msra.mxu0 0.0
    %1422 = vmatprep.subr.mxu0 0.0
    %1423 = vmatpush1.msra.mxu0 0.0
    %1424 = vmatprep.subr.mxu0 0.0
    %1425 = vmatpush1.msra.mxu0 0.0
    %1426 = vmatprep.subr.mxu0 0.0
    %1427 = vmatpush1.msra.mxu0 0.0
    %1428 = vmatprep.subr.mxu0 0.0
    %1429 = vmatpush1.msra.mxu0 0.0
    %1430 = vmatprep.subr.mxu0 0.0
    %1431 = vmatpush1.msra.mxu0 0.0
    %1432 = vmatprep.subr.mxu0 0.0
    %1433 = vmatpush1.msra.mxu0 0.0
    %1434 = vmatprep.subr.mxu0 0.0
    %1435 = vmatpush1.msra.mxu0 0.0
    %1436 = vmatprep.subr.mxu0 0.0
    %1437 = vmatpush1.msra.mxu0 0.0
    %1438 = vmatprep.subr.mxu0 0.0
    %1439 = vmatpush1.msra.mxu0 0.0
    %1440 = vmatprep.subr.mxu0 0.0
    %1441 = vmatpush1.msra.mxu0 0.0
    %1442 = vmatprep.subr.mxu0 0.0
    %1443 = vmatpush1.msra.mxu0 0.0
    %1444 = vmatprep.subr.mxu0 0.0
    %1445 = vmatpush1.msra.mxu0 0.0
    %1446 = vmatprep.subr.mxu0 0.0
    %1447 = vmatpush1.msra.mxu0 %v412
    %1448 = vmatprep.subr.mxu0 0.0
    %1449 = vmatpush2.msra.mxu0 0.0
    %1450 = vmatprep.subr.mxu0 0.0
    %1451 = vmatpush2.msra.mxu0 0.0
    %1452 = vmatprep.subr.mxu0 0.0
    %1453 = vmatpush2.msra.mxu0 0.0
    %1454 = vmatprep.subr.mxu0 0.0
    %1455 = vmatpush2.msra.mxu0 0.0
    %1456 = vmatprep.subr.mxu0 0.0
    %1457 = vmatpush2.msra.mxu0 0.0
    %1458 = vmatprep.subr.mxu0 0.0
    %1459 = vmatpush2.msra.mxu0 0.0
    %1460 = vmatprep.subr.mxu0 0.0
    %1461 = vmatpush2.msra.mxu0 0.0
    %1462 = vmatprep.subr.mxu0 0.0
    %1463 = vmatpush2.msra.mxu0 0.0
    %1464 = vmatprep.subr.mxu0 0.0
    %1465 = vmatpush2.msra.mxu0 0.0
    %1466 = vmatprep.subr.mxu0 0.0
    %1467 = vmatpush2.msra.mxu0 0.0
    %1468 = vmatprep.subr.mxu0 0.0
    %1469 = vmatpush2.msra.mxu0 0.0
    %1470 = vmatprep.subr.mxu0 0.0
    %1471 = vmatpush2.msra.mxu0 0.0
    %1472 = vmatprep.subr.mxu0 0.0
    %1473 = vmatpush2.msra.mxu0 0.0
    %1474 = vmatprep.subr.mxu0 0.0
    %1475 = vmatpush2.msra.mxu0 0.0
    %1476 = vmatprep.subr.mxu0 0.0
    %1477 = vmatpush2.msra.mxu0 0.0
    %1478 = vmatprep.subr.mxu0 0.0
    %1479 = vmatpush2.msra.mxu0 0.0
    %1480 = vmatprep.mubr.f32.mxu0 0.0
    %1481 = vmatmul.mubr.f32.gmra.mxu0 %v1414
    %v1482 = vpop.f32.mrf.mxu0
    %v1483 = vadd.f32 0.0, %v1482
    %v1484 = vpop.f32.mrf.mxu0
    %1485 = vdwg.mxu0
    %v1487 = vsel %vm221, %v1412, 0
    %1489 = vmatprep.subr.mxu0 0.0
    %1490 = vmatpush1.msra.mxu0 0.0
    %1491 = vmatprep.subr.mxu0 0.0
    %1492 = vmatpush1.msra.mxu0 0.0
    %1493 = vmatprep.subr.mxu0 0.0
    %1494 = vmatpush1.msra.mxu0 0.0
    %1495 = vmatprep.subr.mxu0 0.0
    %1496 = vmatpush1.msra.mxu0 0.0
    %1497 = vmatprep.subr.mxu0 0.0
    %1498 = vmatpush1.msra.mxu0 0.0
    %1499 = vmatprep.subr.mxu0 0.0
    %1500 = vmatpush1.msra.mxu0 0.0
    %1501 = vmatprep.subr.mxu0 0.0
    %1502 = vmatpush1.msra.mxu0 0.0
    %1503 = vmatprep.subr.mxu0 0.0
    %1504 = vmatpush1.msra.mxu0 0.0
    %1505 = vmatprep.subr.mxu0 0.0
    %1506 = vmatpush1.msra.mxu0 0.0
    %1507 = vmatprep.subr.mxu0 0.0
    %1508 = vmatpush1.msra.mxu0 0.0
    %1509 = vmatprep.subr.mxu0 0.0
    %1510 = vmatpush1.msra.mxu0 0.0
    %1511 = vmatprep.subr.mxu0 0.0
    %1512 = vmatpush1.msra.mxu0 0.0
    %1513 = vmatprep.subr.mxu0 0.0
    %1514 = vmatpush1.msra.mxu0 0.0
    %1515 = vmatprep.subr.mxu0 0.0
    %1516 = vmatpush1.msra.mxu0 0.0
    %1517 = vmatprep.subr.mxu0 0.0
    %1518 = vmatpush1.msra.mxu0 0.0
    %1519 = vmatprep.subr.mxu0 0.0
    %1520 = vmatpush1.msra.mxu0 %v488
    %1521 = vmatprep.subr.mxu0 0.0
    %1522 = vmatpush2.msra.mxu0 0.0
    %1523 = vmatprep.subr.mxu0 0.0
    %1524 = vmatpush2.msra.mxu0 0.0
    %1525 = vmatprep.subr.mxu0 0.0
    %1526 = vmatpush2.msra.mxu0 0.0
    %1527 = vmatprep.subr.mxu0 0.0
    %1528 = vmatpush2.msra.mxu0 0.0
    %1529 = vmatprep.subr.mxu0 0.0
    %1530 = vmatpush2.msra.mxu0 0.0
    %1531 = vmatprep.subr.mxu0 0.0
    %1532 = vmatpush2.msra.mxu0 0.0
    %1533 = vmatprep.subr.mxu0 0.0
    %1534 = vmatpush2.msra.mxu0 0.0
    %1535 = vmatprep.subr.mxu0 0.0
    %1536 = vmatpush2.msra.mxu0 0.0
    %1537 = vmatprep.subr.mxu0 0.0
    %1538 = vmatpush2.msra.mxu0 0.0
    %1539 = vmatprep.subr.mxu0 0.0
    %1540 = vmatpush2.msra.mxu0 0.0
    %1541 = vmatprep.subr.mxu0 0.0
    %1542 = vmatpush2.msra.mxu0 0.0
    %1543 = vmatprep.subr.mxu0 0.0
    %1544 = vmatpush2.msra.mxu0 0.0
    %1545 = vmatprep.subr.mxu0 0.0
    %1546 = vmatpush2.msra.mxu0 0.0
    %1547 = vmatprep.subr.mxu0 0.0
    %1548 = vmatpush2.msra.mxu0 0.0
    %1549 = vmatprep.subr.mxu0 0.0
    %1550 = vmatpush2.msra.mxu0 0.0
    %1551 = vmatprep.subr.mxu0 0.0
    %1552 = vmatpush2.msra.mxu0 0.0
    %1553 = vmatprep.mubr.f32.mxu0 0.0
    %1554 = vmatmul.mubr.f32.gmra.mxu0 %v1487
    %v1555 = vpop.f32.mrf.mxu0
    %v1556 = vadd.f32 0.0, %v1555
    %v1557 = vpop.f32.mrf.mxu0
    %1558 = vdwg.mxu0
    %v1559 = vmul.f32 %v1483, %v81
    %v1560 = vmul.f32 %v1556, %v81
    %v1561 = vadd.f32 %v1229, %v1559
    %v1562 = vadd.f32 %v1230, %v1560
    %v1563 = vpack.c.bf16 %v1562, %v1561
    %v1564 = vld [vmem:[%s7] sm:$0xf]
    %v1565 = vld [vmem:[%s7 + $0x4] sm:$0xf]
    %v1566 = vld [vmem:[%s7 + $0x8] sm:$0xf]
    %v1567 = vld [vmem:[%s7 + $0xc] sm:$0xf]
    %v1568 = vld [vmem:[%s8] sm:$0x1]
    %v1570 = vlaneseq
    %v1571 = vshrl.u32 %v1570, 7
    %v1572 = vsub.s32 0, %v1571
    %v1573 = vrot.slane %v1568, %v1572
    %v1579 = vunpack.c.l.b16 %v1564
    %v1580 = vunpack.c.l.b16 %v1565
    %v1581 = vunpack.c.l.b16 %v1566
    %v1582 = vunpack.c.l.b16 %v1567
    %v1583 = vpack.c.b16 %v1580, %v1579
    %v1584 = vpack.c.b16 %v1582, %v1581
    %v1588 = vsel %vm91, %v1563, 0
    %1590 = vmatprep.subr.bf16.mxu0 0
    %1591 = vmatpush1.bf16.msra.mxu0 0
    %1592 = vmatprep.subr.bf16.mxu0 0
    %1593 = vmatpush1.bf16.msra.mxu0 0
    %1594 = vmatprep.subr.bf16.mxu0 0
    %1595 = vmatpush1.bf16.msra.mxu0 0
    %1596 = vmatprep.subr.bf16.mxu0 0
    %1597 = vmatpush1.bf16.msra.mxu0 0
    %1598 = vmatprep.subr.bf16.mxu0 0
    %1599 = vmatpush1.bf16.msra.mxu0 0
    %1600 = vmatprep.subr.bf16.mxu0 0
    %1601 = vmatpush1.bf16.msra.mxu0 0
    %1602 = vmatprep.subr.bf16.mxu0 0
    %1603 = vmatpush1.bf16.msra.mxu0 %v1584
    %1604 = vmatprep.subr.bf16.mxu0 0
    %1605 = vmatpush1.bf16.msra.mxu0 %v1583
    %1606 = vmatprep.subr.bf16.mxu0 0
    %1607 = vmatpush2.bf16.msra.mxu0 0
    %1608 = vmatprep.subr.bf16.mxu0 0
    %1609 = vmatpush2.bf16.msra.mxu0 0
    %1610 = vmatprep.subr.bf16.mxu0 0
    %1611 = vmatpush2.bf16.msra.mxu0 0
    %1612 = vmatprep.subr.bf16.mxu0 0
    %1613 = vmatpush2.bf16.msra.mxu0 0
    %1614 = vmatprep.subr.bf16.mxu0 0
    %1615 = vmatpush2.bf16.msra.mxu0 0
    %1616 = vmatprep.subr.bf16.mxu0 0
    %1617 = vmatpush2.bf16.msra.mxu0 0
    %1618 = vmatprep.subr.bf16.mxu0 0
    %1619 = vmatpush2.bf16.msra.mxu0 0
    %1620 = vmatprep.subr.bf16.mxu0 0
    %1621 = vmatpush2.bf16.msra.mxu0 0
    %1622 = vmatprep.mubr.bf16.mxu0 0
    %1623 = vmatmul.mubr.bf16.gmra.mxu0 %v1588
    %v1624 = vpop.f32.mrf.mxu0
    %v1625 = vadd.f32 %v1573, %v1624
    %v1626 = vpop.f32.mrf.mxu0
    %v1627 = vpop.f32.mrf.mxu0
    %v1628 = vadd.f32 %v1573, %v1627
    %v1629 = vpop.f32.mrf.mxu0
    %1630 = vdwg.mxu0
    %v1631 = vadd.f32 %v87, %v1625
    %v1632 = vadd.f32 %v88, %v1628
    %v1633 = vld [vmem:[%s9] sm:$0x1]
    %v1634 = vld [vmem:[%s10] sm:$0x1]
    %v1635 = vsel %vm91, %v1631, 0.0
    %1636 = vadd.xlane.f32.xlu0 %v1635
    %v1637 = vpop.xlane.xlu0 %1636
    %v1638 = vsel %vm91, %v1632, 0.0
    %1639 = vadd.xlane.f32.xlu0 %v1638
    %v1640 = vpop.xlane.xlu0 %1639
    %v1641 = vmul.f32 %v1637, %v98
    %v1642 = vmul.f32 %v1640, %v98
    %v1643 = vsub.f32 %v1631, %v1641
    %v1644 = vsub.f32 %v1632, %v1642
    %v1645 = vmul.f32 %v1643, %v1643
    %v1646 = vmul.f32 %v1644, %v1644
    %v1647 = vsel %vm91, %v1645, 0.0
    %1648 = vadd.xlane.f32.xlu0 %v1647
    %v1649 = vpop.xlane.xlu0 %1648
    %v1650 = vsel %vm91, %v1646, 0.0
    %1651 = vadd.xlane.f32.xlu0 %v1650
    %v1652 = vpop.xlane.xlu0 %1651
    %v1653 = vmul.f32 %v1649, %v111
    %v1654 = vmul.f32 %v1652, %v111
    %v1655 = vrsqrt.pop %v1653
    %v1656 = vmul.f32 %v1653, %v1655
    %vm1657 = vcmp.eq.f32.partialorder %v1653, inf
    %v1658 = vsel %vm1657, %v1653, %v1656
    %vm1659 = vcmp.eq.f32.partialorder %v1653, 0.0
    %v1660 = vand.u32 %v1653, 2147483648
    %v1661 = vsel %vm1659, %v1660, %v1658
    %v1662 = vrsqrt.pop %v1654
    %v1663 = vmul.f32 %v1654, %v1662
    %vm1664 = vcmp.eq.f32.partialorder %v1654, inf
    %v1665 = vsel %vm1664, %v1654, %v1663
    %vm1666 = vcmp.eq.f32.partialorder %v1654, 0.0
    %v1667 = vand.u32 %v1654, 2147483648
    %v1668 = vsel %vm1666, %v1667, %v1665
    %v1669 = vadd.f32 %v1661, 1e-06
    %v1670 = vadd.f32 %v1668, 1e-06
    %v1671 = vrcp.pop %v1669
    %v1672 = vrcp.pop %v1670
    %v1674 = vlaneseq
    %v1675 = vshrl.u32 %v1674, 7
    %v1676 = vsub.s32 0, %v1675
    %v1677 = vrot.slane %v1633, %v1676
    %v1679 = vmul.f32 %v1677, %v1643
    %v1680 = vmul.f32 %v1677, %v1644
    %v1681 = vmul.f32 %v1679, %v1671
    %v1682 = vmul.f32 %v1680, %v1672
    %v1684 = vlaneseq
    %v1685 = vshrl.u32 %v1684, 7
    %v1686 = vsub.s32 0, %v1685
    %v1687 = vrot.slane %v1634, %v1686
    %v1689 = vadd.f32 %v1681, %v1687
    %v1690 = vadd.f32 %v1682, %v1687
    %v1691 = vpack.c.bf16 %v1690, %v1689
    %v1692 = vld [vmem:[%s11] sm:$0xff]
    %v1693 = vld [vmem:[%s11 + $0x8] sm:$0xff]
    %v1694 = vld [vmem:[%s11 + $0x40] sm:$0xff]
    %v1695 = vld [vmem:[%s11 + $0x48] sm:$0xff]
    %v1696 = vld [vmem:[%s11 + $0x80] sm:$0xff]
    %v1697 = vld [vmem:[%s11 + $0x88] sm:$0xff]
    %v1698 = vld [vmem:[%s11 + $0xc0] sm:$0xff]
    %v1699 = vld [vmem:[%s11 + $0xc8] sm:$0xff]
    %v1700 = vld [vmem:[%s12] sm:$0xf]
    %v1702 = vlaneseq
    %v1703 = vshrl.u32 %v1702, 7
    %v1704 = vsub.s32 0, %v1703
    %v1705 = vrot.slane %v1700, %v1704
    %v1706 = vlaneseq
    %v1707 = vshrl.u32 %v1706, 7
    %v1708 = vsub.s32 1, %v1707
    %v1709 = vrot.slane %v1700, %v1708
    %v1710 = vlaneseq
    %v1711 = vshrl.u32 %v1710, 7
    %v1712 = vsub.s32 2, %v1711
    %v1713 = vrot.slane %v1700, %v1712
    %v1714 = vlaneseq
    %v1715 = vshrl.u32 %v1714, 7
    %v1716 = vsub.s32 3, %v1715
    %v1717 = vrot.slane %v1700, %v1716
    %v1730 = vunpack.c.l.b16 %v1692
    %v1731 = vunpack.c.h.b16 %v1692
    %v1732 = vunpack.c.l.b16 %v1693
    %v1733 = vunpack.c.h.b16 %v1693
    %v1734 = vunpack.c.l.b16 %v1694
    %v1735 = vunpack.c.h.b16 %v1694
    %v1736 = vunpack.c.l.b16 %v1695
    %v1737 = vunpack.c.h.b16 %v1695
    %v1738 = vunpack.c.l.b16 %v1696
    %v1739 = vunpack.c.h.b16 %v1696
    %v1740 = vunpack.c.l.b16 %v1697
    %v1741 = vunpack.c.h.b16 %v1697
    %v1742 = vunpack.c.l.b16 %v1698
    %v1743 = vunpack.c.h.b16 %v1698
    %v1744 = vunpack.c.l.b16 %v1699
    %v1745 = vunpack.c.h.b16 %v1699
    %v1746 = vpack.c.b16 %v1734, %v1730
    %v1747 = vpack.c.b16 %v1735, %v1731
    %v1748 = vpack.c.b16 %v1736, %v1732
    %v1749 = vpack.c.b16 %v1737, %v1733
    %v1750 = vpack.c.b16 %v1742, %v1738
    %v1751 = vpack.c.b16 %v1743, %v1739
    %v1752 = vpack.c.b16 %v1744, %v1740
    %v1753 = vpack.c.b16 %v1745, %v1741
    %v1763 = vsel %vm91, %v1691, 0
    %1765 = vmatprep.subr.bf16.mxu0 0
    %1766 = vmatpush1.bf16.msra.mxu0 0
    %1767 = vmatprep.subr.bf16.mxu0 0
    %1768 = vmatpush1.bf16.msra.mxu0 0
    %1769 = vmatprep.subr.bf16.mxu0 0
    %1770 = vmatpush1.bf16.msra.mxu0 0
    %1771 = vmatprep.subr.bf16.mxu0 0
    %1772 = vmatpush1.bf16.msra.mxu0 0
    %1773 = vmatprep.subr.bf16.mxu0 0
    %1774 = vmatpush1.bf16.msra.mxu0 0
    %1775 = vmatprep.subr.bf16.mxu0 0
    %1776 = vmatpush1.bf16.msra.mxu0 0
    %1777 = vmatprep.subr.bf16.mxu0 %v1751
    %1778 = vmatpush1.bf16.msra.mxu0 %v1750
    %1779 = vmatprep.subr.bf16.mxu0 %v1747
    %1780 = vmatpush1.bf16.msra.mxu0 %v1746
    %1781 = vmatprep.subr.bf16.mxu0 0
    %1782 = vmatpush2.bf16.msra.mxu0 0
    %1783 = vmatprep.subr.bf16.mxu0 0
    %1784 = vmatpush2.bf16.msra.mxu0 0
    %1785 = vmatprep.subr.bf16.mxu0 0
    %1786 = vmatpush2.bf16.msra.mxu0 0
    %1787 = vmatprep.subr.bf16.mxu0 0
    %1788 = vmatpush2.bf16.msra.mxu0 0
    %1789 = vmatprep.subr.bf16.mxu0 0
    %1790 = vmatpush2.bf16.msra.mxu0 0
    %1791 = vmatprep.subr.bf16.mxu0 0
    %1792 = vmatpush2.bf16.msra.mxu0 0
    %1793 = vmatprep.subr.bf16.mxu0 0
    %1794 = vmatpush2.bf16.msra.mxu0 0
    %1795 = vmatprep.subr.bf16.mxu0 0
    %1796 = vmatpush2.bf16.msra.mxu0 0
    %1797 = vmatprep.mubr.bf16.mxu0 0
    %1798 = vmatmul.mubr.bf16.gmra.mxu0 %v1763
    %v1799 = vpop.f32.mrf.mxu0
    %v1800 = vadd.f32 %v1705, %v1799
    %v1801 = vpop.f32.mrf.mxu0
    %v1802 = vadd.f32 %v1709, %v1801
    %v1803 = vpop.f32.mrf.mxu0
    %v1804 = vadd.f32 %v1705, %v1803
    %v1805 = vpop.f32.mrf.mxu0
    %v1806 = vadd.f32 %v1709, %v1805
    %1807 = vdwg.mxu0
    %1808 = vmatprep.subr.bf16.mxu0 0
    %1809 = vmatpush1.bf16.msra.mxu0 0
    %1810 = vmatprep.subr.bf16.mxu0 0
    %1811 = vmatpush1.bf16.msra.mxu0 0
    %1812 = vmatprep.subr.bf16.mxu0 0
    %1813 = vmatpush1.bf16.msra.mxu0 0
    %1814 = vmatprep.subr.bf16.mxu0 0
    %1815 = vmatpush1.bf16.msra.mxu0 0
    %1816 = vmatprep.subr.bf16.mxu0 0
    %1817 = vmatpush1.bf16.msra.mxu0 0
    %1818 = vmatprep.subr.bf16.mxu0 0
    %1819 = vmatpush1.bf16.msra.mxu0 0
    %1820 = vmatprep.subr.bf16.mxu0 %v1753
    %1821 = vmatpush1.bf16.msra.mxu0 %v1752
    %1822 = vmatprep.subr.bf16.mxu0 %v1749
    %1823 = vmatpush1.bf16.msra.mxu0 %v1748
    %1824 = vmatprep.subr.bf16.mxu0 0
    %1825 = vmatpush2.bf16.msra.mxu0 0
    %1826 = vmatprep.subr.bf16.mxu0 0
    %1827 = vmatpush2.bf16.msra.mxu0 0
    %1828 = vmatprep.subr.bf16.mxu0 0
    %1829 = vmatpush2.bf16.msra.mxu0 0
    %1830 = vmatprep.subr.bf16.mxu0 0
    %1831 = vmatpush2.bf16.msra.mxu0 0
    %1832 = vmatprep.subr.bf16.mxu0 0
    %1833 = vmatpush2.bf16.msra.mxu0 0
    %1834 = vmatprep.subr.bf16.mxu0 0
    %1835 = vmatpush2.bf16.msra.mxu0 0
    %1836 = vmatprep.subr.bf16.mxu0 0
    %1837 = vmatpush2.bf16.msra.mxu0 0
    %1838 = vmatprep.subr.bf16.mxu0 0
    %1839 = vmatpush2.bf16.msra.mxu0 0
    %1840 = vmatprep.mubr.bf16.mxu0 0
    %1841 = vmatmul.mubr.bf16.gmra.mxu0 %v1763
    %v1842 = vpop.f32.mrf.mxu0
    %v1843 = vadd.f32 %v1713, %v1842
    %v1844 = vpop.f32.mrf.mxu0
    %v1845 = vadd.f32 %v1717, %v1844
    %v1846 = vpop.f32.mrf.mxu0
    %v1847 = vadd.f32 %v1713, %v1846
    %v1848 = vpop.f32.mrf.mxu0
    %v1849 = vadd.f32 %v1717, %v1848
    %1850 = vdwg.mxu0
    %v1851 = vmax.f32 %v1800, 0.0
    %v1852 = vmax.f32 %v1802, 0.0
    %v1853 = vmax.f32 %v1843, 0.0
    %v1854 = vmax.f32 %v1845, 0.0
    %v1855 = vmax.f32 %v1804, 0.0
    %v1856 = vmax.f32 %v1806, 0.0
    %v1857 = vmax.f32 %v1847, 0.0
    %v1858 = vmax.f32 %v1849, 0.0
    %v1859 = vpack.c.bf16 %v1855, %v1851
    %v1860 = vpack.c.bf16 %v1856, %v1852
    %v1861 = vpack.c.bf16 %v1857, %v1853
    %v1862 = vpack.c.bf16 %v1858, %v1854
    %v1863 = vld [vmem:[%s13] sm:$0xf]
    %v1864 = vld [vmem:[%s13 + $0x4] sm:$0xf]
    %v1865 = vld [vmem:[%s13 + $0x8] sm:$0xf]
    %v1866 = vld [vmem:[%s13 + $0xc] sm:$0xf]
    %v1867 = vld [vmem:[%s13 + $0x10] sm:$0xf]
    %v1868 = vld [vmem:[%s13 + $0x14] sm:$0xf]
    %v1869 = vld [vmem:[%s13 + $0x18] sm:$0xf]
    %v1870 = vld [vmem:[%s13 + $0x1c] sm:$0xf]
    %v1871 = vld [vmem:[%s13 + $0x20] sm:$0xf]
    %v1872 = vld [vmem:[%s13 + $0x24] sm:$0xf]
    %v1873 = vld [vmem:[%s13 + $0x28] sm:$0xf]
    %v1874 = vld [vmem:[%s13 + $0x2c] sm:$0xf]
    %v1875 = vld [vmem:[%s13 + $0x30] sm:$0xf]
    %v1876 = vld [vmem:[%s13 + $0x34] sm:$0xf]
    %v1877 = vld [vmem:[%s13 + $0x38] sm:$0xf]
    %v1878 = vld [vmem:[%s13 + $0x3c] sm:$0xf]
    %v1879 = vld [vmem:[%s13 + $0x40] sm:$0xf]
    %v1880 = vld [vmem:[%s13 + $0x44] sm:$0xf]
    %v1881 = vld [vmem:[%s13 + $0x48] sm:$0xf]
    %v1882 = vld [vmem:[%s13 + $0x4c] sm:$0xf]
    %v1883 = vld [vmem:[%s13 + $0x50] sm:$0xf]
    %v1884 = vld [vmem:[%s13 + $0x54] sm:$0xf]
    %v1885 = vld [vmem:[%s13 + $0x58] sm:$0xf]
    %v1886 = vld [vmem:[%s13 + $0x5c] sm:$0xf]
    %v1887 = vld [vmem:[%s13 + $0x60] sm:$0xf]
    %v1888 = vld [vmem:[%s13 + $0x64] sm:$0xf]
    %v1889 = vld [vmem:[%s13 + $0x68] sm:$0xf]
    %v1890 = vld [vmem:[%s13 + $0x6c] sm:$0xf]
    %v1891 = vld [vmem:[%s13 + $0x70] sm:$0xf]
    %v1892 = vld [vmem:[%s13 + $0x74] sm:$0xf]
    %v1893 = vld [vmem:[%s13 + $0x78] sm:$0xf]
    %v1894 = vld [vmem:[%s13 + $0x7c] sm:$0xf]
    %v1895 = vld [vmem:[%s13 + $0x80] sm:$0xf]
    %v1896 = vld [vmem:[%s13 + $0x84] sm:$0xf]
    %v1897 = vld [vmem:[%s13 + $0x88] sm:$0xf]
    %v1898 = vld [vmem:[%s13 + $0x8c] sm:$0xf]
    %v1899 = vld [vmem:[%s13 + $0x90] sm:$0xf]
    %v1900 = vld [vmem:[%s13 + $0x94] sm:$0xf]
    %v1901 = vld [vmem:[%s13 + $0x98] sm:$0xf]
    %v1902 = vld [vmem:[%s13 + $0x9c] sm:$0xf]
    %v1903 = vld [vmem:[%s13 + $0xa0] sm:$0xf]
    %v1904 = vld [vmem:[%s13 + $0xa4] sm:$0xf]
    %v1905 = vld [vmem:[%s13 + $0xa8] sm:$0xf]
    %v1906 = vld [vmem:[%s13 + $0xac] sm:$0xf]
    %v1907 = vld [vmem:[%s13 + $0xb0] sm:$0xf]
    %v1908 = vld [vmem:[%s13 + $0xb4] sm:$0xf]
    %v1909 = vld [vmem:[%s13 + $0xb8] sm:$0xf]
    %v1910 = vld [vmem:[%s13 + $0xbc] sm:$0xf]
    %v1911 = vld [vmem:[%s13 + $0xc0] sm:$0xf]
    %v1912 = vld [vmem:[%s13 + $0xc4] sm:$0xf]
    %v1913 = vld [vmem:[%s13 + $0xc8] sm:$0xf]
    %v1914 = vld [vmem:[%s13 + $0xcc] sm:$0xf]
    %v1915 = vld [vmem:[%s13 + $0xd0] sm:$0xf]
    %v1916 = vld [vmem:[%s13 + $0xd4] sm:$0xf]
    %v1917 = vld [vmem:[%s13 + $0xd8] sm:$0xf]
    %v1918 = vld [vmem:[%s13 + $0xdc] sm:$0xf]
    %v1919 = vld [vmem:[%s13 + $0xe0] sm:$0xf]
    %v1920 = vld [vmem:[%s13 + $0xe4] sm:$0xf]
    %v1921 = vld [vmem:[%s13 + $0xe8] sm:$0xf]
    %v1922 = vld [vmem:[%s13 + $0xec] sm:$0xf]
    %v1923 = vld [vmem:[%s13 + $0xf0] sm:$0xf]
    %v1924 = vld [vmem:[%s13 + $0xf4] sm:$0xf]
    %v1925 = vld [vmem:[%s13 + $0xf8] sm:$0xf]
    %v1926 = vld [vmem:[%s13 + $0xfc] sm:$0xf]
    %v1927 = vld [vmem:[%s11 + $0x10] sm:$0xff]
    %v1928 = vld [vmem:[%s11 + $0x18] sm:$0xff]
    %v1929 = vld [vmem:[%s11 + $0x50] sm:$0xff]
    %v1930 = vld [vmem:[%s11 + $0x58] sm:$0xff]
    %v1931 = vld [vmem:[%s11 + $0x90] sm:$0xff]
    %v1932 = vld [vmem:[%s11 + $0x98] sm:$0xff]
    %v1933 = vld [vmem:[%s11 + $0xd0] sm:$0xff]
    %v1934 = vld [vmem:[%s11 + $0xd8] sm:$0xff]
    %v1935 = vld [vmem:[%s12 + $0x4] sm:$0xf]
    %v1937 = vlaneseq
    %v1938 = vshrl.u32 %v1937, 7
    %v1939 = vsub.s32 0, %v1938
    %v1940 = vrot.slane %v1935, %v1939
    %v1941 = vlaneseq
    %v1942 = vshrl.u32 %v1941, 7
    %v1943 = vsub.s32 1, %v1942
    %v1944 = vrot.slane %v1935, %v1943
    %v1945 = vlaneseq
    %v1946 = vshrl.u32 %v1945, 7
    %v1947 = vsub.s32 2, %v1946
    %v1948 = vrot.slane %v1935, %v1947
    %v1949 = vlaneseq
    %v1950 = vshrl.u32 %v1949, 7
    %v1951 = vsub.s32 3, %v1950
    %v1952 = vrot.slane %v1935, %v1951
    %v1965 = vunpack.c.l.b16 %v1927
    %v1966 = vunpack.c.h.b16 %v1927
    %v1967 = vunpack.c.l.b16 %v1928
    %v1968 = vunpack.c.h.b16 %v1928
    %v1969 = vunpack.c.l.b16 %v1929
    %v1970 = vunpack.c.h.b16 %v1929
    %v1971 = vunpack.c.l.b16 %v1930
    %v1972 = vunpack.c.h.b16 %v1930
    %v1973 = vunpack.c.l.b16 %v1931
    %v1974 = vunpack.c.h.b16 %v1931
    %v1975 = vunpack.c.l.b16 %v1932
    %v1976 = vunpack.c.h.b16 %v1932
    %v1977 = vunpack.c.l.b16 %v1933
    %v1978 = vunpack.c.h.b16 %v1933
    %v1979 = vunpack.c.l.b16 %v1934
    %v1980 = vunpack.c.h.b16 %v1934
    %v1981 = vpack.c.b16 %v1969, %v1965
    %v1982 = vpack.c.b16 %v1970, %v1966
    %v1983 = vpack.c.b16 %v1971, %v1967
    %v1984 = vpack.c.b16 %v1972, %v1968
    %v1985 = vpack.c.b16 %v1977, %v1973
    %v1986 = vpack.c.b16 %v1978, %v1974
    %v1987 = vpack.c.b16 %v1979, %v1975
    %v1988 = vpack.c.b16 %v1980, %v1976
    %1997 = vmatprep.subr.bf16.mxu0 0
    %1998 = vmatpush1.bf16.msra.mxu0 0
    %1999 = vmatprep.subr.bf16.mxu0 0
    %2000 = vmatpush1.bf16.msra.mxu0 0
    %2001 = vmatprep.subr.bf16.mxu0 0
    %2002 = vmatpush1.bf16.msra.mxu0 0
    %2003 = vmatprep.subr.bf16.mxu0 0
    %2004 = vmatpush1.bf16.msra.mxu0 0
    %2005 = vmatprep.subr.bf16.mxu0 0
    %2006 = vmatpush1.bf16.msra.mxu0 0
    %2007 = vmatprep.subr.bf16.mxu0 0
    %2008 = vmatpush1.bf16.msra.mxu0 0
    %2009 = vmatprep.subr.bf16.mxu0 %v1986
    %2010 = vmatpush1.bf16.msra.mxu0 %v1985
    %2011 = vmatprep.subr.bf16.mxu0 %v1982
    %2012 = vmatpush1.bf16.msra.mxu0 %v1981
    %2013 = vmatprep.subr.bf16.mxu0 0
    %2014 = vmatpush2.bf16.msra.mxu0 0
    %2015 = vmatprep.subr.bf16.mxu0 0
    %2016 = vmatpush2.bf16.msra.mxu0 0
    %2017 = vmatprep.subr.bf16.mxu0 0
    %2018 = vmatpush2.bf16.msra.mxu0 0
    %2019 = vmatprep.subr.bf16.mxu0 0
    %2020 = vmatpush2.bf16.msra.mxu0 0
    %2021 = vmatprep.subr.bf16.mxu0 0
    %2022 = vmatpush2.bf16.msra.mxu0 0
    %2023 = vmatprep.subr.bf16.mxu0 0
    %2024 = vmatpush2.bf16.msra.mxu0 0
    %2025 = vmatprep.subr.bf16.mxu0 0
    %2026 = vmatpush2.bf16.msra.mxu0 0
    %2027 = vmatprep.subr.bf16.mxu0 0
    %2028 = vmatpush2.bf16.msra.mxu0 0
    %2029 = vmatprep.mubr.bf16.mxu0 0
    %2030 = vmatmul.mubr.bf16.gmra.mxu0 %v1763
    %v2031 = vpop.f32.mrf.mxu0
    %v2032 = vadd.f32 %v1940, %v2031
    %v2033 = vpop.f32.mrf.mxu0
    %v2034 = vadd.f32 %v1944, %v2033
    %v2035 = vpop.f32.mrf.mxu0
    %v2036 = vadd.f32 %v1940, %v2035
    %v2037 = vpop.f32.mrf.mxu0
    %v2038 = vadd.f32 %v1944, %v2037
    %2039 = vdwg.mxu0
    %2040 = vmatprep.subr.bf16.mxu0 0
    %2041 = vmatpush1.bf16.msra.mxu0 0
    %2042 = vmatprep.subr.bf16.mxu0 0
    %2043 = vmatpush1.bf16.msra.mxu0 0
    %2044 = vmatprep.subr.bf16.mxu0 0
    %2045 = vmatpush1.bf16.msra.mxu0 0
    %2046 = vmatprep.subr.bf16.mxu0 0
    %2047 = vmatpush1.bf16.msra.mxu0 0
    %2048 = vmatprep.subr.bf16.mxu0 0
    %2049 = vmatpush1.bf16.msra.mxu0 0
    %2050 = vmatprep.subr.bf16.mxu0 0
    %2051 = vmatpush1.bf16.msra.mxu0 0
    %2052 = vmatprep.subr.bf16.mxu0 %v1988
    %2053 = vmatpush1.bf16.msra.mxu0 %v1987
    %2054 = vmatprep.subr.bf16.mxu0 %v1984
    %2055 = vmatpush1.bf16.msra.mxu0 %v1983
    %2056 = vmatprep.subr.bf16.mxu0 0
    %2057 = vmatpush2.bf16.msra.mxu0 0
    %2058 = vmatprep.subr.bf16.mxu0 0
    %2059 = vmatpush2.bf16.msra.mxu0 0
    %2060 = vmatprep.subr.bf16.mxu0 0
    %2061 = vmatpush2.bf16.msra.mxu0 0
    %2062 = vmatprep.subr.bf16.mxu0 0
    %2063 = vmatpush2.bf16.msra.mxu0 0
    %2064 = vmatprep.subr.bf16.mxu0 0
    %2065 = vmatpush2.bf16.msra.mxu0 0
    %2066 = vmatprep.subr.bf16.mxu0 0
    %2067 = vmatpush2.bf16.msra.mxu0 0
    %2068 = vmatprep.subr.bf16.mxu0 0
    %2069 = vmatpush2.bf16.msra.mxu0 0
    %2070 = vmatprep.subr.bf16.mxu0 0
    %2071 = vmatpush2.bf16.msra.mxu0 0
    %2072 = vmatprep.mubr.bf16.mxu0 0
    %2073 = vmatmul.mubr.bf16.gmra.mxu0 %v1763
    %v2074 = vpop.f32.mrf.mxu0
    %v2075 = vadd.f32 %v1948, %v2074
    %v2076 = vpop.f32.mrf.mxu0
    %v2077 = vadd.f32 %v1952, %v2076
    %v2078 = vpop.f32.mrf.mxu0
    %v2079 = vadd.f32 %v1948, %v2078
    %v2080 = vpop.f32.mrf.mxu0
    %v2081 = vadd.f32 %v1952, %v2080
    %2082 = vdwg.mxu0
    %v2083 = vmax.f32 %v2032, 0.0
    %v2084 = vmax.f32 %v2034, 0.0
    %v2085 = vmax.f32 %v2075, 0.0
    %v2086 = vmax.f32 %v2077, 0.0
    %v2087 = vmax.f32 %v2036, 0.0
    %v2088 = vmax.f32 %v2038, 0.0
    %v2089 = vmax.f32 %v2079, 0.0
    %v2090 = vmax.f32 %v2081, 0.0
    %v2091 = vpack.c.bf16 %v2087, %v2083
    %v2092 = vpack.c.bf16 %v2088, %v2084
    %v2093 = vpack.c.bf16 %v2089, %v2085
    %v2094 = vpack.c.bf16 %v2090, %v2086
    %v2095 = vld [vmem:[%s13 + $0x100] sm:$0xf]
    %v2096 = vld [vmem:[%s13 + $0x104] sm:$0xf]
    %v2097 = vld [vmem:[%s13 + $0x108] sm:$0xf]
    %v2098 = vld [vmem:[%s13 + $0x10c] sm:$0xf]
    %v2099 = vld [vmem:[%s13 + $0x110] sm:$0xf]
    %v2100 = vld [vmem:[%s13 + $0x114] sm:$0xf]
    %v2101 = vld [vmem:[%s13 + $0x118] sm:$0xf]
    %v2102 = vld [vmem:[%s13 + $0x11c] sm:$0xf]
    %v2103 = vld [vmem:[%s13 + $0x120] sm:$0xf]
    %v2104 = vld [vmem:[%s13 + $0x124] sm:$0xf]
    %v2105 = vld [vmem:[%s13 + $0x128] sm:$0xf]
    %v2106 = vld [vmem:[%s13 + $0x12c] sm:$0xf]
    %v2107 = vld [vmem:[%s13 + $0x130] sm:$0xf]
    %v2108 = vld [vmem:[%s13 + $0x134] sm:$0xf]
    %v2109 = vld [vmem:[%s13 + $0x138] sm:$0xf]
    %v2110 = vld [vmem:[%s13 + $0x13c] sm:$0xf]
    %v2111 = vld [vmem:[%s13 + $0x140] sm:$0xf]
    %v2112 = vld [vmem:[%s13 + $0x144] sm:$0xf]
    %v2113 = vld [vmem:[%s13 + $0x148] sm:$0xf]
    %v2114 = vld [vmem:[%s13 + $0x14c] sm:$0xf]
    %v2115 = vld [vmem:[%s13 + $0x150] sm:$0xf]
    %v2116 = vld [vmem:[%s13 + $0x154] sm:$0xf]
    %v2117 = vld [vmem:[%s13 + $0x158] sm:$0xf]
    %v2118 = vld [vmem:[%s13 + $0x15c] sm:$0xf]
    %v2119 = vld [vmem:[%s13 + $0x160] sm:$0xf]
    %v2120 = vld [vmem:[%s13 + $0x164] sm:$0xf]
    %v2121 = vld [vmem:[%s13 + $0x168] sm:$0xf]
    %v2122 = vld [vmem:[%s13 + $0x16c] sm:$0xf]
    %v2123 = vld [vmem:[%s13 + $0x170] sm:$0xf]
    %v2124 = vld [vmem:[%s13 + $0x174] sm:$0xf]
    %v2125 = vld [vmem:[%s13 + $0x178] sm:$0xf]
    %v2126 = vld [vmem:[%s13 + $0x17c] sm:$0xf]
    %v2127 = vld [vmem:[%s13 + $0x180] sm:$0xf]
    %v2128 = vld [vmem:[%s13 + $0x184] sm:$0xf]
    %v2129 = vld [vmem:[%s13 + $0x188] sm:$0xf]
    %v2130 = vld [vmem:[%s13 + $0x18c] sm:$0xf]
    %v2131 = vld [vmem:[%s13 + $0x190] sm:$0xf]
    %v2132 = vld [vmem:[%s13 + $0x194] sm:$0xf]
    %v2133 = vld [vmem:[%s13 + $0x198] sm:$0xf]
    %v2134 = vld [vmem:[%s13 + $0x19c] sm:$0xf]
    %v2135 = vld [vmem:[%s13 + $0x1a0] sm:$0xf]
    %v2136 = vld [vmem:[%s13 + $0x1a4] sm:$0xf]
    %v2137 = vld [vmem:[%s13 + $0x1a8] sm:$0xf]
    %v2138 = vld [vmem:[%s13 + $0x1ac] sm:$0xf]
    %v2139 = vld [vmem:[%s13 + $0x1b0] sm:$0xf]
    %v2140 = vld [vmem:[%s13 + $0x1b4] sm:$0xf]
    %v2141 = vld [vmem:[%s13 + $0x1b8] sm:$0xf]
    %v2142 = vld [vmem:[%s13 + $0x1bc] sm:$0xf]
    %v2143 = vld [vmem:[%s13 + $0x1c0] sm:$0xf]
    %v2144 = vld [vmem:[%s13 + $0x1c4] sm:$0xf]
    %v2145 = vld [vmem:[%s13 + $0x1c8] sm:$0xf]
    %v2146 = vld [vmem:[%s13 + $0x1cc] sm:$0xf]
    %v2147 = vld [vmem:[%s13 + $0x1d0] sm:$0xf]
    %v2148 = vld [vmem:[%s13 + $0x1d4] sm:$0xf]
    %v2149 = vld [vmem:[%s13 + $0x1d8] sm:$0xf]
    %v2150 = vld [vmem:[%s13 + $0x1dc] sm:$0xf]
    %v2151 = vld [vmem:[%s13 + $0x1e0] sm:$0xf]
    %v2152 = vld [vmem:[%s13 + $0x1e4] sm:$0xf]
    %v2153 = vld [vmem:[%s13 + $0x1e8] sm:$0xf]
    %v2154 = vld [vmem:[%s13 + $0x1ec] sm:$0xf]
    %v2155 = vld [vmem:[%s13 + $0x1f0] sm:$0xf]
    %v2156 = vld [vmem:[%s13 + $0x1f4] sm:$0xf]
    %v2157 = vld [vmem:[%s13 + $0x1f8] sm:$0xf]
    %v2158 = vld [vmem:[%s13 + $0x1fc] sm:$0xf]
    %v2223 = vunpack.c.l.b16 %v2095
    %v2224 = vunpack.c.l.b16 %v2096
    %v2225 = vunpack.c.l.b16 %v2097
    %v2226 = vunpack.c.l.b16 %v2098
    %v2227 = vunpack.c.l.b16 %v2099
    %v2228 = vunpack.c.l.b16 %v2100
    %v2229 = vunpack.c.l.b16 %v2101
    %v2230 = vunpack.c.l.b16 %v2102
    %v2231 = vunpack.c.l.b16 %v2103
    %v2232 = vunpack.c.l.b16 %v2104
    %v2233 = vunpack.c.l.b16 %v2105
    %v2234 = vunpack.c.l.b16 %v2106
    %v2235 = vunpack.c.l.b16 %v2107
    %v2236 = vunpack.c.l.b16 %v2108
    %v2237 = vunpack.c.l.b16 %v2109
    %v2238 = vunpack.c.l.b16 %v2110
    %v2239 = vunpack.c.l.b16 %v2111
    %v2240 = vunpack.c.l.b16 %v2112
    %v2241 = vunpack.c.l.b16 %v2113
    %v2242 = vunpack.c.l.b16 %v2114
    %v2243 = vunpack.c.l.b16 %v2115
    %v2244 = vunpack.c.l.b16 %v2116
    %v2245 = vunpack.c.l.b16 %v2117
    %v2246 = vunpack.c.l.b16 %v2118
    %v2247 = vunpack.c.l.b16 %v2119
    %v2248 = vunpack.c.l.b16 %v2120
    %v2249 = vunpack.c.l.b16 %v2121
    %v2250 = vunpack.c.l.b16 %v2122
    %v2251 = vunpack.c.l.b16 %v2123
    %v2252 = vunpack.c.l.b16 %v2124
    %v2253 = vunpack.c.l.b16 %v2125
    %v2254 = vunpack.c.l.b16 %v2126
    %v2255 = vunpack.c.l.b16 %v2127
    %v2256 = vunpack.c.l.b16 %v2128
    %v2257 = vunpack.c.l.b16 %v2129
    %v2258 = vunpack.c.l.b16 %v2130
    %v2259 = vunpack.c.l.b16 %v2131
    %v2260 = vunpack.c.l.b16 %v2132
    %v2261 = vunpack.c.l.b16 %v2133
    %v2262 = vunpack.c.l.b16 %v2134
    %v2263 = vunpack.c.l.b16 %v2135
    %v2264 = vunpack.c.l.b16 %v2136
    %v2265 = vunpack.c.l.b16 %v2137
    %v2266 = vunpack.c.l.b16 %v2138
    %v2267 = vunpack.c.l.b16 %v2139
    %v2268 = vunpack.c.l.b16 %v2140
    %v2269 = vunpack.c.l.b16 %v2141
    %v2270 = vunpack.c.l.b16 %v2142
    %v2271 = vunpack.c.l.b16 %v2143
    %v2272 = vunpack.c.l.b16 %v2144
    %v2273 = vunpack.c.l.b16 %v2145
    %v2274 = vunpack.c.l.b16 %v2146
    %v2275 = vunpack.c.l.b16 %v2147
    %v2276 = vunpack.c.l.b16 %v2148
    %v2277 = vunpack.c.l.b16 %v2149
    %v2278 = vunpack.c.l.b16 %v2150
    %v2279 = vunpack.c.l.b16 %v2151
    %v2280 = vunpack.c.l.b16 %v2152
    %v2281 = vunpack.c.l.b16 %v2153
    %v2282 = vunpack.c.l.b16 %v2154
    %v2283 = vunpack.c.l.b16 %v2155
    %v2284 = vunpack.c.l.b16 %v2156
    %v2285 = vunpack.c.l.b16 %v2157
    %v2286 = vunpack.c.l.b16 %v2158
    %v2287 = vpack.c.b16 %v2224, %v2223
    %v2288 = vpack.c.b16 %v2226, %v2225
    %v2289 = vpack.c.b16 %v2228, %v2227
    %v2290 = vpack.c.b16 %v2230, %v2229
    %v2291 = vpack.c.b16 %v2232, %v2231
    %v2292 = vpack.c.b16 %v2234, %v2233
    %v2293 = vpack.c.b16 %v2236, %v2235
    %v2294 = vpack.c.b16 %v2238, %v2237
    %v2295 = vpack.c.b16 %v2240, %v2239
    %v2296 = vpack.c.b16 %v2242, %v2241
    %v2297 = vpack.c.b16 %v2244, %v2243
    %v2298 = vpack.c.b16 %v2246, %v2245
    %v2299 = vpack.c.b16 %v2248, %v2247
    %v2300 = vpack.c.b16 %v2250, %v2249
    %v2301 = vpack.c.b16 %v2252, %v2251
    %v2302 = vpack.c.b16 %v2254, %v2253
    %v2303 = vpack.c.b16 %v2256, %v2255
    %v2304 = vpack.c.b16 %v2258, %v2257
    %v2305 = vpack.c.b16 %v2260, %v2259
    %v2306 = vpack.c.b16 %v2262, %v2261
    %v2307 = vpack.c.b16 %v2264, %v2263
    %v2308 = vpack.c.b16 %v2266, %v2265
    %v2309 = vpack.c.b16 %v2268, %v2267
    %v2310 = vpack.c.b16 %v2270, %v2269
    %v2311 = vpack.c.b16 %v2272, %v2271
    %v2312 = vpack.c.b16 %v2274, %v2273
    %v2313 = vpack.c.b16 %v2276, %v2275
    %v2314 = vpack.c.b16 %v2278, %v2277
    %v2315 = vpack.c.b16 %v2280, %v2279
    %v2316 = vpack.c.b16 %v2282, %v2281
    %v2317 = vpack.c.b16 %v2284, %v2283
    %v2318 = vpack.c.b16 %v2286, %v2285
    %2351 = vmatprep.subr.bf16.mxu0 0
    %2352 = vmatpush1.bf16.msra.mxu0 %v2294
    %2353 = vmatprep.subr.bf16.mxu0 0
    %2354 = vmatpush1.bf16.msra.mxu0 %v2293
    %2355 = vmatprep.subr.bf16.mxu0 0
    %2356 = vmatpush1.bf16.msra.mxu0 %v2292
    %2357 = vmatprep.subr.bf16.mxu0 0
    %2358 = vmatpush1.bf16.msra.mxu0 %v2291
    %2359 = vmatprep.subr.bf16.mxu0 0
    %2360 = vmatpush1.bf16.msra.mxu0 %v2290
    %2361 = vmatprep.subr.bf16.mxu0 0
    %2362 = vmatpush1.bf16.msra.mxu0 %v2289
    %2363 = vmatprep.subr.bf16.mxu0 0
    %2364 = vmatpush1.bf16.msra.mxu0 %v2288
    %2365 = vmatprep.subr.bf16.mxu0 0
    %2366 = vmatpush1.bf16.msra.mxu0 %v2287
    %2367 = vmatprep.subr.bf16.mxu0 0
    %2368 = vmatpush2.bf16.msra.mxu0 %v2302
    %2369 = vmatprep.subr.bf16.mxu0 0
    %2370 = vmatpush2.bf16.msra.mxu0 %v2301
    %2371 = vmatprep.subr.bf16.mxu0 0
    %2372 = vmatpush2.bf16.msra.mxu0 %v2300
    %2373 = vmatprep.subr.bf16.mxu0 0
    %2374 = vmatpush2.bf16.msra.mxu0 %v2299
    %2375 = vmatprep.subr.bf16.mxu0 0
    %2376 = vmatpush2.bf16.msra.mxu0 %v2298
    %2377 = vmatprep.subr.bf16.mxu0 0
    %2378 = vmatpush2.bf16.msra.mxu0 %v2297
    %2379 = vmatprep.subr.bf16.mxu0 0
    %2380 = vmatpush2.bf16.msra.mxu0 %v2296
    %2381 = vmatprep.subr.bf16.mxu0 0
    %2382 = vmatpush2.bf16.msra.mxu0 %v2295
    %2383 = vmatprep.mubr.bf16.mxu0 %v2092
    %2384 = vmatmul.mubr.bf16.gmra.mxu0 %v2091
    %v2385 = vpop.f32.mrf.mxu0
    %v2386 = vadd.f32 0.0, %v2385
    %v2387 = vpop.f32.mrf.mxu0
    %v2388 = vpop.f32.mrf.mxu0
    %v2389 = vadd.f32 0.0, %v2388
    %v2390 = vpop.f32.mrf.mxu0
    %2391 = vdwg.mxu0
    %2392 = vmatprep.subr.bf16.mxu0 0
    %2393 = vmatpush1.bf16.msra.mxu0 %v2310
    %2394 = vmatprep.subr.bf16.mxu0 0
    %2395 = vmatpush1.bf16.msra.mxu0 %v2309
    %2396 = vmatprep.subr.bf16.mxu0 0
    %2397 = vmatpush1.bf16.msra.mxu0 %v2308
    %2398 = vmatprep.subr.bf16.mxu0 0
    %2399 = vmatpush1.bf16.msra.mxu0 %v2307
    %2400 = vmatprep.subr.bf16.mxu0 0
    %2401 = vmatpush1.bf16.msra.mxu0 %v2306
    %2402 = vmatprep.subr.bf16.mxu0 0
    %2403 = vmatpush1.bf16.msra.mxu0 %v2305
    %2404 = vmatprep.subr.bf16.mxu0 0
    %2405 = vmatpush1.bf16.msra.mxu0 %v2304
    %2406 = vmatprep.subr.bf16.mxu0 0
    %2407 = vmatpush1.bf16.msra.mxu0 %v2303
    %2408 = vmatprep.subr.bf16.mxu0 0
    %2409 = vmatpush2.bf16.msra.mxu0 %v2318
    %2410 = vmatprep.subr.bf16.mxu0 0
    %2411 = vmatpush2.bf16.msra.mxu0 %v2317
    %2412 = vmatprep.subr.bf16.mxu0 0
    %2413 = vmatpush2.bf16.msra.mxu0 %v2316
    %2414 = vmatprep.subr.bf16.mxu0 0
    %2415 = vmatpush2.bf16.msra.mxu0 %v2315
    %2416 = vmatprep.subr.bf16.mxu0 0
    %2417 = vmatpush2.bf16.msra.mxu0 %v2314
    %2418 = vmatprep.subr.bf16.mxu0 0
    %2419 = vmatpush2.bf16.msra.mxu0 %v2313
    %2420 = vmatprep.subr.bf16.mxu0 0
    %2421 = vmatpush2.bf16.msra.mxu0 %v2312
    %2422 = vmatprep.subr.bf16.mxu0 0
    %2423 = vmatpush2.bf16.msra.mxu0 %v2311
    %2424 = vmatprep.mubr.bf16.mxu0 %v2094
    %2425 = vmatmul.mubr.bf16.gmra.mxu0 %v2093
    %v2426 = vpop.f32.mrf.mxu0
    %v2427 = vadd.f32 %v2386, %v2426
    %v2428 = vpop.f32.mrf.mxu0
    %v2429 = vpop.f32.mrf.mxu0
    %v2430 = vadd.f32 %v2389, %v2429
    %v2431 = vpop.f32.mrf.mxu0
    %2432 = vdwg.mxu0
    %v2497 = vunpack.c.l.b16 %v1863
    %v2498 = vunpack.c.l.b16 %v1864
    %v2499 = vunpack.c.l.b16 %v1865
    %v2500 = vunpack.c.l.b16 %v1866
    %v2501 = vunpack.c.l.b16 %v1867
    %v2502 = vunpack.c.l.b16 %v1868
    %v2503 = vunpack.c.l.b16 %v1869
    %v2504 = vunpack.c.l.b16 %v1870
    %v2505 = vunpack.c.l.b16 %v1871
    %v2506 = vunpack.c.l.b16 %v1872
    %v2507 = vunpack.c.l.b16 %v1873
    %v2508 = vunpack.c.l.b16 %v1874
    %v2509 = vunpack.c.l.b16 %v1875
    %v2510 = vunpack.c.l.b16 %v1876
    %v2511 = vunpack.c.l.b16 %v1877
    %v2512 = vunpack.c.l.b16 %v1878
    %v2513 = vunpack.c.l.b16 %v1879
    %v2514 = vunpack.c.l.b16 %v1880
    %v2515 = vunpack.c.l.b16 %v1881
    %v2516 = vunpack.c.l.b16 %v1882
    %v2517 = vunpack.c.l.b16 %v1883
    %v2518 = vunpack.c.l.b16 %v1884
    %v2519 = vunpack.c.l.b16 %v1885
    %v2520 = vunpack.c.l.b16 %v1886
    %v2521 = vunpack.c.l.b16 %v1887
    %v2522 = vunpack.c.l.b16 %v1888
    %v2523 = vunpack.c.l.b16 %v1889
    %v2524 = vunpack.c.l.b16 %v1890
    %v2525 = vunpack.c.l.b16 %v1891
    %v2526 = vunpack.c.l.b16 %v1892
    %v2527 = vunpack.c.l.b16 %v1893
    %v2528 = vunpack.c.l.b16 %v1894
    %v2529 = vunpack.c.l.b16 %v1895
    %v2530 = vunpack.c.l.b16 %v1896
    %v2531 = vunpack.c.l.b16 %v1897
    %v2532 = vunpack.c.l.b16 %v1898
    %v2533 = vunpack.c.l.b16 %v1899
    %v2534 = vunpack.c.l.b16 %v1900
    %v2535 = vunpack.c.l.b16 %v1901
    %v2536 = vunpack.c.l.b16 %v1902
    %v2537 = vunpack.c.l.b16 %v1903
    %v2538 = vunpack.c.l.b16 %v1904
    %v2539 = vunpack.c.l.b16 %v1905
    %v2540 = vunpack.c.l.b16 %v1906
    %v2541 = vunpack.c.l.b16 %v1907
    %v2542 = vunpack.c.l.b16 %v1908
    %v2543 = vunpack.c.l.b16 %v1909
    %v2544 = vunpack.c.l.b16 %v1910
    %v2545 = vunpack.c.l.b16 %v1911
    %v2546 = vunpack.c.l.b16 %v1912
    %v2547 = vunpack.c.l.b16 %v1913
    %v2548 = vunpack.c.l.b16 %v1914
    %v2549 = vunpack.c.l.b16 %v1915
    %v2550 = vunpack.c.l.b16 %v1916
    %v2551 = vunpack.c.l.b16 %v1917
    %v2552 = vunpack.c.l.b16 %v1918
    %v2553 = vunpack.c.l.b16 %v1919
    %v2554 = vunpack.c.l.b16 %v1920
    %v2555 = vunpack.c.l.b16 %v1921
    %v2556 = vunpack.c.l.b16 %v1922
    %v2557 = vunpack.c.l.b16 %v1923
    %v2558 = vunpack.c.l.b16 %v1924
    %v2559 = vunpack.c.l.b16 %v1925
    %v2560 = vunpack.c.l.b16 %v1926
    %v2561 = vpack.c.b16 %v2498, %v2497
    %v2562 = vpack.c.b16 %v2500, %v2499
    %v2563 = vpack.c.b16 %v2502, %v2501
    %v2564 = vpack.c.b16 %v2504, %v2503
    %v2565 = vpack.c.b16 %v2506, %v2505
    %v2566 = vpack.c.b16 %v2508, %v2507
    %v2567 = vpack.c.b16 %v2510, %v2509
    %v2568 = vpack.c.b16 %v2512, %v2511
    %v2569 = vpack.c.b16 %v2514, %v2513
    %v2570 = vpack.c.b16 %v2516, %v2515
    %v2571 = vpack.c.b16 %v2518, %v2517
    %v2572 = vpack.c.b16 %v2520, %v2519
    %v2573 = vpack.c.b16 %v2522, %v2521
    %v2574 = vpack.c.b16 %v2524, %v2523
    %v2575 = vpack.c.b16 %v2526, %v2525
    %v2576 = vpack.c.b16 %v2528, %v2527
    %v2577 = vpack.c.b16 %v2530, %v2529
    %v2578 = vpack.c.b16 %v2532, %v2531
    %v2579 = vpack.c.b16 %v2534, %v2533
    %v2580 = vpack.c.b16 %v2536, %v2535
    %v2581 = vpack.c.b16 %v2538, %v2537
    %v2582 = vpack.c.b16 %v2540, %v2539
    %v2583 = vpack.c.b16 %v2542, %v2541
    %v2584 = vpack.c.b16 %v2544, %v2543
    %v2585 = vpack.c.b16 %v2546, %v2545
    %v2586 = vpack.c.b16 %v2548, %v2547
    %v2587 = vpack.c.b16 %v2550, %v2549
    %v2588 = vpack.c.b16 %v2552, %v2551
    %v2589 = vpack.c.b16 %v2554, %v2553
    %v2590 = vpack.c.b16 %v2556, %v2555
    %v2591 = vpack.c.b16 %v2558, %v2557
    %v2592 = vpack.c.b16 %v2560, %v2559
    %2625 = vmatprep.subr.bf16.mxu0 0
    %2626 = vmatpush1.bf16.msra.mxu0 %v2568
    %2627 = vmatprep.subr.bf16.mxu0 0
    %2628 = vmatpush1.bf16.msra.mxu0 %v2567
    %2629 = vmatprep.subr.bf16.mxu0 0
    %2630 = vmatpush1.bf16.msra.mxu0 %v2566
    %2631 = vmatprep.subr.bf16.mxu0 0
    %2632 = vmatpush1.bf16.msra.mxu0 %v2565
    %2633 = vmatprep.subr.bf16.mxu0 0
    %2634 = vmatpush1.bf16.msra.mxu0 %v2564
    %2635 = vmatprep.subr.bf16.mxu0 0
    %2636 = vmatpush1.bf16.msra.mxu0 %v2563
    %2637 = vmatprep.subr.bf16.mxu0 0
    %2638 = vmatpush1.bf16.msra.mxu0 %v2562
    %2639 = vmatprep.subr.bf16.mxu0 0
    %2640 = vmatpush1.bf16.msra.mxu0 %v2561
    %2641 = vmatprep.subr.bf16.mxu0 0
    %2642 = vmatpush2.bf16.msra.mxu0 %v2576
    %2643 = vmatprep.subr.bf16.mxu0 0
    %2644 = vmatpush2.bf16.msra.mxu0 %v2575
    %2645 = vmatprep.subr.bf16.mxu0 0
    %2646 = vmatpush2.bf16.msra.mxu0 %v2574
    %2647 = vmatprep.subr.bf16.mxu0 0
    %2648 = vmatpush2.bf16.msra.mxu0 %v2573
    %2649 = vmatprep.subr.bf16.mxu0 0
    %2650 = vmatpush2.bf16.msra.mxu0 %v2572
    %2651 = vmatprep.subr.bf16.mxu0 0
    %2652 = vmatpush2.bf16.msra.mxu0 %v2571
    %2653 = vmatprep.subr.bf16.mxu0 0
    %2654 = vmatpush2.bf16.msra.mxu0 %v2570
    %2655 = vmatprep.subr.bf16.mxu0 0
    %2656 = vmatpush2.bf16.msra.mxu0 %v2569
    %2657 = vmatprep.mubr.bf16.mxu0 %v1860
    %2658 = vmatmul.mubr.bf16.gmra.mxu0 %v1859
    %v2659 = vpop.f32.mrf.mxu0
    %v2660 = vadd.f32 %v2427, %v2659
    %v2661 = vpop.f32.mrf.mxu0
    %v2662 = vpop.f32.mrf.mxu0
    %v2663 = vadd.f32 %v2430, %v2662
    %v2664 = vpop.f32.mrf.mxu0
    %2665 = vdwg.mxu0
    %2666 = vmatprep.subr.bf16.mxu0 0
    %2667 = vmatpush1.bf16.msra.mxu0 %v2584
    %2668 = vmatprep.subr.bf16.mxu0 0
    %2669 = vmatpush1.bf16.msra.mxu0 %v2583
    %2670 = vmatprep.subr.bf16.mxu0 0
    %2671 = vmatpush1.bf16.msra.mxu0 %v2582
    %2672 = vmatprep.subr.bf16.mxu0 0
    %2673 = vmatpush1.bf16.msra.mxu0 %v2581
    %2674 = vmatprep.subr.bf16.mxu0 0
    %2675 = vmatpush1.bf16.msra.mxu0 %v2580
    %2676 = vmatprep.subr.bf16.mxu0 0
    %2677 = vmatpush1.bf16.msra.mxu0 %v2579
    %2678 = vmatprep.subr.bf16.mxu0 0
    %2679 = vmatpush1.bf16.msra.mxu0 %v2578
    %2680 = vmatprep.subr.bf16.mxu0 0
    %2681 = vmatpush1.bf16.msra.mxu0 %v2577
    %2682 = vmatprep.subr.bf16.mxu0 0
    %2683 = vmatpush2.bf16.msra.mxu0 %v2592
    %2684 = vmatprep.subr.bf16.mxu0 0
    %2685 = vmatpush2.bf16.msra.mxu0 %v2591
    %2686 = vmatprep.subr.bf16.mxu0 0
    %2687 = vmatpush2.bf16.msra.mxu0 %v2590
    %2688 = vmatprep.subr.bf16.mxu0 0
    %2689 = vmatpush2.bf16.msra.mxu0 %v2589
    %2690 = vmatprep.subr.bf16.mxu0 0
    %2691 = vmatpush2.bf16.msra.mxu0 %v2588
    %2692 = vmatprep.subr.bf16.mxu0 0
    %2693 = vmatpush2.bf16.msra.mxu0 %v2587
    %2694 = vmatprep.subr.bf16.mxu0 0
    %2695 = vmatpush2.bf16.msra.mxu0 %v2586
    %2696 = vmatprep.subr.bf16.mxu0 0
    %2697 = vmatpush2.bf16.msra.mxu0 %v2585
    %2698 = vmatprep.mubr.bf16.mxu0 %v1862
    %2699 = vmatmul.mubr.bf16.gmra.mxu0 %v1861
    %v2700 = vpop.f32.mrf.mxu0
    %v2701 = vadd.f32 %v2660, %v2700
    %v2702 = vpop.f32.mrf.mxu0
    %v2703 = vpop.f32.mrf.mxu0
    %v2704 = vadd.f32 %v2663, %v2703
    %v2705 = vpop.f32.mrf.mxu0
    %2706 = vdwg.mxu0
    %v2707 = vld [vmem:[%s11 + $0x20] sm:$0xff]
    %v2708 = vld [vmem:[%s11 + $0x28] sm:$0xff]
    %v2709 = vld [vmem:[%s11 + $0x60] sm:$0xff]
    %v2710 = vld [vmem:[%s11 + $0x68] sm:$0xff]
    %v2711 = vld [vmem:[%s11 + $0xa0] sm:$0xff]
    %v2712 = vld [vmem:[%s11 + $0xa8] sm:$0xff]
    %v2713 = vld [vmem:[%s11 + $0xe0] sm:$0xff]
    %v2714 = vld [vmem:[%s11 + $0xe8] sm:$0xff]
    %v2715 = vld [vmem:[%s12 + $0x8] sm:$0xf]
    %v2717 = vlaneseq
    %v2718 = vshrl.u32 %v2717, 7
    %v2719 = vsub.s32 0, %v2718
    %v2720 = vrot.slane %v2715, %v2719
    %v2721 = vlaneseq
    %v2722 = vshrl.u32 %v2721, 7
    %v2723 = vsub.s32 1, %v2722
    %v2724 = vrot.slane %v2715, %v2723
    %v2725 = vlaneseq
    %v2726 = vshrl.u32 %v2725, 7
    %v2727 = vsub.s32 2, %v2726
    %v2728 = vrot.slane %v2715, %v2727
    %v2729 = vlaneseq
    %v2730 = vshrl.u32 %v2729, 7
    %v2731 = vsub.s32 3, %v2730
    %v2732 = vrot.slane %v2715, %v2731
    %v2745 = vunpack.c.l.b16 %v2707
    %v2746 = vunpack.c.h.b16 %v2707
    %v2747 = vunpack.c.l.b16 %v2708
    %v2748 = vunpack.c.h.b16 %v2708
    %v2749 = vunpack.c.l.b16 %v2709
    %v2750 = vunpack.c.h.b16 %v2709
    %v2751 = vunpack.c.l.b16 %v2710
    %v2752 = vunpack.c.h.b16 %v2710
    %v2753 = vunpack.c.l.b16 %v2711
    %v2754 = vunpack.c.h.b16 %v2711
    %v2755 = vunpack.c.l.b16 %v2712
    %v2756 = vunpack.c.h.b16 %v2712
    %v2757 = vunpack.c.l.b16 %v2713
    %v2758 = vunpack.c.h.b16 %v2713
    %v2759 = vunpack.c.l.b16 %v2714
    %v2760 = vunpack.c.h.b16 %v2714
    %v2761 = vpack.c.b16 %v2749, %v2745
    %v2762 = vpack.c.b16 %v2750, %v2746
    %v2763 = vpack.c.b16 %v2751, %v2747
    %v2764 = vpack.c.b16 %v2752, %v2748
    %v2765 = vpack.c.b16 %v2757, %v2753
    %v2766 = vpack.c.b16 %v2758, %v2754
    %v2767 = vpack.c.b16 %v2759, %v2755
    %v2768 = vpack.c.b16 %v2760, %v2756
    %2777 = vmatprep.subr.bf16.mxu0 0
    %2778 = vmatpush1.bf16.msra.mxu0 0
    %2779 = vmatprep.subr.bf16.mxu0 0
    %2780 = vmatpush1.bf16.msra.mxu0 0
    %2781 = vmatprep.subr.bf16.mxu0 0
    %2782 = vmatpush1.bf16.msra.mxu0 0
    %2783 = vmatprep.subr.bf16.mxu0 0
    %2784 = vmatpush1.bf16.msra.mxu0 0
    %2785 = vmatprep.subr.bf16.mxu0 0
    %2786 = vmatpush1.bf16.msra.mxu0 0
    %2787 = vmatprep.subr.bf16.mxu0 0
    %2788 = vmatpush1.bf16.msra.mxu0 0
    %2789 = vmatprep.subr.bf16.mxu0 %v2766
    %2790 = vmatpush1.bf16.msra.mxu0 %v2765
    %2791 = vmatprep.subr.bf16.mxu0 %v2762
    %2792 = vmatpush1.bf16.msra.mxu0 %v2761
    %2793 = vmatprep.subr.bf16.mxu0 0
    %2794 = vmatpush2.bf16.msra.mxu0 0
    %2795 = vmatprep.subr.bf16.mxu0 0
    %2796 = vmatpush2.bf16.msra.mxu0 0
    %2797 = vmatprep.subr.bf16.mxu0 0
    %2798 = vmatpush2.bf16.msra.mxu0 0
    %2799 = vmatprep.subr.bf16.mxu0 0
    %2800 = vmatpush2.bf16.msra.mxu0 0
    %2801 = vmatprep.subr.bf16.mxu0 0
    %2802 = vmatpush2.bf16.msra.mxu0 0
    %2803 = vmatprep.subr.bf16.mxu0 0
    %2804 = vmatpush2.bf16.msra.mxu0 0
    %2805 = vmatprep.subr.bf16.mxu0 0
    %2806 = vmatpush2.bf16.msra.mxu0 0
    %2807 = vmatprep.subr.bf16.mxu0 0
    %2808 = vmatpush2.bf16.msra.mxu0 0
    %2809 = vmatprep.mubr.bf16.mxu0 0
    %2810 = vmatmul.mubr.bf16.gmra.mxu0 %v1763
    %v2811 = vpop.f32.mrf.mxu0
    %v2812 = vadd.f32 %v2720, %v2811
    %v2813 = vpop.f32.mrf.mxu0
    %v2814 = vadd.f32 %v2724, %v2813
    %v2815 = vpop.f32.mrf.mxu0
    %v2816 = vadd.f32 %v2720, %v2815
    %v2817 = vpop.f32.mrf.mxu0
    %v2818 = vadd.f32 %v2724, %v2817
    %2819 = vdwg.mxu0
    %2820 = vmatprep.subr.bf16.mxu0 0
    %2821 = vmatpush1.bf16.msra.mxu0 0
    %2822 = vmatprep.subr.bf16.mxu0 0
    %2823 = vmatpush1.bf16.msra.mxu0 0
    %2824 = vmatprep.subr.bf16.mxu0 0
    %2825 = vmatpush1.bf16.msra.mxu0 0
    %2826 = vmatprep.subr.bf16.mxu0 0
    %2827 = vmatpush1.bf16.msra.mxu0 0
    %2828 = vmatprep.subr.bf16.mxu0 0
    %2829 = vmatpush1.bf16.msra.mxu0 0
    %2830 = vmatprep.subr.bf16.mxu0 0
    %2831 = vmatpush1.bf16.msra.mxu0 0
    %2832 = vmatprep.subr.bf16.mxu0 %v2768
    %2833 = vmatpush1.bf16.msra.mxu0 %v2767
    %2834 = vmatprep.subr.bf16.mxu0 %v2764
    %2835 = vmatpush1.bf16.msra.mxu0 %v2763
    %2836 = vmatprep.subr.bf16.mxu0 0
    %2837 = vmatpush2.bf16.msra.mxu0 0
    %2838 = vmatprep.subr.bf16.mxu0 0
    %2839 = vmatpush2.bf16.msra.mxu0 0
    %2840 = vmatprep.subr.bf16.mxu0 0
    %2841 = vmatpush2.bf16.msra.mxu0 0
    %2842 = vmatprep.subr.bf16.mxu0 0
    %2843 = vmatpush2.bf16.msra.mxu0 0
    %2844 = vmatprep.subr.bf16.mxu0 0
    %2845 = vmatpush2.bf16.msra.mxu0 0
    %2846 = vmatprep.subr.bf16.mxu0 0
    %2847 = vmatpush2.bf16.msra.mxu0 0
    %2848 = vmatprep.subr.bf16.mxu0 0
    %2849 = vmatpush2.bf16.msra.mxu0 0
    %2850 = vmatprep.subr.bf16.mxu0 0
    %2851 = vmatpush2.bf16.msra.mxu0 0
    %2852 = vmatprep.mubr.bf16.mxu0 0
    %2853 = vmatmul.mubr.bf16.gmra.mxu0 %v1763
    %v2854 = vpop.f32.mrf.mxu0
    %v2855 = vadd.f32 %v2728, %v2854
    %v2856 = vpop.f32.mrf.mxu0
    %v2857 = vadd.f32 %v2732, %v2856
    %v2858 = vpop.f32.mrf.mxu0
    %v2859 = vadd.f32 %v2728, %v2858
    %v2860 = vpop.f32.mrf.mxu0
    %v2861 = vadd.f32 %v2732, %v2860
    %2862 = vdwg.mxu0
    %v2863 = vmax.f32 %v2812, 0.0
    %v2864 = vmax.f32 %v2814, 0.0
    %v2865 = vmax.f32 %v2855, 0.0
    %v2866 = vmax.f32 %v2857, 0.0
    %v2867 = vmax.f32 %v2816, 0.0
    %v2868 = vmax.f32 %v2818, 0.0
    %v2869 = vmax.f32 %v2859, 0.0
    %v2870 = vmax.f32 %v2861, 0.0
    %v2871 = vpack.c.bf16 %v2867, %v2863
    %v2872 = vpack.c.bf16 %v2868, %v2864
    %v2873 = vpack.c.bf16 %v2869, %v2865
    %v2874 = vpack.c.bf16 %v2870, %v2866
    %v2875 = vld [vmem:[%s13 + $0x200] sm:$0xf]
    %v2876 = vld [vmem:[%s13 + $0x204] sm:$0xf]
    %v2877 = vld [vmem:[%s13 + $0x208] sm:$0xf]
    %v2878 = vld [vmem:[%s13 + $0x20c] sm:$0xf]
    %v2879 = vld [vmem:[%s13 + $0x210] sm:$0xf]
    %v2880 = vld [vmem:[%s13 + $0x214] sm:$0xf]
    %v2881 = vld [vmem:[%s13 + $0x218] sm:$0xf]
    %v2882 = vld [vmem:[%s13 + $0x21c] sm:$0xf]
    %v2883 = vld [vmem:[%s13 + $0x220] sm:$0xf]
    %v2884 = vld [vmem:[%s13 + $0x224] sm:$0xf]
    %v2885 = vld [vmem:[%s13 + $0x228] sm:$0xf]
    %v2886 = vld [vmem:[%s13 + $0x22c] sm:$0xf]
    %v2887 = vld [vmem:[%s13 + $0x230] sm:$0xf]
    %v2888 = vld [vmem:[%s13 + $0x234] sm:$0xf]
    %v2889 = vld [vmem:[%s13 + $0x238] sm:$0xf]
    %v2890 = vld [vmem:[%s13 + $0x23c] sm:$0xf]
    %v2891 = vld [vmem:[%s13 + $0x240] sm:$0xf]
    %v2892 = vld [vmem:[%s13 + $0x244] sm:$0xf]
    %v2893 = vld [vmem:[%s13 + $0x248] sm:$0xf]
    %v2894 = vld [vmem:[%s13 + $0x24c] sm:$0xf]
    %v2895 = vld [vmem:[%s13 + $0x250] sm:$0xf]
    %v2896 = vld [vmem:[%s13 + $0x254] sm:$0xf]
    %v2897 = vld [vmem:[%s13 + $0x258] sm:$0xf]
    %v2898 = vld [vmem:[%s13 + $0x25c] sm:$0xf]
    %v2899 = vld [vmem:[%s13 + $0x260] sm:$0xf]
    %v2900 = vld [vmem:[%s13 + $0x264] sm:$0xf]
    %v2901 = vld [vmem:[%s13 + $0x268] sm:$0xf]
    %v2902 = vld [vmem:[%s13 + $0x26c] sm:$0xf]
    %v2903 = vld [vmem:[%s13 + $0x270] sm:$0xf]
    %v2904 = vld [vmem:[%s13 + $0x274] sm:$0xf]
    %v2905 = vld [vmem:[%s13 + $0x278] sm:$0xf]
    %v2906 = vld [vmem:[%s13 + $0x27c] sm:$0xf]
    %v2907 = vld [vmem:[%s13 + $0x280] sm:$0xf]
    %v2908 = vld [vmem:[%s13 + $0x284] sm:$0xf]
    %v2909 = vld [vmem:[%s13 + $0x288] sm:$0xf]
    %v2910 = vld [vmem:[%s13 + $0x28c] sm:$0xf]
    %v2911 = vld [vmem:[%s13 + $0x290] sm:$0xf]
    %v2912 = vld [vmem:[%s13 + $0x294] sm:$0xf]
    %v2913 = vld [vmem:[%s13 + $0x298] sm:$0xf]
    %v2914 = vld [vmem:[%s13 + $0x29c] sm:$0xf]
    %v2915 = vld [vmem:[%s13 + $0x2a0] sm:$0xf]
    %v2916 = vld [vmem:[%s13 + $0x2a4] sm:$0xf]
    %v2917 = vld [vmem:[%s13 + $0x2a8] sm:$0xf]
    %v2918 = vld [vmem:[%s13 + $0x2ac] sm:$0xf]
    %v2919 = vld [vmem:[%s13 + $0x2b0] sm:$0xf]
    %v2920 = vld [vmem:[%s13 + $0x2b4] sm:$0xf]
    %v2921 = vld [vmem:[%s13 + $0x2b8] sm:$0xf]
    %v2922 = vld [vmem:[%s13 + $0x2bc] sm:$0xf]
    %v2923 = vld [vmem:[%s13 + $0x2c0] sm:$0xf]
    %v2924 = vld [vmem:[%s13 + $0x2c4] sm:$0xf]
    %v2925 = vld [vmem:[%s13 + $0x2c8] sm:$0xf]
    %v2926 = vld [vmem:[%s13 + $0x2cc] sm:$0xf]
    %v2927 = vld [vmem:[%s13 + $0x2d0] sm:$0xf]
    %v2928 = vld [vmem:[%s13 + $0x2d4] sm:$0xf]
    %v2929 = vld [vmem:[%s13 + $0x2d8] sm:$0xf]
    %v2930 = vld [vmem:[%s13 + $0x2dc] sm:$0xf]
    %v2931 = vld [vmem:[%s13 + $0x2e0] sm:$0xf]
    %v2932 = vld [vmem:[%s13 + $0x2e4] sm:$0xf]
    %v2933 = vld [vmem:[%s13 + $0x2e8] sm:$0xf]
    %v2934 = vld [vmem:[%s13 + $0x2ec] sm:$0xf]
    %v2935 = vld [vmem:[%s13 + $0x2f0] sm:$0xf]
    %v2936 = vld [vmem:[%s13 + $0x2f4] sm:$0xf]
    %v2937 = vld [vmem:[%s13 + $0x2f8] sm:$0xf]
    %v2938 = vld [vmem:[%s13 + $0x2fc] sm:$0xf]
    %v3003 = vunpack.c.l.b16 %v2875
    %v3004 = vunpack.c.l.b16 %v2876
    %v3005 = vunpack.c.l.b16 %v2877
    %v3006 = vunpack.c.l.b16 %v2878
    %v3007 = vunpack.c.l.b16 %v2879
    %v3008 = vunpack.c.l.b16 %v2880
    %v3009 = vunpack.c.l.b16 %v2881
    %v3010 = vunpack.c.l.b16 %v2882
    %v3011 = vunpack.c.l.b16 %v2883
    %v3012 = vunpack.c.l.b16 %v2884
    %v3013 = vunpack.c.l.b16 %v2885
    %v3014 = vunpack.c.l.b16 %v2886
    %v3015 = vunpack.c.l.b16 %v2887
    %v3016 = vunpack.c.l.b16 %v2888
    %v3017 = vunpack.c.l.b16 %v2889
    %v3018 = vunpack.c.l.b16 %v2890
    %v3019 = vunpack.c.l.b16 %v2891
    %v3020 = vunpack.c.l.b16 %v2892
    %v3021 = vunpack.c.l.b16 %v2893
    %v3022 = vunpack.c.l.b16 %v2894
    %v3023 = vunpack.c.l.b16 %v2895
    %v3024 = vunpack.c.l.b16 %v2896
    %v3025 = vunpack.c.l.b16 %v2897
    %v3026 = vunpack.c.l.b16 %v2898
    %v3027 = vunpack.c.l.b16 %v2899
    %v3028 = vunpack.c.l.b16 %v2900
    %v3029 = vunpack.c.l.b16 %v2901
    %v3030 = vunpack.c.l.b16 %v2902
    %v3031 = vunpack.c.l.b16 %v2903
    %v3032 = vunpack.c.l.b16 %v2904
    %v3033 = vunpack.c.l.b16 %v2905
    %v3034 = vunpack.c.l.b16 %v2906
    %v3035 = vunpack.c.l.b16 %v2907
    %v3036 = vunpack.c.l.b16 %v2908
    %v3037 = vunpack.c.l.b16 %v2909
    %v3038 = vunpack.c.l.b16 %v2910
    %v3039 = vunpack.c.l.b16 %v2911
    %v3040 = vunpack.c.l.b16 %v2912
    %v3041 = vunpack.c.l.b16 %v2913
    %v3042 = vunpack.c.l.b16 %v2914
    %v3043 = vunpack.c.l.b16 %v2915
    %v3044 = vunpack.c.l.b16 %v2916
    %v3045 = vunpack.c.l.b16 %v2917
    %v3046 = vunpack.c.l.b16 %v2918
    %v3047 = vunpack.c.l.b16 %v2919
    %v3048 = vunpack.c.l.b16 %v2920
    %v3049 = vunpack.c.l.b16 %v2921
    %v3050 = vunpack.c.l.b16 %v2922
    %v3051 = vunpack.c.l.b16 %v2923
    %v3052 = vunpack.c.l.b16 %v2924
    %v3053 = vunpack.c.l.b16 %v2925
    %v3054 = vunpack.c.l.b16 %v2926
    %v3055 = vunpack.c.l.b16 %v2927
    %v3056 = vunpack.c.l.b16 %v2928
    %v3057 = vunpack.c.l.b16 %v2929
    %v3058 = vunpack.c.l.b16 %v2930
    %v3059 = vunpack.c.l.b16 %v2931
    %v3060 = vunpack.c.l.b16 %v2932
    %v3061 = vunpack.c.l.b16 %v2933
    %v3062 = vunpack.c.l.b16 %v2934
    %v3063 = vunpack.c.l.b16 %v2935
    %v3064 = vunpack.c.l.b16 %v2936
    %v3065 = vunpack.c.l.b16 %v2937
    %v3066 = vunpack.c.l.b16 %v2938
    %v3067 = vpack.c.b16 %v3004, %v3003
    %v3068 = vpack.c.b16 %v3006, %v3005
    %v3069 = vpack.c.b16 %v3008, %v3007
    %v3070 = vpack.c.b16 %v3010, %v3009
    %v3071 = vpack.c.b16 %v3012, %v3011
    %v3072 = vpack.c.b16 %v3014, %v3013
    %v3073 = vpack.c.b16 %v3016, %v3015
    %v3074 = vpack.c.b16 %v3018, %v3017
    %v3075 = vpack.c.b16 %v3020, %v3019
    %v3076 = vpack.c.b16 %v3022, %v3021
    %v3077 = vpack.c.b16 %v3024, %v3023
    %v3078 = vpack.c.b16 %v3026, %v3025
    %v3079 = vpack.c.b16 %v3028, %v3027
    %v3080 = vpack.c.b16 %v3030, %v3029
    %v3081 = vpack.c.b16 %v3032, %v3031
    %v3082 = vpack.c.b16 %v3034, %v3033
    %v3083 = vpack.c.b16 %v3036, %v3035
    %v3084 = vpack.c.b16 %v3038, %v3037
    %v3085 = vpack.c.b16 %v3040, %v3039
    %v3086 = vpack.c.b16 %v3042, %v3041
    %v3087 = vpack.c.b16 %v3044, %v3043
    %v3088 = vpack.c.b16 %v3046, %v3045
    %v3089 = vpack.c.b16 %v3048, %v3047
    %v3090 = vpack.c.b16 %v3050, %v3049
    %v3091 = vpack.c.b16 %v3052, %v3051
    %v3092 = vpack.c.b16 %v3054, %v3053
    %v3093 = vpack.c.b16 %v3056, %v3055
    %v3094 = vpack.c.b16 %v3058, %v3057
    %v3095 = vpack.c.b16 %v3060, %v3059
    %v3096 = vpack.c.b16 %v3062, %v3061
    %v3097 = vpack.c.b16 %v3064, %v3063
    %v3098 = vpack.c.b16 %v3066, %v3065
    %3131 = vmatprep.subr.bf16.mxu0 0
    %3132 = vmatpush1.bf16.msra.mxu0 %v3074
    %3133 = vmatprep.subr.bf16.mxu0 0
    %3134 = vmatpush1.bf16.msra.mxu0 %v3073
    %3135 = vmatprep.subr.bf16.mxu0 0
    %3136 = vmatpush1.bf16.msra.mxu0 %v3072
    %3137 = vmatprep.subr.bf16.mxu0 0
    %3138 = vmatpush1.bf16.msra.mxu0 %v3071
    %3139 = vmatprep.subr.bf16.mxu0 0
    %3140 = vmatpush1.bf16.msra.mxu0 %v3070
    %3141 = vmatprep.subr.bf16.mxu0 0
    %3142 = vmatpush1.bf16.msra.mxu0 %v3069
    %3143 = vmatprep.subr.bf16.mxu0 0
    %3144 = vmatpush1.bf16.msra.mxu0 %v3068
    %3145 = vmatprep.subr.bf16.mxu0 0
    %3146 = vmatpush1.bf16.msra.mxu0 %v3067
    %3147 = vmatprep.subr.bf16.mxu0 0
    %3148 = vmatpush2.bf16.msra.mxu0 %v3082
    %3149 = vmatprep.subr.bf16.mxu0 0
    %3150 = vmatpush2.bf16.msra.mxu0 %v3081
    %3151 = vmatprep.subr.bf16.mxu0 0
    %3152 = vmatpush2.bf16.msra.mxu0 %v3080
    %3153 = vmatprep.subr.bf16.mxu0 0
    %3154 = vmatpush2.bf16.msra.mxu0 %v3079
    %3155 = vmatprep.subr.bf16.mxu0 0
    %3156 = vmatpush2.bf16.msra.mxu0 %v3078
    %3157 = vmatprep.subr.bf16.mxu0 0
    %3158 = vmatpush2.bf16.msra.mxu0 %v3077
    %3159 = vmatprep.subr.bf16.mxu0 0
    %3160 = vmatpush2.bf16.msra.mxu0 %v3076
    %3161 = vmatprep.subr.bf16.mxu0 0
    %3162 = vmatpush2.bf16.msra.mxu0 %v3075
    %3163 = vmatprep.mubr.bf16.mxu0 %v2872
    %3164 = vmatmul.mubr.bf16.gmra.mxu0 %v2871
    %v3165 = vpop.f32.mrf.mxu0
    %v3166 = vadd.f32 0.0, %v3165
    %v3167 = vpop.f32.mrf.mxu0
    %v3168 = vpop.f32.mrf.mxu0
    %v3169 = vadd.f32 0.0, %v3168
    %v3170 = vpop.f32.mrf.mxu0
    %3171 = vdwg.mxu0
    %3172 = vmatprep.subr.bf16.mxu0 0
    %3173 = vmatpush1.bf16.msra.mxu0 %v3090
    %3174 = vmatprep.subr.bf16.mxu0 0
    %3175 = vmatpush1.bf16.msra.mxu0 %v3089
    %3176 = vmatprep.subr.bf16.mxu0 0
    %3177 = vmatpush1.bf16.msra.mxu0 %v3088
    %3178 = vmatprep.subr.bf16.mxu0 0
    %3179 = vmatpush1.bf16.msra.mxu0 %v3087
    %3180 = vmatprep.subr.bf16.mxu0 0
    %3181 = vmatpush1.bf16.msra.mxu0 %v3086
    %3182 = vmatprep.subr.bf16.mxu0 0
    %3183 = vmatpush1.bf16.msra.mxu0 %v3085
    %3184 = vmatprep.subr.bf16.mxu0 0
    %3185 = vmatpush1.bf16.msra.mxu0 %v3084
    %3186 = vmatprep.subr.bf16.mxu0 0
    %3187 = vmatpush1.bf16.msra.mxu0 %v3083
    %3188 = vmatprep.subr.bf16.mxu0 0
    %3189 = vmatpush2.bf16.msra.mxu0 %v3098
    %3190 = vmatprep.subr.bf16.mxu0 0
    %3191 = vmatpush2.bf16.msra.mxu0 %v3097
    %3192 = vmatprep.subr.bf16.mxu0 0
    %3193 = vmatpush2.bf16.msra.mxu0 %v3096
    %3194 = vmatprep.subr.bf16.mxu0 0
    %3195 = vmatpush2.bf16.msra.mxu0 %v3095
    %3196 = vmatprep.subr.bf16.mxu0 0
    %3197 = vmatpush2.bf16.msra.mxu0 %v3094
    %3198 = vmatprep.subr.bf16.mxu0 0
    %3199 = vmatpush2.bf16.msra.mxu0 %v3093
    %3200 = vmatprep.subr.bf16.mxu0 0
    %3201 = vmatpush2.bf16.msra.mxu0 %v3092
    %3202 = vmatprep.subr.bf16.mxu0 0
    %3203 = vmatpush2.bf16.msra.mxu0 %v3091
    %3204 = vmatprep.mubr.bf16.mxu0 %v2874
    %3205 = vmatmul.mubr.bf16.gmra.mxu0 %v2873
    %v3206 = vpop.f32.mrf.mxu0
    %v3207 = vadd.f32 %v3166, %v3206
    %v3208 = vpop.f32.mrf.mxu0
    %v3209 = vpop.f32.mrf.mxu0
    %v3210 = vadd.f32 %v3169, %v3209
    %v3211 = vpop.f32.mrf.mxu0
    %3212 = vdwg.mxu0
    %v3213 = vadd.f32 %v2701, %v3207
    %v3214 = vadd.f32 %v2704, %v3210
    %v3215 = vld [vmem:[%s11 + $0x30] sm:$0xff]
    %v3216 = vld [vmem:[%s11 + $0x38] sm:$0xff]
    %v3217 = vld [vmem:[%s11 + $0x70] sm:$0xff]
    %v3218 = vld [vmem:[%s11 + $0x78] sm:$0xff]
    %v3219 = vld [vmem:[%s11 + $0xb0] sm:$0xff]
    %v3220 = vld [vmem:[%s11 + $0xb8] sm:$0xff]
    %v3221 = vld [vmem:[%s11 + $0xf0] sm:$0xff]
    %v3222 = vld [vmem:[%s11 + $0xf8] sm:$0xff]
    %v3223 = vld [vmem:[%s12 + $0xc] sm:$0xf]
    %v3225 = vlaneseq
    %v3226 = vshrl.u32 %v3225, 7
    %v3227 = vsub.s32 0, %v3226
    %v3228 = vrot.slane %v3223, %v3227
    %v3229 = vlaneseq
    %v3230 = vshrl.u32 %v3229, 7
    %v3231 = vsub.s32 1, %v3230
    %v3232 = vrot.slane %v3223, %v3231
    %v3233 = vlaneseq
    %v3234 = vshrl.u32 %v3233, 7
    %v3235 = vsub.s32 2, %v3234
    %v3236 = vrot.slane %v3223, %v3235
    %v3237 = vlaneseq
    %v3238 = vshrl.u32 %v3237, 7
    %v3239 = vsub.s32 3, %v3238
    %v3240 = vrot.slane %v3223, %v3239
    %v3253 = vunpack.c.l.b16 %v3215
    %v3254 = vunpack.c.h.b16 %v3215
    %v3255 = vunpack.c.l.b16 %v3216
    %v3256 = vunpack.c.h.b16 %v3216
    %v3257 = vunpack.c.l.b16 %v3217
    %v3258 = vunpack.c.h.b16 %v3217
    %v3259 = vunpack.c.l.b16 %v3218
    %v3260 = vunpack.c.h.b16 %v3218
    %v3261 = vunpack.c.l.b16 %v3219
    %v3262 = vunpack.c.h.b16 %v3219
    %v3263 = vunpack.c.l.b16 %v3220
    %v3264 = vunpack.c.h.b16 %v3220
    %v3265 = vunpack.c.l.b16 %v3221
    %v3266 = vunpack.c.h.b16 %v3221
    %v3267 = vunpack.c.l.b16 %v3222
    %v3268 = vunpack.c.h.b16 %v3222
    %v3269 = vpack.c.b16 %v3257, %v3253
    %v3270 = vpack.c.b16 %v3258, %v3254
    %v3271 = vpack.c.b16 %v3259, %v3255
    %v3272 = vpack.c.b16 %v3260, %v3256
    %v3273 = vpack.c.b16 %v3265, %v3261
    %v3274 = vpack.c.b16 %v3266, %v3262
    %v3275 = vpack.c.b16 %v3267, %v3263
    %v3276 = vpack.c.b16 %v3268, %v3264
    %3285 = vmatprep.subr.bf16.mxu0 0
    %3286 = vmatpush1.bf16.msra.mxu0 0
    %3287 = vmatprep.subr.bf16.mxu0 0
    %3288 = vmatpush1.bf16.msra.mxu0 0
    %3289 = vmatprep.subr.bf16.mxu0 0
    %3290 = vmatpush1.bf16.msra.mxu0 0
    %3291 = vmatprep.subr.bf16.mxu0 0
    %3292 = vmatpush1.bf16.msra.mxu0 0
    %3293 = vmatprep.subr.bf16.mxu0 0
    %3294 = vmatpush1.bf16.msra.mxu0 0
    %3295 = vmatprep.subr.bf16.mxu0 0
    %3296 = vmatpush1.bf16.msra.mxu0 0
    %3297 = vmatprep.subr.bf16.mxu0 %v3274
    %3298 = vmatpush1.bf16.msra.mxu0 %v3273
    %3299 = vmatprep.subr.bf16.mxu0 %v3270
    %3300 = vmatpush1.bf16.msra.mxu0 %v3269
    %3301 = vmatprep.subr.bf16.mxu0 0
    %3302 = vmatpush2.bf16.msra.mxu0 0
    %3303 = vmatprep.subr.bf16.mxu0 0
    %3304 = vmatpush2.bf16.msra.mxu0 0
    %3305 = vmatprep.subr.bf16.mxu0 0
    %3306 = vmatpush2.bf16.msra.mxu0 0
    %3307 = vmatprep.subr.bf16.mxu0 0
    %3308 = vmatpush2.bf16.msra.mxu0 0
    %3309 = vmatprep.subr.bf16.mxu0 0
    %3310 = vmatpush2.bf16.msra.mxu0 0
    %3311 = vmatprep.subr.bf16.mxu0 0
    %3312 = vmatpush2.bf16.msra.mxu0 0
    %3313 = vmatprep.subr.bf16.mxu0 0
    %3314 = vmatpush2.bf16.msra.mxu0 0
    %3315 = vmatprep.subr.bf16.mxu0 0
    %3316 = vmatpush2.bf16.msra.mxu0 0
    %3317 = vmatprep.mubr.bf16.mxu0 0
    %3318 = vmatmul.mubr.bf16.gmra.mxu0 %v1763
    %v3319 = vpop.f32.mrf.mxu0
    %v3320 = vadd.f32 %v3228, %v3319
    %v3321 = vpop.f32.mrf.mxu0
    %v3322 = vadd.f32 %v3232, %v3321
    %v3323 = vpop.f32.mrf.mxu0
    %v3324 = vadd.f32 %v3228, %v3323
    %v3325 = vpop.f32.mrf.mxu0
    %v3326 = vadd.f32 %v3232, %v3325
    %3327 = vdwg.mxu0
    %3328 = vmatprep.subr.bf16.mxu0 0
    %3329 = vmatpush1.bf16.msra.mxu0 0
    %3330 = vmatprep.subr.bf16.mxu0 0
    %3331 = vmatpush1.bf16.msra.mxu0 0
    %3332 = vmatprep.subr.bf16.mxu0 0
    %3333 = vmatpush1.bf16.msra.mxu0 0
    %3334 = vmatprep.subr.bf16.mxu0 0
    %3335 = vmatpush1.bf16.msra.mxu0 0
    %3336 = vmatprep.subr.bf16.mxu0 0
    %3337 = vmatpush1.bf16.msra.mxu0 0
    %3338 = vmatprep.subr.bf16.mxu0 0
    %3339 = vmatpush1.bf16.msra.mxu0 0
    %3340 = vmatprep.subr.bf16.mxu0 %v3276
    %3341 = vmatpush1.bf16.msra.mxu0 %v3275
    %3342 = vmatprep.subr.bf16.mxu0 %v3272
    %3343 = vmatpush1.bf16.msra.mxu0 %v3271
    %3344 = vmatprep.subr.bf16.mxu0 0
    %3345 = vmatpush2.bf16.msra.mxu0 0
    %3346 = vmatprep.subr.bf16.mxu0 0
    %3347 = vmatpush2.bf16.msra.mxu0 0
    %3348 = vmatprep.subr.bf16.mxu0 0
    %3349 = vmatpush2.bf16.msra.mxu0 0
    %3350 = vmatprep.subr.bf16.mxu0 0
    %3351 = vmatpush2.bf16.msra.mxu0 0
    %3352 = vmatprep.subr.bf16.mxu0 0
    %3353 = vmatpush2.bf16.msra.mxu0 0
    %3354 = vmatprep.subr.bf16.mxu0 0
    %3355 = vmatpush2.bf16.msra.mxu0 0
    %3356 = vmatprep.subr.bf16.mxu0 0
    %3357 = vmatpush2.bf16.msra.mxu0 0
    %3358 = vmatprep.subr.bf16.mxu0 0
    %3359 = vmatpush2.bf16.msra.mxu0 0
    %3360 = vmatprep.mubr.bf16.mxu0 0
    %3361 = vmatmul.mubr.bf16.gmra.mxu0 %v1763
    %v3362 = vpop.f32.mrf.mxu0
    %v3363 = vadd.f32 %v3236, %v3362
    %v3364 = vpop.f32.mrf.mxu0
    %v3365 = vadd.f32 %v3240, %v3364
    %v3366 = vpop.f32.mrf.mxu0
    %v3367 = vadd.f32 %v3236, %v3366
    %v3368 = vpop.f32.mrf.mxu0
    %v3369 = vadd.f32 %v3240, %v3368
    %3370 = vdwg.mxu0
    %v3371 = vmax.f32 %v3320, 0.0
    %v3372 = vmax.f32 %v3322, 0.0
    %v3373 = vmax.f32 %v3363, 0.0
    %v3374 = vmax.f32 %v3365, 0.0
    %v3375 = vmax.f32 %v3324, 0.0
    %v3376 = vmax.f32 %v3326, 0.0
    %v3377 = vmax.f32 %v3367, 0.0
    %v3378 = vmax.f32 %v3369, 0.0
    %v3379 = vpack.c.bf16 %v3375, %v3371
    %v3380 = vpack.c.bf16 %v3376, %v3372
    %v3381 = vpack.c.bf16 %v3377, %v3373
    %v3382 = vpack.c.bf16 %v3378, %v3374
    %v3383 = vld [vmem:[%s13 + $0x300] sm:$0xf]
    %v3384 = vld [vmem:[%s13 + $0x304] sm:$0xf]
    %v3385 = vld [vmem:[%s13 + $0x308] sm:$0xf]
    %v3386 = vld [vmem:[%s13 + $0x30c] sm:$0xf]
    %v3387 = vld [vmem:[%s13 + $0x310] sm:$0xf]
    %v3388 = vld [vmem:[%s13 + $0x314] sm:$0xf]
    %v3389 = vld [vmem:[%s13 + $0x318] sm:$0xf]
    %v3390 = vld [vmem:[%s13 + $0x31c] sm:$0xf]
    %v3391 = vld [vmem:[%s13 + $0x320] sm:$0xf]
    %v3392 = vld [vmem:[%s13 + $0x324] sm:$0xf]
    %v3393 = vld [vmem:[%s13 + $0x328] sm:$0xf]
    %v3394 = vld [vmem:[%s13 + $0x32c] sm:$0xf]
    %v3395 = vld [vmem:[%s13 + $0x330] sm:$0xf]
    %v3396 = vld [vmem:[%s13 + $0x334] sm:$0xf]
    %v3397 = vld [vmem:[%s13 + $0x338] sm:$0xf]
    %v3398 = vld [vmem:[%s13 + $0x33c] sm:$0xf]
    %v3399 = vld [vmem:[%s13 + $0x340] sm:$0xf]
    %v3400 = vld [vmem:[%s13 + $0x344] sm:$0xf]
    %v3401 = vld [vmem:[%s13 + $0x348] sm:$0xf]
    %v3402 = vld [vmem:[%s13 + $0x34c] sm:$0xf]
    %v3403 = vld [vmem:[%s13 + $0x350] sm:$0xf]
    %v3404 = vld [vmem:[%s13 + $0x354] sm:$0xf]
    %v3405 = vld [vmem:[%s13 + $0x358] sm:$0xf]
    %v3406 = vld [vmem:[%s13 + $0x35c] sm:$0xf]
    %v3407 = vld [vmem:[%s13 + $0x360] sm:$0xf]
    %v3408 = vld [vmem:[%s13 + $0x364] sm:$0xf]
    %v3409 = vld [vmem:[%s13 + $0x368] sm:$0xf]
    %v3410 = vld [vmem:[%s13 + $0x36c] sm:$0xf]
    %v3411 = vld [vmem:[%s13 + $0x370] sm:$0xf]
    %v3412 = vld [vmem:[%s13 + $0x374] sm:$0xf]
    %v3413 = vld [vmem:[%s13 + $0x378] sm:$0xf]
    %v3414 = vld [vmem:[%s13 + $0x37c] sm:$0xf]
    %v3415 = vld [vmem:[%s13 + $0x380] sm:$0xf]
    %v3416 = vld [vmem:[%s13 + $0x384] sm:$0xf]
    %v3417 = vld [vmem:[%s13 + $0x388] sm:$0xf]
    %v3418 = vld [vmem:[%s13 + $0x38c] sm:$0xf]
    %v3419 = vld [vmem:[%s13 + $0x390] sm:$0xf]
    %v3420 = vld [vmem:[%s13 + $0x394] sm:$0xf]
    %v3421 = vld [vmem:[%s13 + $0x398] sm:$0xf]
    %v3422 = vld [vmem:[%s13 + $0x39c] sm:$0xf]
    %v3423 = vld [vmem:[%s13 + $0x3a0] sm:$0xf]
    %v3424 = vld [vmem:[%s13 + $0x3a4] sm:$0xf]
    %v3425 = vld [vmem:[%s13 + $0x3a8] sm:$0xf]
    %v3426 = vld [vmem:[%s13 + $0x3ac] sm:$0xf]
    %v3427 = vld [vmem:[%s13 + $0x3b0] sm:$0xf]
    %v3428 = vld [vmem:[%s13 + $0x3b4] sm:$0xf]
    %v3429 = vld [vmem:[%s13 + $0x3b8] sm:$0xf]
    %v3430 = vld [vmem:[%s13 + $0x3bc] sm:$0xf]
    %v3431 = vld [vmem:[%s13 + $0x3c0] sm:$0xf]
    %v3432 = vld [vmem:[%s13 + $0x3c4] sm:$0xf]
    %v3433 = vld [vmem:[%s13 + $0x3c8] sm:$0xf]
    %v3434 = vld [vmem:[%s13 + $0x3cc] sm:$0xf]
    %v3435 = vld [vmem:[%s13 + $0x3d0] sm:$0xf]
    %v3436 = vld [vmem:[%s13 + $0x3d4] sm:$0xf]
    %v3437 = vld [vmem:[%s13 + $0x3d8] sm:$0xf]
    %v3438 = vld [vmem:[%s13 + $0x3dc] sm:$0xf]
    %v3439 = vld [vmem:[%s13 + $0x3e0] sm:$0xf]
    %v3440 = vld [vmem:[%s13 + $0x3e4] sm:$0xf]
    %v3441 = vld [vmem:[%s13 + $0x3e8] sm:$0xf]
    %v3442 = vld [vmem:[%s13 + $0x3ec] sm:$0xf]
    %v3443 = vld [vmem:[%s13 + $0x3f0] sm:$0xf]
    %v3444 = vld [vmem:[%s13 + $0x3f4] sm:$0xf]
    %v3445 = vld [vmem:[%s13 + $0x3f8] sm:$0xf]
    %v3446 = vld [vmem:[%s13 + $0x3fc] sm:$0xf]
    %v3511 = vunpack.c.l.b16 %v3383
    %v3512 = vunpack.c.l.b16 %v3384
    %v3513 = vunpack.c.l.b16 %v3385
    %v3514 = vunpack.c.l.b16 %v3386
    %v3515 = vunpack.c.l.b16 %v3387
    %v3516 = vunpack.c.l.b16 %v3388
    %v3517 = vunpack.c.l.b16 %v3389
    %v3518 = vunpack.c.l.b16 %v3390
    %v3519 = vunpack.c.l.b16 %v3391
    %v3520 = vunpack.c.l.b16 %v3392
    %v3521 = vunpack.c.l.b16 %v3393
    %v3522 = vunpack.c.l.b16 %v3394
    %v3523 = vunpack.c.l.b16 %v3395
    %v3524 = vunpack.c.l.b16 %v3396
    %v3525 = vunpack.c.l.b16 %v3397
    %v3526 = vunpack.c.l.b16 %v3398
    %v3527 = vunpack.c.l.b16 %v3399
    %v3528 = vunpack.c.l.b16 %v3400
    %v3529 = vunpack.c.l.b16 %v3401
    %v3530 = vunpack.c.l.b16 %v3402
    %v3531 = vunpack.c.l.b16 %v3403
    %v3532 = vunpack.c.l.b16 %v3404
    %v3533 = vunpack.c.l.b16 %v3405
    %v3534 = vunpack.c.l.b16 %v3406
    %v3535 = vunpack.c.l.b16 %v3407
    %v3536 = vunpack.c.l.b16 %v3408
    %v3537 = vunpack.c.l.b16 %v3409
    %v3538 = vunpack.c.l.b16 %v3410
    %v3539 = vunpack.c.l.b16 %v3411
    %v3540 = vunpack.c.l.b16 %v3412
    %v3541 = vunpack.c.l.b16 %v3413
    %v3542 = vunpack.c.l.b16 %v3414
    %v3543 = vunpack.c.l.b16 %v3415
    %v3544 = vunpack.c.l.b16 %v3416
    %v3545 = vunpack.c.l.b16 %v3417
    %v3546 = vunpack.c.l.b16 %v3418
    %v3547 = vunpack.c.l.b16 %v3419
    %v3548 = vunpack.c.l.b16 %v3420
    %v3549 = vunpack.c.l.b16 %v3421
    %v3550 = vunpack.c.l.b16 %v3422
    %v3551 = vunpack.c.l.b16 %v3423
    %v3552 = vunpack.c.l.b16 %v3424
    %v3553 = vunpack.c.l.b16 %v3425
    %v3554 = vunpack.c.l.b16 %v3426
    %v3555 = vunpack.c.l.b16 %v3427
    %v3556 = vunpack.c.l.b16 %v3428
    %v3557 = vunpack.c.l.b16 %v3429
    %v3558 = vunpack.c.l.b16 %v3430
    %v3559 = vunpack.c.l.b16 %v3431
    %v3560 = vunpack.c.l.b16 %v3432
    %v3561 = vunpack.c.l.b16 %v3433
    %v3562 = vunpack.c.l.b16 %v3434
    %v3563 = vunpack.c.l.b16 %v3435
    %v3564 = vunpack.c.l.b16 %v3436
    %v3565 = vunpack.c.l.b16 %v3437
    %v3566 = vunpack.c.l.b16 %v3438
    %v3567 = vunpack.c.l.b16 %v3439
    %v3568 = vunpack.c.l.b16 %v3440
    %v3569 = vunpack.c.l.b16 %v3441
    %v3570 = vunpack.c.l.b16 %v3442
    %v3571 = vunpack.c.l.b16 %v3443
    %v3572 = vunpack.c.l.b16 %v3444
    %v3573 = vunpack.c.l.b16 %v3445
    %v3574 = vunpack.c.l.b16 %v3446
    %v3575 = vpack.c.b16 %v3512, %v3511
    %v3576 = vpack.c.b16 %v3514, %v3513
    %v3577 = vpack.c.b16 %v3516, %v3515
    %v3578 = vpack.c.b16 %v3518, %v3517
    %v3579 = vpack.c.b16 %v3520, %v3519
    %v3580 = vpack.c.b16 %v3522, %v3521
    %v3581 = vpack.c.b16 %v3524, %v3523
    %v3582 = vpack.c.b16 %v3526, %v3525
    %v3583 = vpack.c.b16 %v3528, %v3527
    %v3584 = vpack.c.b16 %v3530, %v3529
    %v3585 = vpack.c.b16 %v3532, %v3531
    %v3586 = vpack.c.b16 %v3534, %v3533
    %v3587 = vpack.c.b16 %v3536, %v3535
    %v3588 = vpack.c.b16 %v3538, %v3537
    %v3589 = vpack.c.b16 %v3540, %v3539
    %v3590 = vpack.c.b16 %v3542, %v3541
    %v3591 = vpack.c.b16 %v3544, %v3543
    %v3592 = vpack.c.b16 %v3546, %v3545
    %v3593 = vpack.c.b16 %v3548, %v3547
    %v3594 = vpack.c.b16 %v3550, %v3549
    %v3595 = vpack.c.b16 %v3552, %v3551
    %v3596 = vpack.c.b16 %v3554, %v3553
    %v3597 = vpack.c.b16 %v3556, %v3555
    %v3598 = vpack.c.b16 %v3558, %v3557
    %v3599 = vpack.c.b16 %v3560, %v3559
    %v3600 = vpack.c.b16 %v3562, %v3561
    %v3601 = vpack.c.b16 %v3564, %v3563
    %v3602 = vpack.c.b16 %v3566, %v3565
    %v3603 = vpack.c.b16 %v3568, %v3567
    %v3604 = vpack.c.b16 %v3570, %v3569
    %v3605 = vpack.c.b16 %v3572, %v3571
    %v3606 = vpack.c.b16 %v3574, %v3573
    %3639 = vmatprep.subr.bf16.mxu0 0
    %3640 = vmatpush1.bf16.msra.mxu0 %v3582
    %3641 = vmatprep.subr.bf16.mxu0 0
    %3642 = vmatpush1.bf16.msra.mxu0 %v3581
    %3643 = vmatprep.subr.bf16.mxu0 0
    %3644 = vmatpush1.bf16.msra.mxu0 %v3580
    %3645 = vmatprep.subr.bf16.mxu0 0
    %3646 = vmatpush1.bf16.msra.mxu0 %v3579
    %3647 = vmatprep.subr.bf16.mxu0 0
    %3648 = vmatpush1.bf16.msra.mxu0 %v3578
    %3649 = vmatprep.subr.bf16.mxu0 0
    %3650 = vmatpush1.bf16.msra.mxu0 %v3577
    %3651 = vmatprep.subr.bf16.mxu0 0
    %3652 = vmatpush1.bf16.msra.mxu0 %v3576
    %3653 = vmatprep.subr.bf16.mxu0 0
    %3654 = vmatpush1.bf16.msra.mxu0 %v3575
    %3655 = vmatprep.subr.bf16.mxu0 0
    %3656 = vmatpush2.bf16.msra.mxu0 %v3590
    %3657 = vmatprep.subr.bf16.mxu0 0
    %3658 = vmatpush2.bf16.msra.mxu0 %v3589
    %3659 = vmatprep.subr.bf16.mxu0 0
    %3660 = vmatpush2.bf16.msra.mxu0 %v3588
    %3661 = vmatprep.subr.bf16.mxu0 0
    %3662 = vmatpush2.bf16.msra.mxu0 %v3587
    %3663 = vmatprep.subr.bf16.mxu0 0
    %3664 = vmatpush2.bf16.msra.mxu0 %v3586
    %3665 = vmatprep.subr.bf16.mxu0 0
    %3666 = vmatpush2.bf16.msra.mxu0 %v3585
    %3667 = vmatprep.subr.bf16.mxu0 0
    %3668 = vmatpush2.bf16.msra.mxu0 %v3584
    %3669 = vmatprep.subr.bf16.mxu0 0
    %3670 = vmatpush2.bf16.msra.mxu0 %v3583
    %3671 = vmatprep.mubr.bf16.mxu0 %v3380
    %3672 = vmatmul.mubr.bf16.gmra.mxu0 %v3379
    %v3673 = vpop.f32.mrf.mxu0
    %v3674 = vadd.f32 0.0, %v3673
    %v3675 = vpop.f32.mrf.mxu0
    %v3676 = vpop.f32.mrf.mxu0
    %v3677 = vadd.f32 0.0, %v3676
    %v3678 = vpop.f32.mrf.mxu0
    %3679 = vdwg.mxu0
    %3680 = vmatprep.subr.bf16.mxu0 0
    %3681 = vmatpush1.bf16.msra.mxu0 %v3598
    %3682 = vmatprep.subr.bf16.mxu0 0
    %3683 = vmatpush1.bf16.msra.mxu0 %v3597
    %3684 = vmatprep.subr.bf16.mxu0 0
    %3685 = vmatpush1.bf16.msra.mxu0 %v3596
    %3686 = vmatprep.subr.bf16.mxu0 0
    %3687 = vmatpush1.bf16.msra.mxu0 %v3595
    %3688 = vmatprep.subr.bf16.mxu0 0
    %3689 = vmatpush1.bf16.msra.mxu0 %v3594
    %3690 = vmatprep.subr.bf16.mxu0 0
    %3691 = vmatpush1.bf16.msra.mxu0 %v3593
    %3692 = vmatprep.subr.bf16.mxu0 0
    %3693 = vmatpush1.bf16.msra.mxu0 %v3592
    %3694 = vmatprep.subr.bf16.mxu0 0
    %3695 = vmatpush1.bf16.msra.mxu0 %v3591
    %3696 = vmatprep.subr.bf16.mxu0 0
    %3697 = vmatpush2.bf16.msra.mxu0 %v3606
    %3698 = vmatprep.subr.bf16.mxu0 0
    %3699 = vmatpush2.bf16.msra.mxu0 %v3605
    %3700 = vmatprep.subr.bf16.mxu0 0
    %3701 = vmatpush2.bf16.msra.mxu0 %v3604
    %3702 = vmatprep.subr.bf16.mxu0 0
    %3703 = vmatpush2.bf16.msra.mxu0 %v3603
    %3704 = vmatprep.subr.bf16.mxu0 0
    %3705 = vmatpush2.bf16.msra.mxu0 %v3602
    %3706 = vmatprep.subr.bf16.mxu0 0
    %3707 = vmatpush2.bf16.msra.mxu0 %v3601
    %3708 = vmatprep.subr.bf16.mxu0 0
    %3709 = vmatpush2.bf16.msra.mxu0 %v3600
    %3710 = vmatprep.subr.bf16.mxu0 0
    %3711 = vmatpush2.bf16.msra.mxu0 %v3599
    %3712 = vmatprep.mubr.bf16.mxu0 %v3382
    %3713 = vmatmul.mubr.bf16.gmra.mxu0 %v3381
    %v3714 = vpop.f32.mrf.mxu0
    %v3715 = vadd.f32 %v3674, %v3714
    %v3716 = vpop.f32.mrf.mxu0
    %v3717 = vpop.f32.mrf.mxu0
    %v3718 = vadd.f32 %v3677, %v3717
    %v3719 = vpop.f32.mrf.mxu0
    %3720 = vdwg.mxu0
    %v3721 = vadd.f32 %v3213, %v3715
    %v3722 = vadd.f32 %v3214, %v3718
    %v3723 = vadd.f32 %v1631, %v3721
    %v3724 = vadd.f32 %v1632, %v3722
    %v3725 = vld [vmem:[%s14] sm:$0x1]
    %v3727 = vlaneseq
    %v3728 = vshrl.u32 %v3727, 7
    %v3729 = vsub.s32 0, %v3728
    %v3730 = vrot.slane %v3725, %v3729
    %v3732 = vadd.f32 %v3723, %v3730
    %v3733 = vadd.f32 %v3724, %v3730
    %s3734 = scalar_lea.vmem %s3, 1
    %v3735 = vld [vmem:[%s3734] sm:$0x1]
    %s3736 = scalar_lea.vmem %s4, 1
    %v3737 = vld [vmem:[%s3736] sm:$0x1]
    %v3738 = vsel %vm91, %v3732, 0.0
    %3739 = vadd.xlane.f32.xlu0 %v3738
    %v3740 = vpop.xlane.xlu0 %3739
    %v3741 = vsel %vm91, %v3733, 0.0
    %3742 = vadd.xlane.f32.xlu0 %v3741
    %v3743 = vpop.xlane.xlu0 %3742
    %v3744 = vmul.f32 %v3740, %v98
    %v3745 = vmul.f32 %v3743, %v98
    %v3746 = vsub.f32 %v3732, %v3744
    %v3747 = vsub.f32 %v3733, %v3745
    %v3748 = vmul.f32 %v3746, %v3746
    %v3749 = vmul.f32 %v3747, %v3747
    %v3750 = vsel %vm91, %v3748, 0.0
    %3751 = vadd.xlane.f32.xlu0 %v3750
    %v3752 = vpop.xlane.xlu0 %3751
    %v3753 = vsel %vm91, %v3749, 0.0
    %3754 = vadd.xlane.f32.xlu0 %v3753
    %v3755 = vpop.xlane.xlu0 %3754
    %v3756 = vmul.f32 %v3752, %v111
    %v3757 = vmul.f32 %v3755, %v111
    %v3758 = vrsqrt.pop %v3756
    %v3759 = vmul.f32 %v3756, %v3758
    %vm3760 = vcmp.eq.f32.partialorder %v3756, inf
    %v3761 = vsel %vm3760, %v3756, %v3759
    %vm3762 = vcmp.eq.f32.partialorder %v3756, 0.0
    %v3763 = vand.u32 %v3756, 2147483648
    %v3764 = vsel %vm3762, %v3763, %v3761
    %v3765 = vrsqrt.pop %v3757
    %v3766 = vmul.f32 %v3757, %v3765
    %vm3767 = vcmp.eq.f32.partialorder %v3757, inf
    %v3768 = vsel %vm3767, %v3757, %v3766
    %vm3769 = vcmp.eq.f32.partialorder %v3757, 0.0
    %v3770 = vand.u32 %v3757, 2147483648
    %v3771 = vsel %vm3769, %v3770, %v3768
    %v3772 = vadd.f32 %v3764, 1e-06
    %v3773 = vadd.f32 %v3771, 1e-06
    %v3774 = vrcp.pop %v3772
    %v3775 = vrcp.pop %v3773
    %v3777 = vlaneseq
    %v3778 = vshrl.u32 %v3777, 7
    %v3779 = vsub.s32 0, %v3778
    %v3780 = vrot.slane %v3735, %v3779
    %v3782 = vmul.f32 %v3780, %v3746
    %v3783 = vmul.f32 %v3780, %v3747
    %v3784 = vmul.f32 %v3782, %v3774
    %v3785 = vmul.f32 %v3783, %v3775
    %v3787 = vlaneseq
    %v3788 = vshrl.u32 %v3787, 7
    %v3789 = vsub.s32 0, %v3788
    %v3790 = vrot.slane %v3737, %v3789
    %v3792 = vadd.f32 %v3784, %v3790
    %v3793 = vadd.f32 %v3785, %v3790
    %v3794 = vpack.c.bf16 %v3793, %v3792
    %s3795 = scalar_lea.vmem %s5, 16
    %v3796 = vld [vmem:[%s3795] sm:$0xf]
    %v3797 = vld [vmem:[%s3795 + $0x4] sm:$0xf]
    %v3798 = vld [vmem:[%s3795 + $0x8] sm:$0xf]
    %v3799 = vld [vmem:[%s3795 + $0xc] sm:$0xf]
    %s3800 = scalar_lea.vmem %s6, 1
    %v3801 = vld [vmem:[%s3800] sm:$0x1]
    %v3803 = vlaneseq
    %v3804 = vshrl.u32 %v3803, 7
    %v3805 = vsub.s32 0, %v3804
    %v3806 = vrot.slane %v3801, %v3805
    %v3812 = vunpack.c.l.b16 %v3796
    %v3813 = vunpack.c.l.b16 %v3797
    %v3814 = vunpack.c.l.b16 %v3798
    %v3815 = vunpack.c.l.b16 %v3799
    %v3816 = vpack.c.b16 %v3813, %v3812
    %v3817 = vpack.c.b16 %v3815, %v3814
    %v3821 = vsel %vm91, %v3794, 0
    %3823 = vmatprep.subr.bf16.mxu0 0
    %3824 = vmatpush1.bf16.msra.mxu0 0
    %3825 = vmatprep.subr.bf16.mxu0 0
    %3826 = vmatpush1.bf16.msra.mxu0 0
    %3827 = vmatprep.subr.bf16.mxu0 0
    %3828 = vmatpush1.bf16.msra.mxu0 0
    %3829 = vmatprep.subr.bf16.mxu0 0
    %3830 = vmatpush1.bf16.msra.mxu0 0
    %3831 = vmatprep.subr.bf16.mxu0 0
    %3832 = vmatpush1.bf16.msra.mxu0 0
    %3833 = vmatprep.subr.bf16.mxu0 0
    %3834 = vmatpush1.bf16.msra.mxu0 0
    %3835 = vmatprep.subr.bf16.mxu0 0
    %3836 = vmatpush1.bf16.msra.mxu0 %v3817
    %3837 = vmatprep.subr.bf16.mxu0 0
    %3838 = vmatpush1.bf16.msra.mxu0 %v3816
    %3839 = vmatprep.subr.bf16.mxu0 0
    %3840 = vmatpush2.bf16.msra.mxu0 0
    %3841 = vmatprep.subr.bf16.mxu0 0
    %3842 = vmatpush2.bf16.msra.mxu0 0
    %3843 = vmatprep.subr.bf16.mxu0 0
    %3844 = vmatpush2.bf16.msra.mxu0 0
    %3845 = vmatprep.subr.bf16.mxu0 0
    %3846 = vmatpush2.bf16.msra.mxu0 0
    %3847 = vmatprep.subr.bf16.mxu0 0
    %3848 = vmatpush2.bf16.msra.mxu0 0
    %3849 = vmatprep.subr.bf16.mxu0 0
    %3850 = vmatpush2.bf16.msra.mxu0 0
    %3851 = vmatprep.subr.bf16.mxu0 0
    %3852 = vmatpush2.bf16.msra.mxu0 0
    %3853 = vmatprep.subr.bf16.mxu0 0
    %3854 = vmatpush2.bf16.msra.mxu0 0
    %3855 = vmatprep.mubr.bf16.mxu0 0
    %3856 = vmatmul.mubr.bf16.gmra.mxu0 %v3821
    %v3857 = vpop.f32.mrf.mxu0
    %v3858 = vadd.f32 %v3806, %v3857
    %v3859 = vpop.f32.mrf.mxu0
    %v3860 = vpop.f32.mrf.mxu0
    %v3861 = vadd.f32 %v3806, %v3860
    %v3862 = vpop.f32.mrf.mxu0
    %3863 = vdwg.mxu0
    %3865 = vrot.lane.b32.xlu0 %v3858, 96
    %v3866 = vpop.permute.xlu0 %3865
    %v3867 = vsel %vm221, %v3858, 0
    %v3869 = vsel %vm221, %v3866, 0
    %3871 = vmatprep.subr.mxu0 0.0
    %3872 = vmatpush1.xpose.msra.mxu0 0.0
    %3873 = vmatprep.subr.mxu0 0.0
    %3874 = vmatpush1.xpose.msra.mxu0 0.0
    %3875 = vmatprep.subr.mxu0 0.0
    %3876 = vmatpush1.xpose.msra.mxu0 0.0
    %3877 = vmatprep.subr.mxu0 0.0
    %3878 = vmatpush1.xpose.msra.mxu0 0.0
    %3879 = vmatprep.subr.mxu0 0.0
    %3880 = vmatpush1.xpose.msra.mxu0 0.0
    %3881 = vmatprep.subr.mxu0 0.0
    %3882 = vmatpush1.xpose.msra.mxu0 0.0
    %3883 = vmatprep.subr.mxu0 0.0
    %3884 = vmatpush1.xpose.msra.mxu0 0.0
    %3885 = vmatprep.subr.mxu0 0.0
    %3886 = vmatpush1.xpose.msra.mxu0 0.0
    %3887 = vmatprep.subr.mxu0 0.0
    %3888 = vmatpush1.xpose.msra.mxu0 0.0
    %3889 = vmatprep.subr.mxu0 0.0
    %3890 = vmatpush1.xpose.msra.mxu0 0.0
    %3891 = vmatprep.subr.mxu0 0.0
    %3892 = vmatpush1.xpose.msra.mxu0 0.0
    %3893 = vmatprep.subr.mxu0 0.0
    %3894 = vmatpush1.xpose.msra.mxu0 0.0
    %3895 = vmatprep.subr.mxu0 0.0
    %3896 = vmatpush1.xpose.msra.mxu0 0.0
    %3897 = vmatprep.subr.mxu0 0.0
    %3898 = vmatpush1.xpose.msra.mxu0 0.0
    %3899 = vmatprep.subr.mxu0 0.0
    %3900 = vmatpush1.xpose.msra.mxu0 0.0
    %3901 = vmatprep.subr.mxu0 0.0
    %3902 = vmatpush1.xpose.msra.mxu0 %v3869
    %3903 = vmatprep.subr.mxu0 0.0
    %3904 = vmatpush2.xpose.msra.mxu0 0.0
    %3905 = vmatprep.subr.mxu0 0.0
    %3906 = vmatpush2.xpose.msra.mxu0 0.0
    %3907 = vmatprep.subr.mxu0 0.0
    %3908 = vmatpush2.xpose.msra.mxu0 0.0
    %3909 = vmatprep.subr.mxu0 0.0
    %3910 = vmatpush2.xpose.msra.mxu0 0.0
    %3911 = vmatprep.subr.mxu0 0.0
    %3912 = vmatpush2.xpose.msra.mxu0 0.0
    %3913 = vmatprep.subr.mxu0 0.0
    %3914 = vmatpush2.xpose.msra.mxu0 0.0
    %3915 = vmatprep.subr.mxu0 0.0
    %3916 = vmatpush2.xpose.msra.mxu0 0.0
    %3917 = vmatprep.subr.mxu0 0.0
    %3918 = vmatpush2.xpose.msra.mxu0 0.0
    %3919 = vmatprep.subr.mxu0 0.0
    %3920 = vmatpush2.xpose.msra.mxu0 0.0
    %3921 = vmatprep.subr.mxu0 0.0
    %3922 = vmatpush2.xpose.msra.mxu0 0.0
    %3923 = vmatprep.subr.mxu0 0.0
    %3924 = vmatpush2.xpose.msra.mxu0 0.0
    %3925 = vmatprep.subr.mxu0 0.0
    %3926 = vmatpush2.xpose.msra.mxu0 0.0
    %3927 = vmatprep.subr.mxu0 0.0
    %3928 = vmatpush2.xpose.msra.mxu0 0.0
    %3929 = vmatprep.subr.mxu0 0.0
    %3930 = vmatpush2.xpose.msra.mxu0 0.0
    %3931 = vmatprep.subr.mxu0 0.0
    %3932 = vmatpush2.xpose.msra.mxu0 0.0
    %3933 = vmatprep.subr.mxu0 0.0
    %3934 = vmatpush2.xpose.msra.mxu0 0.0
    %3935 = vmatprep.mubr.f32.mxu0 0.0
    %3936 = vmatmul.mubr.f32.gmra.mxu0 %v3867
    %v3937 = vpop.f32.mrf.mxu0
    %v3938 = vadd.f32 0.0, %v3937
    %v3939 = vpop.f32.mrf.mxu0
    %3940 = vdwg.mxu0
    %3942 = vrot.lane.b32.xlu0 %v3861, 96
    %v3943 = vpop.permute.xlu0 %3942
    %v3944 = vsel %vm221, %v3861, 0
    %v3946 = vsel %vm221, %v3943, 0
    %3948 = vmatprep.subr.mxu0 0.0
    %3949 = vmatpush1.xpose.msra.mxu0 0.0
    %3950 = vmatprep.subr.mxu0 0.0
    %3951 = vmatpush1.xpose.msra.mxu0 0.0
    %3952 = vmatprep.subr.mxu0 0.0
    %3953 = vmatpush1.xpose.msra.mxu0 0.0
    %3954 = vmatprep.subr.mxu0 0.0
    %3955 = vmatpush1.xpose.msra.mxu0 0.0
    %3956 = vmatprep.subr.mxu0 0.0
    %3957 = vmatpush1.xpose.msra.mxu0 0.0
    %3958 = vmatprep.subr.mxu0 0.0
    %3959 = vmatpush1.xpose.msra.mxu0 0.0
    %3960 = vmatprep.subr.mxu0 0.0
    %3961 = vmatpush1.xpose.msra.mxu0 0.0
    %3962 = vmatprep.subr.mxu0 0.0
    %3963 = vmatpush1.xpose.msra.mxu0 0.0
    %3964 = vmatprep.subr.mxu0 0.0
    %3965 = vmatpush1.xpose.msra.mxu0 0.0
    %3966 = vmatprep.subr.mxu0 0.0
    %3967 = vmatpush1.xpose.msra.mxu0 0.0
    %3968 = vmatprep.subr.mxu0 0.0
    %3969 = vmatpush1.xpose.msra.mxu0 0.0
    %3970 = vmatprep.subr.mxu0 0.0
    %3971 = vmatpush1.xpose.msra.mxu0 0.0
    %3972 = vmatprep.subr.mxu0 0.0
    %3973 = vmatpush1.xpose.msra.mxu0 0.0
    %3974 = vmatprep.subr.mxu0 0.0
    %3975 = vmatpush1.xpose.msra.mxu0 0.0
    %3976 = vmatprep.subr.mxu0 0.0
    %3977 = vmatpush1.xpose.msra.mxu0 0.0
    %3978 = vmatprep.subr.mxu0 0.0
    %3979 = vmatpush1.xpose.msra.mxu0 %v3946
    %3980 = vmatprep.subr.mxu0 0.0
    %3981 = vmatpush2.xpose.msra.mxu0 0.0
    %3982 = vmatprep.subr.mxu0 0.0
    %3983 = vmatpush2.xpose.msra.mxu0 0.0
    %3984 = vmatprep.subr.mxu0 0.0
    %3985 = vmatpush2.xpose.msra.mxu0 0.0
    %3986 = vmatprep.subr.mxu0 0.0
    %3987 = vmatpush2.xpose.msra.mxu0 0.0
    %3988 = vmatprep.subr.mxu0 0.0
    %3989 = vmatpush2.xpose.msra.mxu0 0.0
    %3990 = vmatprep.subr.mxu0 0.0
    %3991 = vmatpush2.xpose.msra.mxu0 0.0
    %3992 = vmatprep.subr.mxu0 0.0
    %3993 = vmatpush2.xpose.msra.mxu0 0.0
    %3994 = vmatprep.subr.mxu0 0.0
    %3995 = vmatpush2.xpose.msra.mxu0 0.0
    %3996 = vmatprep.subr.mxu0 0.0
    %3997 = vmatpush2.xpose.msra.mxu0 0.0
    %3998 = vmatprep.subr.mxu0 0.0
    %3999 = vmatpush2.xpose.msra.mxu0 0.0
    %4000 = vmatprep.subr.mxu0 0.0
    %4001 = vmatpush2.xpose.msra.mxu0 0.0
    %4002 = vmatprep.subr.mxu0 0.0
    %4003 = vmatpush2.xpose.msra.mxu0 0.0
    %4004 = vmatprep.subr.mxu0 0.0
    %4005 = vmatpush2.xpose.msra.mxu0 0.0
    %4006 = vmatprep.subr.mxu0 0.0
    %4007 = vmatpush2.xpose.msra.mxu0 0.0
    %4008 = vmatprep.subr.mxu0 0.0
    %4009 = vmatpush2.xpose.msra.mxu0 0.0
    %4010 = vmatprep.subr.mxu0 0.0
    %4011 = vmatpush2.xpose.msra.mxu0 0.0
    %4012 = vmatprep.mubr.f32.mxu0 0.0
    %4013 = vmatmul.mubr.f32.gmra.mxu0 %v3944
    %v4014 = vpop.f32.mrf.mxu0
    %v4015 = vadd.f32 0.0, %v4014
    %v4016 = vpop.f32.mrf.mxu0
    %4017 = vdwg.mxu0
    %v4018 = vmul.f32 %v3938, 0.35355338
    %v4019 = vmul.f32 %v4015, 0.35355338
    %v4020 = vadd.f32 %v4018, %v380
    %v4021 = vadd.f32 %v4019, %v384
    %v4022 = vsel %vm221, %v4020, -inf
    %4023 = vmax.xlane.f32.xlu0 %v4022
    %v4024 = vpop.xlane.xlu0 %4023
    %v4025 = vsel %vm221, %v4021, -inf
    %4026 = vmax.xlane.f32.xlu0 %v4025
    %v4027 = vpop.xlane.xlu0 %4026
    %v4028 = vsub.f32 %v4020, %v4024
    %v4029 = vsub.f32 %v4021, %v4027
    %v4030 = vmul.f32 %v4028, 1.442695
    %v4031 = vpow.pop %v4030
    %v4032 = vmul.f32 %v4029, 1.442695
    %v4033 = vpow.pop %v4032
    %v4034 = vsel %vm221, %v4031, 0.0
    %4035 = vadd.xlane.f32.xlu0 %v4034
    %v4036 = vpop.xlane.xlu0 %4035
    %v4037 = vsel %vm221, %v4033, 0.0
    %4038 = vadd.xlane.f32.xlu0 %v4037
    %v4039 = vpop.xlane.xlu0 %4038
    %v4040 = vrcp.pop %v4036
    %v4041 = vrcp.pop %v4039
    %v4042 = vmul.f32 %v4031, %v4040
    %v4043 = vmul.f32 %v4033, %v4041
    %4044 = vrot.lane.b32.xlu0 %v3858, 64
    %v4045 = vpop.permute.xlu0 %4044
    %v4048 = vsel %vm221, %v4042, 0
    %4050 = vmatprep.subr.mxu0 0.0
    %4051 = vmatpush1.msra.mxu0 0.0
    %4052 = vmatprep.subr.mxu0 0.0
    %4053 = vmatpush1.msra.mxu0 0.0
    %4054 = vmatprep.subr.mxu0 0.0
    %4055 = vmatpush1.msra.mxu0 0.0
    %4056 = vmatprep.subr.mxu0 0.0
    %4057 = vmatpush1.msra.mxu0 0.0
    %4058 = vmatprep.subr.mxu0 0.0
    %4059 = vmatpush1.msra.mxu0 0.0
    %4060 = vmatprep.subr.mxu0 0.0
    %4061 = vmatpush1.msra.mxu0 0.0
    %4062 = vmatprep.subr.mxu0 0.0
    %4063 = vmatpush1.msra.mxu0 0.0
    %4064 = vmatprep.subr.mxu0 0.0
    %4065 = vmatpush1.msra.mxu0 0.0
    %4066 = vmatprep.subr.mxu0 0.0
    %4067 = vmatpush1.msra.mxu0 0.0
    %4068 = vmatprep.subr.mxu0 0.0
    %4069 = vmatpush1.msra.mxu0 0.0
    %4070 = vmatprep.subr.mxu0 0.0
    %4071 = vmatpush1.msra.mxu0 0.0
    %4072 = vmatprep.subr.mxu0 0.0
    %4073 = vmatpush1.msra.mxu0 0.0
    %4074 = vmatprep.subr.mxu0 0.0
    %4075 = vmatpush1.msra.mxu0 0.0
    %4076 = vmatprep.subr.mxu0 0.0
    %4077 = vmatpush1.msra.mxu0 0.0
    %4078 = vmatprep.subr.mxu0 0.0
    %4079 = vmatpush1.msra.mxu0 0.0
    %4080 = vmatprep.subr.mxu0 0.0
    %4081 = vmatpush1.msra.mxu0 %v4045
    %4082 = vmatprep.subr.mxu0 0.0
    %4083 = vmatpush2.msra.mxu0 0.0
    %4084 = vmatprep.subr.mxu0 0.0
    %4085 = vmatpush2.msra.mxu0 0.0
    %4086 = vmatprep.subr.mxu0 0.0
    %4087 = vmatpush2.msra.mxu0 0.0
    %4088 = vmatprep.subr.mxu0 0.0
    %4089 = vmatpush2.msra.mxu0 0.0
    %4090 = vmatprep.subr.mxu0 0.0
    %4091 = vmatpush2.msra.mxu0 0.0
    %4092 = vmatprep.subr.mxu0 0.0
    %4093 = vmatpush2.msra.mxu0 0.0
    %4094 = vmatprep.subr.mxu0 0.0
    %4095 = vmatpush2.msra.mxu0 0.0
    %4096 = vmatprep.subr.mxu0 0.0
    %4097 = vmatpush2.msra.mxu0 0.0
    %4098 = vmatprep.subr.mxu0 0.0
    %4099 = vmatpush2.msra.mxu0 0.0
    %4100 = vmatprep.subr.mxu0 0.0
    %4101 = vmatpush2.msra.mxu0 0.0
    %4102 = vmatprep.subr.mxu0 0.0
    %4103 = vmatpush2.msra.mxu0 0.0
    %4104 = vmatprep.subr.mxu0 0.0
    %4105 = vmatpush2.msra.mxu0 0.0
    %4106 = vmatprep.subr.mxu0 0.0
    %4107 = vmatpush2.msra.mxu0 0.0
    %4108 = vmatprep.subr.mxu0 0.0
    %4109 = vmatpush2.msra.mxu0 0.0
    %4110 = vmatprep.subr.mxu0 0.0
    %4111 = vmatpush2.msra.mxu0 0.0
    %4112 = vmatprep.subr.mxu0 0.0
    %4113 = vmatpush2.msra.mxu0 0.0
    %4114 = vmatprep.mubr.f32.mxu0 0.0
    %4115 = vmatmul.mubr.f32.gmra.mxu0 %v4048
    %v4116 = vpop.f32.mrf.mxu0
    %v4117 = vadd.f32 0.0, %v4116
    %v4118 = vpop.f32.mrf.mxu0
    %4119 = vdwg.mxu0
    %4120 = vrot.lane.b32.xlu0 %v3861, 64
    %v4121 = vpop.permute.xlu0 %4120
    %v4124 = vsel %vm221, %v4043, 0
    %4126 = vmatprep.subr.mxu0 0.0
    %4127 = vmatpush1.msra.mxu0 0.0
    %4128 = vmatprep.subr.mxu0 0.0
    %4129 = vmatpush1.msra.mxu0 0.0
    %4130 = vmatprep.subr.mxu0 0.0
    %4131 = vmatpush1.msra.mxu0 0.0
    %4132 = vmatprep.subr.mxu0 0.0
    %4133 = vmatpush1.msra.mxu0 0.0
    %4134 = vmatprep.subr.mxu0 0.0
    %4135 = vmatpush1.msra.mxu0 0.0
    %4136 = vmatprep.subr.mxu0 0.0
    %4137 = vmatpush1.msra.mxu0 0.0
    %4138 = vmatprep.subr.mxu0 0.0
    %4139 = vmatpush1.msra.mxu0 0.0
    %4140 = vmatprep.subr.mxu0 0.0
    %4141 = vmatpush1.msra.mxu0 0.0
    %4142 = vmatprep.subr.mxu0 0.0
    %4143 = vmatpush1.msra.mxu0 0.0
    %4144 = vmatprep.subr.mxu0 0.0
    %4145 = vmatpush1.msra.mxu0 0.0
    %4146 = vmatprep.subr.mxu0 0.0
    %4147 = vmatpush1.msra.mxu0 0.0
    %4148 = vmatprep.subr.mxu0 0.0
    %4149 = vmatpush1.msra.mxu0 0.0
    %4150 = vmatprep.subr.mxu0 0.0
    %4151 = vmatpush1.msra.mxu0 0.0
    %4152 = vmatprep.subr.mxu0 0.0
    %4153 = vmatpush1.msra.mxu0 0.0
    %4154 = vmatprep.subr.mxu0 0.0
    %4155 = vmatpush1.msra.mxu0 0.0
    %4156 = vmatprep.subr.mxu0 0.0
    %4157 = vmatpush1.msra.mxu0 %v4121
    %4158 = vmatprep.subr.mxu0 0.0
    %4159 = vmatpush2.msra.mxu0 0.0
    %4160 = vmatprep.subr.mxu0 0.0
    %4161 = vmatpush2.msra.mxu0 0.0
    %4162 = vmatprep.subr.mxu0 0.0
    %4163 = vmatpush2.msra.mxu0 0.0
    %4164 = vmatprep.subr.mxu0 0.0
    %4165 = vmatpush2.msra.mxu0 0.0
    %4166 = vmatprep.subr.mxu0 0.0
    %4167 = vmatpush2.msra.mxu0 0.0
    %4168 = vmatprep.subr.mxu0 0.0
    %4169 = vmatpush2.msra.mxu0 0.0
    %4170 = vmatprep.subr.mxu0 0.0
    %4171 = vmatpush2.msra.mxu0 0.0
    %4172 = vmatprep.subr.mxu0 0.0
    %4173 = vmatpush2.msra.mxu0 0.0
    %4174 = vmatprep.subr.mxu0 0.0
    %4175 = vmatpush2.msra.mxu0 0.0
    %4176 = vmatprep.subr.mxu0 0.0
    %4177 = vmatpush2.msra.mxu0 0.0
    %4178 = vmatprep.subr.mxu0 0.0
    %4179 = vmatpush2.msra.mxu0 0.0
    %4180 = vmatprep.subr.mxu0 0.0
    %4181 = vmatpush2.msra.mxu0 0.0
    %4182 = vmatprep.subr.mxu0 0.0
    %4183 = vmatpush2.msra.mxu0 0.0
    %4184 = vmatprep.subr.mxu0 0.0
    %4185 = vmatpush2.msra.mxu0 0.0
    %4186 = vmatprep.subr.mxu0 0.0
    %4187 = vmatpush2.msra.mxu0 0.0
    %4188 = vmatprep.subr.mxu0 0.0
    %4189 = vmatpush2.msra.mxu0 0.0
    %4190 = vmatprep.mubr.f32.mxu0 0.0
    %4191 = vmatmul.mubr.f32.gmra.mxu0 %v4124
    %v4192 = vpop.f32.mrf.mxu0
    %v4193 = vadd.f32 0.0, %v4192
    %v4194 = vpop.f32.mrf.mxu0
    %4195 = vdwg.mxu0
    %v4196 = vmul.f32 %v4117, %v66
    %v4197 = vmul.f32 %v4193, %v66
    %v4198 = vadd.f32 %v4196, 0.0
    %v4199 = vadd.f32 %v4197, 0.0
    %4200 = vrot.lane.b32.xlu0 %v3858, 120
    %v4201 = vpop.permute.xlu0 %4200
    %4202 = vrot.lane.b32.xlu0 %v3858, 88
    %v4203 = vpop.permute.xlu0 %4202
    %v4204 = vsel %vm221, %v4201, 0
    %v4206 = vsel %vm221, %v4203, 0
    %4208 = vmatprep.subr.mxu0 0.0
    %4209 = vmatpush1.xpose.msra.mxu0 0.0
    %4210 = vmatprep.subr.mxu0 0.0
    %4211 = vmatpush1.xpose.msra.mxu0 0.0
    %4212 = vmatprep.subr.mxu0 0.0
    %4213 = vmatpush1.xpose.msra.mxu0 0.0
    %4214 = vmatprep.subr.mxu0 0.0
    %4215 = vmatpush1.xpose.msra.mxu0 0.0
    %4216 = vmatprep.subr.mxu0 0.0
    %4217 = vmatpush1.xpose.msra.mxu0 0.0
    %4218 = vmatprep.subr.mxu0 0.0
    %4219 = vmatpush1.xpose.msra.mxu0 0.0
    %4220 = vmatprep.subr.mxu0 0.0
    %4221 = vmatpush1.xpose.msra.mxu0 0.0
    %4222 = vmatprep.subr.mxu0 0.0
    %4223 = vmatpush1.xpose.msra.mxu0 0.0
    %4224 = vmatprep.subr.mxu0 0.0
    %4225 = vmatpush1.xpose.msra.mxu0 0.0
    %4226 = vmatprep.subr.mxu0 0.0
    %4227 = vmatpush1.xpose.msra.mxu0 0.0
    %4228 = vmatprep.subr.mxu0 0.0
    %4229 = vmatpush1.xpose.msra.mxu0 0.0
    %4230 = vmatprep.subr.mxu0 0.0
    %4231 = vmatpush1.xpose.msra.mxu0 0.0
    %4232 = vmatprep.subr.mxu0 0.0
    %4233 = vmatpush1.xpose.msra.mxu0 0.0
    %4234 = vmatprep.subr.mxu0 0.0
    %4235 = vmatpush1.xpose.msra.mxu0 0.0
    %4236 = vmatprep.subr.mxu0 0.0
    %4237 = vmatpush1.xpose.msra.mxu0 0.0
    %4238 = vmatprep.subr.mxu0 0.0
    %4239 = vmatpush1.xpose.msra.mxu0 %v4206
    %4240 = vmatprep.subr.mxu0 0.0
    %4241 = vmatpush2.xpose.msra.mxu0 0.0
    %4242 = vmatprep.subr.mxu0 0.0
    %4243 = vmatpush2.xpose.msra.mxu0 0.0
    %4244 = vmatprep.subr.mxu0 0.0
    %4245 = vmatpush2.xpose.msra.mxu0 0.0
    %4246 = vmatprep.subr.mxu0 0.0
    %4247 = vmatpush2.xpose.msra.mxu0 0.0
    %4248 = vmatprep.subr.mxu0 0.0
    %4249 = vmatpush2.xpose.msra.mxu0 0.0
    %4250 = vmatprep.subr.mxu0 0.0
    %4251 = vmatpush2.xpose.msra.mxu0 0.0
    %4252 = vmatprep.subr.mxu0 0.0
    %4253 = vmatpush2.xpose.msra.mxu0 0.0
    %4254 = vmatprep.subr.mxu0 0.0
    %4255 = vmatpush2.xpose.msra.mxu0 0.0
    %4256 = vmatprep.subr.mxu0 0.0
    %4257 = vmatpush2.xpose.msra.mxu0 0.0
    %4258 = vmatprep.subr.mxu0 0.0
    %4259 = vmatpush2.xpose.msra.mxu0 0.0
    %4260 = vmatprep.subr.mxu0 0.0
    %4261 = vmatpush2.xpose.msra.mxu0 0.0
    %4262 = vmatprep.subr.mxu0 0.0
    %4263 = vmatpush2.xpose.msra.mxu0 0.0
    %4264 = vmatprep.subr.mxu0 0.0
    %4265 = vmatpush2.xpose.msra.mxu0 0.0
    %4266 = vmatprep.subr.mxu0 0.0
    %4267 = vmatpush2.xpose.msra.mxu0 0.0
    %4268 = vmatprep.subr.mxu0 0.0
    %4269 = vmatpush2.xpose.msra.mxu0 0.0
    %4270 = vmatprep.subr.mxu0 0.0
    %4271 = vmatpush2.xpose.msra.mxu0 0.0
    %4272 = vmatprep.mubr.f32.mxu0 0.0
    %4273 = vmatmul.mubr.f32.gmra.mxu0 %v4204
    %v4274 = vpop.f32.mrf.mxu0
    %v4275 = vadd.f32 0.0, %v4274
    %v4276 = vpop.f32.mrf.mxu0
    %4277 = vdwg.mxu0
    %4278 = vrot.lane.b32.xlu0 %v3861, 120
    %v4279 = vpop.permute.xlu0 %4278
    %4280 = vrot.lane.b32.xlu0 %v3861, 88
    %v4281 = vpop.permute.xlu0 %4280
    %v4282 = vsel %vm221, %v4279, 0
    %v4284 = vsel %vm221, %v4281, 0
    %4286 = vmatprep.subr.mxu0 0.0
    %4287 = vmatpush1.xpose.msra.mxu0 0.0
    %4288 = vmatprep.subr.mxu0 0.0
    %4289 = vmatpush1.xpose.msra.mxu0 0.0
    %4290 = vmatprep.subr.mxu0 0.0
    %4291 = vmatpush1.xpose.msra.mxu0 0.0
    %4292 = vmatprep.subr.mxu0 0.0
    %4293 = vmatpush1.xpose.msra.mxu0 0.0
    %4294 = vmatprep.subr.mxu0 0.0
    %4295 = vmatpush1.xpose.msra.mxu0 0.0
    %4296 = vmatprep.subr.mxu0 0.0
    %4297 = vmatpush1.xpose.msra.mxu0 0.0
    %4298 = vmatprep.subr.mxu0 0.0
    %4299 = vmatpush1.xpose.msra.mxu0 0.0
    %4300 = vmatprep.subr.mxu0 0.0
    %4301 = vmatpush1.xpose.msra.mxu0 0.0
    %4302 = vmatprep.subr.mxu0 0.0
    %4303 = vmatpush1.xpose.msra.mxu0 0.0
    %4304 = vmatprep.subr.mxu0 0.0
    %4305 = vmatpush1.xpose.msra.mxu0 0.0
    %4306 = vmatprep.subr.mxu0 0.0
    %4307 = vmatpush1.xpose.msra.mxu0 0.0
    %4308 = vmatprep.subr.mxu0 0.0
    %4309 = vmatpush1.xpose.msra.mxu0 0.0
    %4310 = vmatprep.subr.mxu0 0.0
    %4311 = vmatpush1.xpose.msra.mxu0 0.0
    %4312 = vmatprep.subr.mxu0 0.0
    %4313 = vmatpush1.xpose.msra.mxu0 0.0
    %4314 = vmatprep.subr.mxu0 0.0
    %4315 = vmatpush1.xpose.msra.mxu0 0.0
    %4316 = vmatprep.subr.mxu0 0.0
    %4317 = vmatpush1.xpose.msra.mxu0 %v4284
    %4318 = vmatprep.subr.mxu0 0.0
    %4319 = vmatpush2.xpose.msra.mxu0 0.0
    %4320 = vmatprep.subr.mxu0 0.0
    %4321 = vmatpush2.xpose.msra.mxu0 0.0
    %4322 = vmatprep.subr.mxu0 0.0
    %4323 = vmatpush2.xpose.msra.mxu0 0.0
    %4324 = vmatprep.subr.mxu0 0.0
    %4325 = vmatpush2.xpose.msra.mxu0 0.0
    %4326 = vmatprep.subr.mxu0 0.0
    %4327 = vmatpush2.xpose.msra.mxu0 0.0
    %4328 = vmatprep.subr.mxu0 0.0
    %4329 = vmatpush2.xpose.msra.mxu0 0.0
    %4330 = vmatprep.subr.mxu0 0.0
    %4331 = vmatpush2.xpose.msra.mxu0 0.0
    %4332 = vmatprep.subr.mxu0 0.0
    %4333 = vmatpush2.xpose.msra.mxu0 0.0
    %4334 = vmatprep.subr.mxu0 0.0
    %4335 = vmatpush2.xpose.msra.mxu0 0.0
    %4336 = vmatprep.subr.mxu0 0.0
    %4337 = vmatpush2.xpose.msra.mxu0 0.0
    %4338 = vmatprep.subr.mxu0 0.0
    %4339 = vmatpush2.xpose.msra.mxu0 0.0
    %4340 = vmatprep.subr.mxu0 0.0
    %4341 = vmatpush2.xpose.msra.mxu0 0.0
    %4342 = vmatprep.subr.mxu0 0.0
    %4343 = vmatpush2.xpose.msra.mxu0 0.0
    %4344 = vmatprep.subr.mxu0 0.0
    %4345 = vmatpush2.xpose.msra.mxu0 0.0
    %4346 = vmatprep.subr.mxu0 0.0
    %4347 = vmatpush2.xpose.msra.mxu0 0.0
    %4348 = vmatprep.subr.mxu0 0.0
    %4349 = vmatpush2.xpose.msra.mxu0 0.0
    %4350 = vmatprep.mubr.f32.mxu0 0.0
    %4351 = vmatmul.mubr.f32.gmra.mxu0 %v4282
    %v4352 = vpop.f32.mrf.mxu0
    %v4353 = vadd.f32 0.0, %v4352
    %v4354 = vpop.f32.mrf.mxu0
    %4355 = vdwg.mxu0
    %v4356 = vmul.f32 %v4275, 0.35355338
    %v4357 = vmul.f32 %v4353, 0.35355338
    %v4358 = vadd.f32 %v4356, %v380
    %v4359 = vadd.f32 %v4357, %v384
    %v4360 = vsel %vm221, %v4358, -inf
    %4361 = vmax.xlane.f32.xlu0 %v4360
    %v4362 = vpop.xlane.xlu0 %4361
    %v4363 = vsel %vm221, %v4359, -inf
    %4364 = vmax.xlane.f32.xlu0 %v4363
    %v4365 = vpop.xlane.xlu0 %4364
    %v4366 = vsub.f32 %v4358, %v4362
    %v4367 = vsub.f32 %v4359, %v4365
    %v4368 = vmul.f32 %v4366, 1.442695
    %v4369 = vpow.pop %v4368
    %v4370 = vmul.f32 %v4367, 1.442695
    %v4371 = vpow.pop %v4370
    %v4372 = vsel %vm221, %v4369, 0.0
    %4373 = vadd.xlane.f32.xlu0 %v4372
    %v4374 = vpop.xlane.xlu0 %4373
    %v4375 = vsel %vm221, %v4371, 0.0
    %4376 = vadd.xlane.f32.xlu0 %v4375
    %v4377 = vpop.xlane.xlu0 %4376
    %v4378 = vrcp.pop %v4374
    %v4379 = vrcp.pop %v4377
    %v4380 = vmul.f32 %v4369, %v4378
    %v4381 = vmul.f32 %v4371, %v4379
    %v4383 = vsel %vm221, %v4380, 0
    %4385 = vmatprep.subr.mxu0 0.0
    %4386 = vmatpush1.msra.mxu0 0.0
    %4387 = vmatprep.subr.mxu0 0.0
    %4388 = vmatpush1.msra.mxu0 0.0
    %4389 = vmatprep.subr.mxu0 0.0
    %4390 = vmatpush1.msra.mxu0 0.0
    %4391 = vmatprep.subr.mxu0 0.0
    %4392 = vmatpush1.msra.mxu0 0.0
    %4393 = vmatprep.subr.mxu0 0.0
    %4394 = vmatpush1.msra.mxu0 0.0
    %4395 = vmatprep.subr.mxu0 0.0
    %4396 = vmatpush1.msra.mxu0 0.0
    %4397 = vmatprep.subr.mxu0 0.0
    %4398 = vmatpush1.msra.mxu0 0.0
    %4399 = vmatprep.subr.mxu0 0.0
    %4400 = vmatpush1.msra.mxu0 0.0
    %4401 = vmatprep.subr.mxu0 0.0
    %4402 = vmatpush1.msra.mxu0 0.0
    %4403 = vmatprep.subr.mxu0 0.0
    %4404 = vmatpush1.msra.mxu0 0.0
    %4405 = vmatprep.subr.mxu0 0.0
    %4406 = vmatpush1.msra.mxu0 0.0
    %4407 = vmatprep.subr.mxu0 0.0
    %4408 = vmatpush1.msra.mxu0 0.0
    %4409 = vmatprep.subr.mxu0 0.0
    %4410 = vmatpush1.msra.mxu0 0.0
    %4411 = vmatprep.subr.mxu0 0.0
    %4412 = vmatpush1.msra.mxu0 0.0
    %4413 = vmatprep.subr.mxu0 0.0
    %4414 = vmatpush1.msra.mxu0 0.0
    %4415 = vmatprep.subr.mxu0 0.0
    %4416 = vmatpush1.msra.mxu0 %v4045
    %4417 = vmatprep.subr.mxu0 0.0
    %4418 = vmatpush2.msra.mxu0 0.0
    %4419 = vmatprep.subr.mxu0 0.0
    %4420 = vmatpush2.msra.mxu0 0.0
    %4421 = vmatprep.subr.mxu0 0.0
    %4422 = vmatpush2.msra.mxu0 0.0
    %4423 = vmatprep.subr.mxu0 0.0
    %4424 = vmatpush2.msra.mxu0 0.0
    %4425 = vmatprep.subr.mxu0 0.0
    %4426 = vmatpush2.msra.mxu0 0.0
    %4427 = vmatprep.subr.mxu0 0.0
    %4428 = vmatpush2.msra.mxu0 0.0
    %4429 = vmatprep.subr.mxu0 0.0
    %4430 = vmatpush2.msra.mxu0 0.0
    %4431 = vmatprep.subr.mxu0 0.0
    %4432 = vmatpush2.msra.mxu0 0.0
    %4433 = vmatprep.subr.mxu0 0.0
    %4434 = vmatpush2.msra.mxu0 0.0
    %4435 = vmatprep.subr.mxu0 0.0
    %4436 = vmatpush2.msra.mxu0 0.0
    %4437 = vmatprep.subr.mxu0 0.0
    %4438 = vmatpush2.msra.mxu0 0.0
    %4439 = vmatprep.subr.mxu0 0.0
    %4440 = vmatpush2.msra.mxu0 0.0
    %4441 = vmatprep.subr.mxu0 0.0
    %4442 = vmatpush2.msra.mxu0 0.0
    %4443 = vmatprep.subr.mxu0 0.0
    %4444 = vmatpush2.msra.mxu0 0.0
    %4445 = vmatprep.subr.mxu0 0.0
    %4446 = vmatpush2.msra.mxu0 0.0
    %4447 = vmatprep.subr.mxu0 0.0
    %4448 = vmatpush2.msra.mxu0 0.0
    %4449 = vmatprep.mubr.f32.mxu0 0.0
    %4450 = vmatmul.mubr.f32.gmra.mxu0 %v4383
    %v4451 = vpop.f32.mrf.mxu0
    %v4452 = vadd.f32 0.0, %v4451
    %v4453 = vpop.f32.mrf.mxu0
    %4454 = vdwg.mxu0
    %v4456 = vsel %vm221, %v4381, 0
    %4458 = vmatprep.subr.mxu0 0.0
    %4459 = vmatpush1.msra.mxu0 0.0
    %4460 = vmatprep.subr.mxu0 0.0
    %4461 = vmatpush1.msra.mxu0 0.0
    %4462 = vmatprep.subr.mxu0 0.0
    %4463 = vmatpush1.msra.mxu0 0.0
    %4464 = vmatprep.subr.mxu0 0.0
    %4465 = vmatpush1.msra.mxu0 0.0
    %4466 = vmatprep.subr.mxu0 0.0
    %4467 = vmatpush1.msra.mxu0 0.0
    %4468 = vmatprep.subr.mxu0 0.0
    %4469 = vmatpush1.msra.mxu0 0.0
    %4470 = vmatprep.subr.mxu0 0.0
    %4471 = vmatpush1.msra.mxu0 0.0
    %4472 = vmatprep.subr.mxu0 0.0
    %4473 = vmatpush1.msra.mxu0 0.0
    %4474 = vmatprep.subr.mxu0 0.0
    %4475 = vmatpush1.msra.mxu0 0.0
    %4476 = vmatprep.subr.mxu0 0.0
    %4477 = vmatpush1.msra.mxu0 0.0
    %4478 = vmatprep.subr.mxu0 0.0
    %4479 = vmatpush1.msra.mxu0 0.0
    %4480 = vmatprep.subr.mxu0 0.0
    %4481 = vmatpush1.msra.mxu0 0.0
    %4482 = vmatprep.subr.mxu0 0.0
    %4483 = vmatpush1.msra.mxu0 0.0
    %4484 = vmatprep.subr.mxu0 0.0
    %4485 = vmatpush1.msra.mxu0 0.0
    %4486 = vmatprep.subr.mxu0 0.0
    %4487 = vmatpush1.msra.mxu0 0.0
    %4488 = vmatprep.subr.mxu0 0.0
    %4489 = vmatpush1.msra.mxu0 %v4121
    %4490 = vmatprep.subr.mxu0 0.0
    %4491 = vmatpush2.msra.mxu0 0.0
    %4492 = vmatprep.subr.mxu0 0.0
    %4493 = vmatpush2.msra.mxu0 0.0
    %4494 = vmatprep.subr.mxu0 0.0
    %4495 = vmatpush2.msra.mxu0 0.0
    %4496 = vmatprep.subr.mxu0 0.0
    %4497 = vmatpush2.msra.mxu0 0.0
    %4498 = vmatprep.subr.mxu0 0.0
    %4499 = vmatpush2.msra.mxu0 0.0
    %4500 = vmatprep.subr.mxu0 0.0
    %4501 = vmatpush2.msra.mxu0 0.0
    %4502 = vmatprep.subr.mxu0 0.0
    %4503 = vmatpush2.msra.mxu0 0.0
    %4504 = vmatprep.subr.mxu0 0.0
    %4505 = vmatpush2.msra.mxu0 0.0
    %4506 = vmatprep.subr.mxu0 0.0
    %4507 = vmatpush2.msra.mxu0 0.0
    %4508 = vmatprep.subr.mxu0 0.0
    %4509 = vmatpush2.msra.mxu0 0.0
    %4510 = vmatprep.subr.mxu0 0.0
    %4511 = vmatpush2.msra.mxu0 0.0
    %4512 = vmatprep.subr.mxu0 0.0
    %4513 = vmatpush2.msra.mxu0 0.0
    %4514 = vmatprep.subr.mxu0 0.0
    %4515 = vmatpush2.msra.mxu0 0.0
    %4516 = vmatprep.subr.mxu0 0.0
    %4517 = vmatpush2.msra.mxu0 0.0
    %4518 = vmatprep.subr.mxu0 0.0
    %4519 = vmatpush2.msra.mxu0 0.0
    %4520 = vmatprep.subr.mxu0 0.0
    %4521 = vmatpush2.msra.mxu0 0.0
    %4522 = vmatprep.mubr.f32.mxu0 0.0
    %4523 = vmatmul.mubr.f32.gmra.mxu0 %v4456
    %v4524 = vpop.f32.mrf.mxu0
    %v4525 = vadd.f32 0.0, %v4524
    %v4526 = vpop.f32.mrf.mxu0
    %4527 = vdwg.mxu0
    %v4528 = vmul.f32 %v4452, %v71
    %v4529 = vmul.f32 %v4525, %v71
    %v4530 = vadd.f32 %v4198, %v4528
    %v4531 = vadd.f32 %v4199, %v4529
    %4532 = vrot.lane.b32.xlu0 %v3858, 112
    %v4533 = vpop.permute.xlu0 %4532
    %4534 = vrot.lane.b32.xlu0 %v3858, 80
    %v4535 = vpop.permute.xlu0 %4534
    %v4536 = vsel %vm221, %v4533, 0
    %v4538 = vsel %vm221, %v4535, 0
    %4540 = vmatprep.subr.mxu0 0.0
    %4541 = vmatpush1.xpose.msra.mxu0 0.0
    %4542 = vmatprep.subr.mxu0 0.0
    %4543 = vmatpush1.xpose.msra.mxu0 0.0
    %4544 = vmatprep.subr.mxu0 0.0
    %4545 = vmatpush1.xpose.msra.mxu0 0.0
    %4546 = vmatprep.subr.mxu0 0.0
    %4547 = vmatpush1.xpose.msra.mxu0 0.0
    %4548 = vmatprep.subr.mxu0 0.0
    %4549 = vmatpush1.xpose.msra.mxu0 0.0
    %4550 = vmatprep.subr.mxu0 0.0
    %4551 = vmatpush1.xpose.msra.mxu0 0.0
    %4552 = vmatprep.subr.mxu0 0.0
    %4553 = vmatpush1.xpose.msra.mxu0 0.0
    %4554 = vmatprep.subr.mxu0 0.0
    %4555 = vmatpush1.xpose.msra.mxu0 0.0
    %4556 = vmatprep.subr.mxu0 0.0
    %4557 = vmatpush1.xpose.msra.mxu0 0.0
    %4558 = vmatprep.subr.mxu0 0.0
    %4559 = vmatpush1.xpose.msra.mxu0 0.0
    %4560 = vmatprep.subr.mxu0 0.0
    %4561 = vmatpush1.xpose.msra.mxu0 0.0
    %4562 = vmatprep.subr.mxu0 0.0
    %4563 = vmatpush1.xpose.msra.mxu0 0.0
    %4564 = vmatprep.subr.mxu0 0.0
    %4565 = vmatpush1.xpose.msra.mxu0 0.0
    %4566 = vmatprep.subr.mxu0 0.0
    %4567 = vmatpush1.xpose.msra.mxu0 0.0
    %4568 = vmatprep.subr.mxu0 0.0
    %4569 = vmatpush1.xpose.msra.mxu0 0.0
    %4570 = vmatprep.subr.mxu0 0.0
    %4571 = vmatpush1.xpose.msra.mxu0 %v4538
    %4572 = vmatprep.subr.mxu0 0.0
    %4573 = vmatpush2.xpose.msra.mxu0 0.0
    %4574 = vmatprep.subr.mxu0 0.0
    %4575 = vmatpush2.xpose.msra.mxu0 0.0
    %4576 = vmatprep.subr.mxu0 0.0
    %4577 = vmatpush2.xpose.msra.mxu0 0.0
    %4578 = vmatprep.subr.mxu0 0.0
    %4579 = vmatpush2.xpose.msra.mxu0 0.0
    %4580 = vmatprep.subr.mxu0 0.0
    %4581 = vmatpush2.xpose.msra.mxu0 0.0
    %4582 = vmatprep.subr.mxu0 0.0
    %4583 = vmatpush2.xpose.msra.mxu0 0.0
    %4584 = vmatprep.subr.mxu0 0.0
    %4585 = vmatpush2.xpose.msra.mxu0 0.0
    %4586 = vmatprep.subr.mxu0 0.0
    %4587 = vmatpush2.xpose.msra.mxu0 0.0
    %4588 = vmatprep.subr.mxu0 0.0
    %4589 = vmatpush2.xpose.msra.mxu0 0.0
    %4590 = vmatprep.subr.mxu0 0.0
    %4591 = vmatpush2.xpose.msra.mxu0 0.0
    %4592 = vmatprep.subr.mxu0 0.0
    %4593 = vmatpush2.xpose.msra.mxu0 0.0
    %4594 = vmatprep.subr.mxu0 0.0
    %4595 = vmatpush2.xpose.msra.mxu0 0.0
    %4596 = vmatprep.subr.mxu0 0.0
    %4597 = vmatpush2.xpose.msra.mxu0 0.0
    %4598 = vmatprep.subr.mxu0 0.0
    %4599 = vmatpush2.xpose.msra.mxu0 0.0
    %4600 = vmatprep.subr.mxu0 0.0
    %4601 = vmatpush2.xpose.msra.mxu0 0.0
    %4602 = vmatprep.subr.mxu0 0.0
    %4603 = vmatpush2.xpose.msra.mxu0 0.0
    %4604 = vmatprep.mubr.f32.mxu0 0.0
    %4605 = vmatmul.mubr.f32.gmra.mxu0 %v4536
    %v4606 = vpop.f32.mrf.mxu0
    %v4607 = vadd.f32 0.0, %v4606
    %v4608 = vpop.f32.mrf.mxu0
    %4609 = vdwg.mxu0
    %4610 = vrot.lane.b32.xlu0 %v3861, 112
    %v4611 = vpop.permute.xlu0 %4610
    %4612 = vrot.lane.b32.xlu0 %v3861, 80
    %v4613 = vpop.permute.xlu0 %4612
    %v4614 = vsel %vm221, %v4611, 0
    %v4616 = vsel %vm221, %v4613, 0
    %4618 = vmatprep.subr.mxu0 0.0
    %4619 = vmatpush1.xpose.msra.mxu0 0.0
    %4620 = vmatprep.subr.mxu0 0.0
    %4621 = vmatpush1.xpose.msra.mxu0 0.0
    %4622 = vmatprep.subr.mxu0 0.0
    %4623 = vmatpush1.xpose.msra.mxu0 0.0
    %4624 = vmatprep.subr.mxu0 0.0
    %4625 = vmatpush1.xpose.msra.mxu0 0.0
    %4626 = vmatprep.subr.mxu0 0.0
    %4627 = vmatpush1.xpose.msra.mxu0 0.0
    %4628 = vmatprep.subr.mxu0 0.0
    %4629 = vmatpush1.xpose.msra.mxu0 0.0
    %4630 = vmatprep.subr.mxu0 0.0
    %4631 = vmatpush1.xpose.msra.mxu0 0.0
    %4632 = vmatprep.subr.mxu0 0.0
    %4633 = vmatpush1.xpose.msra.mxu0 0.0
    %4634 = vmatprep.subr.mxu0 0.0
    %4635 = vmatpush1.xpose.msra.mxu0 0.0
    %4636 = vmatprep.subr.mxu0 0.0
    %4637 = vmatpush1.xpose.msra.mxu0 0.0
    %4638 = vmatprep.subr.mxu0 0.0
    %4639 = vmatpush1.xpose.msra.mxu0 0.0
    %4640 = vmatprep.subr.mxu0 0.0
    %4641 = vmatpush1.xpose.msra.mxu0 0.0
    %4642 = vmatprep.subr.mxu0 0.0
    %4643 = vmatpush1.xpose.msra.mxu0 0.0
    %4644 = vmatprep.subr.mxu0 0.0
    %4645 = vmatpush1.xpose.msra.mxu0 0.0
    %4646 = vmatprep.subr.mxu0 0.0
    %4647 = vmatpush1.xpose.msra.mxu0 0.0
    %4648 = vmatprep.subr.mxu0 0.0
    %4649 = vmatpush1.xpose.msra.mxu0 %v4616
    %4650 = vmatprep.subr.mxu0 0.0
    %4651 = vmatpush2.xpose.msra.mxu0 0.0
    %4652 = vmatprep.subr.mxu0 0.0
    %4653 = vmatpush2.xpose.msra.mxu0 0.0
    %4654 = vmatprep.subr.mxu0 0.0
    %4655 = vmatpush2.xpose.msra.mxu0 0.0
    %4656 = vmatprep.subr.mxu0 0.0
    %4657 = vmatpush2.xpose.msra.mxu0 0.0
    %4658 = vmatprep.subr.mxu0 0.0
    %4659 = vmatpush2.xpose.msra.mxu0 0.0
    %4660 = vmatprep.subr.mxu0 0.0
    %4661 = vmatpush2.xpose.msra.mxu0 0.0
    %4662 = vmatprep.subr.mxu0 0.0
    %4663 = vmatpush2.xpose.msra.mxu0 0.0
    %4664 = vmatprep.subr.mxu0 0.0
    %4665 = vmatpush2.xpose.msra.mxu0 0.0
    %4666 = vmatprep.subr.mxu0 0.0
    %4667 = vmatpush2.xpose.msra.mxu0 0.0
    %4668 = vmatprep.subr.mxu0 0.0
    %4669 = vmatpush2.xpose.msra.mxu0 0.0
    %4670 = vmatprep.subr.mxu0 0.0
    %4671 = vmatpush2.xpose.msra.mxu0 0.0
    %4672 = vmatprep.subr.mxu0 0.0
    %4673 = vmatpush2.xpose.msra.mxu0 0.0
    %4674 = vmatprep.subr.mxu0 0.0
    %4675 = vmatpush2.xpose.msra.mxu0 0.0
    %4676 = vmatprep.subr.mxu0 0.0
    %4677 = vmatpush2.xpose.msra.mxu0 0.0
    %4678 = vmatprep.subr.mxu0 0.0
    %4679 = vmatpush2.xpose.msra.mxu0 0.0
    %4680 = vmatprep.subr.mxu0 0.0
    %4681 = vmatpush2.xpose.msra.mxu0 0.0
    %4682 = vmatprep.mubr.f32.mxu0 0.0
    %4683 = vmatmul.mubr.f32.gmra.mxu0 %v4614
    %v4684 = vpop.f32.mrf.mxu0
    %v4685 = vadd.f32 0.0, %v4684
    %v4686 = vpop.f32.mrf.mxu0
    %4687 = vdwg.mxu0
    %v4688 = vmul.f32 %v4607, 0.35355338
    %v4689 = vmul.f32 %v4685, 0.35355338
    %v4690 = vadd.f32 %v4688, %v380
    %v4691 = vadd.f32 %v4689, %v384
    %v4692 = vsel %vm221, %v4690, -inf
    %4693 = vmax.xlane.f32.xlu0 %v4692
    %v4694 = vpop.xlane.xlu0 %4693
    %v4695 = vsel %vm221, %v4691, -inf
    %4696 = vmax.xlane.f32.xlu0 %v4695
    %v4697 = vpop.xlane.xlu0 %4696
    %v4698 = vsub.f32 %v4690, %v4694
    %v4699 = vsub.f32 %v4691, %v4697
    %v4700 = vmul.f32 %v4698, 1.442695
    %v4701 = vpow.pop %v4700
    %v4702 = vmul.f32 %v4699, 1.442695
    %v4703 = vpow.pop %v4702
    %v4704 = vsel %vm221, %v4701, 0.0
    %4705 = vadd.xlane.f32.xlu0 %v4704
    %v4706 = vpop.xlane.xlu0 %4705
    %v4707 = vsel %vm221, %v4703, 0.0
    %4708 = vadd.xlane.f32.xlu0 %v4707
    %v4709 = vpop.xlane.xlu0 %4708
    %v4710 = vrcp.pop %v4706
    %v4711 = vrcp.pop %v4709
    %v4712 = vmul.f32 %v4701, %v4710
    %v4713 = vmul.f32 %v4703, %v4711
    %v4715 = vsel %vm221, %v4712, 0
    %4717 = vmatprep.subr.mxu0 0.0
    %4718 = vmatpush1.msra.mxu0 0.0
    %4719 = vmatprep.subr.mxu0 0.0
    %4720 = vmatpush1.msra.mxu0 0.0
    %4721 = vmatprep.subr.mxu0 0.0
    %4722 = vmatpush1.msra.mxu0 0.0
    %4723 = vmatprep.subr.mxu0 0.0
    %4724 = vmatpush1.msra.mxu0 0.0
    %4725 = vmatprep.subr.mxu0 0.0
    %4726 = vmatpush1.msra.mxu0 0.0
    %4727 = vmatprep.subr.mxu0 0.0
    %4728 = vmatpush1.msra.mxu0 0.0
    %4729 = vmatprep.subr.mxu0 0.0
    %4730 = vmatpush1.msra.mxu0 0.0
    %4731 = vmatprep.subr.mxu0 0.0
    %4732 = vmatpush1.msra.mxu0 0.0
    %4733 = vmatprep.subr.mxu0 0.0
    %4734 = vmatpush1.msra.mxu0 0.0
    %4735 = vmatprep.subr.mxu0 0.0
    %4736 = vmatpush1.msra.mxu0 0.0
    %4737 = vmatprep.subr.mxu0 0.0
    %4738 = vmatpush1.msra.mxu0 0.0
    %4739 = vmatprep.subr.mxu0 0.0
    %4740 = vmatpush1.msra.mxu0 0.0
    %4741 = vmatprep.subr.mxu0 0.0
    %4742 = vmatpush1.msra.mxu0 0.0
    %4743 = vmatprep.subr.mxu0 0.0
    %4744 = vmatpush1.msra.mxu0 0.0
    %4745 = vmatprep.subr.mxu0 0.0
    %4746 = vmatpush1.msra.mxu0 0.0
    %4747 = vmatprep.subr.mxu0 0.0
    %4748 = vmatpush1.msra.mxu0 %v4045
    %4749 = vmatprep.subr.mxu0 0.0
    %4750 = vmatpush2.msra.mxu0 0.0
    %4751 = vmatprep.subr.mxu0 0.0
    %4752 = vmatpush2.msra.mxu0 0.0
    %4753 = vmatprep.subr.mxu0 0.0
    %4754 = vmatpush2.msra.mxu0 0.0
    %4755 = vmatprep.subr.mxu0 0.0
    %4756 = vmatpush2.msra.mxu0 0.0
    %4757 = vmatprep.subr.mxu0 0.0
    %4758 = vmatpush2.msra.mxu0 0.0
    %4759 = vmatprep.subr.mxu0 0.0
    %4760 = vmatpush2.msra.mxu0 0.0
    %4761 = vmatprep.subr.mxu0 0.0
    %4762 = vmatpush2.msra.mxu0 0.0
    %4763 = vmatprep.subr.mxu0 0.0
    %4764 = vmatpush2.msra.mxu0 0.0
    %4765 = vmatprep.subr.mxu0 0.0
    %4766 = vmatpush2.msra.mxu0 0.0
    %4767 = vmatprep.subr.mxu0 0.0
    %4768 = vmatpush2.msra.mxu0 0.0
    %4769 = vmatprep.subr.mxu0 0.0
    %4770 = vmatpush2.msra.mxu0 0.0
    %4771 = vmatprep.subr.mxu0 0.0
    %4772 = vmatpush2.msra.mxu0 0.0
    %4773 = vmatprep.subr.mxu0 0.0
    %4774 = vmatpush2.msra.mxu0 0.0
    %4775 = vmatprep.subr.mxu0 0.0
    %4776 = vmatpush2.msra.mxu0 0.0
    %4777 = vmatprep.subr.mxu0 0.0
    %4778 = vmatpush2.msra.mxu0 0.0
    %4779 = vmatprep.subr.mxu0 0.0
    %4780 = vmatpush2.msra.mxu0 0.0
    %4781 = vmatprep.mubr.f32.mxu0 0.0
    %4782 = vmatmul.mubr.f32.gmra.mxu0 %v4715
    %v4783 = vpop.f32.mrf.mxu0
    %v4784 = vadd.f32 0.0, %v4783
    %v4785 = vpop.f32.mrf.mxu0
    %4786 = vdwg.mxu0
    %v4788 = vsel %vm221, %v4713, 0
    %4790 = vmatprep.subr.mxu0 0.0
    %4791 = vmatpush1.msra.mxu0 0.0
    %4792 = vmatprep.subr.mxu0 0.0
    %4793 = vmatpush1.msra.mxu0 0.0
    %4794 = vmatprep.subr.mxu0 0.0
    %4795 = vmatpush1.msra.mxu0 0.0
    %4796 = vmatprep.subr.mxu0 0.0
    %4797 = vmatpush1.msra.mxu0 0.0
    %4798 = vmatprep.subr.mxu0 0.0
    %4799 = vmatpush1.msra.mxu0 0.0
    %4800 = vmatprep.subr.mxu0 0.0
    %4801 = vmatpush1.msra.mxu0 0.0
    %4802 = vmatprep.subr.mxu0 0.0
    %4803 = vmatpush1.msra.mxu0 0.0
    %4804 = vmatprep.subr.mxu0 0.0
    %4805 = vmatpush1.msra.mxu0 0.0
    %4806 = vmatprep.subr.mxu0 0.0
    %4807 = vmatpush1.msra.mxu0 0.0
    %4808 = vmatprep.subr.mxu0 0.0
    %4809 = vmatpush1.msra.mxu0 0.0
    %4810 = vmatprep.subr.mxu0 0.0
    %4811 = vmatpush1.msra.mxu0 0.0
    %4812 = vmatprep.subr.mxu0 0.0
    %4813 = vmatpush1.msra.mxu0 0.0
    %4814 = vmatprep.subr.mxu0 0.0
    %4815 = vmatpush1.msra.mxu0 0.0
    %4816 = vmatprep.subr.mxu0 0.0
    %4817 = vmatpush1.msra.mxu0 0.0
    %4818 = vmatprep.subr.mxu0 0.0
    %4819 = vmatpush1.msra.mxu0 0.0
    %4820 = vmatprep.subr.mxu0 0.0
    %4821 = vmatpush1.msra.mxu0 %v4121
    %4822 = vmatprep.subr.mxu0 0.0
    %4823 = vmatpush2.msra.mxu0 0.0
    %4824 = vmatprep.subr.mxu0 0.0
    %4825 = vmatpush2.msra.mxu0 0.0
    %4826 = vmatprep.subr.mxu0 0.0
    %4827 = vmatpush2.msra.mxu0 0.0
    %4828 = vmatprep.subr.mxu0 0.0
    %4829 = vmatpush2.msra.mxu0 0.0
    %4830 = vmatprep.subr.mxu0 0.0
    %4831 = vmatpush2.msra.mxu0 0.0
    %4832 = vmatprep.subr.mxu0 0.0
    %4833 = vmatpush2.msra.mxu0 0.0
    %4834 = vmatprep.subr.mxu0 0.0
    %4835 = vmatpush2.msra.mxu0 0.0
    %4836 = vmatprep.subr.mxu0 0.0
    %4837 = vmatpush2.msra.mxu0 0.0
    %4838 = vmatprep.subr.mxu0 0.0
    %4839 = vmatpush2.msra.mxu0 0.0
    %4840 = vmatprep.subr.mxu0 0.0
    %4841 = vmatpush2.msra.mxu0 0.0
    %4842 = vmatprep.subr.mxu0 0.0
    %4843 = vmatpush2.msra.mxu0 0.0
    %4844 = vmatprep.subr.mxu0 0.0
    %4845 = vmatpush2.msra.mxu0 0.0
    %4846 = vmatprep.subr.mxu0 0.0
    %4847 = vmatpush2.msra.mxu0 0.0
    %4848 = vmatprep.subr.mxu0 0.0
    %4849 = vmatpush2.msra.mxu0 0.0
    %4850 = vmatprep.subr.mxu0 0.0
    %4851 = vmatpush2.msra.mxu0 0.0
    %4852 = vmatprep.subr.mxu0 0.0
    %4853 = vmatpush2.msra.mxu0 0.0
    %4854 = vmatprep.mubr.f32.mxu0 0.0
    %4855 = vmatmul.mubr.f32.gmra.mxu0 %v4788
    %v4856 = vpop.f32.mrf.mxu0
    %v4857 = vadd.f32 0.0, %v4856
    %v4858 = vpop.f32.mrf.mxu0
    %4859 = vdwg.mxu0
    %v4860 = vmul.f32 %v4784, %v76
    %v4861 = vmul.f32 %v4857, %v76
    %v4862 = vadd.f32 %v4530, %v4860
    %v4863 = vadd.f32 %v4531, %v4861
    %4864 = vrot.lane.b32.xlu0 %v3858, 104
    %v4865 = vpop.permute.xlu0 %4864
    %4866 = vrot.lane.b32.xlu0 %v3858, 72
    %v4867 = vpop.permute.xlu0 %4866
    %v4868 = vsel %vm221, %v4865, 0
    %v4870 = vsel %vm221, %v4867, 0
    %4872 = vmatprep.subr.mxu0 0.0
    %4873 = vmatpush1.xpose.msra.mxu0 0.0
    %4874 = vmatprep.subr.mxu0 0.0
    %4875 = vmatpush1.xpose.msra.mxu0 0.0
    %4876 = vmatprep.subr.mxu0 0.0
    %4877 = vmatpush1.xpose.msra.mxu0 0.0
    %4878 = vmatprep.subr.mxu0 0.0
    %4879 = vmatpush1.xpose.msra.mxu0 0.0
    %4880 = vmatprep.subr.mxu0 0.0
    %4881 = vmatpush1.xpose.msra.mxu0 0.0
    %4882 = vmatprep.subr.mxu0 0.0
    %4883 = vmatpush1.xpose.msra.mxu0 0.0
    %4884 = vmatprep.subr.mxu0 0.0
    %4885 = vmatpush1.xpose.msra.mxu0 0.0
    %4886 = vmatprep.subr.mxu0 0.0
    %4887 = vmatpush1.xpose.msra.mxu0 0.0
    %4888 = vmatprep.subr.mxu0 0.0
    %4889 = vmatpush1.xpose.msra.mxu0 0.0
    %4890 = vmatprep.subr.mxu0 0.0
    %4891 = vmatpush1.xpose.msra.mxu0 0.0
    %4892 = vmatprep.subr.mxu0 0.0
    %4893 = vmatpush1.xpose.msra.mxu0 0.0
    %4894 = vmatprep.subr.mxu0 0.0
    %4895 = vmatpush1.xpose.msra.mxu0 0.0
    %4896 = vmatprep.subr.mxu0 0.0
    %4897 = vmatpush1.xpose.msra.mxu0 0.0
    %4898 = vmatprep.subr.mxu0 0.0
    %4899 = vmatpush1.xpose.msra.mxu0 0.0
    %4900 = vmatprep.subr.mxu0 0.0
    %4901 = vmatpush1.xpose.msra.mxu0 0.0
    %4902 = vmatprep.subr.mxu0 0.0
    %4903 = vmatpush1.xpose.msra.mxu0 %v4870
    %4904 = vmatprep.subr.mxu0 0.0
    %4905 = vmatpush2.xpose.msra.mxu0 0.0
    %4906 = vmatprep.subr.mxu0 0.0
    %4907 = vmatpush2.xpose.msra.mxu0 0.0
    %4908 = vmatprep.subr.mxu0 0.0
    %4909 = vmatpush2.xpose.msra.mxu0 0.0
    %4910 = vmatprep.subr.mxu0 0.0
    %4911 = vmatpush2.xpose.msra.mxu0 0.0
    %4912 = vmatprep.subr.mxu0 0.0
    %4913 = vmatpush2.xpose.msra.mxu0 0.0
    %4914 = vmatprep.subr.mxu0 0.0
    %4915 = vmatpush2.xpose.msra.mxu0 0.0
    %4916 = vmatprep.subr.mxu0 0.0
    %4917 = vmatpush2.xpose.msra.mxu0 0.0
    %4918 = vmatprep.subr.mxu0 0.0
    %4919 = vmatpush2.xpose.msra.mxu0 0.0
    %4920 = vmatprep.subr.mxu0 0.0
    %4921 = vmatpush2.xpose.msra.mxu0 0.0
    %4922 = vmatprep.subr.mxu0 0.0
    %4923 = vmatpush2.xpose.msra.mxu0 0.0
    %4924 = vmatprep.subr.mxu0 0.0
    %4925 = vmatpush2.xpose.msra.mxu0 0.0
    %4926 = vmatprep.subr.mxu0 0.0
    %4927 = vmatpush2.xpose.msra.mxu0 0.0
    %4928 = vmatprep.subr.mxu0 0.0
    %4929 = vmatpush2.xpose.msra.mxu0 0.0
    %4930 = vmatprep.subr.mxu0 0.0
    %4931 = vmatpush2.xpose.msra.mxu0 0.0
    %4932 = vmatprep.subr.mxu0 0.0
    %4933 = vmatpush2.xpose.msra.mxu0 0.0
    %4934 = vmatprep.subr.mxu0 0.0
    %4935 = vmatpush2.xpose.msra.mxu0 0.0
    %4936 = vmatprep.mubr.f32.mxu0 0.0
    %4937 = vmatmul.mubr.f32.gmra.mxu0 %v4868
    %v4938 = vpop.f32.mrf.mxu0
    %v4939 = vadd.f32 0.0, %v4938
    %v4940 = vpop.f32.mrf.mxu0
    %4941 = vdwg.mxu0
    %4942 = vrot.lane.b32.xlu0 %v3861, 104
    %v4943 = vpop.permute.xlu0 %4942
    %4944 = vrot.lane.b32.xlu0 %v3861, 72
    %v4945 = vpop.permute.xlu0 %4944
    %v4946 = vsel %vm221, %v4943, 0
    %v4948 = vsel %vm221, %v4945, 0
    %4950 = vmatprep.subr.mxu0 0.0
    %4951 = vmatpush1.xpose.msra.mxu0 0.0
    %4952 = vmatprep.subr.mxu0 0.0
    %4953 = vmatpush1.xpose.msra.mxu0 0.0
    %4954 = vmatprep.subr.mxu0 0.0
    %4955 = vmatpush1.xpose.msra.mxu0 0.0
    %4956 = vmatprep.subr.mxu0 0.0
    %4957 = vmatpush1.xpose.msra.mxu0 0.0
    %4958 = vmatprep.subr.mxu0 0.0
    %4959 = vmatpush1.xpose.msra.mxu0 0.0
    %4960 = vmatprep.subr.mxu0 0.0
    %4961 = vmatpush1.xpose.msra.mxu0 0.0
    %4962 = vmatprep.subr.mxu0 0.0
    %4963 = vmatpush1.xpose.msra.mxu0 0.0
    %4964 = vmatprep.subr.mxu0 0.0
    %4965 = vmatpush1.xpose.msra.mxu0 0.0
    %4966 = vmatprep.subr.mxu0 0.0
    %4967 = vmatpush1.xpose.msra.mxu0 0.0
    %4968 = vmatprep.subr.mxu0 0.0
    %4969 = vmatpush1.xpose.msra.mxu0 0.0
    %4970 = vmatprep.subr.mxu0 0.0
    %4971 = vmatpush1.xpose.msra.mxu0 0.0
    %4972 = vmatprep.subr.mxu0 0.0
    %4973 = vmatpush1.xpose.msra.mxu0 0.0
    %4974 = vmatprep.subr.mxu0 0.0
    %4975 = vmatpush1.xpose.msra.mxu0 0.0
    %4976 = vmatprep.subr.mxu0 0.0
    %4977 = vmatpush1.xpose.msra.mxu0 0.0
    %4978 = vmatprep.subr.mxu0 0.0
    %4979 = vmatpush1.xpose.msra.mxu0 0.0
    %4980 = vmatprep.subr.mxu0 0.0
    %4981 = vmatpush1.xpose.msra.mxu0 %v4948
    %4982 = vmatprep.subr.mxu0 0.0
    %4983 = vmatpush2.xpose.msra.mxu0 0.0
    %4984 = vmatprep.subr.mxu0 0.0
    %4985 = vmatpush2.xpose.msra.mxu0 0.0
    %4986 = vmatprep.subr.mxu0 0.0
    %4987 = vmatpush2.xpose.msra.mxu0 0.0
    %4988 = vmatprep.subr.mxu0 0.0
    %4989 = vmatpush2.xpose.msra.mxu0 0.0
    %4990 = vmatprep.subr.mxu0 0.0
    %4991 = vmatpush2.xpose.msra.mxu0 0.0
    %4992 = vmatprep.subr.mxu0 0.0
    %4993 = vmatpush2.xpose.msra.mxu0 0.0
    %4994 = vmatprep.subr.mxu0 0.0
    %4995 = vmatpush2.xpose.msra.mxu0 0.0
    %4996 = vmatprep.subr.mxu0 0.0
    %4997 = vmatpush2.xpose.msra.mxu0 0.0
    %4998 = vmatprep.subr.mxu0 0.0
    %4999 = vmatpush2.xpose.msra.mxu0 0.0
    %5000 = vmatprep.subr.mxu0 0.0
    %5001 = vmatpush2.xpose.msra.mxu0 0.0
    %5002 = vmatprep.subr.mxu0 0.0
    %5003 = vmatpush2.xpose.msra.mxu0 0.0
    %5004 = vmatprep.subr.mxu0 0.0
    %5005 = vmatpush2.xpose.msra.mxu0 0.0
    %5006 = vmatprep.subr.mxu0 0.0
    %5007 = vmatpush2.xpose.msra.mxu0 0.0
    %5008 = vmatprep.subr.mxu0 0.0
    %5009 = vmatpush2.xpose.msra.mxu0 0.0
    %5010 = vmatprep.subr.mxu0 0.0
    %5011 = vmatpush2.xpose.msra.mxu0 0.0
    %5012 = vmatprep.subr.mxu0 0.0
    %5013 = vmatpush2.xpose.msra.mxu0 0.0
    %5014 = vmatprep.mubr.f32.mxu0 0.0
    %5015 = vmatmul.mubr.f32.gmra.mxu0 %v4946
    %v5016 = vpop.f32.mrf.mxu0
    %v5017 = vadd.f32 0.0, %v5016
    %v5018 = vpop.f32.mrf.mxu0
    %5019 = vdwg.mxu0
    %v5020 = vmul.f32 %v4939, 0.35355338
    %v5021 = vmul.f32 %v5017, 0.35355338
    %v5022 = vadd.f32 %v5020, %v380
    %v5023 = vadd.f32 %v5021, %v384
    %v5024 = vsel %vm221, %v5022, -inf
    %5025 = vmax.xlane.f32.xlu0 %v5024
    %v5026 = vpop.xlane.xlu0 %5025
    %v5027 = vsel %vm221, %v5023, -inf
    %5028 = vmax.xlane.f32.xlu0 %v5027
    %v5029 = vpop.xlane.xlu0 %5028
    %v5030 = vsub.f32 %v5022, %v5026
    %v5031 = vsub.f32 %v5023, %v5029
    %v5032 = vmul.f32 %v5030, 1.442695
    %v5033 = vpow.pop %v5032
    %v5034 = vmul.f32 %v5031, 1.442695
    %v5035 = vpow.pop %v5034
    %v5036 = vsel %vm221, %v5033, 0.0
    %5037 = vadd.xlane.f32.xlu0 %v5036
    %v5038 = vpop.xlane.xlu0 %5037
    %v5039 = vsel %vm221, %v5035, 0.0
    %5040 = vadd.xlane.f32.xlu0 %v5039
    %v5041 = vpop.xlane.xlu0 %5040
    %v5042 = vrcp.pop %v5038
    %v5043 = vrcp.pop %v5041
    %v5044 = vmul.f32 %v5033, %v5042
    %v5045 = vmul.f32 %v5035, %v5043
    %v5047 = vsel %vm221, %v5044, 0
    %5049 = vmatprep.subr.mxu0 0.0
    %5050 = vmatpush1.msra.mxu0 0.0
    %5051 = vmatprep.subr.mxu0 0.0
    %5052 = vmatpush1.msra.mxu0 0.0
    %5053 = vmatprep.subr.mxu0 0.0
    %5054 = vmatpush1.msra.mxu0 0.0
    %5055 = vmatprep.subr.mxu0 0.0
    %5056 = vmatpush1.msra.mxu0 0.0
    %5057 = vmatprep.subr.mxu0 0.0
    %5058 = vmatpush1.msra.mxu0 0.0
    %5059 = vmatprep.subr.mxu0 0.0
    %5060 = vmatpush1.msra.mxu0 0.0
    %5061 = vmatprep.subr.mxu0 0.0
    %5062 = vmatpush1.msra.mxu0 0.0
    %5063 = vmatprep.subr.mxu0 0.0
    %5064 = vmatpush1.msra.mxu0 0.0
    %5065 = vmatprep.subr.mxu0 0.0
    %5066 = vmatpush1.msra.mxu0 0.0
    %5067 = vmatprep.subr.mxu0 0.0
    %5068 = vmatpush1.msra.mxu0 0.0
    %5069 = vmatprep.subr.mxu0 0.0
    %5070 = vmatpush1.msra.mxu0 0.0
    %5071 = vmatprep.subr.mxu0 0.0
    %5072 = vmatpush1.msra.mxu0 0.0
    %5073 = vmatprep.subr.mxu0 0.0
    %5074 = vmatpush1.msra.mxu0 0.0
    %5075 = vmatprep.subr.mxu0 0.0
    %5076 = vmatpush1.msra.mxu0 0.0
    %5077 = vmatprep.subr.mxu0 0.0
    %5078 = vmatpush1.msra.mxu0 0.0
    %5079 = vmatprep.subr.mxu0 0.0
    %5080 = vmatpush1.msra.mxu0 %v4045
    %5081 = vmatprep.subr.mxu0 0.0
    %5082 = vmatpush2.msra.mxu0 0.0
    %5083 = vmatprep.subr.mxu0 0.0
    %5084 = vmatpush2.msra.mxu0 0.0
    %5085 = vmatprep.subr.mxu0 0.0
    %5086 = vmatpush2.msra.mxu0 0.0
    %5087 = vmatprep.subr.mxu0 0.0
    %5088 = vmatpush2.msra.mxu0 0.0
    %5089 = vmatprep.subr.mxu0 0.0
    %5090 = vmatpush2.msra.mxu0 0.0
    %5091 = vmatprep.subr.mxu0 0.0
    %5092 = vmatpush2.msra.mxu0 0.0
    %5093 = vmatprep.subr.mxu0 0.0
    %5094 = vmatpush2.msra.mxu0 0.0
    %5095 = vmatprep.subr.mxu0 0.0
    %5096 = vmatpush2.msra.mxu0 0.0
    %5097 = vmatprep.subr.mxu0 0.0
    %5098 = vmatpush2.msra.mxu0 0.0
    %5099 = vmatprep.subr.mxu0 0.0
    %5100 = vmatpush2.msra.mxu0 0.0
    %5101 = vmatprep.subr.mxu0 0.0
    %5102 = vmatpush2.msra.mxu0 0.0
    %5103 = vmatprep.subr.mxu0 0.0
    %5104 = vmatpush2.msra.mxu0 0.0
    %5105 = vmatprep.subr.mxu0 0.0
    %5106 = vmatpush2.msra.mxu0 0.0
    %5107 = vmatprep.subr.mxu0 0.0
    %5108 = vmatpush2.msra.mxu0 0.0
    %5109 = vmatprep.subr.mxu0 0.0
    %5110 = vmatpush2.msra.mxu0 0.0
    %5111 = vmatprep.subr.mxu0 0.0
    %5112 = vmatpush2.msra.mxu0 0.0
    %5113 = vmatprep.mubr.f32.mxu0 0.0
    %5114 = vmatmul.mubr.f32.gmra.mxu0 %v5047
    %v5115 = vpop.f32.mrf.mxu0
    %v5116 = vadd.f32 0.0, %v5115
    %v5117 = vpop.f32.mrf.mxu0
    %5118 = vdwg.mxu0
    %v5120 = vsel %vm221, %v5045, 0
    %5122 = vmatprep.subr.mxu0 0.0
    %5123 = vmatpush1.msra.mxu0 0.0
    %5124 = vmatprep.subr.mxu0 0.0
    %5125 = vmatpush1.msra.mxu0 0.0
    %5126 = vmatprep.subr.mxu0 0.0
    %5127 = vmatpush1.msra.mxu0 0.0
    %5128 = vmatprep.subr.mxu0 0.0
    %5129 = vmatpush1.msra.mxu0 0.0
    %5130 = vmatprep.subr.mxu0 0.0
    %5131 = vmatpush1.msra.mxu0 0.0
    %5132 = vmatprep.subr.mxu0 0.0
    %5133 = vmatpush1.msra.mxu0 0.0
    %5134 = vmatprep.subr.mxu0 0.0
    %5135 = vmatpush1.msra.mxu0 0.0
    %5136 = vmatprep.subr.mxu0 0.0
    %5137 = vmatpush1.msra.mxu0 0.0
    %5138 = vmatprep.subr.mxu0 0.0
    %5139 = vmatpush1.msra.mxu0 0.0
    %5140 = vmatprep.subr.mxu0 0.0
    %5141 = vmatpush1.msra.mxu0 0.0
    %5142 = vmatprep.subr.mxu0 0.0
    %5143 = vmatpush1.msra.mxu0 0.0
    %5144 = vmatprep.subr.mxu0 0.0
    %5145 = vmatpush1.msra.mxu0 0.0
    %5146 = vmatprep.subr.mxu0 0.0
    %5147 = vmatpush1.msra.mxu0 0.0
    %5148 = vmatprep.subr.mxu0 0.0
    %5149 = vmatpush1.msra.mxu0 0.0
    %5150 = vmatprep.subr.mxu0 0.0
    %5151 = vmatpush1.msra.mxu0 0.0
    %5152 = vmatprep.subr.mxu0 0.0
    %5153 = vmatpush1.msra.mxu0 %v4121
    %5154 = vmatprep.subr.mxu0 0.0
    %5155 = vmatpush2.msra.mxu0 0.0
    %5156 = vmatprep.subr.mxu0 0.0
    %5157 = vmatpush2.msra.mxu0 0.0
    %5158 = vmatprep.subr.mxu0 0.0
    %5159 = vmatpush2.msra.mxu0 0.0
    %5160 = vmatprep.subr.mxu0 0.0
    %5161 = vmatpush2.msra.mxu0 0.0
    %5162 = vmatprep.subr.mxu0 0.0
    %5163 = vmatpush2.msra.mxu0 0.0
    %5164 = vmatprep.subr.mxu0 0.0
    %5165 = vmatpush2.msra.mxu0 0.0
    %5166 = vmatprep.subr.mxu0 0.0
    %5167 = vmatpush2.msra.mxu0 0.0
    %5168 = vmatprep.subr.mxu0 0.0
    %5169 = vmatpush2.msra.mxu0 0.0
    %5170 = vmatprep.subr.mxu0 0.0
    %5171 = vmatpush2.msra.mxu0 0.0
    %5172 = vmatprep.subr.mxu0 0.0
    %5173 = vmatpush2.msra.mxu0 0.0
    %5174 = vmatprep.subr.mxu0 0.0
    %5175 = vmatpush2.msra.mxu0 0.0
    %5176 = vmatprep.subr.mxu0 0.0
    %5177 = vmatpush2.msra.mxu0 0.0
    %5178 = vmatprep.subr.mxu0 0.0
    %5179 = vmatpush2.msra.mxu0 0.0
    %5180 = vmatprep.subr.mxu0 0.0
    %5181 = vmatpush2.msra.mxu0 0.0
    %5182 = vmatprep.subr.mxu0 0.0
    %5183 = vmatpush2.msra.mxu0 0.0
    %5184 = vmatprep.subr.mxu0 0.0
    %5185 = vmatpush2.msra.mxu0 0.0
    %5186 = vmatprep.mubr.f32.mxu0 0.0
    %5187 = vmatmul.mubr.f32.gmra.mxu0 %v5120
    %v5188 = vpop.f32.mrf.mxu0
    %v5189 = vadd.f32 0.0, %v5188
    %v5190 = vpop.f32.mrf.mxu0
    %5191 = vdwg.mxu0
    %v5192 = vmul.f32 %v5116, %v81
    %v5193 = vmul.f32 %v5189, %v81
    %v5194 = vadd.f32 %v4862, %v5192
    %v5195 = vadd.f32 %v4863, %v5193
    %v5196 = vpack.c.bf16 %v5195, %v5194
    %s5197 = scalar_lea.vmem %s7, 16
    %v5198 = vld [vmem:[%s5197] sm:$0xf]
    %v5199 = vld [vmem:[%s5197 + $0x4] sm:$0xf]
    %v5200 = vld [vmem:[%s5197 + $0x8] sm:$0xf]
    %v5201 = vld [vmem:[%s5197 + $0xc] sm:$0xf]
    %s5202 = scalar_lea.vmem %s8, 1
    %v5203 = vld [vmem:[%s5202] sm:$0x1]
    %v5205 = vlaneseq
    %v5206 = vshrl.u32 %v5205, 7
    %v5207 = vsub.s32 0, %v5206
    %v5208 = vrot.slane %v5203, %v5207
    %v5214 = vunpack.c.l.b16 %v5198
    %v5215 = vunpack.c.l.b16 %v5199
    %v5216 = vunpack.c.l.b16 %v5200
    %v5217 = vunpack.c.l.b16 %v5201
    %v5218 = vpack.c.b16 %v5215, %v5214
    %v5219 = vpack.c.b16 %v5217, %v5216
    %v5223 = vsel %vm91, %v5196, 0
    %5225 = vmatprep.subr.bf16.mxu0 0
    %5226 = vmatpush1.bf16.msra.mxu0 0
    %5227 = vmatprep.subr.bf16.mxu0 0
    %5228 = vmatpush1.bf16.msra.mxu0 0
    %5229 = vmatprep.subr.bf16.mxu0 0
    %5230 = vmatpush1.bf16.msra.mxu0 0
    %5231 = vmatprep.subr.bf16.mxu0 0
    %5232 = vmatpush1.bf16.msra.mxu0 0
    %5233 = vmatprep.subr.bf16.mxu0 0
    %5234 = vmatpush1.bf16.msra.mxu0 0
    %5235 = vmatprep.subr.bf16.mxu0 0
    %5236 = vmatpush1.bf16.msra.mxu0 0
    %5237 = vmatprep.subr.bf16.mxu0 0
    %5238 = vmatpush1.bf16.msra.mxu0 %v5219
    %5239 = vmatprep.subr.bf16.mxu0 0
    %5240 = vmatpush1.bf16.msra.mxu0 %v5218
    %5241 = vmatprep.subr.bf16.mxu0 0
    %5242 = vmatpush2.bf16.msra.mxu0 0
    %5243 = vmatprep.subr.bf16.mxu0 0
    %5244 = vmatpush2.bf16.msra.mxu0 0
    %5245 = vmatprep.subr.bf16.mxu0 0
    %5246 = vmatpush2.bf16.msra.mxu0 0
    %5247 = vmatprep.subr.bf16.mxu0 0
    %5248 = vmatpush2.bf16.msra.mxu0 0
    %5249 = vmatprep.subr.bf16.mxu0 0
    %5250 = vmatpush2.bf16.msra.mxu0 0
    %5251 = vmatprep.subr.bf16.mxu0 0
    %5252 = vmatpush2.bf16.msra.mxu0 0
    %5253 = vmatprep.subr.bf16.mxu0 0
    %5254 = vmatpush2.bf16.msra.mxu0 0
    %5255 = vmatprep.subr.bf16.mxu0 0
    %5256 = vmatpush2.bf16.msra.mxu0 0
    %5257 = vmatprep.mubr.bf16.mxu0 0
    %5258 = vmatmul.mubr.bf16.gmra.mxu0 %v5223
    %v5259 = vpop.f32.mrf.mxu0
    %v5260 = vadd.f32 %v5208, %v5259
    %v5261 = vpop.f32.mrf.mxu0
    %v5262 = vpop.f32.mrf.mxu0
    %v5263 = vadd.f32 %v5208, %v5262
    %v5264 = vpop.f32.mrf.mxu0
    %5265 = vdwg.mxu0
    %v5266 = vadd.f32 %v3732, %v5260
    %v5267 = vadd.f32 %v3733, %v5263
    %s5268 = scalar_lea.vmem %s9, 1
    %v5269 = vld [vmem:[%s5268] sm:$0x1]
    %s5270 = scalar_lea.vmem %s10, 1
    %v5271 = vld [vmem:[%s5270] sm:$0x1]
    %v5272 = vsel %vm91, %v5266, 0.0
    %5273 = vadd.xlane.f32.xlu0 %v5272
    %v5274 = vpop.xlane.xlu0 %5273
    %v5275 = vsel %vm91, %v5267, 0.0
    %5276 = vadd.xlane.f32.xlu0 %v5275
    %v5277 = vpop.xlane.xlu0 %5276
    %v5278 = vmul.f32 %v5274, %v98
    %v5279 = vmul.f32 %v5277, %v98
    %v5280 = vsub.f32 %v5266, %v5278
    %v5281 = vsub.f32 %v5267, %v5279
    %v5282 = vmul.f32 %v5280, %v5280
    %v5283 = vmul.f32 %v5281, %v5281
    %v5284 = vsel %vm91, %v5282, 0.0
    %5285 = vadd.xlane.f32.xlu0 %v5284
    %v5286 = vpop.xlane.xlu0 %5285
    %v5287 = vsel %vm91, %v5283, 0.0
    %5288 = vadd.xlane.f32.xlu0 %v5287
    %v5289 = vpop.xlane.xlu0 %5288
    %v5290 = vmul.f32 %v5286, %v111
    %v5291 = vmul.f32 %v5289, %v111
    %v5292 = vrsqrt.pop %v5290
    %v5293 = vmul.f32 %v5290, %v5292
    %vm5294 = vcmp.eq.f32.partialorder %v5290, inf
    %v5295 = vsel %vm5294, %v5290, %v5293
    %vm5296 = vcmp.eq.f32.partialorder %v5290, 0.0
    %v5297 = vand.u32 %v5290, 2147483648
    %v5298 = vsel %vm5296, %v5297, %v5295
    %v5299 = vrsqrt.pop %v5291
    %v5300 = vmul.f32 %v5291, %v5299
    %vm5301 = vcmp.eq.f32.partialorder %v5291, inf
    %v5302 = vsel %vm5301, %v5291, %v5300
    %vm5303 = vcmp.eq.f32.partialorder %v5291, 0.0
    %v5304 = vand.u32 %v5291, 2147483648
    %v5305 = vsel %vm5303, %v5304, %v5302
    %v5306 = vadd.f32 %v5298, 1e-06
    %v5307 = vadd.f32 %v5305, 1e-06
    %v5308 = vrcp.pop %v5306
    %v5309 = vrcp.pop %v5307
    %v5311 = vlaneseq
    %v5312 = vshrl.u32 %v5311, 7
    %v5313 = vsub.s32 0, %v5312
    %v5314 = vrot.slane %v5269, %v5313
    %v5316 = vmul.f32 %v5314, %v5280
    %v5317 = vmul.f32 %v5314, %v5281
    %v5318 = vmul.f32 %v5316, %v5308
    %v5319 = vmul.f32 %v5317, %v5309
    %v5321 = vlaneseq
    %v5322 = vshrl.u32 %v5321, 7
    %v5323 = vsub.s32 0, %v5322
    %v5324 = vrot.slane %v5271, %v5323
    %v5326 = vadd.f32 %v5318, %v5324
    %v5327 = vadd.f32 %v5319, %v5324
    %v5328 = vpack.c.bf16 %v5327, %v5326
    %s5329 = scalar_lea.vmem %s11, 256
    %v5330 = vld [vmem:[%s5329] sm:$0xff]
    %v5331 = vld [vmem:[%s5329 + $0x8] sm:$0xff]
    %v5332 = vld [vmem:[%s5329 + $0x40] sm:$0xff]
    %v5333 = vld [vmem:[%s5329 + $0x48] sm:$0xff]
    %v5334 = vld [vmem:[%s5329 + $0x80] sm:$0xff]
    %v5335 = vld [vmem:[%s5329 + $0x88] sm:$0xff]
    %v5336 = vld [vmem:[%s5329 + $0xc0] sm:$0xff]
    %v5337 = vld [vmem:[%s5329 + $0xc8] sm:$0xff]
    %s5338 = scalar_lea.vmem %s12, 16
    %v5339 = vld [vmem:[%s5338] sm:$0xf]
    %v5341 = vlaneseq
    %v5342 = vshrl.u32 %v5341, 7
    %v5343 = vsub.s32 0, %v5342
    %v5344 = vrot.slane %v5339, %v5343
    %v5345 = vlaneseq
    %v5346 = vshrl.u32 %v5345, 7
    %v5347 = vsub.s32 1, %v5346
    %v5348 = vrot.slane %v5339, %v5347
    %v5349 = vlaneseq
    %v5350 = vshrl.u32 %v5349, 7
    %v5351 = vsub.s32 2, %v5350
    %v5352 = vrot.slane %v5339, %v5351
    %v5353 = vlaneseq
    %v5354 = vshrl.u32 %v5353, 7
    %v5355 = vsub.s32 3, %v5354
    %v5356 = vrot.slane %v5339, %v5355
    %v5369 = vunpack.c.l.b16 %v5330
    %v5370 = vunpack.c.h.b16 %v5330
    %v5371 = vunpack.c.l.b16 %v5331
    %v5372 = vunpack.c.h.b16 %v5331
    %v5373 = vunpack.c.l.b16 %v5332
    %v5374 = vunpack.c.h.b16 %v5332
    %v5375 = vunpack.c.l.b16 %v5333
    %v5376 = vunpack.c.h.b16 %v5333
    %v5377 = vunpack.c.l.b16 %v5334
    %v5378 = vunpack.c.h.b16 %v5334
    %v5379 = vunpack.c.l.b16 %v5335
    %v5380 = vunpack.c.h.b16 %v5335
    %v5381 = vunpack.c.l.b16 %v5336
    %v5382 = vunpack.c.h.b16 %v5336
    %v5383 = vunpack.c.l.b16 %v5337
    %v5384 = vunpack.c.h.b16 %v5337
    %v5385 = vpack.c.b16 %v5373, %v5369
    %v5386 = vpack.c.b16 %v5374, %v5370
    %v5387 = vpack.c.b16 %v5375, %v5371
    %v5388 = vpack.c.b16 %v5376, %v5372
    %v5389 = vpack.c.b16 %v5381, %v5377
    %v5390 = vpack.c.b16 %v5382, %v5378
    %v5391 = vpack.c.b16 %v5383, %v5379
    %v5392 = vpack.c.b16 %v5384, %v5380
    %v5402 = vsel %vm91, %v5328, 0
    %5404 = vmatprep.subr.bf16.mxu0 0
    %5405 = vmatpush1.bf16.msra.mxu0 0
    %5406 = vmatprep.subr.bf16.mxu0 0
    %5407 = vmatpush1.bf16.msra.mxu0 0
    %5408 = vmatprep.subr.bf16.mxu0 0
    %5409 = vmatpush1.bf16.msra.mxu0 0
    %5410 = vmatprep.subr.bf16.mxu0 0
    %5411 = vmatpush1.bf16.msra.mxu0 0
    %5412 = vmatprep.subr.bf16.mxu0 0
    %5413 = vmatpush1.bf16.msra.mxu0 0
    %5414 = vmatprep.subr.bf16.mxu0 0
    %5415 = vmatpush1.bf16.msra.mxu0 0
    %5416 = vmatprep.subr.bf16.mxu0 %v5390
    %5417 = vmatpush1.bf16.msra.mxu0 %v5389
    %5418 = vmatprep.subr.bf16.mxu0 %v5386
    %5419 = vmatpush1.bf16.msra.mxu0 %v5385
    %5420 = vmatprep.subr.bf16.mxu0 0
    %5421 = vmatpush2.bf16.msra.mxu0 0
    %5422 = vmatprep.subr.bf16.mxu0 0
    %5423 = vmatpush2.bf16.msra.mxu0 0
    %5424 = vmatprep.subr.bf16.mxu0 0
    %5425 = vmatpush2.bf16.msra.mxu0 0
    %5426 = vmatprep.subr.bf16.mxu0 0
    %5427 = vmatpush2.bf16.msra.mxu0 0
    %5428 = vmatprep.subr.bf16.mxu0 0
    %5429 = vmatpush2.bf16.msra.mxu0 0
    %5430 = vmatprep.subr.bf16.mxu0 0
    %5431 = vmatpush2.bf16.msra.mxu0 0
    %5432 = vmatprep.subr.bf16.mxu0 0
    %5433 = vmatpush2.bf16.msra.mxu0 0
    %5434 = vmatprep.subr.bf16.mxu0 0
    %5435 = vmatpush2.bf16.msra.mxu0 0
    %5436 = vmatprep.mubr.bf16.mxu0 0
    %5437 = vmatmul.mubr.bf16.gmra.mxu0 %v5402
    %v5438 = vpop.f32.mrf.mxu0
    %v5439 = vadd.f32 %v5344, %v5438
    %v5440 = vpop.f32.mrf.mxu0
    %v5441 = vadd.f32 %v5348, %v5440
    %v5442 = vpop.f32.mrf.mxu0
    %v5443 = vadd.f32 %v5344, %v5442
    %v5444 = vpop.f32.mrf.mxu0
    %v5445 = vadd.f32 %v5348, %v5444
    %5446 = vdwg.mxu0
    %5447 = vmatprep.subr.bf16.mxu0 0
    %5448 = vmatpush1.bf16.msra.mxu0 0
    %5449 = vmatprep.subr.bf16.mxu0 0
    %5450 = vmatpush1.bf16.msra.mxu0 0
    %5451 = vmatprep.subr.bf16.mxu0 0
    %5452 = vmatpush1.bf16.msra.mxu0 0
    %5453 = vmatprep.subr.bf16.mxu0 0
    %5454 = vmatpush1.bf16.msra.mxu0 0
    %5455 = vmatprep.subr.bf16.mxu0 0
    %5456 = vmatpush1.bf16.msra.mxu0 0
    %5457 = vmatprep.subr.bf16.mxu0 0
    %5458 = vmatpush1.bf16.msra.mxu0 0
    %5459 = vmatprep.subr.bf16.mxu0 %v5392
    %5460 = vmatpush1.bf16.msra.mxu0 %v5391
    %5461 = vmatprep.subr.bf16.mxu0 %v5388
    %5462 = vmatpush1.bf16.msra.mxu0 %v5387
    %5463 = vmatprep.subr.bf16.mxu0 0
    %5464 = vmatpush2.bf16.msra.mxu0 0
    %5465 = vmatprep.subr.bf16.mxu0 0
    %5466 = vmatpush2.bf16.msra.mxu0 0
    %5467 = vmatprep.subr.bf16.mxu0 0
    %5468 = vmatpush2.bf16.msra.mxu0 0
    %5469 = vmatprep.subr.bf16.mxu0 0
    %5470 = vmatpush2.bf16.msra.mxu0 0
    %5471 = vmatprep.subr.bf16.mxu0 0
    %5472 = vmatpush2.bf16.msra.mxu0 0
    %5473 = vmatprep.subr.bf16.mxu0 0
    %5474 = vmatpush2.bf16.msra.mxu0 0
    %5475 = vmatprep.subr.bf16.mxu0 0
    %5476 = vmatpush2.bf16.msra.mxu0 0
    %5477 = vmatprep.subr.bf16.mxu0 0
    %5478 = vmatpush2.bf16.msra.mxu0 0
    %5479 = vmatprep.mubr.bf16.mxu0 0
    %5480 = vmatmul.mubr.bf16.gmra.mxu0 %v5402
    %v5481 = vpop.f32.mrf.mxu0
    %v5482 = vadd.f32 %v5352, %v5481
    %v5483 = vpop.f32.mrf.mxu0
    %v5484 = vadd.f32 %v5356, %v5483
    %v5485 = vpop.f32.mrf.mxu0
    %v5486 = vadd.f32 %v5352, %v5485
    %v5487 = vpop.f32.mrf.mxu0
    %v5488 = vadd.f32 %v5356, %v5487
    %5489 = vdwg.mxu0
    %v5490 = vmax.f32 %v5439, 0.0
    %v5491 = vmax.f32 %v5441, 0.0
    %v5492 = vmax.f32 %v5482, 0.0
    %v5493 = vmax.f32 %v5484, 0.0
    %v5494 = vmax.f32 %v5443, 0.0
    %v5495 = vmax.f32 %v5445, 0.0
    %v5496 = vmax.f32 %v5486, 0.0
    %v5497 = vmax.f32 %v5488, 0.0
    %v5498 = vpack.c.bf16 %v5494, %v5490
    %v5499 = vpack.c.bf16 %v5495, %v5491
    %v5500 = vpack.c.bf16 %v5496, %v5492
    %v5501 = vpack.c.bf16 %v5497, %v5493
    %s5502 = scalar_lea.vmem %s13, 1024
    %v5503 = vld [vmem:[%s5502] sm:$0xf]
    %v5504 = vld [vmem:[%s5502 + $0x4] sm:$0xf]
    %v5505 = vld [vmem:[%s5502 + $0x8] sm:$0xf]
    %v5506 = vld [vmem:[%s5502 + $0xc] sm:$0xf]
    %v5507 = vld [vmem:[%s5502 + $0x10] sm:$0xf]
    %v5508 = vld [vmem:[%s5502 + $0x14] sm:$0xf]
    %v5509 = vld [vmem:[%s5502 + $0x18] sm:$0xf]
    %v5510 = vld [vmem:[%s5502 + $0x1c] sm:$0xf]
    %v5511 = vld [vmem:[%s5502 + $0x20] sm:$0xf]
    %v5512 = vld [vmem:[%s5502 + $0x24] sm:$0xf]
    %v5513 = vld [vmem:[%s5502 + $0x28] sm:$0xf]
    %v5514 = vld [vmem:[%s5502 + $0x2c] sm:$0xf]
    %v5515 = vld [vmem:[%s5502 + $0x30] sm:$0xf]
    %v5516 = vld [vmem:[%s5502 + $0x34] sm:$0xf]
    %v5517 = vld [vmem:[%s5502 + $0x38] sm:$0xf]
    %v5518 = vld [vmem:[%s5502 + $0x3c] sm:$0xf]
    %v5519 = vld [vmem:[%s5502 + $0x40] sm:$0xf]
    %v5520 = vld [vmem:[%s5502 + $0x44] sm:$0xf]
    %v5521 = vld [vmem:[%s5502 + $0x48] sm:$0xf]
    %v5522 = vld [vmem:[%s5502 + $0x4c] sm:$0xf]
    %v5523 = vld [vmem:[%s5502 + $0x50] sm:$0xf]
    %v5524 = vld [vmem:[%s5502 + $0x54] sm:$0xf]
    %v5525 = vld [vmem:[%s5502 + $0x58] sm:$0xf]
    %v5526 = vld [vmem:[%s5502 + $0x5c] sm:$0xf]
    %v5527 = vld [vmem:[%s5502 + $0x60] sm:$0xf]
    %v5528 = vld [vmem:[%s5502 + $0x64] sm:$0xf]
    %v5529 = vld [vmem:[%s5502 + $0x68] sm:$0xf]
    %v5530 = vld [vmem:[%s5502 + $0x6c] sm:$0xf]
    %v5531 = vld [vmem:[%s5502 + $0x70] sm:$0xf]
    %v5532 = vld [vmem:[%s5502 + $0x74] sm:$0xf]
    %v5533 = vld [vmem:[%s5502 + $0x78] sm:$0xf]
    %v5534 = vld [vmem:[%s5502 + $0x7c] sm:$0xf]
    %v5535 = vld [vmem:[%s5502 + $0x80] sm:$0xf]
    %v5536 = vld [vmem:[%s5502 + $0x84] sm:$0xf]
    %v5537 = vld [vmem:[%s5502 + $0x88] sm:$0xf]
    %v5538 = vld [vmem:[%s5502 + $0x8c] sm:$0xf]
    %v5539 = vld [vmem:[%s5502 + $0x90] sm:$0xf]
    %v5540 = vld [vmem:[%s5502 + $0x94] sm:$0xf]
    %v5541 = vld [vmem:[%s5502 + $0x98] sm:$0xf]
    %v5542 = vld [vmem:[%s5502 + $0x9c] sm:$0xf]
    %v5543 = vld [vmem:[%s5502 + $0xa0] sm:$0xf]
    %v5544 = vld [vmem:[%s5502 + $0xa4] sm:$0xf]
    %v5545 = vld [vmem:[%s5502 + $0xa8] sm:$0xf]
    %v5546 = vld [vmem:[%s5502 + $0xac] sm:$0xf]
    %v5547 = vld [vmem:[%s5502 + $0xb0] sm:$0xf]
    %v5548 = vld [vmem:[%s5502 + $0xb4] sm:$0xf]
    %v5549 = vld [vmem:[%s5502 + $0xb8] sm:$0xf]
    %v5550 = vld [vmem:[%s5502 + $0xbc] sm:$0xf]
    %v5551 = vld [vmem:[%s5502 + $0xc0] sm:$0xf]
    %v5552 = vld [vmem:[%s5502 + $0xc4] sm:$0xf]
    %v5553 = vld [vmem:[%s5502 + $0xc8] sm:$0xf]
    %v5554 = vld [vmem:[%s5502 + $0xcc] sm:$0xf]
    %v5555 = vld [vmem:[%s5502 + $0xd0] sm:$0xf]
    %v5556 = vld [vmem:[%s5502 + $0xd4] sm:$0xf]
    %v5557 = vld [vmem:[%s5502 + $0xd8] sm:$0xf]
    %v5558 = vld [vmem:[%s5502 + $0xdc] sm:$0xf]
    %v5559 = vld [vmem:[%s5502 + $0xe0] sm:$0xf]
    %v5560 = vld [vmem:[%s5502 + $0xe4] sm:$0xf]
    %v5561 = vld [vmem:[%s5502 + $0xe8] sm:$0xf]
    %v5562 = vld [vmem:[%s5502 + $0xec] sm:$0xf]
    %v5563 = vld [vmem:[%s5502 + $0xf0] sm:$0xf]
    %v5564 = vld [vmem:[%s5502 + $0xf4] sm:$0xf]
    %v5565 = vld [vmem:[%s5502 + $0xf8] sm:$0xf]
    %v5566 = vld [vmem:[%s5502 + $0xfc] sm:$0xf]
    %v5567 = vld [vmem:[%s5329 + $0x10] sm:$0xff]
    %v5568 = vld [vmem:[%s5329 + $0x18] sm:$0xff]
    %v5569 = vld [vmem:[%s5329 + $0x50] sm:$0xff]
    %v5570 = vld [vmem:[%s5329 + $0x58] sm:$0xff]
    %v5571 = vld [vmem:[%s5329 + $0x90] sm:$0xff]
    %v5572 = vld [vmem:[%s5329 + $0x98] sm:$0xff]
    %v5573 = vld [vmem:[%s5329 + $0xd0] sm:$0xff]
    %v5574 = vld [vmem:[%s5329 + $0xd8] sm:$0xff]
    %v5575 = vld [vmem:[%s5338 + $0x4] sm:$0xf]
    %v5577 = vlaneseq
    %v5578 = vshrl.u32 %v5577, 7
    %v5579 = vsub.s32 0, %v5578
    %v5580 = vrot.slane %v5575, %v5579
    %v5581 = vlaneseq
    %v5582 = vshrl.u32 %v5581, 7
    %v5583 = vsub.s32 1, %v5582
    %v5584 = vrot.slane %v5575, %v5583
    %v5585 = vlaneseq
    %v5586 = vshrl.u32 %v5585, 7
    %v5587 = vsub.s32 2, %v5586
    %v5588 = vrot.slane %v5575, %v5587
    %v5589 = vlaneseq
    %v5590 = vshrl.u32 %v5589, 7
    %v5591 = vsub.s32 3, %v5590
    %v5592 = vrot.slane %v5575, %v5591
    %v5605 = vunpack.c.l.b16 %v5567
    %v5606 = vunpack.c.h.b16 %v5567
    %v5607 = vunpack.c.l.b16 %v5568
    %v5608 = vunpack.c.h.b16 %v5568
    %v5609 = vunpack.c.l.b16 %v5569
    %v5610 = vunpack.c.h.b16 %v5569
    %v5611 = vunpack.c.l.b16 %v5570
    %v5612 = vunpack.c.h.b16 %v5570
    %v5613 = vunpack.c.l.b16 %v5571
    %v5614 = vunpack.c.h.b16 %v5571
    %v5615 = vunpack.c.l.b16 %v5572
    %v5616 = vunpack.c.h.b16 %v5572
    %v5617 = vunpack.c.l.b16 %v5573
    %v5618 = vunpack.c.h.b16 %v5573
    %v5619 = vunpack.c.l.b16 %v5574
    %v5620 = vunpack.c.h.b16 %v5574
    %v5621 = vpack.c.b16 %v5609, %v5605
    %v5622 = vpack.c.b16 %v5610, %v5606
    %v5623 = vpack.c.b16 %v5611, %v5607
    %v5624 = vpack.c.b16 %v5612, %v5608
    %v5625 = vpack.c.b16 %v5617, %v5613
    %v5626 = vpack.c.b16 %v5618, %v5614
    %v5627 = vpack.c.b16 %v5619, %v5615
    %v5628 = vpack.c.b16 %v5620, %v5616
    %5637 = vmatprep.subr.bf16.mxu0 0
    %5638 = vmatpush1.bf16.msra.mxu0 0
    %5639 = vmatprep.subr.bf16.mxu0 0
    %5640 = vmatpush1.bf16.msra.mxu0 0
    %5641 = vmatprep.subr.bf16.mxu0 0
    %5642 = vmatpush1.bf16.msra.mxu0 0
    %5643 = vmatprep.subr.bf16.mxu0 0
    %5644 = vmatpush1.bf16.msra.mxu0 0
    %5645 = vmatprep.subr.bf16.mxu0 0
    %5646 = vmatpush1.bf16.msra.mxu0 0
    %5647 = vmatprep.subr.bf16.mxu0 0
    %5648 = vmatpush1.bf16.msra.mxu0 0
    %5649 = vmatprep.subr.bf16.mxu0 %v5626
    %5650 = vmatpush1.bf16.msra.mxu0 %v5625
    %5651 = vmatprep.subr.bf16.mxu0 %v5622
    %5652 = vmatpush1.bf16.msra.mxu0 %v5621
    %5653 = vmatprep.subr.bf16.mxu0 0
    %5654 = vmatpush2.bf16.msra.mxu0 0
    %5655 = vmatprep.subr.bf16.mxu0 0
    %5656 = vmatpush2.bf16.msra.mxu0 0
    %5657 = vmatprep.subr.bf16.mxu0 0
    %5658 = vmatpush2.bf16.msra.mxu0 0
    %5659 = vmatprep.subr.bf16.mxu0 0
    %5660 = vmatpush2.bf16.msra.mxu0 0
    %5661 = vmatprep.subr.bf16.mxu0 0
    %5662 = vmatpush2.bf16.msra.mxu0 0
    %5663 = vmatprep.subr.bf16.mxu0 0
    %5664 = vmatpush2.bf16.msra.mxu0 0
    %5665 = vmatprep.subr.bf16.mxu0 0
    %5666 = vmatpush2.bf16.msra.mxu0 0
    %5667 = vmatprep.subr.bf16.mxu0 0
    %5668 = vmatpush2.bf16.msra.mxu0 0
    %5669 = vmatprep.mubr.bf16.mxu0 0
    %5670 = vmatmul.mubr.bf16.gmra.mxu0 %v5402
    %v5671 = vpop.f32.mrf.mxu0
    %v5672 = vadd.f32 %v5580, %v5671
    %v5673 = vpop.f32.mrf.mxu0
    %v5674 = vadd.f32 %v5584, %v5673
    %v5675 = vpop.f32.mrf.mxu0
    %v5676 = vadd.f32 %v5580, %v5675
    %v5677 = vpop.f32.mrf.mxu0
    %v5678 = vadd.f32 %v5584, %v5677
    %5679 = vdwg.mxu0
    %5680 = vmatprep.subr.bf16.mxu0 0
    %5681 = vmatpush1.bf16.msra.mxu0 0
    %5682 = vmatprep.subr.bf16.mxu0 0
    %5683 = vmatpush1.bf16.msra.mxu0 0
    %5684 = vmatprep.subr.bf16.mxu0 0
    %5685 = vmatpush1.bf16.msra.mxu0 0
    %5686 = vmatprep.subr.bf16.mxu0 0
    %5687 = vmatpush1.bf16.msra.mxu0 0
    %5688 = vmatprep.subr.bf16.mxu0 0
    %5689 = vmatpush1.bf16.msra.mxu0 0
    %5690 = vmatprep.subr.bf16.mxu0 0
    %5691 = vmatpush1.bf16.msra.mxu0 0
    %5692 = vmatprep.subr.bf16.mxu0 %v5628
    %5693 = vmatpush1.bf16.msra.mxu0 %v5627
    %5694 = vmatprep.subr.bf16.mxu0 %v5624
    %5695 = vmatpush1.bf16.msra.mxu0 %v5623
    %5696 = vmatprep.subr.bf16.mxu0 0
    %5697 = vmatpush2.bf16.msra.mxu0 0
    %5698 = vmatprep.subr.bf16.mxu0 0
    %5699 = vmatpush2.bf16.msra.mxu0 0
    %5700 = vmatprep.subr.bf16.mxu0 0
    %5701 = vmatpush2.bf16.msra.mxu0 0
    %5702 = vmatprep.subr.bf16.mxu0 0
    %5703 = vmatpush2.bf16.msra.mxu0 0
    %5704 = vmatprep.subr.bf16.mxu0 0
    %5705 = vmatpush2.bf16.msra.mxu0 0
    %5706 = vmatprep.subr.bf16.mxu0 0
    %5707 = vmatpush2.bf16.msra.mxu0 0
    %5708 = vmatprep.subr.bf16.mxu0 0
    %5709 = vmatpush2.bf16.msra.mxu0 0
    %5710 = vmatprep.subr.bf16.mxu0 0
    %5711 = vmatpush2.bf16.msra.mxu0 0
    %5712 = vmatprep.mubr.bf16.mxu0 0
    %5713 = vmatmul.mubr.bf16.gmra.mxu0 %v5402
    %v5714 = vpop.f32.mrf.mxu0
    %v5715 = vadd.f32 %v5588, %v5714
    %v5716 = vpop.f32.mrf.mxu0
    %v5717 = vadd.f32 %v5592, %v5716
    %v5718 = vpop.f32.mrf.mxu0
    %v5719 = vadd.f32 %v5588, %v5718
    %v5720 = vpop.f32.mrf.mxu0
    %v5721 = vadd.f32 %v5592, %v5720
    %5722 = vdwg.mxu0
    %v5723 = vmax.f32 %v5672, 0.0
    %v5724 = vmax.f32 %v5674, 0.0
    %v5725 = vmax.f32 %v5715, 0.0
    %v5726 = vmax.f32 %v5717, 0.0
    %v5727 = vmax.f32 %v5676, 0.0
    %v5728 = vmax.f32 %v5678, 0.0
    %v5729 = vmax.f32 %v5719, 0.0
    %v5730 = vmax.f32 %v5721, 0.0
    %v5731 = vpack.c.bf16 %v5727, %v5723
    %v5732 = vpack.c.bf16 %v5728, %v5724
    %v5733 = vpack.c.bf16 %v5729, %v5725
    %v5734 = vpack.c.bf16 %v5730, %v5726
    %v5735 = vld [vmem:[%s5502 + $0x100] sm:$0xf]
    %v5736 = vld [vmem:[%s5502 + $0x104] sm:$0xf]
    %v5737 = vld [vmem:[%s5502 + $0x108] sm:$0xf]
    %v5738 = vld [vmem:[%s5502 + $0x10c] sm:$0xf]
    %v5739 = vld [vmem:[%s5502 + $0x110] sm:$0xf]
    %v5740 = vld [vmem:[%s5502 + $0x114] sm:$0xf]
    %v5741 = vld [vmem:[%s5502 + $0x118] sm:$0xf]
    %v5742 = vld [vmem:[%s5502 + $0x11c] sm:$0xf]
    %v5743 = vld [vmem:[%s5502 + $0x120] sm:$0xf]
    %v5744 = vld [vmem:[%s5502 + $0x124] sm:$0xf]
    %v5745 = vld [vmem:[%s5502 + $0x128] sm:$0xf]
    %v5746 = vld [vmem:[%s5502 + $0x12c] sm:$0xf]
    %v5747 = vld [vmem:[%s5502 + $0x130] sm:$0xf]
    %v5748 = vld [vmem:[%s5502 + $0x134] sm:$0xf]
    %v5749 = vld [vmem:[%s5502 + $0x138] sm:$0xf]
    %v5750 = vld [vmem:[%s5502 + $0x13c] sm:$0xf]
    %v5751 = vld [vmem:[%s5502 + $0x140] sm:$0xf]
    %v5752 = vld [vmem:[%s5502 + $0x144] sm:$0xf]
    %v5753 = vld [vmem:[%s5502 + $0x148] sm:$0xf]
    %v5754 = vld [vmem:[%s5502 + $0x14c] sm:$0xf]
    %v5755 = vld [vmem:[%s5502 + $0x150] sm:$0xf]
    %v5756 = vld [vmem:[%s5502 + $0x154] sm:$0xf]
    %v5757 = vld [vmem:[%s5502 + $0x158] sm:$0xf]
    %v5758 = vld [vmem:[%s5502 + $0x15c] sm:$0xf]
    %v5759 = vld [vmem:[%s5502 + $0x160] sm:$0xf]
    %v5760 = vld [vmem:[%s5502 + $0x164] sm:$0xf]
    %v5761 = vld [vmem:[%s5502 + $0x168] sm:$0xf]
    %v5762 = vld [vmem:[%s5502 + $0x16c] sm:$0xf]
    %v5763 = vld [vmem:[%s5502 + $0x170] sm:$0xf]
    %v5764 = vld [vmem:[%s5502 + $0x174] sm:$0xf]
    %v5765 = vld [vmem:[%s5502 + $0x178] sm:$0xf]
    %v5766 = vld [vmem:[%s5502 + $0x17c] sm:$0xf]
    %v5767 = vld [vmem:[%s5502 + $0x180] sm:$0xf]
    %v5768 = vld [vmem:[%s5502 + $0x184] sm:$0xf]
    %v5769 = vld [vmem:[%s5502 + $0x188] sm:$0xf]
    %v5770 = vld [vmem:[%s5502 + $0x18c] sm:$0xf]
    %v5771 = vld [vmem:[%s5502 + $0x190] sm:$0xf]
    %v5772 = vld [vmem:[%s5502 + $0x194] sm:$0xf]
    %v5773 = vld [vmem:[%s5502 + $0x198] sm:$0xf]
    %v5774 = vld [vmem:[%s5502 + $0x19c] sm:$0xf]
    %v5775 = vld [vmem:[%s5502 + $0x1a0] sm:$0xf]
    %v5776 = vld [vmem:[%s5502 + $0x1a4] sm:$0xf]
    %v5777 = vld [vmem:[%s5502 + $0x1a8] sm:$0xf]
    %v5778 = vld [vmem:[%s5502 + $0x1ac] sm:$0xf]
    %v5779 = vld [vmem:[%s5502 + $0x1b0] sm:$0xf]
    %v5780 = vld [vmem:[%s5502 + $0x1b4] sm:$0xf]
    %v5781 = vld [vmem:[%s5502 + $0x1b8] sm:$0xf]
    %v5782 = vld [vmem:[%s5502 + $0x1bc] sm:$0xf]
    %v5783 = vld [vmem:[%s5502 + $0x1c0] sm:$0xf]
    %v5784 = vld [vmem:[%s5502 + $0x1c4] sm:$0xf]
    %v5785 = vld [vmem:[%s5502 + $0x1c8] sm:$0xf]
    %v5786 = vld [vmem:[%s5502 + $0x1cc] sm:$0xf]
    %v5787 = vld [vmem:[%s5502 + $0x1d0] sm:$0xf]
    %v5788 = vld [vmem:[%s5502 + $0x1d4] sm:$0xf]
    %v5789 = vld [vmem:[%s5502 + $0x1d8] sm:$0xf]
    %v5790 = vld [vmem:[%s5502 + $0x1dc] sm:$0xf]
    %v5791 = vld [vmem:[%s5502 + $0x1e0] sm:$0xf]
    %v5792 = vld [vmem:[%s5502 + $0x1e4] sm:$0xf]
    %v5793 = vld [vmem:[%s5502 + $0x1e8] sm:$0xf]
    %v5794 = vld [vmem:[%s5502 + $0x1ec] sm:$0xf]
    %v5795 = vld [vmem:[%s5502 + $0x1f0] sm:$0xf]
    %v5796 = vld [vmem:[%s5502 + $0x1f4] sm:$0xf]
    %v5797 = vld [vmem:[%s5502 + $0x1f8] sm:$0xf]
    %v5798 = vld [vmem:[%s5502 + $0x1fc] sm:$0xf]
    %v5863 = vunpack.c.l.b16 %v5735
    %v5864 = vunpack.c.l.b16 %v5736
    %v5865 = vunpack.c.l.b16 %v5737
    %v5866 = vunpack.c.l.b16 %v5738
    %v5867 = vunpack.c.l.b16 %v5739
    %v5868 = vunpack.c.l.b16 %v5740
    %v5869 = vunpack.c.l.b16 %v5741
    %v5870 = vunpack.c.l.b16 %v5742
    %v5871 = vunpack.c.l.b16 %v5743
    %v5872 = vunpack.c.l.b16 %v5744
    %v5873 = vunpack.c.l.b16 %v5745
    %v5874 = vunpack.c.l.b16 %v5746
    %v5875 = vunpack.c.l.b16 %v5747
    %v5876 = vunpack.c.l.b16 %v5748
    %v5877 = vunpack.c.l.b16 %v5749
    %v5878 = vunpack.c.l.b16 %v5750
    %v5879 = vunpack.c.l.b16 %v5751
    %v5880 = vunpack.c.l.b16 %v5752
    %v5881 = vunpack.c.l.b16 %v5753
    %v5882 = vunpack.c.l.b16 %v5754
    %v5883 = vunpack.c.l.b16 %v5755
    %v5884 = vunpack.c.l.b16 %v5756
    %v5885 = vunpack.c.l.b16 %v5757
    %v5886 = vunpack.c.l.b16 %v5758
    %v5887 = vunpack.c.l.b16 %v5759
    %v5888 = vunpack.c.l.b16 %v5760
    %v5889 = vunpack.c.l.b16 %v5761
    %v5890 = vunpack.c.l.b16 %v5762
    %v5891 = vunpack.c.l.b16 %v5763
    %v5892 = vunpack.c.l.b16 %v5764
    %v5893 = vunpack.c.l.b16 %v5765
    %v5894 = vunpack.c.l.b16 %v5766
    %v5895 = vunpack.c.l.b16 %v5767
    %v5896 = vunpack.c.l.b16 %v5768
    %v5897 = vunpack.c.l.b16 %v5769
    %v5898 = vunpack.c.l.b16 %v5770
    %v5899 = vunpack.c.l.b16 %v5771
    %v5900 = vunpack.c.l.b16 %v5772
    %v5901 = vunpack.c.l.b16 %v5773
    %v5902 = vunpack.c.l.b16 %v5774
    %v5903 = vunpack.c.l.b16 %v5775
    %v5904 = vunpack.c.l.b16 %v5776
    %v5905 = vunpack.c.l.b16 %v5777
    %v5906 = vunpack.c.l.b16 %v5778
    %v5907 = vunpack.c.l.b16 %v5779
    %v5908 = vunpack.c.l.b16 %v5780
    %v5909 = vunpack.c.l.b16 %v5781
    %v5910 = vunpack.c.l.b16 %v5782
    %v5911 = vunpack.c.l.b16 %v5783
    %v5912 = vunpack.c.l.b16 %v5784
    %v5913 = vunpack.c.l.b16 %v5785
    %v5914 = vunpack.c.l.b16 %v5786
    %v5915 = vunpack.c.l.b16 %v5787
    %v5916 = vunpack.c.l.b16 %v5788
    %v5917 = vunpack.c.l.b16 %v5789
    %v5918 = vunpack.c.l.b16 %v5790
    %v5919 = vunpack.c.l.b16 %v5791
    %v5920 = vunpack.c.l.b16 %v5792
    %v5921 = vunpack.c.l.b16 %v5793
    %v5922 = vunpack.c.l.b16 %v5794
    %v5923 = vunpack.c.l.b16 %v5795
    %v5924 = vunpack.c.l.b16 %v5796
    %v5925 = vunpack.c.l.b16 %v5797
    %v5926 = vunpack.c.l.b16 %v5798
    %v5927 = vpack.c.b16 %v5864, %v5863
    %v5928 = vpack.c.b16 %v5866, %v5865
    %v5929 = vpack.c.b16 %v5868, %v5867
    %v5930 = vpack.c.b16 %v5870, %v5869
    %v5931 = vpack.c.b16 %v5872, %v5871
    %v5932 = vpack.c.b16 %v5874, %v5873
    %v5933 = vpack.c.b16 %v5876, %v5875
    %v5934 = vpack.c.b16 %v5878, %v5877
    %v5935 = vpack.c.b16 %v5880, %v5879
    %v5936 = vpack.c.b16 %v5882, %v5881
    %v5937 = vpack.c.b16 %v5884, %v5883
    %v5938 = vpack.c.b16 %v5886, %v5885
    %v5939 = vpack.c.b16 %v5888, %v5887
    %v5940 = vpack.c.b16 %v5890, %v5889
    %v5941 = vpack.c.b16 %v5892, %v5891
    %v5942 = vpack.c.b16 %v5894, %v5893
    %v5943 = vpack.c.b16 %v5896, %v5895
    %v5944 = vpack.c.b16 %v5898, %v5897
    %v5945 = vpack.c.b16 %v5900, %v5899
    %v5946 = vpack.c.b16 %v5902, %v5901
    %v5947 = vpack.c.b16 %v5904, %v5903
    %v5948 = vpack.c.b16 %v5906, %v5905
    %v5949 = vpack.c.b16 %v5908, %v5907
    %v5950 = vpack.c.b16 %v5910, %v5909
    %v5951 = vpack.c.b16 %v5912, %v5911
    %v5952 = vpack.c.b16 %v5914, %v5913
    %v5953 = vpack.c.b16 %v5916, %v5915
    %v5954 = vpack.c.b16 %v5918, %v5917
    %v5955 = vpack.c.b16 %v5920, %v5919
    %v5956 = vpack.c.b16 %v5922, %v5921
    %v5957 = vpack.c.b16 %v5924, %v5923
    %v5958 = vpack.c.b16 %v5926, %v5925
    %5991 = vmatprep.subr.bf16.mxu0 0
    %5992 = vmatpush1.bf16.msra.mxu0 %v5934
    %5993 = vmatprep.subr.bf16.mxu0 0
    %5994 = vmatpush1.bf16.msra.mxu0 %v5933
    %5995 = vmatprep.subr.bf16.mxu0 0
    %5996 = vmatpush1.bf16.msra.mxu0 %v5932
    %5997 = vmatprep.subr.bf16.mxu0 0
    %5998 = vmatpush1.bf16.msra.mxu0 %v5931
    %5999 = vmatprep.subr.bf16.mxu0 0
    %6000 = vmatpush1.bf16.msra.mxu0 %v5930
    %6001 = vmatprep.subr.bf16.mxu0 0
    %6002 = vmatpush1.bf16.msra.mxu0 %v5929
    %6003 = vmatprep.subr.bf16.mxu0 0
    %6004 = vmatpush1.bf16.msra.mxu0 %v5928
    %6005 = vmatprep.subr.bf16.mxu0 0
    %6006 = vmatpush1.bf16.msra.mxu0 %v5927
    %6007 = vmatprep.subr.bf16.mxu0 0
    %6008 = vmatpush2.bf16.msra.mxu0 %v5942
    %6009 = vmatprep.subr.bf16.mxu0 0
    %6010 = vmatpush2.bf16.msra.mxu0 %v5941
    %6011 = vmatprep.subr.bf16.mxu0 0
    %6012 = vmatpush2.bf16.msra.mxu0 %v5940
    %6013 = vmatprep.subr.bf16.mxu0 0
    %6014 = vmatpush2.bf16.msra.mxu0 %v5939
    %6015 = vmatprep.subr.bf16.mxu0 0
    %6016 = vmatpush2.bf16.msra.mxu0 %v5938
    %6017 = vmatprep.subr.bf16.mxu0 0
    %6018 = vmatpush2.bf16.msra.mxu0 %v5937
    %6019 = vmatprep.subr.bf16.mxu0 0
    %6020 = vmatpush2.bf16.msra.mxu0 %v5936
    %6021 = vmatprep.subr.bf16.mxu0 0
    %6022 = vmatpush2.bf16.msra.mxu0 %v5935
    %6023 = vmatprep.mubr.bf16.mxu0 %v5732
    %6024 = vmatmul.mubr.bf16.gmra.mxu0 %v5731
    %v6025 = vpop.f32.mrf.mxu0
    %v6026 = vadd.f32 0.0, %v6025
    %v6027 = vpop.f32.mrf.mxu0
    %v6028 = vpop.f32.mrf.mxu0
    %v6029 = vadd.f32 0.0, %v6028
    %v6030 = vpop.f32.mrf.mxu0
    %6031 = vdwg.mxu0
    %6032 = vmatprep.subr.bf16.mxu0 0
    %6033 = vmatpush1.bf16.msra.mxu0 %v5950
    %6034 = vmatprep.subr.bf16.mxu0 0
    %6035 = vmatpush1.bf16.msra.mxu0 %v5949
    %6036 = vmatprep.subr.bf16.mxu0 0
    %6037 = vmatpush1.bf16.msra.mxu0 %v5948
    %6038 = vmatprep.subr.bf16.mxu0 0
    %6039 = vmatpush1.bf16.msra.mxu0 %v5947
    %6040 = vmatprep.subr.bf16.mxu0 0
    %6041 = vmatpush1.bf16.msra.mxu0 %v5946
    %6042 = vmatprep.subr.bf16.mxu0 0
    %6043 = vmatpush1.bf16.msra.mxu0 %v5945
    %6044 = vmatprep.subr.bf16.mxu0 0
    %6045 = vmatpush1.bf16.msra.mxu0 %v5944
    %6046 = vmatprep.subr.bf16.mxu0 0
    %6047 = vmatpush1.bf16.msra.mxu0 %v5943
    %6048 = vmatprep.subr.bf16.mxu0 0
    %6049 = vmatpush2.bf16.msra.mxu0 %v5958
    %6050 = vmatprep.subr.bf16.mxu0 0
    %6051 = vmatpush2.bf16.msra.mxu0 %v5957
    %6052 = vmatprep.subr.bf16.mxu0 0
    %6053 = vmatpush2.bf16.msra.mxu0 %v5956
    %6054 = vmatprep.subr.bf16.mxu0 0
    %6055 = vmatpush2.bf16.msra.mxu0 %v5955
    %6056 = vmatprep.subr.bf16.mxu0 0
    %6057 = vmatpush2.bf16.msra.mxu0 %v5954
    %6058 = vmatprep.subr.bf16.mxu0 0
    %6059 = vmatpush2.bf16.msra.mxu0 %v5953
    %6060 = vmatprep.subr.bf16.mxu0 0
    %6061 = vmatpush2.bf16.msra.mxu0 %v5952
    %6062 = vmatprep.subr.bf16.mxu0 0
    %6063 = vmatpush2.bf16.msra.mxu0 %v5951
    %6064 = vmatprep.mubr.bf16.mxu0 %v5734
    %6065 = vmatmul.mubr.bf16.gmra.mxu0 %v5733
    %v6066 = vpop.f32.mrf.mxu0
    %v6067 = vadd.f32 %v6026, %v6066
    %v6068 = vpop.f32.mrf.mxu0
    %v6069 = vpop.f32.mrf.mxu0
    %v6070 = vadd.f32 %v6029, %v6069
    %v6071 = vpop.f32.mrf.mxu0
    %6072 = vdwg.mxu0
    %v6137 = vunpack.c.l.b16 %v5503
    %v6138 = vunpack.c.l.b16 %v5504
    %v6139 = vunpack.c.l.b16 %v5505
    %v6140 = vunpack.c.l.b16 %v5506
    %v6141 = vunpack.c.l.b16 %v5507
    %v6142 = vunpack.c.l.b16 %v5508
    %v6143 = vunpack.c.l.b16 %v5509
    %v6144 = vunpack.c.l.b16 %v5510
    %v6145 = vunpack.c.l.b16 %v5511
    %v6146 = vunpack.c.l.b16 %v5512
    %v6147 = vunpack.c.l.b16 %v5513
    %v6148 = vunpack.c.l.b16 %v5514
    %v6149 = vunpack.c.l.b16 %v5515
    %v6150 = vunpack.c.l.b16 %v5516
    %v6151 = vunpack.c.l.b16 %v5517
    %v6152 = vunpack.c.l.b16 %v5518
    %v6153 = vunpack.c.l.b16 %v5519
    %v6154 = vunpack.c.l.b16 %v5520
    %v6155 = vunpack.c.l.b16 %v5521
    %v6156 = vunpack.c.l.b16 %v5522
    %v6157 = vunpack.c.l.b16 %v5523
    %v6158 = vunpack.c.l.b16 %v5524
    %v6159 = vunpack.c.l.b16 %v5525
    %v6160 = vunpack.c.l.b16 %v5526
    %v6161 = vunpack.c.l.b16 %v5527
    %v6162 = vunpack.c.l.b16 %v5528
    %v6163 = vunpack.c.l.b16 %v5529
    %v6164 = vunpack.c.l.b16 %v5530
    %v6165 = vunpack.c.l.b16 %v5531
    %v6166 = vunpack.c.l.b16 %v5532
    %v6167 = vunpack.c.l.b16 %v5533
    %v6168 = vunpack.c.l.b16 %v5534
    %v6169 = vunpack.c.l.b16 %v5535
    %v6170 = vunpack.c.l.b16 %v5536
    %v6171 = vunpack.c.l.b16 %v5537
    %v6172 = vunpack.c.l.b16 %v5538
    %v6173 = vunpack.c.l.b16 %v5539
    %v6174 = vunpack.c.l.b16 %v5540
    %v6175 = vunpack.c.l.b16 %v5541
    %v6176 = vunpack.c.l.b16 %v5542
    %v6177 = vunpack.c.l.b16 %v5543
    %v6178 = vunpack.c.l.b16 %v5544
    %v6179 = vunpack.c.l.b16 %v5545
    %v6180 = vunpack.c.l.b16 %v5546
    %v6181 = vunpack.c.l.b16 %v5547
    %v6182 = vunpack.c.l.b16 %v5548
    %v6183 = vunpack.c.l.b16 %v5549
    %v6184 = vunpack.c.l.b16 %v5550
    %v6185 = vunpack.c.l.b16 %v5551
    %v6186 = vunpack.c.l.b16 %v5552
    %v6187 = vunpack.c.l.b16 %v5553
    %v6188 = vunpack.c.l.b16 %v5554
    %v6189 = vunpack.c.l.b16 %v5555
    %v6190 = vunpack.c.l.b16 %v5556
    %v6191 = vunpack.c.l.b16 %v5557
    %v6192 = vunpack.c.l.b16 %v5558
    %v6193 = vunpack.c.l.b16 %v5559
    %v6194 = vunpack.c.l.b16 %v5560
    %v6195 = vunpack.c.l.b16 %v5561
    %v6196 = vunpack.c.l.b16 %v5562
    %v6197 = vunpack.c.l.b16 %v5563
    %v6198 = vunpack.c.l.b16 %v5564
    %v6199 = vunpack.c.l.b16 %v5565
    %v6200 = vunpack.c.l.b16 %v5566
    %v6201 = vpack.c.b16 %v6138, %v6137
    %v6202 = vpack.c.b16 %v6140, %v6139
    %v6203 = vpack.c.b16 %v6142, %v6141
    %v6204 = vpack.c.b16 %v6144, %v6143
    %v6205 = vpack.c.b16 %v6146, %v6145
    %v6206 = vpack.c.b16 %v6148, %v6147
    %v6207 = vpack.c.b16 %v6150, %v6149
    %v6208 = vpack.c.b16 %v6152, %v6151
    %v6209 = vpack.c.b16 %v6154, %v6153
    %v6210 = vpack.c.b16 %v6156, %v6155
    %v6211 = vpack.c.b16 %v6158, %v6157
    %v6212 = vpack.c.b16 %v6160, %v6159
    %v6213 = vpack.c.b16 %v6162, %v6161
    %v6214 = vpack.c.b16 %v6164, %v6163
    %v6215 = vpack.c.b16 %v6166, %v6165
    %v6216 = vpack.c.b16 %v6168, %v6167
    %v6217 = vpack.c.b16 %v6170, %v6169
    %v6218 = vpack.c.b16 %v6172, %v6171
    %v6219 = vpack.c.b16 %v6174, %v6173
    %v6220 = vpack.c.b16 %v6176, %v6175
    %v6221 = vpack.c.b16 %v6178, %v6177
    %v6222 = vpack.c.b16 %v6180, %v6179
    %v6223 = vpack.c.b16 %v6182, %v6181
    %v6224 = vpack.c.b16 %v6184, %v6183
    %v6225 = vpack.c.b16 %v6186, %v6185
    %v6226 = vpack.c.b16 %v6188, %v6187
    %v6227 = vpack.c.b16 %v6190, %v6189
    %v6228 = vpack.c.b16 %v6192, %v6191
    %v6229 = vpack.c.b16 %v6194, %v6193
    %v6230 = vpack.c.b16 %v6196, %v6195
    %v6231 = vpack.c.b16 %v6198, %v6197
    %v6232 = vpack.c.b16 %v6200, %v6199
    %6265 = vmatprep.subr.bf16.mxu0 0
    %6266 = vmatpush1.bf16.msra.mxu0 %v6208
    %6267 = vmatprep.subr.bf16.mxu0 0
    %6268 = vmatpush1.bf16.msra.mxu0 %v6207
    %6269 = vmatprep.subr.bf16.mxu0 0
    %6270 = vmatpush1.bf16.msra.mxu0 %v6206
    %6271 = vmatprep.subr.bf16.mxu0 0
    %6272 = vmatpush1.bf16.msra.mxu0 %v6205
    %6273 = vmatprep.subr.bf16.mxu0 0
    %6274 = vmatpush1.bf16.msra.mxu0 %v6204
    %6275 = vmatprep.subr.bf16.mxu0 0
    %6276 = vmatpush1.bf16.msra.mxu0 %v6203
    %6277 = vmatprep.subr.bf16.mxu0 0
    %6278 = vmatpush1.bf16.msra.mxu0 %v6202
    %6279 = vmatprep.subr.bf16.mxu0 0
    %6280 = vmatpush1.bf16.msra.mxu0 %v6201
    %6281 = vmatprep.subr.bf16.mxu0 0
    %6282 = vmatpush2.bf16.msra.mxu0 %v6216
    %6283 = vmatprep.subr.bf16.mxu0 0
    %6284 = vmatpush2.bf16.msra.mxu0 %v6215
    %6285 = vmatprep.subr.bf16.mxu0 0
    %6286 = vmatpush2.bf16.msra.mxu0 %v6214
    %6287 = vmatprep.subr.bf16.mxu0 0
    %6288 = vmatpush2.bf16.msra.mxu0 %v6213
    %6289 = vmatprep.subr.bf16.mxu0 0
    %6290 = vmatpush2.bf16.msra.mxu0 %v6212
    %6291 = vmatprep.subr.bf16.mxu0 0
    %6292 = vmatpush2.bf16.msra.mxu0 %v6211
    %6293 = vmatprep.subr.bf16.mxu0 0
    %6294 = vmatpush2.bf16.msra.mxu0 %v6210
    %6295 = vmatprep.subr.bf16.mxu0 0
    %6296 = vmatpush2.bf16.msra.mxu0 %v6209
    %6297 = vmatprep.mubr.bf16.mxu0 %v5499
    %6298 = vmatmul.mubr.bf16.gmra.mxu0 %v5498
    %v6299 = vpop.f32.mrf.mxu0
    %v6300 = vadd.f32 %v6067, %v6299
    %v6301 = vpop.f32.mrf.mxu0
    %v6302 = vpop.f32.mrf.mxu0
    %v6303 = vadd.f32 %v6070, %v6302
    %v6304 = vpop.f32.mrf.mxu0
    %6305 = vdwg.mxu0
    %6306 = vmatprep.subr.bf16.mxu0 0
    %6307 = vmatpush1.bf16.msra.mxu0 %v6224
    %6308 = vmatprep.subr.bf16.mxu0 0
    %6309 = vmatpush1.bf16.msra.mxu0 %v6223
    %6310 = vmatprep.subr.bf16.mxu0 0
    %6311 = vmatpush1.bf16.msra.mxu0 %v6222
    %6312 = vmatprep.subr.bf16.mxu0 0
    %6313 = vmatpush1.bf16.msra.mxu0 %v6221
    %6314 = vmatprep.subr.bf16.mxu0 0
    %6315 = vmatpush1.bf16.msra.mxu0 %v6220
    %6316 = vmatprep.subr.bf16.mxu0 0
    %6317 = vmatpush1.bf16.msra.mxu0 %v6219
    %6318 = vmatprep.subr.bf16.mxu0 0
    %6319 = vmatpush1.bf16.msra.mxu0 %v6218
    %6320 = vmatprep.subr.bf16.mxu0 0
    %6321 = vmatpush1.bf16.msra.mxu0 %v6217
    %6322 = vmatprep.subr.bf16.mxu0 0
    %6323 = vmatpush2.bf16.msra.mxu0 %v6232
    %6324 = vmatprep.subr.bf16.mxu0 0
    %6325 = vmatpush2.bf16.msra.mxu0 %v6231
    %6326 = vmatprep.subr.bf16.mxu0 0
    %6327 = vmatpush2.bf16.msra.mxu0 %v6230
    %6328 = vmatprep.subr.bf16.mxu0 0
    %6329 = vmatpush2.bf16.msra.mxu0 %v6229
    %6330 = vmatprep.subr.bf16.mxu0 0
    %6331 = vmatpush2.bf16.msra.mxu0 %v6228
    %6332 = vmatprep.subr.bf16.mxu0 0
    %6333 = vmatpush2.bf16.msra.mxu0 %v6227
    %6334 = vmatprep.subr.bf16.mxu0 0
    %6335 = vmatpush2.bf16.msra.mxu0 %v6226
    %6336 = vmatprep.subr.bf16.mxu0 0
    %6337 = vmatpush2.bf16.msra.mxu0 %v6225
    %6338 = vmatprep.mubr.bf16.mxu0 %v5501
    %6339 = vmatmul.mubr.bf16.gmra.mxu0 %v5500
    %v6340 = vpop.f32.mrf.mxu0
    %v6341 = vadd.f32 %v6300, %v6340
    %v6342 = vpop.f32.mrf.mxu0
    %v6343 = vpop.f32.mrf.mxu0
    %v6344 = vadd.f32 %v6303, %v6343
    %v6345 = vpop.f32.mrf.mxu0
    %6346 = vdwg.mxu0
    %v6347 = vld [vmem:[%s5329 + $0x20] sm:$0xff]
    %v6348 = vld [vmem:[%s5329 + $0x28] sm:$0xff]
    %v6349 = vld [vmem:[%s5329 + $0x60] sm:$0xff]
    %v6350 = vld [vmem:[%s5329 + $0x68] sm:$0xff]
    %v6351 = vld [vmem:[%s5329 + $0xa0] sm:$0xff]
    %v6352 = vld [vmem:[%s5329 + $0xa8] sm:$0xff]
    %v6353 = vld [vmem:[%s5329 + $0xe0] sm:$0xff]
    %v6354 = vld [vmem:[%s5329 + $0xe8] sm:$0xff]
    %v6355 = vld [vmem:[%s5338 + $0x8] sm:$0xf]
    %v6357 = vlaneseq
    %v6358 = vshrl.u32 %v6357, 7
    %v6359 = vsub.s32 0, %v6358
    %v6360 = vrot.slane %v6355, %v6359
    %v6361 = vlaneseq
    %v6362 = vshrl.u32 %v6361, 7
    %v6363 = vsub.s32 1, %v6362
    %v6364 = vrot.slane %v6355, %v6363
    %v6365 = vlaneseq
    %v6366 = vshrl.u32 %v6365, 7
    %v6367 = vsub.s32 2, %v6366
    %v6368 = vrot.slane %v6355, %v6367
    %v6369 = vlaneseq
    %v6370 = vshrl.u32 %v6369, 7
    %v6371 = vsub.s32 3, %v6370
    %v6372 = vrot.slane %v6355, %v6371
    %v6385 = vunpack.c.l.b16 %v6347
    %v6386 = vunpack.c.h.b16 %v6347
    %v6387 = vunpack.c.l.b16 %v6348
    %v6388 = vunpack.c.h.b16 %v6348
    %v6389 = vunpack.c.l.b16 %v6349
    %v6390 = vunpack.c.h.b16 %v6349
    %v6391 = vunpack.c.l.b16 %v6350
    %v6392 = vunpack.c.h.b16 %v6350
    %v6393 = vunpack.c.l.b16 %v6351
    %v6394 = vunpack.c.h.b16 %v6351
    %v6395 = vunpack.c.l.b16 %v6352
    %v6396 = vunpack.c.h.b16 %v6352
    %v6397 = vunpack.c.l.b16 %v6353
    %v6398 = vunpack.c.h.b16 %v6353
    %v6399 = vunpack.c.l.b16 %v6354
    %v6400 = vunpack.c.h.b16 %v6354
    %v6401 = vpack.c.b16 %v6389, %v6385
    %v6402 = vpack.c.b16 %v6390, %v6386
    %v6403 = vpack.c.b16 %v6391, %v6387
    %v6404 = vpack.c.b16 %v6392, %v6388
    %v6405 = vpack.c.b16 %v6397, %v6393
    %v6406 = vpack.c.b16 %v6398, %v6394
    %v6407 = vpack.c.b16 %v6399, %v6395
    %v6408 = vpack.c.b16 %v6400, %v6396
    %6417 = vmatprep.subr.bf16.mxu0 0
    %6418 = vmatpush1.bf16.msra.mxu0 0
    %6419 = vmatprep.subr.bf16.mxu0 0
    %6420 = vmatpush1.bf16.msra.mxu0 0
    %6421 = vmatprep.subr.bf16.mxu0 0
    %6422 = vmatpush1.bf16.msra.mxu0 0
    %6423 = vmatprep.subr.bf16.mxu0 0
    %6424 = vmatpush1.bf16.msra.mxu0 0
    %6425 = vmatprep.subr.bf16.mxu0 0
    %6426 = vmatpush1.bf16.msra.mxu0 0
    %6427 = vmatprep.subr.bf16.mxu0 0
    %6428 = vmatpush1.bf16.msra.mxu0 0
    %6429 = vmatprep.subr.bf16.mxu0 %v6406
    %6430 = vmatpush1.bf16.msra.mxu0 %v6405
    %6431 = vmatprep.subr.bf16.mxu0 %v6402
    %6432 = vmatpush1.bf16.msra.mxu0 %v6401
    %6433 = vmatprep.subr.bf16.mxu0 0
    %6434 = vmatpush2.bf16.msra.mxu0 0
    %6435 = vmatprep.subr.bf16.mxu0 0
    %6436 = vmatpush2.bf16.msra.mxu0 0
    %6437 = vmatprep.subr.bf16.mxu0 0
    %6438 = vmatpush2.bf16.msra.mxu0 0
    %6439 = vmatprep.subr.bf16.mxu0 0
    %6440 = vmatpush2.bf16.msra.mxu0 0
    %6441 = vmatprep.subr.bf16.mxu0 0
    %6442 = vmatpush2.bf16.msra.mxu0 0
    %6443 = vmatprep.subr.bf16.mxu0 0
    %6444 = vmatpush2.bf16.msra.mxu0 0
    %6445 = vmatprep.subr.bf16.mxu0 0
    %6446 = vmatpush2.bf16.msra.mxu0 0
    %6447 = vmatprep.subr.bf16.mxu0 0
    %6448 = vmatpush2.bf16.msra.mxu0 0
    %6449 = vmatprep.mubr.bf16.mxu0 0
    %6450 = vmatmul.mubr.bf16.gmra.mxu0 %v5402
    %v6451 = vpop.f32.mrf.mxu0
    %v6452 = vadd.f32 %v6360, %v6451
    %v6453 = vpop.f32.mrf.mxu0
    %v6454 = vadd.f32 %v6364, %v6453
    %v6455 = vpop.f32.mrf.mxu0
    %v6456 = vadd.f32 %v6360, %v6455
    %v6457 = vpop.f32.mrf.mxu0
    %v6458 = vadd.f32 %v6364, %v6457
    %6459 = vdwg.mxu0
    %6460 = vmatprep.subr.bf16.mxu0 0
    %6461 = vmatpush1.bf16.msra.mxu0 0
    %6462 = vmatprep.subr.bf16.mxu0 0
    %6463 = vmatpush1.bf16.msra.mxu0 0
    %6464 = vmatprep.subr.bf16.mxu0 0
    %6465 = vmatpush1.bf16.msra.mxu0 0
    %6466 = vmatprep.subr.bf16.mxu0 0
    %6467 = vmatpush1.bf16.msra.mxu0 0
    %6468 = vmatprep.subr.bf16.mxu0 0
    %6469 = vmatpush1.bf16.msra.mxu0 0
    %6470 = vmatprep.subr.bf16.mxu0 0
    %6471 = vmatpush1.bf16.msra.mxu0 0
    %6472 = vmatprep.subr.bf16.mxu0 %v6408
    %6473 = vmatpush1.bf16.msra.mxu0 %v6407
    %6474 = vmatprep.subr.bf16.mxu0 %v6404
    %6475 = vmatpush1.bf16.msra.mxu0 %v6403
    %6476 = vmatprep.subr.bf16.mxu0 0
    %6477 = vmatpush2.bf16.msra.mxu0 0
    %6478 = vmatprep.subr.bf16.mxu0 0
    %6479 = vmatpush2.bf16.msra.mxu0 0
    %6480 = vmatprep.subr.bf16.mxu0 0
    %6481 = vmatpush2.bf16.msra.mxu0 0
    %6482 = vmatprep.subr.bf16.mxu0 0
    %6483 = vmatpush2.bf16.msra.mxu0 0
    %6484 = vmatprep.subr.bf16.mxu0 0
    %6485 = vmatpush2.bf16.msra.mxu0 0
    %6486 = vmatprep.subr.bf16.mxu0 0
    %6487 = vmatpush2.bf16.msra.mxu0 0
    %6488 = vmatprep.subr.bf16.mxu0 0
    %6489 = vmatpush2.bf16.msra.mxu0 0
    %6490 = vmatprep.subr.bf16.mxu0 0
    %6491 = vmatpush2.bf16.msra.mxu0 0
    %6492 = vmatprep.mubr.bf16.mxu0 0
    %6493 = vmatmul.mubr.bf16.gmra.mxu0 %v5402
    %v6494 = vpop.f32.mrf.mxu0
    %v6495 = vadd.f32 %v6368, %v6494
    %v6496 = vpop.f32.mrf.mxu0
    %v6497 = vadd.f32 %v6372, %v6496
    %v6498 = vpop.f32.mrf.mxu0
    %v6499 = vadd.f32 %v6368, %v6498
    %v6500 = vpop.f32.mrf.mxu0
    %v6501 = vadd.f32 %v6372, %v6500
    %6502 = vdwg.mxu0
    %v6503 = vmax.f32 %v6452, 0.0
    %v6504 = vmax.f32 %v6454, 0.0
    %v6505 = vmax.f32 %v6495, 0.0
    %v6506 = vmax.f32 %v6497, 0.0
    %v6507 = vmax.f32 %v6456, 0.0
    %v6508 = vmax.f32 %v6458, 0.0
    %v6509 = vmax.f32 %v6499, 0.0
    %v6510 = vmax.f32 %v6501, 0.0
    %v6511 = vpack.c.bf16 %v6507, %v6503
    %v6512 = vpack.c.bf16 %v6508, %v6504
    %v6513 = vpack.c.bf16 %v6509, %v6505
    %v6514 = vpack.c.bf16 %v6510, %v6506
    %v6515 = vld [vmem:[%s5502 + $0x200] sm:$0xf]
    %v6516 = vld [vmem:[%s5502 + $0x204] sm:$0xf]
    %v6517 = vld [vmem:[%s5502 + $0x208] sm:$0xf]
    %v6518 = vld [vmem:[%s5502 + $0x20c] sm:$0xf]
    %v6519 = vld [vmem:[%s5502 + $0x210] sm:$0xf]
    %v6520 = vld [vmem:[%s5502 + $0x214] sm:$0xf]
    %v6521 = vld [vmem:[%s5502 + $0x218] sm:$0xf]
    %v6522 = vld [vmem:[%s5502 + $0x21c] sm:$0xf]
    %v6523 = vld [vmem:[%s5502 + $0x220] sm:$0xf]
    %v6524 = vld [vmem:[%s5502 + $0x224] sm:$0xf]
    %v6525 = vld [vmem:[%s5502 + $0x228] sm:$0xf]
    %v6526 = vld [vmem:[%s5502 + $0x22c] sm:$0xf]
    %v6527 = vld [vmem:[%s5502 + $0x230] sm:$0xf]
    %v6528 = vld [vmem:[%s5502 + $0x234] sm:$0xf]
    %v6529 = vld [vmem:[%s5502 + $0x238] sm:$0xf]
    %v6530 = vld [vmem:[%s5502 + $0x23c] sm:$0xf]
    %v6531 = vld [vmem:[%s5502 + $0x240] sm:$0xf]
    %v6532 = vld [vmem:[%s5502 + $0x244] sm:$0xf]
    %v6533 = vld [vmem:[%s5502 + $0x248] sm:$0xf]
    %v6534 = vld [vmem:[%s5502 + $0x24c] sm:$0xf]
    %v6535 = vld [vmem:[%s5502 + $0x250] sm:$0xf]
    %v6536 = vld [vmem:[%s5502 + $0x254] sm:$0xf]
    %v6537 = vld [vmem:[%s5502 + $0x258] sm:$0xf]
    %v6538 = vld [vmem:[%s5502 + $0x25c] sm:$0xf]
    %v6539 = vld [vmem:[%s5502 + $0x260] sm:$0xf]
    %v6540 = vld [vmem:[%s5502 + $0x264] sm:$0xf]
    %v6541 = vld [vmem:[%s5502 + $0x268] sm:$0xf]
    %v6542 = vld [vmem:[%s5502 + $0x26c] sm:$0xf]
    %v6543 = vld [vmem:[%s5502 + $0x270] sm:$0xf]
    %v6544 = vld [vmem:[%s5502 + $0x274] sm:$0xf]
    %v6545 = vld [vmem:[%s5502 + $0x278] sm:$0xf]
    %v6546 = vld [vmem:[%s5502 + $0x27c] sm:$0xf]
    %v6547 = vld [vmem:[%s5502 + $0x280] sm:$0xf]
    %v6548 = vld [vmem:[%s5502 + $0x284] sm:$0xf]
    %v6549 = vld [vmem:[%s5502 + $0x288] sm:$0xf]
    %v6550 = vld [vmem:[%s5502 + $0x28c] sm:$0xf]
    %v6551 = vld [vmem:[%s5502 + $0x290] sm:$0xf]
    %v6552 = vld [vmem:[%s5502 + $0x294] sm:$0xf]
    %v6553 = vld [vmem:[%s5502 + $0x298] sm:$0xf]
    %v6554 = vld [vmem:[%s5502 + $0x29c] sm:$0xf]
    %v6555 = vld [vmem:[%s5502 + $0x2a0] sm:$0xf]
    %v6556 = vld [vmem:[%s5502 + $0x2a4] sm:$0xf]
    %v6557 = vld [vmem:[%s5502 + $0x2a8] sm:$0xf]
    %v6558 = vld [vmem:[%s5502 + $0x2ac] sm:$0xf]
    %v6559 = vld [vmem:[%s5502 + $0x2b0] sm:$0xf]
    %v6560 = vld [vmem:[%s5502 + $0x2b4] sm:$0xf]
    %v6561 = vld [vmem:[%s5502 + $0x2b8] sm:$0xf]
    %v6562 = vld [vmem:[%s5502 + $0x2bc] sm:$0xf]
    %v6563 = vld [vmem:[%s5502 + $0x2c0] sm:$0xf]
    %v6564 = vld [vmem:[%s5502 + $0x2c4] sm:$0xf]
    %v6565 = vld [vmem:[%s5502 + $0x2c8] sm:$0xf]
    %v6566 = vld [vmem:[%s5502 + $0x2cc] sm:$0xf]
    %v6567 = vld [vmem:[%s5502 + $0x2d0] sm:$0xf]
    %v6568 = vld [vmem:[%s5502 + $0x2d4] sm:$0xf]
    %v6569 = vld [vmem:[%s5502 + $0x2d8] sm:$0xf]
    %v6570 = vld [vmem:[%s5502 + $0x2dc] sm:$0xf]
    %v6571 = vld [vmem:[%s5502 + $0x2e0] sm:$0xf]
    %v6572 = vld [vmem:[%s5502 + $0x2e4] sm:$0xf]
    %v6573 = vld [vmem:[%s5502 + $0x2e8] sm:$0xf]
    %v6574 = vld [vmem:[%s5502 + $0x2ec] sm:$0xf]
    %v6575 = vld [vmem:[%s5502 + $0x2f0] sm:$0xf]
    %v6576 = vld [vmem:[%s5502 + $0x2f4] sm:$0xf]
    %v6577 = vld [vmem:[%s5502 + $0x2f8] sm:$0xf]
    %v6578 = vld [vmem:[%s5502 + $0x2fc] sm:$0xf]
    %v6643 = vunpack.c.l.b16 %v6515
    %v6644 = vunpack.c.l.b16 %v6516
    %v6645 = vunpack.c.l.b16 %v6517
    %v6646 = vunpack.c.l.b16 %v6518
    %v6647 = vunpack.c.l.b16 %v6519
    %v6648 = vunpack.c.l.b16 %v6520
    %v6649 = vunpack.c.l.b16 %v6521
    %v6650 = vunpack.c.l.b16 %v6522
    %v6651 = vunpack.c.l.b16 %v6523
    %v6652 = vunpack.c.l.b16 %v6524
    %v6653 = vunpack.c.l.b16 %v6525
    %v6654 = vunpack.c.l.b16 %v6526
    %v6655 = vunpack.c.l.b16 %v6527
    %v6656 = vunpack.c.l.b16 %v6528
    %v6657 = vunpack.c.l.b16 %v6529
    %v6658 = vunpack.c.l.b16 %v6530
    %v6659 = vunpack.c.l.b16 %v6531
    %v6660 = vunpack.c.l.b16 %v6532
    %v6661 = vunpack.c.l.b16 %v6533
    %v6662 = vunpack.c.l.b16 %v6534
    %v6663 = vunpack.c.l.b16 %v6535
    %v6664 = vunpack.c.l.b16 %v6536
    %v6665 = vunpack.c.l.b16 %v6537
    %v6666 = vunpack.c.l.b16 %v6538
    %v6667 = vunpack.c.l.b16 %v6539
    %v6668 = vunpack.c.l.b16 %v6540
    %v6669 = vunpack.c.l.b16 %v6541
    %v6670 = vunpack.c.l.b16 %v6542
    %v6671 = vunpack.c.l.b16 %v6543
    %v6672 = vunpack.c.l.b16 %v6544
    %v6673 = vunpack.c.l.b16 %v6545
    %v6674 = vunpack.c.l.b16 %v6546
    %v6675 = vunpack.c.l.b16 %v6547
    %v6676 = vunpack.c.l.b16 %v6548
    %v6677 = vunpack.c.l.b16 %v6549
    %v6678 = vunpack.c.l.b16 %v6550
    %v6679 = vunpack.c.l.b16 %v6551
    %v6680 = vunpack.c.l.b16 %v6552
    %v6681 = vunpack.c.l.b16 %v6553
    %v6682 = vunpack.c.l.b16 %v6554
    %v6683 = vunpack.c.l.b16 %v6555
    %v6684 = vunpack.c.l.b16 %v6556
    %v6685 = vunpack.c.l.b16 %v6557
    %v6686 = vunpack.c.l.b16 %v6558
    %v6687 = vunpack.c.l.b16 %v6559
    %v6688 = vunpack.c.l.b16 %v6560
    %v6689 = vunpack.c.l.b16 %v6561
    %v6690 = vunpack.c.l.b16 %v6562
    %v6691 = vunpack.c.l.b16 %v6563
    %v6692 = vunpack.c.l.b16 %v6564
    %v6693 = vunpack.c.l.b16 %v6565
    %v6694 = vunpack.c.l.b16 %v6566
    %v6695 = vunpack.c.l.b16 %v6567
    %v6696 = vunpack.c.l.b16 %v6568
    %v6697 = vunpack.c.l.b16 %v6569
    %v6698 = vunpack.c.l.b16 %v6570
    %v6699 = vunpack.c.l.b16 %v6571
    %v6700 = vunpack.c.l.b16 %v6572
    %v6701 = vunpack.c.l.b16 %v6573
    %v6702 = vunpack.c.l.b16 %v6574
    %v6703 = vunpack.c.l.b16 %v6575
    %v6704 = vunpack.c.l.b16 %v6576
    %v6705 = vunpack.c.l.b16 %v6577
    %v6706 = vunpack.c.l.b16 %v6578
    %v6707 = vpack.c.b16 %v6644, %v6643
    %v6708 = vpack.c.b16 %v6646, %v6645
    %v6709 = vpack.c.b16 %v6648, %v6647
    %v6710 = vpack.c.b16 %v6650, %v6649
    %v6711 = vpack.c.b16 %v6652, %v6651
    %v6712 = vpack.c.b16 %v6654, %v6653
    %v6713 = vpack.c.b16 %v6656, %v6655
    %v6714 = vpack.c.b16 %v6658, %v6657
    %v6715 = vpack.c.b16 %v6660, %v6659
    %v6716 = vpack.c.b16 %v6662, %v6661
    %v6717 = vpack.c.b16 %v6664, %v6663
    %v6718 = vpack.c.b16 %v6666, %v6665
    %v6719 = vpack.c.b16 %v6668, %v6667
    %v6720 = vpack.c.b16 %v6670, %v6669
    %v6721 = vpack.c.b16 %v6672, %v6671
    %v6722 = vpack.c.b16 %v6674, %v6673
    %v6723 = vpack.c.b16 %v6676, %v6675
    %v6724 = vpack.c.b16 %v6678, %v6677
    %v6725 = vpack.c.b16 %v6680, %v6679
    %v6726 = vpack.c.b16 %v6682, %v6681
    %v6727 = vpack.c.b16 %v6684, %v6683
    %v6728 = vpack.c.b16 %v6686, %v6685
    %v6729 = vpack.c.b16 %v6688, %v6687
    %v6730 = vpack.c.b16 %v6690, %v6689
    %v6731 = vpack.c.b16 %v6692, %v6691
    %v6732 = vpack.c.b16 %v6694, %v6693
    %v6733 = vpack.c.b16 %v6696, %v6695
    %v6734 = vpack.c.b16 %v6698, %v6697
    %v6735 = vpack.c.b16 %v6700, %v6699
    %v6736 = vpack.c.b16 %v6702, %v6701
    %v6737 = vpack.c.b16 %v6704, %v6703
    %v6738 = vpack.c.b16 %v6706, %v6705
    %6771 = vmatprep.subr.bf16.mxu0 0
    %6772 = vmatpush1.bf16.msra.mxu0 %v6714
    %6773 = vmatprep.subr.bf16.mxu0 0
    %6774 = vmatpush1.bf16.msra.mxu0 %v6713
    %6775 = vmatprep.subr.bf16.mxu0 0
    %6776 = vmatpush1.bf16.msra.mxu0 %v6712
    %6777 = vmatprep.subr.bf16.mxu0 0
    %6778 = vmatpush1.bf16.msra.mxu0 %v6711
    %6779 = vmatprep.subr.bf16.mxu0 0
    %6780 = vmatpush1.bf16.msra.mxu0 %v6710
    %6781 = vmatprep.subr.bf16.mxu0 0
    %6782 = vmatpush1.bf16.msra.mxu0 %v6709
    %6783 = vmatprep.subr.bf16.mxu0 0
    %6784 = vmatpush1.bf16.msra.mxu0 %v6708
    %6785 = vmatprep.subr.bf16.mxu0 0
    %6786 = vmatpush1.bf16.msra.mxu0 %v6707
    %6787 = vmatprep.subr.bf16.mxu0 0
    %6788 = vmatpush2.bf16.msra.mxu0 %v6722
    %6789 = vmatprep.subr.bf16.mxu0 0
    %6790 = vmatpush2.bf16.msra.mxu0 %v6721
    %6791 = vmatprep.subr.bf16.mxu0 0
    %6792 = vmatpush2.bf16.msra.mxu0 %v6720
    %6793 = vmatprep.subr.bf16.mxu0 0
    %6794 = vmatpush2.bf16.msra.mxu0 %v6719
    %6795 = vmatprep.subr.bf16.mxu0 0
    %6796 = vmatpush2.bf16.msra.mxu0 %v6718
    %6797 = vmatprep.subr.bf16.mxu0 0
    %6798 = vmatpush2.bf16.msra.mxu0 %v6717
    %6799 = vmatprep.subr.bf16.mxu0 0
    %6800 = vmatpush2.bf16.msra.mxu0 %v6716
    %6801 = vmatprep.subr.bf16.mxu0 0
    %6802 = vmatpush2.bf16.msra.mxu0 %v6715
    %6803 = vmatprep.mubr.bf16.mxu0 %v6512
    %6804 = vmatmul.mubr.bf16.gmra.mxu0 %v6511
    %v6805 = vpop.f32.mrf.mxu0
    %v6806 = vadd.f32 0.0, %v6805
    %v6807 = vpop.f32.mrf.mxu0
    %v6808 = vpop.f32.mrf.mxu0
    %v6809 = vadd.f32 0.0, %v6808
    %v6810 = vpop.f32.mrf.mxu0
    %6811 = vdwg.mxu0
    %6812 = vmatprep.subr.bf16.mxu0 0
    %6813 = vmatpush1.bf16.msra.mxu0 %v6730
    %6814 = vmatprep.subr.bf16.mxu0 0
    %6815 = vmatpush1.bf16.msra.mxu0 %v6729
    %6816 = vmatprep.subr.bf16.mxu0 0
    %6817 = vmatpush1.bf16.msra.mxu0 %v6728
    %6818 = vmatprep.subr.bf16.mxu0 0
    %6819 = vmatpush1.bf16.msra.mxu0 %v6727
    %6820 = vmatprep.subr.bf16.mxu0 0
    %6821 = vmatpush1.bf16.msra.mxu0 %v6726
    %6822 = vmatprep.subr.bf16.mxu0 0
    %6823 = vmatpush1.bf16.msra.mxu0 %v6725
    %6824 = vmatprep.subr.bf16.mxu0 0
    %6825 = vmatpush1.bf16.msra.mxu0 %v6724
    %6826 = vmatprep.subr.bf16.mxu0 0
    %6827 = vmatpush1.bf16.msra.mxu0 %v6723
    %6828 = vmatprep.subr.bf16.mxu0 0
    %6829 = vmatpush2.bf16.msra.mxu0 %v6738
    %6830 = vmatprep.subr.bf16.mxu0 0
    %6831 = vmatpush2.bf16.msra.mxu0 %v6737
    %6832 = vmatprep.subr.bf16.mxu0 0
    %6833 = vmatpush2.bf16.msra.mxu0 %v6736
    %6834 = vmatprep.subr.bf16.mxu0 0
    %6835 = vmatpush2.bf16.msra.mxu0 %v6735
    %6836 = vmatprep.subr.bf16.mxu0 0
    %6837 = vmatpush2.bf16.msra.mxu0 %v6734
    %6838 = vmatprep.subr.bf16.mxu0 0
    %6839 = vmatpush2.bf16.msra.mxu0 %v6733
    %6840 = vmatprep.subr.bf16.mxu0 0
    %6841 = vmatpush2.bf16.msra.mxu0 %v6732
    %6842 = vmatprep.subr.bf16.mxu0 0
    %6843 = vmatpush2.bf16.msra.mxu0 %v6731
    %6844 = vmatprep.mubr.bf16.mxu0 %v6514
    %6845 = vmatmul.mubr.bf16.gmra.mxu0 %v6513
    %v6846 = vpop.f32.mrf.mxu0
    %v6847 = vadd.f32 %v6806, %v6846
    %v6848 = vpop.f32.mrf.mxu0
    %v6849 = vpop.f32.mrf.mxu0
    %v6850 = vadd.f32 %v6809, %v6849
    %v6851 = vpop.f32.mrf.mxu0
    %6852 = vdwg.mxu0
    %v6853 = vadd.f32 %v6341, %v6847
    %v6854 = vadd.f32 %v6344, %v6850
    %v6855 = vld [vmem:[%s5329 + $0x30] sm:$0xff]
    %v6856 = vld [vmem:[%s5329 + $0x38] sm:$0xff]
    %v6857 = vld [vmem:[%s5329 + $0x70] sm:$0xff]
    %v6858 = vld [vmem:[%s5329 + $0x78] sm:$0xff]
    %v6859 = vld [vmem:[%s5329 + $0xb0] sm:$0xff]
    %v6860 = vld [vmem:[%s5329 + $0xb8] sm:$0xff]
    %v6861 = vld [vmem:[%s5329 + $0xf0] sm:$0xff]
    %v6862 = vld [vmem:[%s5329 + $0xf8] sm:$0xff]
    %v6863 = vld [vmem:[%s5338 + $0xc] sm:$0xf]
    %v6865 = vlaneseq
    %v6866 = vshrl.u32 %v6865, 7
    %v6867 = vsub.s32 0, %v6866
    %v6868 = vrot.slane %v6863, %v6867
    %v6869 = vlaneseq
    %v6870 = vshrl.u32 %v6869, 7
    %v6871 = vsub.s32 1, %v6870
    %v6872 = vrot.slane %v6863, %v6871
    %v6873 = vlaneseq
    %v6874 = vshrl.u32 %v6873, 7
    %v6875 = vsub.s32 2, %v6874
    %v6876 = vrot.slane %v6863, %v6875
    %v6877 = vlaneseq
    %v6878 = vshrl.u32 %v6877, 7
    %v6879 = vsub.s32 3, %v6878
    %v6880 = vrot.slane %v6863, %v6879
    %v6893 = vunpack.c.l.b16 %v6855
    %v6894 = vunpack.c.h.b16 %v6855
    %v6895 = vunpack.c.l.b16 %v6856
    %v6896 = vunpack.c.h.b16 %v6856
    %v6897 = vunpack.c.l.b16 %v6857
    %v6898 = vunpack.c.h.b16 %v6857
    %v6899 = vunpack.c.l.b16 %v6858
    %v6900 = vunpack.c.h.b16 %v6858
    %v6901 = vunpack.c.l.b16 %v6859
    %v6902 = vunpack.c.h.b16 %v6859
    %v6903 = vunpack.c.l.b16 %v6860
    %v6904 = vunpack.c.h.b16 %v6860
    %v6905 = vunpack.c.l.b16 %v6861
    %v6906 = vunpack.c.h.b16 %v6861
    %v6907 = vunpack.c.l.b16 %v6862
    %v6908 = vunpack.c.h.b16 %v6862
    %v6909 = vpack.c.b16 %v6897, %v6893
    %v6910 = vpack.c.b16 %v6898, %v6894
    %v6911 = vpack.c.b16 %v6899, %v6895
    %v6912 = vpack.c.b16 %v6900, %v6896
    %v6913 = vpack.c.b16 %v6905, %v6901
    %v6914 = vpack.c.b16 %v6906, %v6902
    %v6915 = vpack.c.b16 %v6907, %v6903
    %v6916 = vpack.c.b16 %v6908, %v6904
    %6925 = vmatprep.subr.bf16.mxu0 0
    %6926 = vmatpush1.bf16.msra.mxu0 0
    %6927 = vmatprep.subr.bf16.mxu0 0
    %6928 = vmatpush1.bf16.msra.mxu0 0
    %6929 = vmatprep.subr.bf16.mxu0 0
    %6930 = vmatpush1.bf16.msra.mxu0 0
    %6931 = vmatprep.subr.bf16.mxu0 0
    %6932 = vmatpush1.bf16.msra.mxu0 0
    %6933 = vmatprep.subr.bf16.mxu0 0
    %6934 = vmatpush1.bf16.msra.mxu0 0
    %6935 = vmatprep.subr.bf16.mxu0 0
    %6936 = vmatpush1.bf16.msra.mxu0 0
    %6937 = vmatprep.subr.bf16.mxu0 %v6914
    %6938 = vmatpush1.bf16.msra.mxu0 %v6913
    %6939 = vmatprep.subr.bf16.mxu0 %v6910
    %6940 = vmatpush1.bf16.msra.mxu0 %v6909
    %6941 = vmatprep.subr.bf16.mxu0 0
    %6942 = vmatpush2.bf16.msra.mxu0 0
    %6943 = vmatprep.subr.bf16.mxu0 0
    %6944 = vmatpush2.bf16.msra.mxu0 0
    %6945 = vmatprep.subr.bf16.mxu0 0
    %6946 = vmatpush2.bf16.msra.mxu0 0
    %6947 = vmatprep.subr.bf16.mxu0 0
    %6948 = vmatpush2.bf16.msra.mxu0 0
    %6949 = vmatprep.subr.bf16.mxu0 0
    %6950 = vmatpush2.bf16.msra.mxu0 0
    %6951 = vmatprep.subr.bf16.mxu0 0
    %6952 = vmatpush2.bf16.msra.mxu0 0
    %6953 = vmatprep.subr.bf16.mxu0 0
    %6954 = vmatpush2.bf16.msra.mxu0 0
    %6955 = vmatprep.subr.bf16.mxu0 0
    %6956 = vmatpush2.bf16.msra.mxu0 0
    %6957 = vmatprep.mubr.bf16.mxu0 0
    %6958 = vmatmul.mubr.bf16.gmra.mxu0 %v5402
    %v6959 = vpop.f32.mrf.mxu0
    %v6960 = vadd.f32 %v6868, %v6959
    %v6961 = vpop.f32.mrf.mxu0
    %v6962 = vadd.f32 %v6872, %v6961
    %v6963 = vpop.f32.mrf.mxu0
    %v6964 = vadd.f32 %v6868, %v6963
    %v6965 = vpop.f32.mrf.mxu0
    %v6966 = vadd.f32 %v6872, %v6965
    %6967 = vdwg.mxu0
    %6968 = vmatprep.subr.bf16.mxu0 0
    %6969 = vmatpush1.bf16.msra.mxu0 0
    %6970 = vmatprep.subr.bf16.mxu0 0
    %6971 = vmatpush1.bf16.msra.mxu0 0
    %6972 = vmatprep.subr.bf16.mxu0 0
    %6973 = vmatpush1.bf16.msra.mxu0 0
    %6974 = vmatprep.subr.bf16.mxu0 0
    %6975 = vmatpush1.bf16.msra.mxu0 0
    %6976 = vmatprep.subr.bf16.mxu0 0
    %6977 = vmatpush1.bf16.msra.mxu0 0
    %6978 = vmatprep.subr.bf16.mxu0 0
    %6979 = vmatpush1.bf16.msra.mxu0 0
    %6980 = vmatprep.subr.bf16.mxu0 %v6916
    %6981 = vmatpush1.bf16.msra.mxu0 %v6915
    %6982 = vmatprep.subr.bf16.mxu0 %v6912
    %6983 = vmatpush1.bf16.msra.mxu0 %v6911
    %6984 = vmatprep.subr.bf16.mxu0 0
    %6985 = vmatpush2.bf16.msra.mxu0 0
    %6986 = vmatprep.subr.bf16.mxu0 0
    %6987 = vmatpush2.bf16.msra.mxu0 0
    %6988 = vmatprep.subr.bf16.mxu0 0
    %6989 = vmatpush2.bf16.msra.mxu0 0
    %6990 = vmatprep.subr.bf16.mxu0 0
    %6991 = vmatpush2.bf16.msra.mxu0 0
    %6992 = vmatprep.subr.bf16.mxu0 0
    %6993 = vmatpush2.bf16.msra.mxu0 0
    %6994 = vmatprep.subr.bf16.mxu0 0
    %6995 = vmatpush2.bf16.msra.mxu0 0
    %6996 = vmatprep.subr.bf16.mxu0 0
    %6997 = vmatpush2.bf16.msra.mxu0 0
    %6998 = vmatprep.subr.bf16.mxu0 0
    %6999 = vmatpush2.bf16.msra.mxu0 0
    %7000 = vmatprep.mubr.bf16.mxu0 0
    %7001 = vmatmul.mubr.bf16.gmra.mxu0 %v5402
    %v7002 = vpop.f32.mrf.mxu0
    %v7003 = vadd.f32 %v6876, %v7002
    %v7004 = vpop.f32.mrf.mxu0
    %v7005 = vadd.f32 %v6880, %v7004
    %v7006 = vpop.f32.mrf.mxu0
    %v7007 = vadd.f32 %v6876, %v7006
    %v7008 = vpop.f32.mrf.mxu0
    %v7009 = vadd.f32 %v6880, %v7008
    %7010 = vdwg.mxu0
    %v7011 = vmax.f32 %v6960, 0.0
    %v7012 = vmax.f32 %v6962, 0.0
    %v7013 = vmax.f32 %v7003, 0.0
    %v7014 = vmax.f32 %v7005, 0.0
    %v7015 = vmax.f32 %v6964, 0.0
    %v7016 = vmax.f32 %v6966, 0.0
    %v7017 = vmax.f32 %v7007, 0.0
    %v7018 = vmax.f32 %v7009, 0.0
    %v7019 = vpack.c.bf16 %v7015, %v7011
    %v7020 = vpack.c.bf16 %v7016, %v7012
    %v7021 = vpack.c.bf16 %v7017, %v7013
    %v7022 = vpack.c.bf16 %v7018, %v7014
    %v7023 = vld [vmem:[%s5502 + $0x300] sm:$0xf]
    %v7024 = vld [vmem:[%s5502 + $0x304] sm:$0xf]
    %v7025 = vld [vmem:[%s5502 + $0x308] sm:$0xf]
    %v7026 = vld [vmem:[%s5502 + $0x30c] sm:$0xf]
    %v7027 = vld [vmem:[%s5502 + $0x310] sm:$0xf]
    %v7028 = vld [vmem:[%s5502 + $0x314] sm:$0xf]
    %v7029 = vld [vmem:[%s5502 + $0x318] sm:$0xf]
    %v7030 = vld [vmem:[%s5502 + $0x31c] sm:$0xf]
    %v7031 = vld [vmem:[%s5502 + $0x320] sm:$0xf]
    %v7032 = vld [vmem:[%s5502 + $0x324] sm:$0xf]
    %v7033 = vld [vmem:[%s5502 + $0x328] sm:$0xf]
    %v7034 = vld [vmem:[%s5502 + $0x32c] sm:$0xf]
    %v7035 = vld [vmem:[%s5502 + $0x330] sm:$0xf]
    %v7036 = vld [vmem:[%s5502 + $0x334] sm:$0xf]
    %v7037 = vld [vmem:[%s5502 + $0x338] sm:$0xf]
    %v7038 = vld [vmem:[%s5502 + $0x33c] sm:$0xf]
    %v7039 = vld [vmem:[%s5502 + $0x340] sm:$0xf]
    %v7040 = vld [vmem:[%s5502 + $0x344] sm:$0xf]
    %v7041 = vld [vmem:[%s5502 + $0x348] sm:$0xf]
    %v7042 = vld [vmem:[%s5502 + $0x34c] sm:$0xf]
    %v7043 = vld [vmem:[%s5502 + $0x350] sm:$0xf]
    %v7044 = vld [vmem:[%s5502 + $0x354] sm:$0xf]
    %v7045 = vld [vmem:[%s5502 + $0x358] sm:$0xf]
    %v7046 = vld [vmem:[%s5502 + $0x35c] sm:$0xf]
    %v7047 = vld [vmem:[%s5502 + $0x360] sm:$0xf]
    %v7048 = vld [vmem:[%s5502 + $0x364] sm:$0xf]
    %v7049 = vld [vmem:[%s5502 + $0x368] sm:$0xf]
    %v7050 = vld [vmem:[%s5502 + $0x36c] sm:$0xf]
    %v7051 = vld [vmem:[%s5502 + $0x370] sm:$0xf]
    %v7052 = vld [vmem:[%s5502 + $0x374] sm:$0xf]
    %v7053 = vld [vmem:[%s5502 + $0x378] sm:$0xf]
    %v7054 = vld [vmem:[%s5502 + $0x37c] sm:$0xf]
    %v7055 = vld [vmem:[%s5502 + $0x380] sm:$0xf]
    %v7056 = vld [vmem:[%s5502 + $0x384] sm:$0xf]
    %v7057 = vld [vmem:[%s5502 + $0x388] sm:$0xf]
    %v7058 = vld [vmem:[%s5502 + $0x38c] sm:$0xf]
    %v7059 = vld [vmem:[%s5502 + $0x390] sm:$0xf]
    %v7060 = vld [vmem:[%s5502 + $0x394] sm:$0xf]
    %v7061 = vld [vmem:[%s5502 + $0x398] sm:$0xf]
    %v7062 = vld [vmem:[%s5502 + $0x39c] sm:$0xf]
    %v7063 = vld [vmem:[%s5502 + $0x3a0] sm:$0xf]
    %v7064 = vld [vmem:[%s5502 + $0x3a4] sm:$0xf]
    %v7065 = vld [vmem:[%s5502 + $0x3a8] sm:$0xf]
    %v7066 = vld [vmem:[%s5502 + $0x3ac] sm:$0xf]
    %v7067 = vld [vmem:[%s5502 + $0x3b0] sm:$0xf]
    %v7068 = vld [vmem:[%s5502 + $0x3b4] sm:$0xf]
    %v7069 = vld [vmem:[%s5502 + $0x3b8] sm:$0xf]
    %v7070 = vld [vmem:[%s5502 + $0x3bc] sm:$0xf]
    %v7071 = vld [vmem:[%s5502 + $0x3c0] sm:$0xf]
    %v7072 = vld [vmem:[%s5502 + $0x3c4] sm:$0xf]
    %v7073 = vld [vmem:[%s5502 + $0x3c8] sm:$0xf]
    %v7074 = vld [vmem:[%s5502 + $0x3cc] sm:$0xf]
    %v7075 = vld [vmem:[%s5502 + $0x3d0] sm:$0xf]
    %v7076 = vld [vmem:[%s5502 + $0x3d4] sm:$0xf]
    %v7077 = vld [vmem:[%s5502 + $0x3d8] sm:$0xf]
    %v7078 = vld [vmem:[%s5502 + $0x3dc] sm:$0xf]
    %v7079 = vld [vmem:[%s5502 + $0x3e0] sm:$0xf]
    %v7080 = vld [vmem:[%s5502 + $0x3e4] sm:$0xf]
    %v7081 = vld [vmem:[%s5502 + $0x3e8] sm:$0xf]
    %v7082 = vld [vmem:[%s5502 + $0x3ec] sm:$0xf]
    %v7083 = vld [vmem:[%s5502 + $0x3f0] sm:$0xf]
    %v7084 = vld [vmem:[%s5502 + $0x3f4] sm:$0xf]
    %v7085 = vld [vmem:[%s5502 + $0x3f8] sm:$0xf]
    %v7086 = vld [vmem:[%s5502 + $0x3fc] sm:$0xf]
    %v7151 = vunpack.c.l.b16 %v7023
    %v7152 = vunpack.c.l.b16 %v7024
    %v7153 = vunpack.c.l.b16 %v7025
    %v7154 = vunpack.c.l.b16 %v7026
    %v7155 = vunpack.c.l.b16 %v7027
    %v7156 = vunpack.c.l.b16 %v7028
    %v7157 = vunpack.c.l.b16 %v7029
    %v7158 = vunpack.c.l.b16 %v7030
    %v7159 = vunpack.c.l.b16 %v7031
    %v7160 = vunpack.c.l.b16 %v7032
    %v7161 = vunpack.c.l.b16 %v7033
    %v7162 = vunpack.c.l.b16 %v7034
    %v7163 = vunpack.c.l.b16 %v7035
    %v7164 = vunpack.c.l.b16 %v7036
    %v7165 = vunpack.c.l.b16 %v7037
    %v7166 = vunpack.c.l.b16 %v7038
    %v7167 = vunpack.c.l.b16 %v7039
    %v7168 = vunpack.c.l.b16 %v7040
    %v7169 = vunpack.c.l.b16 %v7041
    %v7170 = vunpack.c.l.b16 %v7042
    %v7171 = vunpack.c.l.b16 %v7043
    %v7172 = vunpack.c.l.b16 %v7044
    %v7173 = vunpack.c.l.b16 %v7045
    %v7174 = vunpack.c.l.b16 %v7046
    %v7175 = vunpack.c.l.b16 %v7047
    %v7176 = vunpack.c.l.b16 %v7048
    %v7177 = vunpack.c.l.b16 %v7049
    %v7178 = vunpack.c.l.b16 %v7050
    %v7179 = vunpack.c.l.b16 %v7051
    %v7180 = vunpack.c.l.b16 %v7052
    %v7181 = vunpack.c.l.b16 %v7053
    %v7182 = vunpack.c.l.b16 %v7054
    %v7183 = vunpack.c.l.b16 %v7055
    %v7184 = vunpack.c.l.b16 %v7056
    %v7185 = vunpack.c.l.b16 %v7057
    %v7186 = vunpack.c.l.b16 %v7058
    %v7187 = vunpack.c.l.b16 %v7059
    %v7188 = vunpack.c.l.b16 %v7060
    %v7189 = vunpack.c.l.b16 %v7061
    %v7190 = vunpack.c.l.b16 %v7062
    %v7191 = vunpack.c.l.b16 %v7063
    %v7192 = vunpack.c.l.b16 %v7064
    %v7193 = vunpack.c.l.b16 %v7065
    %v7194 = vunpack.c.l.b16 %v7066
    %v7195 = vunpack.c.l.b16 %v7067
    %v7196 = vunpack.c.l.b16 %v7068
    %v7197 = vunpack.c.l.b16 %v7069
    %v7198 = vunpack.c.l.b16 %v7070
    %v7199 = vunpack.c.l.b16 %v7071
    %v7200 = vunpack.c.l.b16 %v7072
    %v7201 = vunpack.c.l.b16 %v7073
    %v7202 = vunpack.c.l.b16 %v7074
    %v7203 = vunpack.c.l.b16 %v7075
    %v7204 = vunpack.c.l.b16 %v7076
    %v7205 = vunpack.c.l.b16 %v7077
    %v7206 = vunpack.c.l.b16 %v7078
    %v7207 = vunpack.c.l.b16 %v7079
    %v7208 = vunpack.c.l.b16 %v7080
    %v7209 = vunpack.c.l.b16 %v7081
    %v7210 = vunpack.c.l.b16 %v7082
    %v7211 = vunpack.c.l.b16 %v7083
    %v7212 = vunpack.c.l.b16 %v7084
    %v7213 = vunpack.c.l.b16 %v7085
    %v7214 = vunpack.c.l.b16 %v7086
    %v7215 = vpack.c.b16 %v7152, %v7151
    %v7216 = vpack.c.b16 %v7154, %v7153
    %v7217 = vpack.c.b16 %v7156, %v7155
    %v7218 = vpack.c.b16 %v7158, %v7157
    %v7219 = vpack.c.b16 %v7160, %v7159
    %v7220 = vpack.c.b16 %v7162, %v7161
    %v7221 = vpack.c.b16 %v7164, %v7163
    %v7222 = vpack.c.b16 %v7166, %v7165
    %v7223 = vpack.c.b16 %v7168, %v7167
    %v7224 = vpack.c.b16 %v7170, %v7169
    %v7225 = vpack.c.b16 %v7172, %v7171
    %v7226 = vpack.c.b16 %v7174, %v7173
    %v7227 = vpack.c.b16 %v7176, %v7175
    %v7228 = vpack.c.b16 %v7178, %v7177
    %v7229 = vpack.c.b16 %v7180, %v7179
    %v7230 = vpack.c.b16 %v7182, %v7181
    %v7231 = vpack.c.b16 %v7184, %v7183
    %v7232 = vpack.c.b16 %v7186, %v7185
    %v7233 = vpack.c.b16 %v7188, %v7187
    %v7234 = vpack.c.b16 %v7190, %v7189
    %v7235 = vpack.c.b16 %v7192, %v7191
    %v7236 = vpack.c.b16 %v7194, %v7193
    %v7237 = vpack.c.b16 %v7196, %v7195
    %v7238 = vpack.c.b16 %v7198, %v7197
    %v7239 = vpack.c.b16 %v7200, %v7199
    %v7240 = vpack.c.b16 %v7202, %v7201
    %v7241 = vpack.c.b16 %v7204, %v7203
    %v7242 = vpack.c.b16 %v7206, %v7205
    %v7243 = vpack.c.b16 %v7208, %v7207
    %v7244 = vpack.c.b16 %v7210, %v7209
    %v7245 = vpack.c.b16 %v7212, %v7211
    %v7246 = vpack.c.b16 %v7214, %v7213
    %7279 = vmatprep.subr.bf16.mxu0 0
    %7280 = vmatpush1.bf16.msra.mxu0 %v7222
    %7281 = vmatprep.subr.bf16.mxu0 0
    %7282 = vmatpush1.bf16.msra.mxu0 %v7221
    %7283 = vmatprep.subr.bf16.mxu0 0
    %7284 = vmatpush1.bf16.msra.mxu0 %v7220
    %7285 = vmatprep.subr.bf16.mxu0 0
    %7286 = vmatpush1.bf16.msra.mxu0 %v7219
    %7287 = vmatprep.subr.bf16.mxu0 0
    %7288 = vmatpush1.bf16.msra.mxu0 %v7218
    %7289 = vmatprep.subr.bf16.mxu0 0
    %7290 = vmatpush1.bf16.msra.mxu0 %v7217
    %7291 = vmatprep.subr.bf16.mxu0 0
    %7292 = vmatpush1.bf16.msra.mxu0 %v7216
    %7293 = vmatprep.subr.bf16.mxu0 0
    %7294 = vmatpush1.bf16.msra.mxu0 %v7215
    %7295 = vmatprep.subr.bf16.mxu0 0
    %7296 = vmatpush2.bf16.msra.mxu0 %v7230
    %7297 = vmatprep.subr.bf16.mxu0 0
    %7298 = vmatpush2.bf16.msra.mxu0 %v7229
    %7299 = vmatprep.subr.bf16.mxu0 0
    %7300 = vmatpush2.bf16.msra.mxu0 %v7228
    %7301 = vmatprep.subr.bf16.mxu0 0
    %7302 = vmatpush2.bf16.msra.mxu0 %v7227
    %7303 = vmatprep.subr.bf16.mxu0 0
    %7304 = vmatpush2.bf16.msra.mxu0 %v7226
    %7305 = vmatprep.subr.bf16.mxu0 0
    %7306 = vmatpush2.bf16.msra.mxu0 %v7225
    %7307 = vmatprep.subr.bf16.mxu0 0
    %7308 = vmatpush2.bf16.msra.mxu0 %v7224
    %7309 = vmatprep.subr.bf16.mxu0 0
    %7310 = vmatpush2.bf16.msra.mxu0 %v7223
    %7311 = vmatprep.mubr.bf16.mxu0 %v7020
    %7312 = vmatmul.mubr.bf16.gmra.mxu0 %v7019
    %v7313 = vpop.f32.mrf.mxu0
    %v7314 = vadd.f32 0.0, %v7313
    %v7315 = vpop.f32.mrf.mxu0
    %v7316 = vpop.f32.mrf.mxu0
    %v7317 = vadd.f32 0.0, %v7316
    %v7318 = vpop.f32.mrf.mxu0
    %7319 = vdwg.mxu0
    %7320 = vmatprep.subr.bf16.mxu0 0
    %7321 = vmatpush1.bf16.msra.mxu0 %v7238
    %7322 = vmatprep.subr.bf16.mxu0 0
    %7323 = vmatpush1.bf16.msra.mxu0 %v7237
    %7324 = vmatprep.subr.bf16.mxu0 0
    %7325 = vmatpush1.bf16.msra.mxu0 %v7236
    %7326 = vmatprep.subr.bf16.mxu0 0
    %7327 = vmatpush1.bf16.msra.mxu0 %v7235
    %7328 = vmatprep.subr.bf16.mxu0 0
    %7329 = vmatpush1.bf16.msra.mxu0 %v7234
    %7330 = vmatprep.subr.bf16.mxu0 0
    %7331 = vmatpush1.bf16.msra.mxu0 %v7233
    %7332 = vmatprep.subr.bf16.mxu0 0
    %7333 = vmatpush1.bf16.msra.mxu0 %v7232
    %7334 = vmatprep.subr.bf16.mxu0 0
    %7335 = vmatpush1.bf16.msra.mxu0 %v7231
    %7336 = vmatprep.subr.bf16.mxu0 0
    %7337 = vmatpush2.bf16.msra.mxu0 %v7246
    %7338 = vmatprep.subr.bf16.mxu0 0
    %7339 = vmatpush2.bf16.msra.mxu0 %v7245
    %7340 = vmatprep.subr.bf16.mxu0 0
    %7341 = vmatpush2.bf16.msra.mxu0 %v7244
    %7342 = vmatprep.subr.bf16.mxu0 0
    %7343 = vmatpush2.bf16.msra.mxu0 %v7243
    %7344 = vmatprep.subr.bf16.mxu0 0
    %7345 = vmatpush2.bf16.msra.mxu0 %v7242
    %7346 = vmatprep.subr.bf16.mxu0 0
    %7347 = vmatpush2.bf16.msra.mxu0 %v7241
    %7348 = vmatprep.subr.bf16.mxu0 0
    %7349 = vmatpush2.bf16.msra.mxu0 %v7240
    %7350 = vmatprep.subr.bf16.mxu0 0
    %7351 = vmatpush2.bf16.msra.mxu0 %v7239
    %7352 = vmatprep.mubr.bf16.mxu0 %v7022
    %7353 = vmatmul.mubr.bf16.gmra.mxu0 %v7021
    %v7354 = vpop.f32.mrf.mxu0
    %v7355 = vadd.f32 %v7314, %v7354
    %v7356 = vpop.f32.mrf.mxu0
    %v7357 = vpop.f32.mrf.mxu0
    %v7358 = vadd.f32 %v7317, %v7357
    %v7359 = vpop.f32.mrf.mxu0
    %7360 = vdwg.mxu0
    %v7361 = vadd.f32 %v6853, %v7355
    %v7362 = vadd.f32 %v6854, %v7358
    %v7363 = vadd.f32 %v5266, %v7361
    %v7364 = vadd.f32 %v5267, %v7362
    %s7365 = scalar_lea.vmem %s14, 1
    %v7366 = vld [vmem:[%s7365] sm:$0x1]
    %v7368 = vlaneseq
    %v7369 = vshrl.u32 %v7368, 7
    %v7370 = vsub.s32 0, %v7369
    %v7371 = vrot.slane %v7366, %v7370
    %v7373 = vadd.f32 %v7363, %v7371
    %v7374 = vadd.f32 %v7364, %v7371
    %v7375 = vld [vmem:[%s15] sm:$0x1]
    %v7376 = vld [vmem:[%s16] sm:$0x1]
    %v7377 = vsel %vm91, %v7373, 0.0
    %7378 = vadd.xlane.f32.xlu0 %v7377
    %v7379 = vpop.xlane.xlu0 %7378
    %v7380 = vsel %vm91, %v7374, 0.0
    %7381 = vadd.xlane.f32.xlu0 %v7380
    %v7382 = vpop.xlane.xlu0 %7381
    %v7383 = vmul.f32 %v7379, %v98
    %v7384 = vmul.f32 %v7382, %v98
    %v7385 = vsub.f32 %v7373, %v7383
    %v7386 = vsub.f32 %v7374, %v7384
    %v7387 = vmul.f32 %v7385, %v7385
    %v7388 = vmul.f32 %v7386, %v7386
    %v7389 = vsel %vm91, %v7387, 0.0
    %7390 = vadd.xlane.f32.xlu0 %v7389
    %v7391 = vpop.xlane.xlu0 %7390
    %v7392 = vsel %vm91, %v7388, 0.0
    %7393 = vadd.xlane.f32.xlu0 %v7392
    %v7394 = vpop.xlane.xlu0 %7393
    %v7395 = vmul.f32 %v7391, %v111
    %v7396 = vmul.f32 %v7394, %v111
    %v7397 = vrsqrt.pop %v7395
    %v7398 = vmul.f32 %v7395, %v7397
    %vm7399 = vcmp.eq.f32.partialorder %v7395, inf
    %v7400 = vsel %vm7399, %v7395, %v7398
    %vm7401 = vcmp.eq.f32.partialorder %v7395, 0.0
    %v7402 = vand.u32 %v7395, 2147483648
    %v7403 = vsel %vm7401, %v7402, %v7400
    %v7404 = vrsqrt.pop %v7396
    %v7405 = vmul.f32 %v7396, %v7404
    %vm7406 = vcmp.eq.f32.partialorder %v7396, inf
    %v7407 = vsel %vm7406, %v7396, %v7405
    %vm7408 = vcmp.eq.f32.partialorder %v7396, 0.0
    %v7409 = vand.u32 %v7396, 2147483648
    %v7410 = vsel %vm7408, %v7409, %v7407
    %v7411 = vadd.f32 %v7403, 1e-06
    %v7412 = vadd.f32 %v7410, 1e-06
    %v7413 = vrcp.pop %v7411
    %v7414 = vrcp.pop %v7412
    %v7416 = vlaneseq
    %v7417 = vshrl.u32 %v7416, 7
    %v7418 = vsub.s32 0, %v7417
    %v7419 = vrot.slane %v7375, %v7418
    %v7421 = vmul.f32 %v7419, %v7385
    %v7422 = vmul.f32 %v7419, %v7386
    %v7423 = vmul.f32 %v7421, %v7413
    %v7424 = vmul.f32 %v7422, %v7414
    %v7426 = vlaneseq
    %v7427 = vshrl.u32 %v7426, 7
    %v7428 = vsub.s32 0, %v7427
    %v7429 = vrot.slane %v7376, %v7428
    %v7431 = vadd.f32 %v7423, %v7429
    %v7432 = vadd.f32 %v7424, %v7429
    %7433 = vst.msk [vmem:[#allocation2] sm:$0xff] %vm91, %v7431
    %7434 = vst.msk [vmem:[#allocation2 + $0x8] sm:$0xff] %vm91, %v7432
    // Predicated region
    $region70: #{encoder_forward.1} parent=1 // pred_check
      _
    $region71: #{encoder_forward.1} parent=1 // pred_check_branch
      %7436 = sbr.rel (0) target = $region73
    $region72: #{encoder_forward.1} parent=1 // pred_region
      %s7438 = ssub.s32 256, 256
      %7439 = vsyncadd [#allocation3], %s7438
      %s7440 = sshll.u32 [#allocation2], 4
      %s7441 = int_to_ptr.vmem [resolvable:$true] %s7440
      %7446 = dma.vmem_to_hbm [thread:$0]  %s7441, 256, %s17, [#allocation3], 128, 128, 8
    $region73: #{encoder_forward.1} parent=1 // pred_fallthru
      _
    // Predicated region
    $region74: #{encoder_forward.1} parent=1 // pred_check
      _
    $region75: #{encoder_forward.1} parent=1 // pred_check_branch
      %7448 = sbr.rel (0) target = $region77
    $region76: #{encoder_forward.1} parent=1 // pred_region
      %7449 = dma.done [#allocation3], 256
    $region77: #{encoder_forward.1} parent=1 // pred_fallthru
      _
    %7450 = vsyncpa [#allocation3], 1

</llo_original>
